<compile_context>
chip_gen: v6e
topology: v6e:2x2x1
jax: 0.10.0
libtpu: 0.0.40
codegen_flags: <defaults>
</compile_context>

<pallas_src>
import jax
import jax.numpy as jnp
from jax import lax
from jax.experimental import pallas as pl
from jax.experimental.pallas import tpu as pltpu

BN_EPS = 1e-5        # PyTorch BatchNorm default eps
NORM_EPS = 1e-12     # F.normalize default eps

B, C_IN, H, W = 2, 4, 16, 16
HW = H * W
N_ROWS = B * HW      # 512 flattened spatial rows
C_MID = 256
C_FEAT = 2048        # encoder output dim required by Linear(2048, 512)
HIDDEN = 512
FEATURE_DIM = 128


def _pick_tc():
    """Per-generation channel block size (see perf review)."""
    try:
        kind = jax.devices()[0].device_kind.lower()
    except Exception:
        return 1024
    if "v5 lite" in kind or "v5e" in kind or "v5lite" in kind:
        return 512       # keep 4-step overlap of the ~3 MiB weight stream
    if "v7" in kind:
        return 2048      # fully resident, single grid step (overhead-bound)
    return 1024          # v6e / default: fewer per-step overheads


def _bn_fold(x, gamma, beta):
    # Training-mode batch stats (biased variance), single pass, folded into one
    # fused scale/shift application. Matches nn.BatchNorm training semantics.
    mu = jnp.mean(x, axis=0, keepdims=True)
    var = jnp.maximum(jnp.mean(x * x, axis=0, keepdims=True) - mu * mu, 0.0)
    scale = gamma * lax.rsqrt(var + BN_EPS)
    shift = beta - mu * scale
    return x * scale + shift


def barlow_twins_forward(x_nchw, params):
    tc = _pick_tc()
    nblk = C_FEAT // tc

    b, c, h, w = x_nchw.shape
    n = b * h * w
    # NCHW -> NHWC -> [B*H*W, C]; tiny (8 KiB), so the cast stays here.
    x_flat = jnp.transpose(x_nchw, (0, 2, 3, 1)).reshape(n, c).astype(jnp.bfloat16)

    # BN params of the wide conv, reshaped so the kernel row-indexes them with
    # the grid index (resident, no per-step DMA).
    cg2_r = params["cg2"].reshape(nblk, tc)
    cb2_r = params["cb2"].reshape(nblk, tc)

    def model_kernel(x_ref, cw1_ref, cg1_ref, cb1_ref,
                     cw2_ref, cg2_ref, cb2_ref,
                     gw1_ref, gg1_ref, gb1_ref,
                     gw2_ref, gb2_ref,
                     feat_ref, nsq_ref, out_ref,
                     h1_s, z_s):
        i = pl.program_id(0)
        last = pl.num_programs(0) - 1

        @pl.when(i == 0)
        def _():
            # Encoder stage 1 (tiny): 1x1 conv -> BN2d -> ReLU, kept resident.
            h1 = jnp.dot(x_ref[...], cw1_ref[...],
                         preferred_element_type=jnp.float32)
            h1 = jnp.maximum(_bn_fold(h1, cg1_ref[...], cb1_ref[...]), 0.0)
            h1_s[...] = h1.astype(jnp.bfloat16)
            z_s[...] = jnp.zeros_like(z_s)
            nsq_ref[...] = jnp.zeros_like(nsq_ref)

        # Encoder stage 2 on this channel block: 1x1 conv -> BN2d -> ReLU.
        h2 = jnp.dot(h1_s[...], cw2_ref[...],
                     preferred_element_type=jnp.float32)          # [N_ROWS, tc] f32
        h2 = jnp.maximum(_bn_fold(h2, cg2_ref[i], cb2_ref[i]), 0.0)

        # Global average pool over H*W per sample (sublane-aligned reshape).
        fblk = jnp.mean(h2.reshape(B, HW, tc), axis=1)            # [B, tc] f32

        # Per-block writeback of the unnormalized feature; nsq accumulates in
        # the (VMEM-resident) output block.
        feat_ref[...] = fblk
        nsq_ref[...] += jnp.sum(fblk * fblk, axis=-1, keepdims=True)

        # Accumulate first projection: z += feature_block @ gw1_block (bf16 MXU).
        z_s[...] += jnp.dot(fblk.astype(jnp.bfloat16), gw1_ref[...],
                            preferred_element_type=jnp.float32)

        @pl.when(i == last)
        def _():
            # Projection head tail: BN1d -> ReLU -> Linear(512, feature_dim).
            z = jnp.maximum(_bn_fold(z_s[...], gg1_ref[...], gb1_ref[...]), 0.0)
            out = jnp.dot(z.astype(jnp.bfloat16), gw2_ref[...],
                          preferred_element_type=jnp.float32) + gb2_ref[...]
            # F.normalize(dim=-1): x / max(||x||, eps) == x * rsqrt(max(||x||^2, eps^2))
            onorm = jnp.sum(out * out, axis=-1, keepdims=True)
            out_ref[...] = out * lax.rsqrt(jnp.maximum(onorm, NORM_EPS * NORM_EPS))

    inputs = (
        x_flat,
        params["cw1"], params["cg1"], params["cb1"],
        params["cw2"], cg2_r, cb2_r,
        params["gw1"], params["gg1"], params["gb1"],
        params["gw2"], params["gb2"],
    )

    def full_spec(a):
        return pl.BlockSpec(a.shape, lambda i, _nd=len(a.shape): (0,) * _nd)

    in_specs = [
        full_spec(inputs[0]),                                  # x (resident)
        full_spec(inputs[1]), full_spec(inputs[2]), full_spec(inputs[3]),
        pl.BlockSpec((C_MID, tc), lambda i: (0, i)),           # cw2 block (streamed)
        full_spec(cg2_r), full_spec(cb2_r),                    # BN params (resident)
        pl.BlockSpec((tc, HIDDEN), lambda i: (i, 0)),          # gw1 block (streamed)
        full_spec(inputs[8]), full_spec(inputs[9]),            # gg1, gb1
        full_spec(inputs[10]), full_spec(inputs[11]),          # gw2, gb2
    ]

    feat, nsq, out_norm = pl.pallas_call(
        model_kernel,
        out_shape=(
            jax.ShapeDtypeStruct((b, C_FEAT), jnp.float32),     # unnormalized feature
            jax.ShapeDtypeStruct((b, 1), jnp.float32),          # ||feature||^2
            jax.ShapeDtypeStruct((b, FEATURE_DIM), jnp.float32),
        ),
        grid=(nblk,),
        in_specs=in_specs,
        out_specs=(
            pl.BlockSpec((b, tc), lambda i: (0, i)),            # blocked writeback
            pl.BlockSpec((b, 1), lambda i: (0, 0)),             # resident accumulator
            pl.BlockSpec((b, FEATURE_DIM), lambda i: (0, 0)),
        ),
        scratch_shapes=[
            pltpu.VMEM((n, C_MID), jnp.bfloat16),   # resident h1 activations
            pltpu.VMEM((b, HIDDEN), jnp.float32),   # z accumulator
        ],
        compiler_params=pltpu.CompilerParams(
            # Axis carries accumulators + last-step epilogue -> "arbitrary".
            dimension_semantics=("arbitrary",),
            vmem_limit_bytes=32 << 20,
        ),
    )(*inputs)

    # F.normalize(feature, dim=-1) as a trivial [B, 2048] rescale (32 KiB).
    feat_norm = feat * lax.rsqrt(jnp.maximum(nsq, NORM_EPS * NORM_EPS))
    return feat_norm, out_norm


def init_params(key):
    ks = jax.random.split(key, 5)
    return {
        # Encoder stand-in (1x1 convs as [Cin, Cout] matrices, pre-cast to bf16)
        # + BN params (f32).
        "cw1": (jax.random.normal(ks[0], (C_IN, C_MID), jnp.float32) * 0.05
                ).astype(jnp.bfloat16),
        "cg1": jnp.ones((1, C_MID), jnp.float32),
        "cb1": jnp.zeros((1, C_MID), jnp.float32),
        "cw2": (jax.random.normal(ks[1], (C_MID, C_FEAT), jnp.float32) * 0.05
                ).astype(jnp.bfloat16),
        "cg2": jnp.ones((1, C_FEAT), jnp.float32),
        "cb2": jnp.zeros((1, C_FEAT), jnp.float32),
        # Projection head g: Linear(2048,512,bias=False) stored as [in, out].
        "gw1": (jax.random.normal(ks[2], (C_FEAT, HIDDEN), jnp.float32) * 0.02
                ).astype(jnp.bfloat16),
        "gg1": jnp.ones((1, HIDDEN), jnp.float32),
        "gb1": jnp.zeros((1, HIDDEN), jnp.float32),
        # Linear(512, feature_dim, bias=True).
        "gw2": (jax.random.normal(ks[3], (HIDDEN, FEATURE_DIM), jnp.float32) * 0.02
                ).astype(jnp.bfloat16),
        "gb2": jax.random.normal(ks[4], (1, FEATURE_DIM), jnp.float32) * 0.01,
    }


if __name__ == "__main__":
    key = jax.random.PRNGKey(0)
    k_x, k_p = jax.random.split(key)
    x = jax.random.normal(k_x, (B, C_IN, H, W), jnp.float32)
    params = init_params(k_p)

    feat_norm, out_norm = jax.jit(barlow_twins_forward)(x, params)
    jax.block_until_ready((feat_norm, out_norm))

    assert feat_norm.shape == (B, C_FEAT)
    assert out_norm.shape == (B, FEATURE_DIM)
    # sanity: rows are unit-norm after F.normalize (small tolerance for rsqrt)
    assert bool(jnp.all(jnp.abs(jnp.sum(feat_norm ** 2, axis=-1) - 1.0) < 2e-3))
    assert bool(jnp.all(jnp.abs(jnp.sum(out_norm ** 2, axis=-1) - 1.0) < 2e-3))

    print("KERNEL_OK")
</pallas_src>

<mosaic_0001>
module attributes {stable_mosaic.version = 11 : i64} {
  func.func @model_kernel(%arg0: i32, %arg1: memref<512x4xbf16, #tpu.memory_space<vmem>>, %arg2: memref<4x256xbf16, #tpu.memory_space<vmem>>, %arg3: memref<1x256xf32, #tpu.memory_space<vmem>>, %arg4: memref<1x256xf32, #tpu.memory_space<vmem>>, %arg5: memref<256x1024xbf16, #tpu.memory_space<vmem>>, %arg6: memref<2x1024xf32, #tpu.memory_space<vmem>>, %arg7: memref<2x1024xf32, #tpu.memory_space<vmem>>, %arg8: memref<1024x512xbf16, #tpu.memory_space<vmem>>, %arg9: memref<1x512xf32, #tpu.memory_space<vmem>>, %arg10: memref<1x512xf32, #tpu.memory_space<vmem>>, %arg11: memref<512x128xbf16, #tpu.memory_space<vmem>>, %arg12: memref<1x128xf32, #tpu.memory_space<vmem>>, %arg13: memref<2x1024xf32, #tpu.memory_space<vmem>>, %arg14: memref<2x1xf32, #tpu.memory_space<vmem>>, %arg15: memref<2x128xf32, #tpu.memory_space<vmem>>, %arg16: memref<512x256xbf16, #tpu.memory_space<vmem>>, %arg17: memref<2x512xf32, #tpu.memory_space<vmem>>) attributes {dimension_semantics = [#tpu.dimension_semantics<arbitrary>], iteration_bounds = array<i64: 2>, scalar_prefetch = 0 : i64, scratch_operands = 2 : i64, tpu.core_type = #tpu.core_type<tc>, window_params = [{pipeline_mode = #tpu.pipeline_mode<synchronous>, transform_indices = @transform_0, window_bounds = array<i64: 512, 4>}, {pipeline_mode = #tpu.pipeline_mode<synchronous>, transform_indices = @transform_1, window_bounds = array<i64: 4, 256>}, {pipeline_mode = #tpu.pipeline_mode<synchronous>, transform_indices = @transform_2, window_bounds = array<i64: 1, 256>}, {pipeline_mode = #tpu.pipeline_mode<synchronous>, transform_indices = @transform_3, window_bounds = array<i64: 1, 256>}, {transform_indices = @transform_4, window_bounds = array<i64: 256, 1024>}, {pipeline_mode = #tpu.pipeline_mode<synchronous>, transform_indices = @transform_5, window_bounds = array<i64: 2, 1024>}, {pipeline_mode = #tpu.pipeline_mode<synchronous>, transform_indices = @transform_6, window_bounds = array<i64: 2, 1024>}, {transform_indices = @transform_7, window_bounds = array<i64: 1024, 512>}, {pipeline_mode = #tpu.pipeline_mode<synchronous>, transform_indices = @transform_8, window_bounds = array<i64: 1, 512>}, {pipeline_mode = #tpu.pipeline_mode<synchronous>, transform_indices = @transform_9, window_bounds = array<i64: 1, 512>}, {pipeline_mode = #tpu.pipeline_mode<synchronous>, transform_indices = @transform_10, window_bounds = array<i64: 512, 128>}, {pipeline_mode = #tpu.pipeline_mode<synchronous>, transform_indices = @transform_11, window_bounds = array<i64: 1, 128>}, {transform_indices = @transform_12, window_bounds = array<i64: 2, 1024>}, {pipeline_mode = #tpu.pipeline_mode<synchronous>, transform_indices = @transform_13, window_bounds = array<i64: 2, 1>}, {pipeline_mode = #tpu.pipeline_mode<synchronous>, transform_indices = @transform_14, window_bounds = array<i64: 2, 128>}]} {
    %c0_i32 = arith.constant 0 : i32
    %0 = arith.cmpi eq, %arg0, %c0_i32 : i32
    %1 = arith.extui %0 : i1 to i32
    %c0_i32_0 = arith.constant 0 : i32
    %2 = arith.cmpi ne, %1, %c0_i32_0 : i32
    scf.if %2 {
      %c0_30 = arith.constant 0 : index
      %c0_31 = arith.constant 0 : index
      %59 = vector.load %arg1[%c0_30, %c0_31] : memref<512x4xbf16, #tpu.memory_space<vmem>>, vector<512x4xbf16>
      %c0_32 = arith.constant 0 : index
      %c0_33 = arith.constant 0 : index
      %60 = vector.load %arg2[%c0_32, %c0_33] : memref<4x256xbf16, #tpu.memory_space<vmem>>, vector<4x256xbf16>
      %cst_34 = arith.constant dense<0.000000e+00> : vector<512x256xf32>
      %61 = tpu.matmul %59, %60, %cst_34 {dimension_numbers = #tpu.dot_dimension_numbers<[1], [0], [0], [1], [0, 0, 1, 1], [], []>} : vector<512x4xbf16>, vector<4x256xbf16>, vector<512x256xf32> -> vector<512x256xf32>
      %c0_35 = arith.constant 0 : index
      %c0_36 = arith.constant 0 : index
      %62 = vector.load %arg3[%c0_35, %c0_36] : memref<1x256xf32, #tpu.memory_space<vmem>>, vector<1x256xf32>
      %c0_37 = arith.constant 0 : index
      %c0_38 = arith.constant 0 : index
      %63 = vector.load %arg4[%c0_37, %c0_38] : memref<1x256xf32, #tpu.memory_space<vmem>>, vector<1x256xf32>
      %cst_39 = arith.constant dense<0.000000e+00> : vector<256xf32>
      %64 = vector.multi_reduction <add>, %61, %cst_39 [0] : vector<512x256xf32> to vector<256xf32>
      %65 = vector.shape_cast %64 : vector<256xf32> to vector<1x256xf32>
      %cst_40 = arith.constant 5.120000e+02 : f32
      %66 = vector.broadcast %cst_40 : f32 to vector<1x256xf32>
      %67 = arith.divf %65, %66 : vector<1x256xf32>
      %68 = arith.mulf %61, %61 : vector<512x256xf32>
      %cst_41 = arith.constant dense<0.000000e+00> : vector<256xf32>
      %69 = vector.multi_reduction <add>, %68, %cst_41 [0] : vector<512x256xf32> to vector<256xf32>
      %70 = vector.shape_cast %69 : vector<256xf32> to vector<1x256xf32>
      %cst_42 = arith.constant 5.120000e+02 : f32
      %71 = vector.broadcast %cst_42 : f32 to vector<1x256xf32>
      %72 = arith.divf %70, %71 : vector<1x256xf32>
      %73 = arith.mulf %67, %67 : vector<1x256xf32>
      %74 = arith.subf %72, %73 : vector<1x256xf32>
      %cst_43 = arith.constant 0.000000e+00 : f32
      %75 = vector.broadcast %cst_43 : f32 to vector<1x256xf32>
      %76 = arith.maximumf %74, %75 : vector<1x256xf32>
      %cst_44 = arith.constant 9.99999974E-6 : f32
      %77 = vector.broadcast %cst_44 : f32 to vector<1x256xf32>
      %78 = arith.addf %76, %77 : vector<1x256xf32>
      %79 = math.rsqrt %78 : vector<1x256xf32>
      %80 = arith.mulf %62, %79 : vector<1x256xf32>
      %81 = arith.mulf %67, %80 : vector<1x256xf32>
      %82 = arith.subf %63, %81 : vector<1x256xf32>
      %83 = vector.broadcast %80 : vector<1x256xf32> to vector<512x256xf32>
      %84 = arith.mulf %61, %83 : vector<512x256xf32>
      %85 = vector.broadcast %82 : vector<1x256xf32> to vector<512x256xf32>
      %86 = arith.addf %84, %85 : vector<512x256xf32>
      %cst_45 = arith.constant 0.000000e+00 : f32
      %87 = vector.broadcast %cst_45 : f32 to vector<512x256xf32>
      %88 = arith.maximumf %86, %87 : vector<512x256xf32>
      %89 = arith.truncf %88 : vector<512x256xf32> to vector<512x256xbf16>
      %c0_46 = arith.constant 0 : index
      %c0_47 = arith.constant 0 : index
      %90 = vector.load %arg16[%c0_46, %c0_47] : memref<512x256xbf16, #tpu.memory_space<vmem>>, vector<512x256xbf16>
      tpu.vector_store %arg16[%c0_46, %c0_47], %89 {strides = array<i32>} : memref<512x256xbf16, #tpu.memory_space<vmem>>, vector<512x256xbf16>,
      %cst_48 = arith.constant 0.000000e+00 : f32
      %91 = vector.broadcast %cst_48 : f32 to vector<2x512xf32>
      %c0_49 = arith.constant 0 : index
      %c0_50 = arith.constant 0 : index
      %92 = vector.load %arg17[%c0_49, %c0_50] : memref<2x512xf32, #tpu.memory_space<vmem>>, vector<2x512xf32>
      tpu.vector_store %arg17[%c0_49, %c0_50], %91 {strides = array<i32>} : memref<2x512xf32, #tpu.memory_space<vmem>>, vector<2x512xf32>,
      %cst_51 = arith.constant 0.000000e+00 : f32
      %93 = vector.broadcast %cst_51 : f32 to vector<2x1xf32>
      %c0_52 = arith.constant 0 : index
      %c0_53 = arith.constant 0 : index
      %94 = vector.load %arg14[%c0_52, %c0_53] : memref<2x1xf32, #tpu.memory_space<vmem>>, vector<2x1xf32>
      tpu.vector_store %arg14[%c0_52, %c0_53], %93 {strides = array<i32>} : memref<2x1xf32, #tpu.memory_space<vmem>>, vector<2x1xf32>,
    } else {
    }
    %c0 = arith.constant 0 : index
    %c0_1 = arith.constant 0 : index
    %3 = vector.load %arg16[%c0, %c0_1] : memref<512x256xbf16, #tpu.memory_space<vmem>>, vector<512x256xbf16>
    %c0_2 = arith.constant 0 : index
    %c0_3 = arith.constant 0 : index
    %4 = vector.load %arg5[%c0_2, %c0_3] : memref<256x1024xbf16, #tpu.memory_space<vmem>>, vector<256x1024xbf16>
    %cst = arith.constant dense<0.000000e+00> : vector<512x1024xf32>
    %5 = tpu.matmul %3, %4, %cst {dimension_numbers = #tpu.dot_dimension_numbers<[1], [0], [0], [1], [0, 0, 1, 1], [], []>} : vector<512x256xbf16>, vector<256x1024xbf16>, vector<512x1024xf32> -> vector<512x1024xf32>
    %6 = arith.index_cast %arg0 : i32 to index
    %c0_4 = arith.constant 0 : index
    %7 = vector.load %arg6[%6, %c0_4] : memref<2x1024xf32, #tpu.memory_space<vmem>>, vector<1x1024xf32>
    %8 = vector.shape_cast %7 : vector<1x1024xf32> to vector<1024xf32>
    %9 = arith.index_cast %arg0 : i32 to index
    %c0_5 = arith.constant 0 : index
    %10 = vector.load %arg7[%9, %c0_5] : memref<2x1024xf32, #tpu.memory_space<vmem>>, vector<1x1024xf32>
    %11 = vector.shape_cast %10 : vector<1x1024xf32> to vector<1024xf32>
    %cst_6 = arith.constant dense<0.000000e+00> : vector<1024xf32>
    %12 = vector.multi_reduction <add>, %5, %cst_6 [0] : vector<512x1024xf32> to vector<1024xf32>
    %13 = vector.shape_cast %12 : vector<1024xf32> to vector<1x1024xf32>
    %cst_7 = arith.constant 5.120000e+02 : f32
    %14 = vector.broadcast %cst_7 : f32 to vector<1x1024xf32>
    %15 = arith.divf %13, %14 : vector<1x1024xf32>
    %16 = arith.mulf %5, %5 : vector<512x1024xf32>
    %cst_8 = arith.constant dense<0.000000e+00> : vector<1024xf32>
    %17 = vector.multi_reduction <add>, %16, %cst_8 [0] : vector<512x1024xf32> to vector<1024xf32>
    %18 = vector.shape_cast %17 : vector<1024xf32> to vector<1x1024xf32>
    %cst_9 = arith.constant 5.120000e+02 : f32
    %19 = vector.broadcast %cst_9 : f32 to vector<1x1024xf32>
    %20 = arith.divf %18, %19 : vector<1x1024xf32>
    %21 = arith.mulf %15, %15 : vector<1x1024xf32>
    %22 = arith.subf %20, %21 : vector<1x1024xf32>
    %cst_10 = arith.constant 0.000000e+00 : f32
    %23 = vector.broadcast %cst_10 : f32 to vector<1x1024xf32>
    %24 = arith.maximumf %22, %23 : vector<1x1024xf32>
    %cst_11 = arith.constant 9.99999974E-6 : f32
    %25 = vector.broadcast %cst_11 : f32 to vector<1x1024xf32>
    %26 = arith.addf %24, %25 : vector<1x1024xf32>
    %27 = math.rsqrt %26 : vector<1x1024xf32>
    %28 = vector.shape_cast %8 : vector<1024xf32> to vector<1x1024xf32>
    %29 = arith.mulf %28, %27 : vector<1x1024xf32>
    %30 = arith.mulf %15, %29 : vector<1x1024xf32>
    %31 = vector.shape_cast %11 : vector<1024xf32> to vector<1x1024xf32>
    %32 = arith.subf %31, %30 : vector<1x1024xf32>
    %33 = vector.broadcast %29 : vector<1x1024xf32> to vector<512x1024xf32>
    %34 = arith.mulf %5, %33 : vector<512x1024xf32>
    %35 = vector.broadcast %32 : vector<1x1024xf32> to vector<512x1024xf32>
    %36 = arith.addf %34, %35 : vector<512x1024xf32>
    %cst_12 = arith.constant 0.000000e+00 : f32
    %37 = vector.broadcast %cst_12 : f32 to vector<512x1024xf32>
    %38 = arith.maximumf %36, %37 : vector<512x1024xf32>
    %39 = vector.shape_cast %38 : vector<512x1024xf32> to vector<2x256x1024xf32>
    %cst_13 = arith.constant dense<0.000000e+00> : vector<2x1024xf32>
    %40 = vector.multi_reduction <add>, %39, %cst_13 [1] : vector<2x256x1024xf32> to vector<2x1024xf32>
    %cst_14 = arith.constant 2.560000e+02 : f32
    %41 = vector.broadcast %cst_14 : f32 to vector<2x1024xf32>
    %42 = arith.divf %40, %41 : vector<2x1024xf32>
    %c0_15 = arith.constant 0 : index
    %c0_16 = arith.constant 0 : index
    %43 = vector.load %arg13[%c0_15, %c0_16] : memref<2x1024xf32, #tpu.memory_space<vmem>>, vector<2x1024xf32>
    tpu.vector_store %arg13[%c0_15, %c0_16], %42 {strides = array<i32>} : memref<2x1024xf32, #tpu.memory_space<vmem>>, vector<2x1024xf32>,
    %c0_17 = arith.constant 0 : index
    %c0_18 = arith.constant 0 : index
    %44 = vector.load %arg14[%c0_17, %c0_18] : memref<2x1xf32, #tpu.memory_space<vmem>>, vector<2x1xf32>
    %45 = arith.mulf %42, %42 : vector<2x1024xf32>
    %cst_19 = arith.constant dense<0.000000e+00> : vector<2xf32>
    %46 = vector.multi_reduction <add>, %45, %cst_19 [1] : vector<2x1024xf32> to vector<2xf32>
    %47 = vector.shape_cast %46 : vector<2xf32> to vector<2x1xf32>
    %48 = arith.addf %44, %47 : vector<2x1xf32>
    %c0_20 = arith.constant 0 : index
    %c0_21 = arith.constant 0 : index
    %49 = vector.load %arg14[%c0_20, %c0_21] : memref<2x1xf32, #tpu.memory_space<vmem>>, vector<2x1xf32>
    tpu.vector_store %arg14[%c0_20, %c0_21], %48 {strides = array<i32>} : memref<2x1xf32, #tpu.memory_space<vmem>>, vector<2x1xf32>,
    %c0_22 = arith.constant 0 : index
    %c0_23 = arith.constant 0 : index
    %50 = vector.load %arg17[%c0_22, %c0_23] : memref<2x512xf32, #tpu.memory_space<vmem>>, vector<2x512xf32>
    %51 = arith.truncf %42 : vector<2x1024xf32> to vector<2x1024xbf16>
    %c0_24 = arith.constant 0 : index
    %c0_25 = arith.constant 0 : index
    %52 = vector.load %arg8[%c0_24, %c0_25] : memref<1024x512xbf16, #tpu.memory_space<vmem>>, vector<1024x512xbf16>
    %cst_26 = arith.constant dense<0.000000e+00> : vector<2x512xf32>
    %53 = tpu.matmul %51, %52, %cst_26 {dimension_numbers = #tpu.dot_dimension_numbers<[1], [0], [0], [1], [0, 0, 1, 1], [], []>} : vector<2x1024xbf16>, vector<1024x512xbf16>, vector<2x512xf32> -> vector<2x512xf32>
    %54 = arith.addf %50, %53 : vector<2x512xf32>
    %c0_27 = arith.constant 0 : index
    %c0_28 = arith.constant 0 : index
    %55 = vector.load %arg17[%c0_27, %c0_28] : memref<2x512xf32, #tpu.memory_space<vmem>>, vector<2x512xf32>
    tpu.vector_store %arg17[%c0_27, %c0_28], %54 {strides = array<i32>} : memref<2x512xf32, #tpu.memory_space<vmem>>, vector<2x512xf32>,
    %c1_i32 = arith.constant 1 : i32
    %56 = arith.cmpi eq, %arg0, %c1_i32 : i32
    %57 = arith.extui %56 : i1 to i32
    %c0_i32_29 = arith.constant 0 : i32
    %58 = arith.cmpi ne, %57, %c0_i32_29 : i32
    scf.if %58 {
      %c0_30 = arith.constant 0 : index
      %c0_31 = arith.constant 0 : index
      %59 = vector.load %arg17[%c0_30, %c0_31] : memref<2x512xf32, #tpu.memory_space<vmem>>, vector<2x512xf32>
      %c0_32 = arith.constant 0 : index
      %c0_33 = arith.constant 0 : index
      %60 = vector.load %arg9[%c0_32, %c0_33] : memref<1x512xf32, #tpu.memory_space<vmem>>, vector<1x512xf32>
      %c0_34 = arith.constant 0 : index
      %c0_35 = arith.constant 0 : index
      %61 = vector.load %arg10[%c0_34, %c0_35] : memref<1x512xf32, #tpu.memory_space<vmem>>, vector<1x512xf32>
      %cst_36 = arith.constant dense<0.000000e+00> : vector<512xf32>
      %62 = vector.multi_reduction <add>, %59, %cst_36 [0] : vector<2x512xf32> to vector<512xf32>
      %63 = vector.shape_cast %62 : vector<512xf32> to vector<1x512xf32>
      %cst_37 = arith.constant 2.000000e+00 : f32
      %64 = vector.broadcast %cst_37 : f32 to vector<1x512xf32>
      %65 = arith.divf %63, %64 : vector<1x512xf32>
      %66 = arith.mulf %59, %59 : vector<2x512xf32>
      %cst_38 = arith.constant dense<0.000000e+00> : vector<512xf32>
      %67 = vector.multi_reduction <add>, %66, %cst_38 [0] : vector<2x512xf32> to vector<512xf32>
      %68 = vector.shape_cast %67 : vector<512xf32> to vector<1x512xf32>
      %cst_39 = arith.constant 2.000000e+00 : f32
      %69 = vector.broadcast %cst_39 : f32 to vector<1x512xf32>
      %70 = arith.divf %68, %69 : vector<1x512xf32>
      %71 = arith.mulf %65, %65 : vector<1x512xf32>
      %72 = arith.subf %70, %71 : vector<1x512xf32>
      %cst_40 = arith.constant 0.000000e+00 : f32
      %73 = vector.broadcast %cst_40 : f32 to vector<1x512xf32>
      %74 = arith.maximumf %72, %73 : vector<1x512xf32>
      %cst_41 = arith.constant 9.99999974E-6 : f32
      %75 = vector.broadcast %cst_41 : f32 to vector<1x512xf32>
      %76 = arith.addf %74, %75 : vector<1x512xf32>
      %77 = math.rsqrt %76 : vector<1x512xf32>
      %78 = arith.mulf %60, %77 : vector<1x512xf32>
      %79 = arith.mulf %65, %78 : vector<1x512xf32>
      %80 = arith.subf %61, %79 : vector<1x512xf32>
      %81 = vector.broadcast %78 : vector<1x512xf32> to vector<2x512xf32>
      %82 = arith.mulf %59, %81 : vector<2x512xf32>
      %83 = vector.broadcast %80 : vector<1x512xf32> to vector<2x512xf32>
      %84 = arith.addf %82, %83 : vector<2x512xf32>
      %cst_42 = arith.constant 0.000000e+00 : f32
      %85 = vector.broadcast %cst_42 : f32 to vector<2x512xf32>
      %86 = arith.maximumf %84, %85 : vector<2x512xf32>
      %87 = arith.truncf %86 : vector<2x512xf32> to vector<2x512xbf16>
      %c0_43 = arith.constant 0 : index
      %c0_44 = arith.constant 0 : index
      %88 = vector.load %arg11[%c0_43, %c0_44] : memref<512x128xbf16, #tpu.memory_space<vmem>>, vector<512x128xbf16>
      %cst_45 = arith.constant dense<0.000000e+00> : vector<2x128xf32>
      %89 = tpu.matmul %87, %88, %cst_45 {dimension_numbers = #tpu.dot_dimension_numbers<[1], [0], [0], [1], [0, 0, 1, 1], [], []>} : vector<2x512xbf16>, vector<512x128xbf16>, vector<2x128xf32> -> vector<2x128xf32>
      %c0_46 = arith.constant 0 : index
      %c0_47 = arith.constant 0 : index
      %90 = vector.load %arg12[%c0_46, %c0_47] : memref<1x128xf32, #tpu.memory_space<vmem>>, vector<1x128xf32>
      %91 = vector.broadcast %90 : vector<1x128xf32> to vector<2x128xf32>
      %92 = arith.addf %89, %91 : vector<2x128xf32>
      %93 = arith.mulf %92, %92 : vector<2x128xf32>
      %cst_48 = arith.constant dense<0.000000e+00> : vector<2xf32>
      %94 = vector.multi_reduction <add>, %93, %cst_48 [1] : vector<2x128xf32> to vector<2xf32>
      %95 = vector.shape_cast %94 : vector<2xf32> to vector<2x1xf32>
      %cst_49 = arith.constant 1.000000e-24 : f32
      %96 = vector.broadcast %cst_49 : f32 to vector<2x1xf32>
      %97 = arith.maximumf %95, %96 : vector<2x1xf32>
      %98 = math.rsqrt %97 : vector<2x1xf32>
      %99 = vector.broadcast %98 : vector<2x1xf32> to vector<2x128xf32>
      %100 = arith.mulf %92, %99 : vector<2x128xf32>
      %c0_50 = arith.constant 0 : index
      %c0_51 = arith.constant 0 : index
      %101 = vector.load %arg15[%c0_50, %c0_51] : memref<2x128xf32, #tpu.memory_space<vmem>>, vector<2x128xf32>
      tpu.vector_store %arg15[%c0_50, %c0_51], %100 {strides = array<i32>} : memref<2x128xf32, #tpu.memory_space<vmem>>, vector<2x128xf32>,
    } else {
    }
    return
  }
  func.func @transform_0(%arg0: i32) -> (i32, i32) {
    %c0_i32 = arith.constant 0 : i32
    %c0_i32_0 = arith.constant 0 : i32
    %c0_i32_1 = arith.constant 0 : i32
    return %c0_i32, %c0_i32_0 : i32, i32
  }
  func.func @transform_1(%arg0: i32) -> (i32, i32) {
    %c0_i32 = arith.constant 0 : i32
    %c0_i32_0 = arith.constant 0 : i32
    %c0_i32_1 = arith.constant 0 : i32
    return %c0_i32, %c0_i32_0 : i32, i32
  }
  func.func @transform_2(%arg0: i32) -> (i32, i32) {
    %c0_i32 = arith.constant 0 : i32
    %c0_i32_0 = arith.constant 0 : i32
    %c0_i32_1 = arith.constant 0 : i32
    return %c0_i32, %c0_i32_0 : i32, i32
  }
  func.func @transform_3(%arg0: i32) -> (i32, i32) {
    %c0_i32 = arith.constant 0 : i32
    %c0_i32_0 = arith.constant 0 : i32
    %c0_i32_1 = arith.constant 0 : i32
    return %c0_i32, %c0_i32_0 : i32, i32
  }
  func.func @transform_4(%arg0: i32) -> (i32, i32) {
    %c0_i32 = arith.constant 0 : i32
    %c0_i32_0 = arith.constant 0 : i32
    return %c0_i32, %arg0 : i32, i32
  }
  func.func @transform_5(%arg0: i32) -> (i32, i32) {
    %c0_i32 = arith.constant 0 : i32
    %c0_i32_0 = arith.constant 0 : i32
    %c0_i32_1 = arith.constant 0 : i32
    return %c0_i32, %c0_i32_0 : i32, i32
  }
  func.func @transform_6(%arg0: i32) -> (i32, i32) {
    %c0_i32 = arith.constant 0 : i32
    %c0_i32_0 = arith.constant 0 : i32
    %c0_i32_1 = arith.constant 0 : i32
    return %c0_i32, %c0_i32_0 : i32, i32
  }
  func.func @transform_7(%arg0: i32) -> (i32, i32) {
    %c0_i32 = arith.constant 0 : i32
    %c0_i32_0 = arith.constant 0 : i32
    return %arg0, %c0_i32 : i32, i32
  }
  func.func @transform_8(%arg0: i32) -> (i32, i32) {
    %c0_i32 = arith.constant 0 : i32
    %c0_i32_0 = arith.constant 0 : i32
    %c0_i32_1 = arith.constant 0 : i32
    return %c0_i32, %c0_i32_0 : i32, i32
  }
  func.func @transform_9(%arg0: i32) -> (i32, i32) {
    %c0_i32 = arith.constant 0 : i32
    %c0_i32_0 = arith.constant 0 : i32
    %c0_i32_1 = arith.constant 0 : i32
    return %c0_i32, %c0_i32_0 : i32, i32
  }
  func.func @transform_10(%arg0: i32) -> (i32, i32) {
    %c0_i32 = arith.constant 0 : i32
    %c0_i32_0 = arith.constant 0 : i32
    %c0_i32_1 = arith.constant 0 : i32
    return %c0_i32, %c0_i32_0 : i32, i32
  }
  func.func @transform_11(%arg0: i32) -> (i32, i32) {
    %c0_i32 = arith.constant 0 : i32
    %c0_i32_0 = arith.constant 0 : i32
    %c0_i32_1 = arith.constant 0 : i32
    return %c0_i32, %c0_i32_0 : i32, i32
  }
  func.func @transform_12(%arg0: i32) -> (i32, i32) {
    %c0_i32 = arith.constant 0 : i32
    %c0_i32_0 = arith.constant 0 : i32
    return %c0_i32, %arg0 : i32, i32
  }
  func.func @transform_13(%arg0: i32) -> (i32, i32) {
    %c0_i32 = arith.constant 0 : i32
    %c0_i32_0 = arith.constant 0 : i32
    %c0_i32_1 = arith.constant 0 : i32
    return %c0_i32, %c0_i32_0 : i32, i32
  }
  func.func @transform_14(%arg0: i32) -> (i32, i32) {
    %c0_i32 = arith.constant 0 : i32
    %c0_i32_0 = arith.constant 0 : i32
    %c0_i32_1 = arith.constant 0 : i32
    return %c0_i32, %c0_i32_0 : i32, i32
  }
}

</mosaic_0001>

<llo_original>
// kernel: barlow_twins_forward.1
$region0: #{barlow_twins_forward.1}
  #allocation0 [shape = 'u32[]', space=smem, size = 0x4, offset = 0x4, fixed_abs, tag = 'smem constant byte address 0x4 - core index']
  #allocation1 [shape = 'u32[144,128]{1,0:T(1,128)}', space=vmem, size = 0x12000, scoped, tag = 'internal scratch']
  #allocation2 [shape = 'bf16[512,256]{1,0:T(8,128)(2,1)}', space=vmem, size = 0x40000, scoped, tag = 'scratch operand']
  #allocation3 [shape = 'f32[2,512]{1,0:T(2,128)}', space=vmem, size = 0x1000, scoped, tag = 'scratch operand']
  %s0 = inlined_call_operand.vmem [shape: bf16[512,4], index: 0, kind: input, shape index: {}]
  %s1 = inlined_call_operand.hbm [shape: bf16[4,256], index: 1, kind: input, shape index: {}]
  %s2 = inlined_call_operand.hbm [shape: f32[1,256], index: 2, kind: input, shape index: {}]
  %s3 = inlined_call_operand.hbm [shape: f32[1,256], index: 3, kind: input, shape index: {}]
  %s4 = inlined_call_operand.hbm [shape: bf16[256,2048], index: 4, kind: input, shape index: {}]
  %s5 = inlined_call_operand.vmem [shape: f32[2,1024], index: 5, kind: input, shape index: {}]
  %s6 = inlined_call_operand.vmem [shape: f32[2,1024], index: 6, kind: input, shape index: {}]
  %s7 = inlined_call_operand.hbm [shape: bf16[2048,512], index: 7, kind: input, shape index: {}]
  %s8 = inlined_call_operand.hbm [shape: f32[1,512], index: 8, kind: input, shape index: {}]
  %s9 = inlined_call_operand.hbm [shape: f32[1,512], index: 9, kind: input, shape index: {}]
  %s10 = inlined_call_operand.hbm [shape: bf16[512,128], index: 10, kind: input, shape index: {}]
  %s11 = inlined_call_operand.hbm [shape: f32[1,128], index: 11, kind: input, shape index: {}]
  %s12 = inlined_call_operand.vmem [shape: f32[2,2048], index: 12, kind: output, shape index: {0}]
  %s13 = inlined_call_operand.vmem [shape: f32[2,1], index: 13, kind: output, shape index: {1}]
  %s14 = inlined_call_operand.hbm [shape: f32[2,128], index: 14, kind: output, shape index: {2}]
  %15 = xla_tuple %s12, %s13, %s14
  %s16 = sld [smem:[#allocation0]]
  $region141: #{barlow_twins_forward.1} parent=0
    _
  %s18 = ssub.s32 1, %s16
  %s19 = scalar_select 0, %s18, %s16
  $region1: #{barlow_twins_forward.1} parent=0
    #allocation4 [shape = 'u8[2048]{0}', space=vmem, size = 0x800, scoped, tag = 'input window, operand 1, single buffered']
    #allocation5 [shape = 's32[2]{0}', space=sflag, size = 0x8, scoped, tag = 'scoped memory for barlow_twins_forward.1']
    #allocation6 [shape = 's32[2]{0}', space=sflag, size = 0x8, scoped, tag = 'scoped memory for barlow_twins_forward.1']
    #allocation7 [shape = 'u8[1024]{0}', space=vmem, size = 0x400, scoped, tag = 'input window, operand 2, single buffered']
    #allocation8 [shape = 's32[1]{0}', space=sflag, size = 0x4, scoped, tag = 'scoped memory for barlow_twins_forward.1']
    #allocation9 [shape = 'u8[1024]{0}', space=vmem, size = 0x400, scoped, tag = 'input window, operand 3, single buffered']
    #allocation10 [shape = 'u8[1048576]{0}', space=vmem, size = 0x100000, scoped, tag = 'input window, operand 4']
    #allocation11 [shape = 's32[2]{0}', space=sflag, size = 0x8, scoped, tag = 'scoped memory for barlow_twins_forward.1']
    #allocation12 [shape = 'u8[2097152]{0}', space=vmem, size = 0x200000, scoped, tag = 'input window, operand 7']
    #allocation13 [shape = 'u8[2048]{0}', space=vmem, size = 0x800, scoped, tag = 'input window, operand 8, single buffered']
    #allocation14 [shape = 's32[1]{0}', space=sflag, size = 0x4, scoped, tag = 'scoped memory for barlow_twins_forward.1']
    #allocation15 [shape = 'u8[2048]{0}', space=vmem, size = 0x800, scoped, tag = 'input window, operand 9, single buffered']
    #allocation16 [shape = 'u8[131072]{0}', space=vmem, size = 0x20000, scoped, tag = 'input window, operand 10, single buffered']
    #allocation17 [shape = 's32[1]{0}', space=sflag, size = 0x4, scoped, tag = 'scoped memory for barlow_twins_forward.1']
    #allocation18 [shape = 'u8[512]{0}', space=vmem, size = 0x400, scoped, tag = 'input window, operand 11, single buffered']
    #allocation19 [shape = 'u8[1024]{0}', space=vmem, size = 0x400, scoped, tag = 'output window, operand 2, single buffered']
    %20 = vsyncpa [#allocation5], 0
    %21 = vsyncpa [#allocation8], 0
    %22 = vsyncpa [#allocation11], 0
    %s23 = scalar_lea.sflag [#allocation11], 1
    %24 = vsyncpa %s23, 0
    %25 = vsyncpa [#allocation14], 0
    %26 = vsyncpa [#allocation17], 0
    %27 = vsyncpa [#allocation6], 0
    loop: start=0, step=1, limit=4
    $region2: #{barlow_twins_forward.1} parent=1 // loop_pre_header
      _
    $region3: #{barlow_twins_forward.1} parent=1 // loop_header
      %s29 = sphi 0, %s33
      %p30 = scmp.ge.s32.totalorder %s29, 4
      %s37 = sphi 0, %s37
      %s39 = sphi 0, %s37
      %s40 = sphi 0, %s39
      %s54 = sphi 0, %s40
      %s58 = sphi 0, %s58
      %s60 = sphi 0, %s58
      %s61 = sphi 0, %s60
      %s75 = sphi 0, %s61
      %s79 = sphi 0, %s79
      %s81 = sphi 0, %s79
      %s82 = sphi 0, %s81
      %s96 = sphi 0, %s82
      %s100 = sphi 0, %s100
      %s102 = sphi 0, %s100
      %s103 = sphi 0, %s102
      %s117 = sphi 0, %s103
      %s123 = sphi 0, %s125
      %s126 = sphi 0, %s123
      %s127 = sphi 0, %s126
      %s143 = sphi 0, %s127
      %s147 = sphi 0, %s147
      %s149 = sphi 0, %s147
      %s150 = sphi 0, %s149
      %s164 = sphi 0, %s150
      %s168 = sphi 0, %s168
      %s170 = sphi 0, %s168
      %s171 = sphi 0, %s170
      %s185 = sphi 0, %s171
      %s191 = sphi 0, %s193
      %s194 = sphi 0, %s191
      %s195 = sphi 0, %s194
      %s211 = sphi 0, %s195
      %s215 = sphi 0, %s215
      %s217 = sphi 0, %s215
      %s218 = sphi 0, %s217
      %s232 = sphi 0, %s218
      %s236 = sphi 0, %s236
      %s238 = sphi 0, %s236
      %s239 = sphi 0, %s238
      %s253 = sphi 0, %s239
      %s257 = sphi 0, %s257
      %s259 = sphi 0, %s257
      %s260 = sphi 0, %s259
      %s274 = sphi 0, %s260
      %s278 = sphi 0, %s278
      %s280 = sphi 0, %s278
      %s281 = sphi 0, %s280
      %s295 = sphi 0, %s281
      %s301 = sphi 0, %s303
      %s304 = sphi 0, %s301
      %s305 = sphi 0, %s304
      %s321 = sphi 0, %s305
      %s325 = sphi 0, %s325
      %s327 = sphi 0, %s325
      %s328 = sphi 0, %s327
      %s342 = sphi 0, %s328
      %s346 = sphi 0, %s346
      %s348 = sphi 0, %s346
      %s349 = sphi 0, %s348
      %s363 = sphi 0, %s349
    $region4: #{barlow_twins_forward.1} parent=1 // loop_header_branch
      %32 = sbr.rel (%p30) target = $region8
    $region5: #{barlow_twins_forward.1} parent=1 // loop_body
      %s34 = ssub.s32 %s29, 1
      %s35 = ssub.s32 %s29, 2
      %s36 = sadd.s32 %s29, 1
      %s38 = sadd.s32 %s37, 1
      %p41 = scmp.eq.s32.totalorder %s29, 1
      %p42 = scmp.ne.s32.totalorder %s37, %s39
      %p43 = scmp.eq.s32.totalorder %s29, 0
      %p44 = por %p42, %p43
      %p45 = scmp.ne.s32.totalorder %s37, %s39
      %p46 = scmp.eq.s32.totalorder %s34, 1
      %p47 = por %p45, %p46
      %p48 = scmp.ne.s32.totalorder %s39, %s40
      %p49 = scmp.eq.s32.totalorder %s34, 0
      %p50 = por %p48, %p49
      %p51 = scmp.ne.s32.totalorder %s39, %s40
      %p52 = scmp.eq.s32.totalorder %s35, 1
      %p53 = por %p51, %p52
      %p55 = scmp.ne.s32.totalorder %s40, %s54
      %p56 = scmp.eq.s32.totalorder %s35, 0
      %p57 = por %p55, %p56
      %s59 = sadd.s32 %s58, 1
      %p62 = scmp.eq.s32.totalorder %s29, 1
      %p63 = scmp.ne.s32.totalorder %s58, %s60
      %p64 = scmp.eq.s32.totalorder %s29, 0
      %p65 = por %p63, %p64
      %p66 = scmp.ne.s32.totalorder %s58, %s60
      %p67 = scmp.eq.s32.totalorder %s34, 1
      %p68 = por %p66, %p67
      %p69 = scmp.ne.s32.totalorder %s60, %s61
      %p70 = scmp.eq.s32.totalorder %s34, 0
      %p71 = por %p69, %p70
      %p72 = scmp.ne.s32.totalorder %s60, %s61
      %p73 = scmp.eq.s32.totalorder %s35, 1
      %p74 = por %p72, %p73
      %p76 = scmp.ne.s32.totalorder %s61, %s75
      %p77 = scmp.eq.s32.totalorder %s35, 0
      %p78 = por %p76, %p77
      %s80 = sadd.s32 %s79, 1
      %p83 = scmp.eq.s32.totalorder %s29, 1
      %p84 = scmp.ne.s32.totalorder %s79, %s81
      %p85 = scmp.eq.s32.totalorder %s29, 0
      %p86 = por %p84, %p85
      %p87 = scmp.ne.s32.totalorder %s79, %s81
      %p88 = scmp.eq.s32.totalorder %s34, 1
      %p89 = por %p87, %p88
      %p90 = scmp.ne.s32.totalorder %s81, %s82
      %p91 = scmp.eq.s32.totalorder %s34, 0
      %p92 = por %p90, %p91
      %p93 = scmp.ne.s32.totalorder %s81, %s82
      %p94 = scmp.eq.s32.totalorder %s35, 1
      %p95 = por %p93, %p94
      %p97 = scmp.ne.s32.totalorder %s82, %s96
      %p98 = scmp.eq.s32.totalorder %s35, 0
      %p99 = por %p97, %p98
      %s101 = sadd.s32 %s100, 1
      %p104 = scmp.eq.s32.totalorder %s29, 1
      %p105 = scmp.ne.s32.totalorder %s100, %s102
      %p106 = scmp.eq.s32.totalorder %s29, 0
      %p107 = por %p105, %p106
      %p108 = scmp.ne.s32.totalorder %s100, %s102
      %p109 = scmp.eq.s32.totalorder %s34, 1
      %p110 = por %p108, %p109
      %p111 = scmp.ne.s32.totalorder %s102, %s103
      %p112 = scmp.eq.s32.totalorder %s34, 0
      %p113 = por %p111, %p112
      %p114 = scmp.ne.s32.totalorder %s102, %s103
      %p115 = scmp.eq.s32.totalorder %s35, 1
      %p116 = por %p114, %p115
      %p118 = scmp.ne.s32.totalorder %s103, %s117
      %p119 = scmp.eq.s32.totalorder %s35, 0
      %p120 = por %p118, %p119
      %s121 = ssub.s32 %s29, %s36
      %p122 = scmp.eq.s32.totalorder %s121, 0
      %s124 = sadd.s32 %s123, 1
      %s125 = scalar_select %p122, %s123, %s124
      %p128 = pneg %p122
      %p129 = scmp.eq.s32.totalorder %s29, 1
      %p130 = por %p128, %p129
      %p131 = scmp.ne.s32.totalorder %s123, %s126
      %p132 = scmp.eq.s32.totalorder %s29, 0
      %p133 = por %p131, %p132
      %p134 = scmp.ne.s32.totalorder %s123, %s126
      %p135 = scmp.eq.s32.totalorder %s34, 1
      %p136 = por %p134, %p135
      %p137 = scmp.ne.s32.totalorder %s126, %s127
      %p138 = scmp.eq.s32.totalorder %s34, 0
      %p139 = por %p137, %p138
      %p140 = scmp.ne.s32.totalorder %s126, %s127
      %p141 = scmp.eq.s32.totalorder %s35, 1
      %p142 = por %p140, %p141
      %p144 = scmp.ne.s32.totalorder %s127, %s143
      %p145 = scmp.eq.s32.totalorder %s35, 0
      %p146 = por %p144, %p145
      %s148 = sadd.s32 %s147, 1
      %p151 = scmp.eq.s32.totalorder %s29, 1
      %p152 = scmp.ne.s32.totalorder %s147, %s149
      %p153 = scmp.eq.s32.totalorder %s29, 0
      %p154 = por %p152, %p153
      %p155 = scmp.ne.s32.totalorder %s147, %s149
      %p156 = scmp.eq.s32.totalorder %s34, 1
      %p157 = por %p155, %p156
      %p158 = scmp.ne.s32.totalorder %s149, %s150
      %p159 = scmp.eq.s32.totalorder %s34, 0
      %p160 = por %p158, %p159
      %p161 = scmp.ne.s32.totalorder %s149, %s150
      %p162 = scmp.eq.s32.totalorder %s35, 1
      %p163 = por %p161, %p162
      %p165 = scmp.ne.s32.totalorder %s150, %s164
      %p166 = scmp.eq.s32.totalorder %s35, 0
      %p167 = por %p165, %p166
      %s169 = sadd.s32 %s168, 1
      %p172 = scmp.eq.s32.totalorder %s29, 1
      %p173 = scmp.ne.s32.totalorder %s168, %s170
      %p174 = scmp.eq.s32.totalorder %s29, 0
      %p175 = por %p173, %p174
      %p176 = scmp.ne.s32.totalorder %s168, %s170
      %p177 = scmp.eq.s32.totalorder %s34, 1
      %p178 = por %p176, %p177
      %p179 = scmp.ne.s32.totalorder %s170, %s171
      %p180 = scmp.eq.s32.totalorder %s34, 0
      %p181 = por %p179, %p180
      %p182 = scmp.ne.s32.totalorder %s170, %s171
      %p183 = scmp.eq.s32.totalorder %s35, 1
      %p184 = por %p182, %p183
      %p186 = scmp.ne.s32.totalorder %s171, %s185
      %p187 = scmp.eq.s32.totalorder %s35, 0
      %p188 = por %p186, %p187
      %s189 = ssub.s32 %s29, %s36
      %p190 = scmp.eq.s32.totalorder %s189, 0
      %s192 = sadd.s32 %s191, 1
      %s193 = scalar_select %p190, %s191, %s192
      %p196 = pneg %p190
      %p197 = scmp.eq.s32.totalorder %s29, 1
      %p198 = por %p196, %p197
      %p199 = scmp.ne.s32.totalorder %s191, %s194
      %p200 = scmp.eq.s32.totalorder %s29, 0
      %p201 = por %p199, %p200
      %p202 = scmp.ne.s32.totalorder %s191, %s194
      %p203 = scmp.eq.s32.totalorder %s34, 1
      %p204 = por %p202, %p203
      %p205 = scmp.ne.s32.totalorder %s194, %s195
      %p206 = scmp.eq.s32.totalorder %s34, 0
      %p207 = por %p205, %p206
      %p208 = scmp.ne.s32.totalorder %s194, %s195
      %p209 = scmp.eq.s32.totalorder %s35, 1
      %p210 = por %p208, %p209
      %p212 = scmp.ne.s32.totalorder %s195, %s211
      %p213 = scmp.eq.s32.totalorder %s35, 0
      %p214 = por %p212, %p213
      %s216 = sadd.s32 %s215, 1
      %p219 = scmp.eq.s32.totalorder %s29, 1
      %p220 = scmp.ne.s32.totalorder %s215, %s217
      %p221 = scmp.eq.s32.totalorder %s29, 0
      %p222 = por %p220, %p221
      %p223 = scmp.ne.s32.totalorder %s215, %s217
      %p224 = scmp.eq.s32.totalorder %s34, 1
      %p225 = por %p223, %p224
      %p226 = scmp.ne.s32.totalorder %s217, %s218
      %p227 = scmp.eq.s32.totalorder %s34, 0
      %p228 = por %p226, %p227
      %p229 = scmp.ne.s32.totalorder %s217, %s218
      %p230 = scmp.eq.s32.totalorder %s35, 1
      %p231 = por %p229, %p230
      %p233 = scmp.ne.s32.totalorder %s218, %s232
      %p234 = scmp.eq.s32.totalorder %s35, 0
      %p235 = por %p233, %p234
      %s237 = sadd.s32 %s236, 1
      %p240 = scmp.eq.s32.totalorder %s29, 1
      %p241 = scmp.ne.s32.totalorder %s236, %s238
      %p242 = scmp.eq.s32.totalorder %s29, 0
      %p243 = por %p241, %p242
      %p244 = scmp.ne.s32.totalorder %s236, %s238
      %p245 = scmp.eq.s32.totalorder %s34, 1
      %p246 = por %p244, %p245
      %p247 = scmp.ne.s32.totalorder %s238, %s239
      %p248 = scmp.eq.s32.totalorder %s34, 0
      %p249 = por %p247, %p248
      %p250 = scmp.ne.s32.totalorder %s238, %s239
      %p251 = scmp.eq.s32.totalorder %s35, 1
      %p252 = por %p250, %p251
      %p254 = scmp.ne.s32.totalorder %s239, %s253
      %p255 = scmp.eq.s32.totalorder %s35, 0
      %p256 = por %p254, %p255
      %s258 = sadd.s32 %s257, 1
      %p261 = scmp.eq.s32.totalorder %s29, 1
      %p262 = scmp.ne.s32.totalorder %s257, %s259
      %p263 = scmp.eq.s32.totalorder %s29, 0
      %p264 = por %p262, %p263
      %p265 = scmp.ne.s32.totalorder %s257, %s259
      %p266 = scmp.eq.s32.totalorder %s34, 1
      %p267 = por %p265, %p266
      %p268 = scmp.ne.s32.totalorder %s259, %s260
      %p269 = scmp.eq.s32.totalorder %s34, 0
      %p270 = por %p268, %p269
      %p271 = scmp.ne.s32.totalorder %s259, %s260
      %p272 = scmp.eq.s32.totalorder %s35, 1
      %p273 = por %p271, %p272
      %p275 = scmp.ne.s32.totalorder %s260, %s274
      %p276 = scmp.eq.s32.totalorder %s35, 0
      %p277 = por %p275, %p276
      %s279 = sadd.s32 %s278, 1
      %p282 = scmp.eq.s32.totalorder %s29, 1
      %p283 = scmp.ne.s32.totalorder %s278, %s280
      %p284 = scmp.eq.s32.totalorder %s29, 0
      %p285 = por %p283, %p284
      %p286 = scmp.ne.s32.totalorder %s278, %s280
      %p287 = scmp.eq.s32.totalorder %s34, 1
      %p288 = por %p286, %p287
      %p289 = scmp.ne.s32.totalorder %s280, %s281
      %p290 = scmp.eq.s32.totalorder %s34, 0
      %p291 = por %p289, %p290
      %p292 = scmp.ne.s32.totalorder %s280, %s281
      %p293 = scmp.eq.s32.totalorder %s35, 1
      %p294 = por %p292, %p293
      %p296 = scmp.ne.s32.totalorder %s281, %s295
      %p297 = scmp.eq.s32.totalorder %s35, 0
      %p298 = por %p296, %p297
      %s299 = ssub.s32 %s29, %s36
      %p300 = scmp.eq.s32.totalorder %s299, 0
      %s302 = sadd.s32 %s301, 1
      %s303 = scalar_select %p300, %s301, %s302
      %p306 = pneg %p300
      %p307 = scmp.eq.s32.totalorder %s29, 1
      %p308 = por %p306, %p307
      %p309 = scmp.ne.s32.totalorder %s301, %s304
      %p310 = scmp.eq.s32.totalorder %s29, 0
      %p311 = por %p309, %p310
      %p312 = scmp.ne.s32.totalorder %s301, %s304
      %p313 = scmp.eq.s32.totalorder %s34, 1
      %p314 = por %p312, %p313
      %p315 = scmp.ne.s32.totalorder %s304, %s305
      %p316 = scmp.eq.s32.totalorder %s34, 0
      %p317 = por %p315, %p316
      %p318 = scmp.ne.s32.totalorder %s304, %s305
      %p319 = scmp.eq.s32.totalorder %s35, 1
      %p320 = por %p318, %p319
      %p322 = scmp.ne.s32.totalorder %s305, %s321
      %p323 = scmp.eq.s32.totalorder %s35, 0
      %p324 = por %p322, %p323
      %s326 = sadd.s32 %s325, 1
      %p329 = scmp.eq.s32.totalorder %s29, 1
      %p330 = scmp.ne.s32.totalorder %s325, %s327
      %p331 = scmp.eq.s32.totalorder %s29, 0
      %p332 = por %p330, %p331
      %p333 = scmp.ne.s32.totalorder %s325, %s327
      %p334 = scmp.eq.s32.totalorder %s34, 1
      %p335 = por %p333, %p334
      %p336 = scmp.ne.s32.totalorder %s327, %s328
      %p337 = scmp.eq.s32.totalorder %s34, 0
      %p338 = por %p336, %p337
      %p339 = scmp.ne.s32.totalorder %s327, %s328
      %p340 = scmp.eq.s32.totalorder %s35, 1
      %p341 = por %p339, %p340
      %p343 = scmp.ne.s32.totalorder %s328, %s342
      %p344 = scmp.eq.s32.totalorder %s35, 0
      %p345 = por %p343, %p344
      %s347 = sadd.s32 %s346, 1
      %p350 = scmp.eq.s32.totalorder %s29, 1
      %p351 = scmp.ne.s32.totalorder %s346, %s348
      %p352 = scmp.eq.s32.totalorder %s29, 0
      %p353 = por %p351, %p352
      %p354 = scmp.ne.s32.totalorder %s346, %s348
      %p355 = scmp.eq.s32.totalorder %s34, 1
      %p356 = por %p354, %p355
      %p357 = scmp.ne.s32.totalorder %s348, %s349
      %p358 = scmp.eq.s32.totalorder %s34, 0
      %p359 = por %p357, %p358
      %p360 = scmp.ne.s32.totalorder %s348, %s349
      %p361 = scmp.eq.s32.totalorder %s35, 1
      %p362 = por %p360, %p361
      %p364 = scmp.ne.s32.totalorder %s349, %s363
      %p365 = scmp.eq.s32.totalorder %s35, 0
      %p366 = por %p364, %p365
      %p367 = scmp.le.s32.totalorder 1, %s29
      %p368 = scmp.lt.s32.totalorder %s29, 3
      %p369 = pnand %p367, %p368
      %p370 = pneg %p369
      // Predicated region
      $region9: #{barlow_twins_forward.1} parent=5 // pred_check
        _
      $region10: #{barlow_twins_forward.1} parent=5 // pred_check_branch
        %372 = sbr.rel (%p369) target = $region12
      $region11: #{barlow_twins_forward.1} parent=5 // pred_region
        %s373 = ssub.s32 %s29, 1
        // Predicated region
        $region13: #{barlow_twins_forward.1} parent=11 // pred_check
          %p374 = pneg %p50
        $region14: #{barlow_twins_forward.1} parent=11 // pred_check_branch
          %376 = sbr.rel (%p374) target = $region16
        $region15: #{barlow_twins_forward.1} parent=11 // pred_region
          _
        $region16: #{barlow_twins_forward.1} parent=11 // pred_fallthru
          _
        // Predicated region
        $region17: #{barlow_twins_forward.1} parent=11 // pred_check
          %p377 = pneg %p71
        $region18: #{barlow_twins_forward.1} parent=11 // pred_check_branch
          %379 = sbr.rel (%p377) target = $region20
        $region19: #{barlow_twins_forward.1} parent=11 // pred_region
          %s381 = ssub.s32 64, 64
          %382 = vsyncadd [#allocation5], %s381
          %s384 = sshll.u32 [#allocation4], 4
          %s385 = int_to_ptr.vmem [resolvable:$true] %s384
          %387 = dma.hbm_to_vmem [thread:$0]  %s1, 64, %s385, [#allocation5]
        $region20: #{barlow_twins_forward.1} parent=11 // pred_fallthru
          _
        // Predicated region
        $region21: #{barlow_twins_forward.1} parent=11 // pred_check
          %p388 = pneg %p92
        $region22: #{barlow_twins_forward.1} parent=11 // pred_check_branch
          %390 = sbr.rel (%p388) target = $region24
        $region23: #{barlow_twins_forward.1} parent=11 // pred_region
          %s392 = ssub.s32 32, 32
          %393 = vsyncadd [#allocation8], %s392
          %s395 = sshll.u32 [#allocation7], 4
          %s396 = int_to_ptr.vmem [resolvable:$true] %s395
          %398 = dma.hbm_to_vmem [thread:$0]  %s2, 32, %s396, [#allocation8]
        $region24: #{barlow_twins_forward.1} parent=11 // pred_fallthru
          _
        // Predicated region
        $region25: #{barlow_twins_forward.1} parent=11 // pred_check
          %p399 = pneg %p113
        $region26: #{barlow_twins_forward.1} parent=11 // pred_check_branch
          %401 = sbr.rel (%p399) target = $region28
        $region27: #{barlow_twins_forward.1} parent=11 // pred_region
          %s403 = ssub.s32 32, 32
          %404 = vsyncadd [#allocation8], %s403
          %s406 = sshll.u32 [#allocation9], 4
          %s407 = int_to_ptr.vmem [resolvable:$true] %s406
          %409 = dma.hbm_to_vmem [thread:$0]  %s3, 32, %s407, [#allocation8]
        $region28: #{barlow_twins_forward.1} parent=11 // pred_fallthru
          _
        // Predicated region
        $region29: #{barlow_twins_forward.1} parent=11 // pred_check
          %p410 = pneg %p160
        $region30: #{barlow_twins_forward.1} parent=11 // pred_check_branch
          %412 = sbr.rel (%p410) target = $region32
        $region31: #{barlow_twins_forward.1} parent=11 // pred_region
          _
        $region32: #{barlow_twins_forward.1} parent=11 // pred_fallthru
          _
        // Predicated region
        $region33: #{barlow_twins_forward.1} parent=11 // pred_check
          %p413 = pneg %p181
        $region34: #{barlow_twins_forward.1} parent=11 // pred_check_branch
          %415 = sbr.rel (%p413) target = $region36
        $region35: #{barlow_twins_forward.1} parent=11 // pred_region
          _
        $region36: #{barlow_twins_forward.1} parent=11 // pred_fallthru
          _
        // Predicated region
        $region37: #{barlow_twins_forward.1} parent=11 // pred_check
          %p416 = pneg %p228
        $region38: #{barlow_twins_forward.1} parent=11 // pred_check_branch
          %418 = sbr.rel (%p416) target = $region40
        $region39: #{barlow_twins_forward.1} parent=11 // pred_region
          %s420 = ssub.s32 64, 64
          %421 = vsyncadd [#allocation14], %s420
          %s423 = sshll.u32 [#allocation13], 4
          %s424 = int_to_ptr.vmem [resolvable:$true] %s423
          %426 = dma.hbm_to_vmem [thread:$0]  %s8, 64, %s424, [#allocation14]
        $region40: #{barlow_twins_forward.1} parent=11 // pred_fallthru
          _
        // Predicated region
        $region41: #{barlow_twins_forward.1} parent=11 // pred_check
          %p427 = pneg %p249
        $region42: #{barlow_twins_forward.1} parent=11 // pred_check_branch
          %429 = sbr.rel (%p427) target = $region44
        $region43: #{barlow_twins_forward.1} parent=11 // pred_region
          %s431 = ssub.s32 64, 64
          %432 = vsyncadd [#allocation14], %s431
          %s434 = sshll.u32 [#allocation15], 4
          %s435 = int_to_ptr.vmem [resolvable:$true] %s434
          %437 = dma.hbm_to_vmem [thread:$0]  %s9, 64, %s435, [#allocation14]
        $region44: #{barlow_twins_forward.1} parent=11 // pred_fallthru
          _
        // Predicated region
        $region45: #{barlow_twins_forward.1} parent=11 // pred_check
          %p438 = pneg %p270
        $region46: #{barlow_twins_forward.1} parent=11 // pred_check_branch
          %440 = sbr.rel (%p438) target = $region48
        $region47: #{barlow_twins_forward.1} parent=11 // pred_region
          %s442 = ssub.s32 4096, 4096
          %443 = vsyncadd [#allocation17], %s442
          %s444 = sshll.u32 [#allocation16], 4
          %s445 = int_to_ptr.vmem [resolvable:$true] %s444
          %450 = dma.hbm_to_vmem [thread:$0]  %s10, 4096, %s445, [#allocation17], 64, 64, 4
        $region48: #{barlow_twins_forward.1} parent=11 // pred_fallthru
          _
        // Predicated region
        $region49: #{barlow_twins_forward.1} parent=11 // pred_check
          %p451 = pneg %p291
        $region50: #{barlow_twins_forward.1} parent=11 // pred_check_branch
          %453 = sbr.rel (%p451) target = $region52
        $region51: #{barlow_twins_forward.1} parent=11 // pred_region
          %s455 = ssub.s32 16, 16
          %456 = vsyncadd [#allocation17], %s455
          %s458 = sshll.u32 [#allocation18], 4
          %s459 = int_to_ptr.vmem [resolvable:$true] %s458
          %461 = dma.hbm_to_vmem [thread:$0]  %s11, 16, %s459, [#allocation17]
        $region52: #{barlow_twins_forward.1} parent=11 // pred_fallthru
          _
      $region12: #{barlow_twins_forward.1} parent=5 // pred_fallthru
        _
      %p462 = scmp.lt.s32.totalorder %s29, 2
      // Predicated region
      $region53: #{barlow_twins_forward.1} parent=5 // pred_check
        %p463 = pneg %p462
      $region54: #{barlow_twins_forward.1} parent=5 // pred_check_branch
        %465 = sbr.rel (%p463) target = $region56
      $region55: #{barlow_twins_forward.1} parent=5 // pred_region
        // Predicated region
        $region57: #{barlow_twins_forward.1} parent=55 // pred_check
          %p466 = pneg %p133
        $region58: #{barlow_twins_forward.1} parent=55 // pred_check_branch
          %468 = sbr.rel (%p466) target = $region60
        $region59: #{barlow_twins_forward.1} parent=55 // pred_region
          %s469 = sand.u32 %s29, 1
          %s470 = scalar_lea.sflag [#allocation11], %s469
          %s471 = sand.u32 %s123, 1
          %s472 = smul.addr %s471, 1024
          %s473 = scalar_lea.vmem [#allocation10], %s472
          %s474 = smul.u32 8, %s29
          %s476 = ssub.s32 16384, 16384
          %477 = vsyncadd %s470, %s476
          %s478 = smul.addr %s474, 64
          %s479 = scalar_lea.hbm %s4, %s478
          %s480 = sshll.u32 %s473, 4
          %s481 = int_to_ptr.vmem [resolvable:$true] %s480
          %486 = dma.hbm_to_vmem [thread:$0]  %s479, 16384, %s481, %s470, 1024, 512, 32
        $region60: #{barlow_twins_forward.1} parent=55 // pred_fallthru
          _
        // Predicated region
        $region61: #{barlow_twins_forward.1} parent=55 // pred_check
          %p487 = pneg %p201
        $region62: #{barlow_twins_forward.1} parent=55 // pred_check_branch
          %489 = sbr.rel (%p487) target = $region64
        $region63: #{barlow_twins_forward.1} parent=55 // pred_region
          %s490 = sand.u32 %s29, 1
          %s491 = scalar_lea.sflag [#allocation11], %s490
          %s492 = sand.u32 %s191, 1
          %s493 = smul.addr %s492, 2048
          %s494 = scalar_lea.vmem [#allocation12], %s493
          %s495 = smul.u32 128, %s29
          %s497 = ssub.s32 32768, 32768
          %498 = vsyncadd %s491, %s497
          %s499 = smul.addr %s495, 4
          %s500 = smul.addr %s499, 64
          %s501 = scalar_lea.hbm %s7, %s500
          %s502 = sshll.u32 %s494, 4
          %s503 = int_to_ptr.vmem [resolvable:$true] %s502
          %508 = dma.hbm_to_vmem [thread:$0]  %s501, 32768, %s503, %s491, 256, 256, 16
        $region64: #{barlow_twins_forward.1} parent=55 // pred_fallthru
          _
      $region56: #{barlow_twins_forward.1} parent=5 // pred_fallthru
        _
      %p509 = scmp.le.s32.totalorder 1, %s29
      %p510 = scmp.lt.s32.totalorder %s29, 3
      %p511 = pnand %p509, %p510
      %p512 = pneg %p511
      // Predicated region
      $region65: #{barlow_twins_forward.1} parent=5 // pred_check
        _
      $region66: #{barlow_twins_forward.1} parent=5 // pred_check_branch
        %514 = sbr.rel (%p511) target = $region68
      $region67: #{barlow_twins_forward.1} parent=5 // pred_region
        %s515 = ssub.s32 %s29, 1
        // Predicated region
        $region69: #{barlow_twins_forward.1} parent=67 // pred_check
          %p516 = pneg %p71
        $region70: #{barlow_twins_forward.1} parent=67 // pred_check_branch
          %518 = sbr.rel (%p516) target = $region72
        $region71: #{barlow_twins_forward.1} parent=67 // pred_region
          %519 = dma.done [#allocation5], 64
        $region72: #{barlow_twins_forward.1} parent=67 // pred_fallthru
          _
        // Predicated region
        $region73: #{barlow_twins_forward.1} parent=67 // pred_check
          %p520 = pneg %p92
        $region74: #{barlow_twins_forward.1} parent=67 // pred_check_branch
          %522 = sbr.rel (%p520) target = $region76
        $region75: #{barlow_twins_forward.1} parent=67 // pred_region
          %523 = dma.done [#allocation8], 32
        $region76: #{barlow_twins_forward.1} parent=67 // pred_fallthru
          _
        // Predicated region
        $region77: #{barlow_twins_forward.1} parent=67 // pred_check
          %p524 = pneg %p113
        $region78: #{barlow_twins_forward.1} parent=67 // pred_check_branch
          %526 = sbr.rel (%p524) target = $region80
        $region79: #{barlow_twins_forward.1} parent=67 // pred_region
          %527 = dma.done [#allocation8], 32
        $region80: #{barlow_twins_forward.1} parent=67 // pred_fallthru
          _
        %s528 = sand.u32 %s34, 1
        %s529 = scalar_lea.sflag [#allocation11], %s528
        %s530 = sand.u32 %s126, 1
        %s531 = smul.addr %s530, 1024
        %s532 = scalar_lea.vmem [#allocation10], %s531
        // Predicated region
        $region81: #{barlow_twins_forward.1} parent=67 // pred_check
          %p533 = pneg %p139
        $region82: #{barlow_twins_forward.1} parent=67 // pred_check_branch
          %535 = sbr.rel (%p533) target = $region84
        $region83: #{barlow_twins_forward.1} parent=67 // pred_region
          %536 = dma.done %s529, 16384
        $region84: #{barlow_twins_forward.1} parent=67 // pred_fallthru
          _
        %s537 = sand.u32 %s34, 1
        %s538 = scalar_lea.sflag [#allocation11], %s537
        %s539 = sand.u32 %s194, 1
        %s540 = smul.addr %s539, 2048
        %s541 = scalar_lea.vmem [#allocation12], %s540
        // Predicated region
        $region85: #{barlow_twins_forward.1} parent=67 // pred_check
          %p542 = pneg %p207
        $region86: #{barlow_twins_forward.1} parent=67 // pred_check_branch
          %544 = sbr.rel (%p542) target = $region88
        $region87: #{barlow_twins_forward.1} parent=67 // pred_region
          %545 = dma.done %s538, 32768
        $region88: #{barlow_twins_forward.1} parent=67 // pred_fallthru
          _
        // Predicated region
        $region89: #{barlow_twins_forward.1} parent=67 // pred_check
          %p546 = pneg %p228
        $region90: #{barlow_twins_forward.1} parent=67 // pred_check_branch
          %548 = sbr.rel (%p546) target = $region92
        $region91: #{barlow_twins_forward.1} parent=67 // pred_region
          %549 = dma.done [#allocation14], 64
        $region92: #{barlow_twins_forward.1} parent=67 // pred_fallthru
          _
        // Predicated region
        $region93: #{barlow_twins_forward.1} parent=67 // pred_check
          %p550 = pneg %p249
        $region94: #{barlow_twins_forward.1} parent=67 // pred_check_branch
          %552 = sbr.rel (%p550) target = $region96
        $region95: #{barlow_twins_forward.1} parent=67 // pred_region
          %553 = dma.done [#allocation14], 64
        $region96: #{barlow_twins_forward.1} parent=67 // pred_fallthru
          _
        // Predicated region
        $region97: #{barlow_twins_forward.1} parent=67 // pred_check
          %p554 = pneg %p270
        $region98: #{barlow_twins_forward.1} parent=67 // pred_check_branch
          %556 = sbr.rel (%p554) target = $region100
        $region99: #{barlow_twins_forward.1} parent=67 // pred_region
          %557 = dma.done [#allocation17], 4096
        $region100: #{barlow_twins_forward.1} parent=67 // pred_fallthru
          _
        // Predicated region
        $region101: #{barlow_twins_forward.1} parent=67 // pred_check
          %p558 = pneg %p291
        $region102: #{barlow_twins_forward.1} parent=67 // pred_check_branch
          %560 = sbr.rel (%p558) target = $region104
        $region103: #{barlow_twins_forward.1} parent=67 // pred_region
          %561 = dma.done [#allocation17], 16
        $region104: #{barlow_twins_forward.1} parent=67 // pred_fallthru
          _
        %p562 = pneg %p50
        %p563 = pneg %p47
        %p564 = pneg %p71
        %p565 = pneg %p68
        %p566 = pneg %p92
        %p567 = pneg %p89
        %p568 = pneg %p113
        %p569 = pneg %p110
        %s570 = sand.u32 %s34, 1
        %s571 = scalar_lea.sflag [#allocation11], %s570
        %s572 = sand.u32 %s126, 1
        %s573 = smul.addr %s572, 1024
        %s574 = scalar_lea.vmem [#allocation10], %s573
        %p575 = pneg %p139
        %p576 = pneg %p136
        %p577 = pneg %p160
        %p578 = pneg %p157
        %p579 = pneg %p181
        %p580 = pneg %p178
        %s581 = sand.u32 %s34, 1
        %s582 = scalar_lea.sflag [#allocation11], %s581
        %s583 = sand.u32 %s194, 1
        %s584 = smul.addr %s583, 2048
        %s585 = scalar_lea.vmem [#allocation12], %s584
        %p586 = pneg %p207
        %p587 = pneg %p204
        %p588 = pneg %p228
        %p589 = pneg %p225
        %p590 = pneg %p249
        %p591 = pneg %p246
        %p592 = pneg %p270
        %p593 = pneg %p267
        %p594 = pneg %p291
        %p595 = pneg %p288
        %p596 = pneg %p317
        %p597 = pneg %p314
        %s598 = smul.u32 8, %s34
        %p599 = scmp.lt.s32.totalorder %s598, 15
        %s600 = scalar_select %p599, %s598, 15
        %s601 = smul.addr %s600, 2
        %s602 = scalar_lea.vmem %s12, %s601
        %p603 = pneg %p338
        %p604 = pneg %p335
        %p605 = pneg %p359
        %p606 = pneg %p356
        %s607 = smul.u32 8, %s34
        %s608 = smul.u32 128, %s34
        %s609 = smul.u32 8, %s34
        %p610 = scmp.lt.s32.totalorder %s609, 15
        %s611 = scalar_select %p610, %s609, 15
        %s612 = smul.addr %s611, 2
        %s613 = scalar_lea.vmem %s12, %s612
        %s614 = smul.u32 8, %s34
        %p616 = scmp.eq.s32.totalorder %s34, 0
        // Predicated region
        $region105: #{barlow_twins_forward.1} parent=67 // pred_check
          %p617 = pneg %p616
        $region106: #{barlow_twins_forward.1} parent=67 // pred_check_branch
          %619 = sbr.rel (%p617) target = $region108
        $region107: #{barlow_twins_forward.1} parent=67 // pred_region
          %v620 = vld [vmem:[%s0] sm:$0xf]
          %v621 = vld [vmem:[%s0 + $0x4] sm:$0xf]
          %v622 = vld [vmem:[%s0 + $0x8] sm:$0xf]
          %v623 = vld [vmem:[%s0 + $0xc] sm:$0xf]
          %v624 = vld [vmem:[%s0 + $0x10] sm:$0xf]
          %v625 = vld [vmem:[%s0 + $0x14] sm:$0xf]
          %v626 = vld [vmem:[%s0 + $0x18] sm:$0xf]
          %v627 = vld [vmem:[%s0 + $0x1c] sm:$0xf]
          %v628 = vld [vmem:[%s0 + $0x20] sm:$0xf]
          %v629 = vld [vmem:[%s0 + $0x24] sm:$0xf]
          %v630 = vld [vmem:[%s0 + $0x28] sm:$0xf]
          %v631 = vld [vmem:[%s0 + $0x2c] sm:$0xf]
          %v632 = vld [vmem:[%s0 + $0x30] sm:$0xf]
          %v633 = vld [vmem:[%s0 + $0x34] sm:$0xf]
          %v634 = vld [vmem:[%s0 + $0x38] sm:$0xf]
          %v635 = vld [vmem:[%s0 + $0x3c] sm:$0xf]
          %v636 = vld [vmem:[%s0 + $0x40] sm:$0xf]
          %v637 = vld [vmem:[%s0 + $0x44] sm:$0xf]
          %v638 = vld [vmem:[%s0 + $0x48] sm:$0xf]
          %v639 = vld [vmem:[%s0 + $0x4c] sm:$0xf]
          %v640 = vld [vmem:[%s0 + $0x50] sm:$0xf]
          %v641 = vld [vmem:[%s0 + $0x54] sm:$0xf]
          %v642 = vld [vmem:[%s0 + $0x58] sm:$0xf]
          %v643 = vld [vmem:[%s0 + $0x5c] sm:$0xf]
          %v644 = vld [vmem:[%s0 + $0x60] sm:$0xf]
          %v645 = vld [vmem:[%s0 + $0x64] sm:$0xf]
          %v646 = vld [vmem:[%s0 + $0x68] sm:$0xf]
          %v647 = vld [vmem:[%s0 + $0x6c] sm:$0xf]
          %v648 = vld [vmem:[%s0 + $0x70] sm:$0xf]
          %v649 = vld [vmem:[%s0 + $0x74] sm:$0xf]
          %v650 = vld [vmem:[%s0 + $0x78] sm:$0xf]
          %v651 = vld [vmem:[%s0 + $0x7c] sm:$0xf]
          %v652 = vld [vmem:[%s0 + $0x80] sm:$0xf]
          %v653 = vld [vmem:[%s0 + $0x84] sm:$0xf]
          %v654 = vld [vmem:[%s0 + $0x88] sm:$0xf]
          %v655 = vld [vmem:[%s0 + $0x8c] sm:$0xf]
          %v656 = vld [vmem:[%s0 + $0x90] sm:$0xf]
          %v657 = vld [vmem:[%s0 + $0x94] sm:$0xf]
          %v658 = vld [vmem:[%s0 + $0x98] sm:$0xf]
          %v659 = vld [vmem:[%s0 + $0x9c] sm:$0xf]
          %v660 = vld [vmem:[%s0 + $0xa0] sm:$0xf]
          %v661 = vld [vmem:[%s0 + $0xa4] sm:$0xf]
          %v662 = vld [vmem:[%s0 + $0xa8] sm:$0xf]
          %v663 = vld [vmem:[%s0 + $0xac] sm:$0xf]
          %v664 = vld [vmem:[%s0 + $0xb0] sm:$0xf]
          %v665 = vld [vmem:[%s0 + $0xb4] sm:$0xf]
          %v666 = vld [vmem:[%s0 + $0xb8] sm:$0xf]
          %v667 = vld [vmem:[%s0 + $0xbc] sm:$0xf]
          %v668 = vld [vmem:[%s0 + $0xc0] sm:$0xf]
          %v669 = vld [vmem:[%s0 + $0xc4] sm:$0xf]
          %v670 = vld [vmem:[%s0 + $0xc8] sm:$0xf]
          %v671 = vld [vmem:[%s0 + $0xcc] sm:$0xf]
          %v672 = vld [vmem:[%s0 + $0xd0] sm:$0xf]
          %v673 = vld [vmem:[%s0 + $0xd4] sm:$0xf]
          %v674 = vld [vmem:[%s0 + $0xd8] sm:$0xf]
          %v675 = vld [vmem:[%s0 + $0xdc] sm:$0xf]
          %v676 = vld [vmem:[%s0 + $0xe0] sm:$0xf]
          %v677 = vld [vmem:[%s0 + $0xe4] sm:$0xf]
          %v678 = vld [vmem:[%s0 + $0xe8] sm:$0xf]
          %v679 = vld [vmem:[%s0 + $0xec] sm:$0xf]
          %v680 = vld [vmem:[%s0 + $0xf0] sm:$0xf]
          %v681 = vld [vmem:[%s0 + $0xf4] sm:$0xf]
          %v682 = vld [vmem:[%s0 + $0xf8] sm:$0xf]
          %v683 = vld [vmem:[%s0 + $0xfc] sm:$0xf]
          %v684 = vld [vmem:[#allocation4] sm:$0xf]
          %v749 = vunpack.c.l.b16 %v620
          %v750 = vunpack.c.l.b16 %v621
          %v751 = vunpack.c.l.b16 %v622
          %v752 = vunpack.c.l.b16 %v623
          %v753 = vunpack.c.l.b16 %v624
          %v754 = vunpack.c.l.b16 %v625
          %v755 = vunpack.c.l.b16 %v626
          %v756 = vunpack.c.l.b16 %v627
          %v757 = vunpack.c.l.b16 %v628
          %v758 = vunpack.c.l.b16 %v629
          %v759 = vunpack.c.l.b16 %v630
          %v760 = vunpack.c.l.b16 %v631
          %v761 = vunpack.c.l.b16 %v632
          %v762 = vunpack.c.l.b16 %v633
          %v763 = vunpack.c.l.b16 %v634
          %v764 = vunpack.c.l.b16 %v635
          %v765 = vunpack.c.l.b16 %v636
          %v766 = vunpack.c.l.b16 %v637
          %v767 = vunpack.c.l.b16 %v638
          %v768 = vunpack.c.l.b16 %v639
          %v769 = vunpack.c.l.b16 %v640
          %v770 = vunpack.c.l.b16 %v641
          %v771 = vunpack.c.l.b16 %v642
          %v772 = vunpack.c.l.b16 %v643
          %v773 = vunpack.c.l.b16 %v644
          %v774 = vunpack.c.l.b16 %v645
          %v775 = vunpack.c.l.b16 %v646
          %v776 = vunpack.c.l.b16 %v647
          %v777 = vunpack.c.l.b16 %v648
          %v778 = vunpack.c.l.b16 %v649
          %v779 = vunpack.c.l.b16 %v650
          %v780 = vunpack.c.l.b16 %v651
          %v781 = vunpack.c.l.b16 %v652
          %v782 = vunpack.c.l.b16 %v653
          %v783 = vunpack.c.l.b16 %v654
          %v784 = vunpack.c.l.b16 %v655
          %v785 = vunpack.c.l.b16 %v656
          %v786 = vunpack.c.l.b16 %v657
          %v787 = vunpack.c.l.b16 %v658
          %v788 = vunpack.c.l.b16 %v659
          %v789 = vunpack.c.l.b16 %v660
          %v790 = vunpack.c.l.b16 %v661
          %v791 = vunpack.c.l.b16 %v662
          %v792 = vunpack.c.l.b16 %v663
          %v793 = vunpack.c.l.b16 %v664
          %v794 = vunpack.c.l.b16 %v665
          %v795 = vunpack.c.l.b16 %v666
          %v796 = vunpack.c.l.b16 %v667
          %v797 = vunpack.c.l.b16 %v668
          %v798 = vunpack.c.l.b16 %v669
          %v799 = vunpack.c.l.b16 %v670
          %v800 = vunpack.c.l.b16 %v671
          %v801 = vunpack.c.l.b16 %v672
          %v802 = vunpack.c.l.b16 %v673
          %v803 = vunpack.c.l.b16 %v674
          %v804 = vunpack.c.l.b16 %v675
          %v805 = vunpack.c.l.b16 %v676
          %v806 = vunpack.c.l.b16 %v677
          %v807 = vunpack.c.l.b16 %v678
          %v808 = vunpack.c.l.b16 %v679
          %v809 = vunpack.c.l.b16 %v680
          %v810 = vunpack.c.l.b16 %v681
          %v811 = vunpack.c.l.b16 %v682
          %v812 = vunpack.c.l.b16 %v683
          %v813 = vpack.c.b16 %v750, %v749
          %v814 = vpack.c.b16 %v752, %v751
          %v815 = vpack.c.b16 %v754, %v753
          %v816 = vpack.c.b16 %v756, %v755
          %v817 = vpack.c.b16 %v758, %v757
          %v818 = vpack.c.b16 %v760, %v759
          %v819 = vpack.c.b16 %v762, %v761
          %v820 = vpack.c.b16 %v764, %v763
          %v821 = vpack.c.b16 %v766, %v765
          %v822 = vpack.c.b16 %v768, %v767
          %v823 = vpack.c.b16 %v770, %v769
          %v824 = vpack.c.b16 %v772, %v771
          %v825 = vpack.c.b16 %v774, %v773
          %v826 = vpack.c.b16 %v776, %v775
          %v827 = vpack.c.b16 %v778, %v777
          %v828 = vpack.c.b16 %v780, %v779
          %v829 = vpack.c.b16 %v782, %v781
          %v830 = vpack.c.b16 %v784, %v783
          %v831 = vpack.c.b16 %v786, %v785
          %v832 = vpack.c.b16 %v788, %v787
          %v833 = vpack.c.b16 %v790, %v789
          %v834 = vpack.c.b16 %v792, %v791
          %v835 = vpack.c.b16 %v794, %v793
          %v836 = vpack.c.b16 %v796, %v795
          %v837 = vpack.c.b16 %v798, %v797
          %v838 = vpack.c.b16 %v800, %v799
          %v839 = vpack.c.b16 %v802, %v801
          %v840 = vpack.c.b16 %v804, %v803
          %v841 = vpack.c.b16 %v806, %v805
          %v842 = vpack.c.b16 %v808, %v807
          %v843 = vpack.c.b16 %v810, %v809
          %v844 = vpack.c.b16 %v812, %v811
          %v847 = vunpack.c.l.s4 1983009808
          %v848 = vunpack.c.0.s8 %v847
          %v849 = vlaneseq
          %v850 = vshrl.u32 %v849, 7
          %v851 = vsub.s32 %v848, %v850
          %v852 = vrot.slane %v684, %v851
          %v853 = vcombine.high %v852, %v852
          %vm854 = vcmask 31744
          %v856 = vsel %vm854, %v813, 0
          %v859 = vsel %vm854, %v814, 0
          %v862 = vsel %vm854, %v815, 0
          %v865 = vsel %vm854, %v816, 0
          %v868 = vsel %vm854, %v817, 0
          %v871 = vsel %vm854, %v818, 0
          %v874 = vsel %vm854, %v819, 0
          %v877 = vsel %vm854, %v820, 0
          %v880 = vsel %vm854, %v821, 0
          %v883 = vsel %vm854, %v822, 0
          %v886 = vsel %vm854, %v823, 0
          %v889 = vsel %vm854, %v824, 0
          %v892 = vsel %vm854, %v825, 0
          %v895 = vsel %vm854, %v826, 0
          %v898 = vsel %vm854, %v827, 0
          %v901 = vsel %vm854, %v828, 0
          %v904 = vsel %vm854, %v829, 0
          %v907 = vsel %vm854, %v830, 0
          %v910 = vsel %vm854, %v831, 0
          %v913 = vsel %vm854, %v832, 0
          %v916 = vsel %vm854, %v833, 0
          %v919 = vsel %vm854, %v834, 0
          %v922 = vsel %vm854, %v835, 0
          %v925 = vsel %vm854, %v836, 0
          %v928 = vsel %vm854, %v837, 0
          %v931 = vsel %vm854, %v838, 0
          %v934 = vsel %vm854, %v839, 0
          %v937 = vsel %vm854, %v840, 0
          %v940 = vsel %vm854, %v841, 0
          %v943 = vsel %vm854, %v842, 0
          %v946 = vsel %vm854, %v843, 0
          %v949 = vsel %vm854, %v844, 0
          %vm951 = vcmask 1041408
          %v953 = vsel %vm951, %v852, 0
          %v956 = vsel %vm951, %v853, 0
          %958 = vmatprep.subr.bf16.mxu0 0
          %959 = vmatpush1.bf16.msra.mxu0 0
          %960 = vmatprep.subr.bf16.mxu0 0
          %961 = vmatpush1.bf16.msra.mxu0 0
          %962 = vmatprep.subr.bf16.mxu0 0
          %963 = vmatpush1.bf16.msra.mxu0 0
          %964 = vmatprep.subr.bf16.mxu0 0
          %965 = vmatpush1.bf16.msra.mxu0 0
          %966 = vmatprep.subr.bf16.mxu0 0
          %967 = vmatpush1.bf16.msra.mxu0 0
          %968 = vmatprep.subr.bf16.mxu0 0
          %969 = vmatpush1.bf16.msra.mxu0 0
          %970 = vmatprep.subr.bf16.mxu0 0
          %971 = vmatpush1.bf16.msra.mxu0 0
          %972 = vmatprep.subr.bf16.mxu0 %v956
          %973 = vmatpush1.bf16.msra.mxu0 %v953
          %974 = vmatprep.subr.bf16.mxu0 0
          %975 = vmatpush2.bf16.msra.mxu0 0
          %976 = vmatprep.subr.bf16.mxu0 0
          %977 = vmatpush2.bf16.msra.mxu0 0
          %978 = vmatprep.subr.bf16.mxu0 0
          %979 = vmatpush2.bf16.msra.mxu0 0
          %980 = vmatprep.subr.bf16.mxu0 0
          %981 = vmatpush2.bf16.msra.mxu0 0
          %982 = vmatprep.subr.bf16.mxu0 0
          %983 = vmatpush2.bf16.msra.mxu0 0
          %984 = vmatprep.subr.bf16.mxu0 0
          %985 = vmatpush2.bf16.msra.mxu0 0
          %986 = vmatprep.subr.bf16.mxu0 0
          %987 = vmatpush2.bf16.msra.mxu0 0
          %988 = vmatprep.subr.bf16.mxu0 0
          %989 = vmatpush2.bf16.msra.mxu0 0
          %990 = vmatprep.mubr.bf16.mxu0 0
          %991 = vmatmul.mubr.bf16.gmra.mxu0 %v856
          %v992 = vpop.f32.mrf.mxu0
          %v993 = vadd.f32 0.0, %v992
          %v994 = vpop.f32.mrf.mxu0
          %v995 = vadd.f32 0.0, %v994
          %v996 = vpop.f32.mrf.mxu0
          %v997 = vadd.f32 0.0, %v996
          %v998 = vpop.f32.mrf.mxu0
          %v999 = vadd.f32 0.0, %v998
          %1000 = vmatprep.mubr.bf16.mxu0 0
          %1001 = vmatmul.mubr.bf16.gmra.mxu0 %v859
          %v1002 = vpop.f32.mrf.mxu0
          %v1003 = vadd.f32 0.0, %v1002
          %v1004 = vpop.f32.mrf.mxu0
          %v1005 = vadd.f32 0.0, %v1004
          %v1006 = vpop.f32.mrf.mxu0
          %v1007 = vadd.f32 0.0, %v1006
          %v1008 = vpop.f32.mrf.mxu0
          %v1009 = vadd.f32 0.0, %v1008
          %1010 = vmatprep.mubr.bf16.mxu0 0
          %1011 = vmatmul.mubr.bf16.gmra.mxu0 %v862
          %v1012 = vpop.f32.mrf.mxu0
          %v1013 = vadd.f32 0.0, %v1012
          %v1014 = vpop.f32.mrf.mxu0
          %v1015 = vadd.f32 0.0, %v1014
          %v1016 = vpop.f32.mrf.mxu0
          %v1017 = vadd.f32 0.0, %v1016
          %v1018 = vpop.f32.mrf.mxu0
          %v1019 = vadd.f32 0.0, %v1018
          %1020 = vmatprep.mubr.bf16.mxu0 0
          %1021 = vmatmul.mubr.bf16.gmra.mxu0 %v865
          %v1022 = vpop.f32.mrf.mxu0
          %v1023 = vadd.f32 0.0, %v1022
          %v1024 = vpop.f32.mrf.mxu0
          %v1025 = vadd.f32 0.0, %v1024
          %v1026 = vpop.f32.mrf.mxu0
          %v1027 = vadd.f32 0.0, %v1026
          %v1028 = vpop.f32.mrf.mxu0
          %v1029 = vadd.f32 0.0, %v1028
          %1030 = vmatprep.mubr.bf16.mxu0 0
          %1031 = vmatmul.mubr.bf16.gmra.mxu0 %v868
          %v1032 = vpop.f32.mrf.mxu0
          %v1033 = vadd.f32 0.0, %v1032
          %v1034 = vpop.f32.mrf.mxu0
          %v1035 = vadd.f32 0.0, %v1034
          %v1036 = vpop.f32.mrf.mxu0
          %v1037 = vadd.f32 0.0, %v1036
          %v1038 = vpop.f32.mrf.mxu0
          %v1039 = vadd.f32 0.0, %v1038
          %1040 = vmatprep.mubr.bf16.mxu0 0
          %1041 = vmatmul.mubr.bf16.gmra.mxu0 %v871
          %v1042 = vpop.f32.mrf.mxu0
          %v1043 = vadd.f32 0.0, %v1042
          %v1044 = vpop.f32.mrf.mxu0
          %v1045 = vadd.f32 0.0, %v1044
          %v1046 = vpop.f32.mrf.mxu0
          %v1047 = vadd.f32 0.0, %v1046
          %v1048 = vpop.f32.mrf.mxu0
          %v1049 = vadd.f32 0.0, %v1048
          %1050 = vmatprep.mubr.bf16.mxu0 0
          %1051 = vmatmul.mubr.bf16.gmra.mxu0 %v874
          %v1052 = vpop.f32.mrf.mxu0
          %v1053 = vadd.f32 0.0, %v1052
          %v1054 = vpop.f32.mrf.mxu0
          %v1055 = vadd.f32 0.0, %v1054
          %v1056 = vpop.f32.mrf.mxu0
          %v1057 = vadd.f32 0.0, %v1056
          %v1058 = vpop.f32.mrf.mxu0
          %v1059 = vadd.f32 0.0, %v1058
          %1060 = vmatprep.mubr.bf16.mxu0 0
          %1061 = vmatmul.mubr.bf16.gmra.mxu0 %v877
          %v1062 = vpop.f32.mrf.mxu0
          %v1063 = vadd.f32 0.0, %v1062
          %v1064 = vpop.f32.mrf.mxu0
          %v1065 = vadd.f32 0.0, %v1064
          %v1066 = vpop.f32.mrf.mxu0
          %v1067 = vadd.f32 0.0, %v1066
          %v1068 = vpop.f32.mrf.mxu0
          %v1069 = vadd.f32 0.0, %v1068
          %1070 = vmatprep.mubr.bf16.mxu0 0
          %1071 = vmatmul.mubr.bf16.gmra.mxu0 %v880
          %v1072 = vpop.f32.mrf.mxu0
          %v1073 = vadd.f32 0.0, %v1072
          %v1074 = vpop.f32.mrf.mxu0
          %v1075 = vadd.f32 0.0, %v1074
          %v1076 = vpop.f32.mrf.mxu0
          %v1077 = vadd.f32 0.0, %v1076
          %v1078 = vpop.f32.mrf.mxu0
          %v1079 = vadd.f32 0.0, %v1078
          %1080 = vmatprep.mubr.bf16.mxu0 0
          %1081 = vmatmul.mubr.bf16.gmra.mxu0 %v883
          %v1082 = vpop.f32.mrf.mxu0
          %v1083 = vadd.f32 0.0, %v1082
          %v1084 = vpop.f32.mrf.mxu0
          %v1085 = vadd.f32 0.0, %v1084
          %v1086 = vpop.f32.mrf.mxu0
          %v1087 = vadd.f32 0.0, %v1086
          %v1088 = vpop.f32.mrf.mxu0
          %v1089 = vadd.f32 0.0, %v1088
          %1090 = vmatprep.mubr.bf16.mxu0 0
          %1091 = vmatmul.mubr.bf16.gmra.mxu0 %v886
          %v1092 = vpop.f32.mrf.mxu0
          %v1093 = vadd.f32 0.0, %v1092
          %v1094 = vpop.f32.mrf.mxu0
          %v1095 = vadd.f32 0.0, %v1094
          %v1096 = vpop.f32.mrf.mxu0
          %v1097 = vadd.f32 0.0, %v1096
          %v1098 = vpop.f32.mrf.mxu0
          %v1099 = vadd.f32 0.0, %v1098
          %1100 = vmatprep.mubr.bf16.mxu0 0
          %1101 = vmatmul.mubr.bf16.gmra.mxu0 %v889
          %v1102 = vpop.f32.mrf.mxu0
          %v1103 = vadd.f32 0.0, %v1102
          %v1104 = vpop.f32.mrf.mxu0
          %v1105 = vadd.f32 0.0, %v1104
          %v1106 = vpop.f32.mrf.mxu0
          %v1107 = vadd.f32 0.0, %v1106
          %v1108 = vpop.f32.mrf.mxu0
          %v1109 = vadd.f32 0.0, %v1108
          %1110 = vmatprep.mubr.bf16.mxu0 0
          %1111 = vmatmul.mubr.bf16.gmra.mxu0 %v892
          %v1112 = vpop.f32.mrf.mxu0
          %v1113 = vadd.f32 0.0, %v1112
          %v1114 = vpop.f32.mrf.mxu0
          %v1115 = vadd.f32 0.0, %v1114
          %v1116 = vpop.f32.mrf.mxu0
          %v1117 = vadd.f32 0.0, %v1116
          %v1118 = vpop.f32.mrf.mxu0
          %v1119 = vadd.f32 0.0, %v1118
          %1120 = vmatprep.mubr.bf16.mxu0 0
          %1121 = vmatmul.mubr.bf16.gmra.mxu0 %v895
          %v1122 = vpop.f32.mrf.mxu0
          %v1123 = vadd.f32 0.0, %v1122
          %v1124 = vpop.f32.mrf.mxu0
          %v1125 = vadd.f32 0.0, %v1124
          %v1126 = vpop.f32.mrf.mxu0
          %v1127 = vadd.f32 0.0, %v1126
          %v1128 = vpop.f32.mrf.mxu0
          %v1129 = vadd.f32 0.0, %v1128
          %1130 = vmatprep.mubr.bf16.mxu0 0
          %1131 = vmatmul.mubr.bf16.gmra.mxu0 %v898
          %v1132 = vpop.f32.mrf.mxu0
          %v1133 = vadd.f32 0.0, %v1132
          %v1134 = vpop.f32.mrf.mxu0
          %v1135 = vadd.f32 0.0, %v1134
          %v1136 = vpop.f32.mrf.mxu0
          %v1137 = vadd.f32 0.0, %v1136
          %v1138 = vpop.f32.mrf.mxu0
          %v1139 = vadd.f32 0.0, %v1138
          %1140 = vmatprep.mubr.bf16.mxu0 0
          %1141 = vmatmul.mubr.bf16.gmra.mxu0 %v901
          %v1142 = vpop.f32.mrf.mxu0
          %v1143 = vadd.f32 0.0, %v1142
          %v1144 = vpop.f32.mrf.mxu0
          %v1145 = vadd.f32 0.0, %v1144
          %v1146 = vpop.f32.mrf.mxu0
          %v1147 = vadd.f32 0.0, %v1146
          %v1148 = vpop.f32.mrf.mxu0
          %v1149 = vadd.f32 0.0, %v1148
          %1150 = vmatprep.mubr.bf16.mxu0 0
          %1151 = vmatmul.mubr.bf16.gmra.mxu0 %v904
          %v1152 = vpop.f32.mrf.mxu0
          %v1153 = vadd.f32 0.0, %v1152
          %v1154 = vpop.f32.mrf.mxu0
          %v1155 = vadd.f32 0.0, %v1154
          %v1156 = vpop.f32.mrf.mxu0
          %v1157 = vadd.f32 0.0, %v1156
          %v1158 = vpop.f32.mrf.mxu0
          %v1159 = vadd.f32 0.0, %v1158
          %1160 = vmatprep.mubr.bf16.mxu0 0
          %1161 = vmatmul.mubr.bf16.gmra.mxu0 %v907
          %v1162 = vpop.f32.mrf.mxu0
          %v1163 = vadd.f32 0.0, %v1162
          %v1164 = vpop.f32.mrf.mxu0
          %v1165 = vadd.f32 0.0, %v1164
          %v1166 = vpop.f32.mrf.mxu0
          %v1167 = vadd.f32 0.0, %v1166
          %v1168 = vpop.f32.mrf.mxu0
          %v1169 = vadd.f32 0.0, %v1168
          %1170 = vmatprep.mubr.bf16.mxu0 0
          %1171 = vmatmul.mubr.bf16.gmra.mxu0 %v910
          %v1172 = vpop.f32.mrf.mxu0
          %v1173 = vadd.f32 0.0, %v1172
          %v1174 = vpop.f32.mrf.mxu0
          %v1175 = vadd.f32 0.0, %v1174
          %v1176 = vpop.f32.mrf.mxu0
          %v1177 = vadd.f32 0.0, %v1176
          %v1178 = vpop.f32.mrf.mxu0
          %v1179 = vadd.f32 0.0, %v1178
          %1180 = vmatprep.mubr.bf16.mxu0 0
          %1181 = vmatmul.mubr.bf16.gmra.mxu0 %v913
          %v1182 = vpop.f32.mrf.mxu0
          %v1183 = vadd.f32 0.0, %v1182
          %v1184 = vpop.f32.mrf.mxu0
          %v1185 = vadd.f32 0.0, %v1184
          %v1186 = vpop.f32.mrf.mxu0
          %v1187 = vadd.f32 0.0, %v1186
          %v1188 = vpop.f32.mrf.mxu0
          %v1189 = vadd.f32 0.0, %v1188
          %1190 = vmatprep.mubr.bf16.mxu0 0
          %1191 = vmatmul.mubr.bf16.gmra.mxu0 %v916
          %v1192 = vpop.f32.mrf.mxu0
          %v1193 = vadd.f32 0.0, %v1192
          %v1194 = vpop.f32.mrf.mxu0
          %v1195 = vadd.f32 0.0, %v1194
          %v1196 = vpop.f32.mrf.mxu0
          %v1197 = vadd.f32 0.0, %v1196
          %v1198 = vpop.f32.mrf.mxu0
          %v1199 = vadd.f32 0.0, %v1198
          %1200 = vmatprep.mubr.bf16.mxu0 0
          %1201 = vmatmul.mubr.bf16.gmra.mxu0 %v919
          %v1202 = vpop.f32.mrf.mxu0
          %v1203 = vadd.f32 0.0, %v1202
          %v1204 = vpop.f32.mrf.mxu0
          %v1205 = vadd.f32 0.0, %v1204
          %v1206 = vpop.f32.mrf.mxu0
          %v1207 = vadd.f32 0.0, %v1206
          %v1208 = vpop.f32.mrf.mxu0
          %v1209 = vadd.f32 0.0, %v1208
          %1210 = vmatprep.mubr.bf16.mxu0 0
          %1211 = vmatmul.mubr.bf16.gmra.mxu0 %v922
          %v1212 = vpop.f32.mrf.mxu0
          %v1213 = vadd.f32 0.0, %v1212
          %v1214 = vpop.f32.mrf.mxu0
          %v1215 = vadd.f32 0.0, %v1214
          %v1216 = vpop.f32.mrf.mxu0
          %v1217 = vadd.f32 0.0, %v1216
          %v1218 = vpop.f32.mrf.mxu0
          %v1219 = vadd.f32 0.0, %v1218
          %1220 = vmatprep.mubr.bf16.mxu0 0
          %1221 = vmatmul.mubr.bf16.gmra.mxu0 %v925
          %v1222 = vpop.f32.mrf.mxu0
          %v1223 = vadd.f32 0.0, %v1222
          %v1224 = vpop.f32.mrf.mxu0
          %v1225 = vadd.f32 0.0, %v1224
          %v1226 = vpop.f32.mrf.mxu0
          %v1227 = vadd.f32 0.0, %v1226
          %v1228 = vpop.f32.mrf.mxu0
          %v1229 = vadd.f32 0.0, %v1228
          %1230 = vmatprep.mubr.bf16.mxu0 0
          %1231 = vmatmul.mubr.bf16.gmra.mxu0 %v928
          %v1232 = vpop.f32.mrf.mxu0
          %v1233 = vadd.f32 0.0, %v1232
          %v1234 = vpop.f32.mrf.mxu0
          %v1235 = vadd.f32 0.0, %v1234
          %v1236 = vpop.f32.mrf.mxu0
          %v1237 = vadd.f32 0.0, %v1236
          %v1238 = vpop.f32.mrf.mxu0
          %v1239 = vadd.f32 0.0, %v1238
          %1240 = vmatprep.mubr.bf16.mxu0 0
          %1241 = vmatmul.mubr.bf16.gmra.mxu0 %v931
          %v1242 = vpop.f32.mrf.mxu0
          %v1243 = vadd.f32 0.0, %v1242
          %v1244 = vpop.f32.mrf.mxu0
          %v1245 = vadd.f32 0.0, %v1244
          %v1246 = vpop.f32.mrf.mxu0
          %v1247 = vadd.f32 0.0, %v1246
          %v1248 = vpop.f32.mrf.mxu0
          %v1249 = vadd.f32 0.0, %v1248
          %1250 = vmatprep.mubr.bf16.mxu0 0
          %1251 = vmatmul.mubr.bf16.gmra.mxu0 %v934
          %v1252 = vpop.f32.mrf.mxu0
          %v1253 = vadd.f32 0.0, %v1252
          %v1254 = vpop.f32.mrf.mxu0
          %v1255 = vadd.f32 0.0, %v1254
          %v1256 = vpop.f32.mrf.mxu0
          %v1257 = vadd.f32 0.0, %v1256
          %v1258 = vpop.f32.mrf.mxu0
          %v1259 = vadd.f32 0.0, %v1258
          %1260 = vmatprep.mubr.bf16.mxu0 0
          %1261 = vmatmul.mubr.bf16.gmra.mxu0 %v937
          %v1262 = vpop.f32.mrf.mxu0
          %v1263 = vadd.f32 0.0, %v1262
          %v1264 = vpop.f32.mrf.mxu0
          %v1265 = vadd.f32 0.0, %v1264
          %v1266 = vpop.f32.mrf.mxu0
          %v1267 = vadd.f32 0.0, %v1266
          %v1268 = vpop.f32.mrf.mxu0
          %v1269 = vadd.f32 0.0, %v1268
          %1270 = vmatprep.mubr.bf16.mxu0 0
          %1271 = vmatmul.mubr.bf16.gmra.mxu0 %v940
          %v1272 = vpop.f32.mrf.mxu0
          %v1273 = vadd.f32 0.0, %v1272
          %v1274 = vpop.f32.mrf.mxu0
          %v1275 = vadd.f32 0.0, %v1274
          %v1276 = vpop.f32.mrf.mxu0
          %v1277 = vadd.f32 0.0, %v1276
          %v1278 = vpop.f32.mrf.mxu0
          %v1279 = vadd.f32 0.0, %v1278
          %1280 = vmatprep.mubr.bf16.mxu0 0
          %1281 = vmatmul.mubr.bf16.gmra.mxu0 %v943
          %v1282 = vpop.f32.mrf.mxu0
          %v1283 = vadd.f32 0.0, %v1282
          %v1284 = vpop.f32.mrf.mxu0
          %v1285 = vadd.f32 0.0, %v1284
          %v1286 = vpop.f32.mrf.mxu0
          %v1287 = vadd.f32 0.0, %v1286
          %v1288 = vpop.f32.mrf.mxu0
          %v1289 = vadd.f32 0.0, %v1288
          %1290 = vmatprep.mubr.bf16.mxu0 0
          %1291 = vmatmul.mubr.bf16.gmra.mxu0 %v946
          %v1292 = vpop.f32.mrf.mxu0
          %v1293 = vadd.f32 0.0, %v1292
          %v1294 = vpop.f32.mrf.mxu0
          %v1295 = vadd.f32 0.0, %v1294
          %v1296 = vpop.f32.mrf.mxu0
          %v1297 = vadd.f32 0.0, %v1296
          %v1298 = vpop.f32.mrf.mxu0
          %v1299 = vadd.f32 0.0, %v1298
          %1300 = vmatprep.mubr.bf16.mxu0 0
          %1301 = vmatmul.mubr.bf16.gmra.mxu0 %v949
          %v1302 = vpop.f32.mrf.mxu0
          %v1303 = vadd.f32 0.0, %v1302
          %v1304 = vpop.f32.mrf.mxu0
          %v1305 = vadd.f32 0.0, %v1304
          %v1306 = vpop.f32.mrf.mxu0
          %v1307 = vadd.f32 0.0, %v1306
          %v1308 = vpop.f32.mrf.mxu0
          %v1309 = vadd.f32 0.0, %v1308
          %1310 = vdwg.mxu0
          %v1311 = vld [vmem:[#allocation7] sm:$0x3]
          %v1312 = vld [vmem:[#allocation9] sm:$0x3]
          %v1313 = vadd.f32 %v993, %v997
          %v1314 = vadd.f32 %v1313, %v1003
          %v1315 = vadd.f32 %v1314, %v1007
          %v1316 = vadd.f32 %v1315, %v1013
          %v1317 = vadd.f32 %v1316, %v1017
          %v1318 = vadd.f32 %v1317, %v1023
          %v1319 = vadd.f32 %v1318, %v1027
          %v1320 = vadd.f32 %v1319, %v1033
          %v1321 = vadd.f32 %v1320, %v1037
          %v1322 = vadd.f32 %v1321, %v1043
          %v1323 = vadd.f32 %v1322, %v1047
          %v1324 = vadd.f32 %v1323, %v1053
          %v1325 = vadd.f32 %v1324, %v1057
          %v1326 = vadd.f32 %v1325, %v1063
          %v1327 = vadd.f32 %v1326, %v1067
          %v1328 = vadd.f32 %v1327, %v1073
          %v1329 = vadd.f32 %v1328, %v1077
          %v1330 = vadd.f32 %v1329, %v1083
          %v1331 = vadd.f32 %v1330, %v1087
          %v1332 = vadd.f32 %v1331, %v1093
          %v1333 = vadd.f32 %v1332, %v1097
          %v1334 = vadd.f32 %v1333, %v1103
          %v1335 = vadd.f32 %v1334, %v1107
          %v1336 = vadd.f32 %v1335, %v1113
          %v1337 = vadd.f32 %v1336, %v1117
          %v1338 = vadd.f32 %v1337, %v1123
          %v1339 = vadd.f32 %v1338, %v1127
          %v1340 = vadd.f32 %v1339, %v1133
          %v1341 = vadd.f32 %v1340, %v1137
          %v1342 = vadd.f32 %v1341, %v1143
          %v1343 = vadd.f32 %v1342, %v1147
          %v1344 = vadd.f32 %v1343, %v1153
          %v1345 = vadd.f32 %v1344, %v1157
          %v1346 = vadd.f32 %v1345, %v1163
          %v1347 = vadd.f32 %v1346, %v1167
          %v1348 = vadd.f32 %v1347, %v1173
          %v1349 = vadd.f32 %v1348, %v1177
          %v1350 = vadd.f32 %v1349, %v1183
          %v1351 = vadd.f32 %v1350, %v1187
          %v1352 = vadd.f32 %v1351, %v1193
          %v1353 = vadd.f32 %v1352, %v1197
          %v1354 = vadd.f32 %v1353, %v1203
          %v1355 = vadd.f32 %v1354, %v1207
          %v1356 = vadd.f32 %v1355, %v1213
          %v1357 = vadd.f32 %v1356, %v1217
          %v1358 = vadd.f32 %v1357, %v1223
          %v1359 = vadd.f32 %v1358, %v1227
          %v1360 = vadd.f32 %v1359, %v1233
          %v1361 = vadd.f32 %v1360, %v1237
          %v1362 = vadd.f32 %v1361, %v1243
          %v1363 = vadd.f32 %v1362, %v1247
          %v1364 = vadd.f32 %v1363, %v1253
          %v1365 = vadd.f32 %v1364, %v1257
          %v1366 = vadd.f32 %v1365, %v1263
          %v1367 = vadd.f32 %v1366, %v1267
          %v1368 = vadd.f32 %v1367, %v1273
          %v1369 = vadd.f32 %v1368, %v1277
          %v1370 = vadd.f32 %v1369, %v1283
          %v1371 = vadd.f32 %v1370, %v1287
          %v1372 = vadd.f32 %v1371, %v1293
          %v1373 = vadd.f32 %v1372, %v1297
          %v1374 = vadd.f32 %v1373, %v1303
          %v1375 = vadd.f32 %v1374, %v1307
          %v1376 = vrot.slane %v1375, 4
          %v1377 = vadd.f32 %v1375, %v1376
          %v1378 = vrot.slane %v1377, 2
          %v1379 = vadd.f32 %v1377, %v1378
          %v1380 = vrot.slane %v1379, 1
          %v1381 = vadd.f32 %v1379, %v1380
          %v1382 = vadd.f32 %v995, %v999
          %v1383 = vadd.f32 %v1382, %v1005
          %v1384 = vadd.f32 %v1383, %v1009
          %v1385 = vadd.f32 %v1384, %v1015
          %v1386 = vadd.f32 %v1385, %v1019
          %v1387 = vadd.f32 %v1386, %v1025
          %v1388 = vadd.f32 %v1387, %v1029
          %v1389 = vadd.f32 %v1388, %v1035
          %v1390 = vadd.f32 %v1389, %v1039
          %v1391 = vadd.f32 %v1390, %v1045
          %v1392 = vadd.f32 %v1391, %v1049
          %v1393 = vadd.f32 %v1392, %v1055
          %v1394 = vadd.f32 %v1393, %v1059
          %v1395 = vadd.f32 %v1394, %v1065
          %v1396 = vadd.f32 %v1395, %v1069
          %v1397 = vadd.f32 %v1396, %v1075
          %v1398 = vadd.f32 %v1397, %v1079
          %v1399 = vadd.f32 %v1398, %v1085
          %v1400 = vadd.f32 %v1399, %v1089
          %v1401 = vadd.f32 %v1400, %v1095
          %v1402 = vadd.f32 %v1401, %v1099
          %v1403 = vadd.f32 %v1402, %v1105
          %v1404 = vadd.f32 %v1403, %v1109
          %v1405 = vadd.f32 %v1404, %v1115
          %v1406 = vadd.f32 %v1405, %v1119
          %v1407 = vadd.f32 %v1406, %v1125
          %v1408 = vadd.f32 %v1407, %v1129
          %v1409 = vadd.f32 %v1408, %v1135
          %v1410 = vadd.f32 %v1409, %v1139
          %v1411 = vadd.f32 %v1410, %v1145
          %v1412 = vadd.f32 %v1411, %v1149
          %v1413 = vadd.f32 %v1412, %v1155
          %v1414 = vadd.f32 %v1413, %v1159
          %v1415 = vadd.f32 %v1414, %v1165
          %v1416 = vadd.f32 %v1415, %v1169
          %v1417 = vadd.f32 %v1416, %v1175
          %v1418 = vadd.f32 %v1417, %v1179
          %v1419 = vadd.f32 %v1418, %v1185
          %v1420 = vadd.f32 %v1419, %v1189
          %v1421 = vadd.f32 %v1420, %v1195
          %v1422 = vadd.f32 %v1421, %v1199
          %v1423 = vadd.f32 %v1422, %v1205
          %v1424 = vadd.f32 %v1423, %v1209
          %v1425 = vadd.f32 %v1424, %v1215
          %v1426 = vadd.f32 %v1425, %v1219
          %v1427 = vadd.f32 %v1426, %v1225
          %v1428 = vadd.f32 %v1427, %v1229
          %v1429 = vadd.f32 %v1428, %v1235
          %v1430 = vadd.f32 %v1429, %v1239
          %v1431 = vadd.f32 %v1430, %v1245
          %v1432 = vadd.f32 %v1431, %v1249
          %v1433 = vadd.f32 %v1432, %v1255
          %v1434 = vadd.f32 %v1433, %v1259
          %v1435 = vadd.f32 %v1434, %v1265
          %v1436 = vadd.f32 %v1435, %v1269
          %v1437 = vadd.f32 %v1436, %v1275
          %v1438 = vadd.f32 %v1437, %v1279
          %v1439 = vadd.f32 %v1438, %v1285
          %v1440 = vadd.f32 %v1439, %v1289
          %v1441 = vadd.f32 %v1440, %v1295
          %v1442 = vadd.f32 %v1441, %v1299
          %v1443 = vadd.f32 %v1442, %v1305
          %v1444 = vadd.f32 %v1443, %v1309
          %v1445 = vrot.slane %v1444, 4
          %v1446 = vadd.f32 %v1444, %v1445
          %v1447 = vrot.slane %v1446, 2
          %v1448 = vadd.f32 %v1446, %v1447
          %v1449 = vrot.slane %v1448, 1
          %v1450 = vadd.f32 %v1448, %v1449
          %v1451 = vrcp.pop 512.0
          %v1452 = vmul.f32 %v1381, %v1451
          %v1453 = vmul.f32 %v1450, %v1451
          %v1454 = vmul.f32 %v993, %v993
          %v1455 = vmul.f32 %v995, %v995
          %v1456 = vmul.f32 %v997, %v997
          %v1457 = vmul.f32 %v999, %v999
          %v1458 = vmul.f32 %v1003, %v1003
          %v1459 = vmul.f32 %v1005, %v1005
          %v1460 = vmul.f32 %v1007, %v1007
          %v1461 = vmul.f32 %v1009, %v1009
          %v1462 = vmul.f32 %v1013, %v1013
          %v1463 = vmul.f32 %v1015, %v1015
          %v1464 = vmul.f32 %v1017, %v1017
          %v1465 = vmul.f32 %v1019, %v1019
          %v1466 = vmul.f32 %v1023, %v1023
          %v1467 = vmul.f32 %v1025, %v1025
          %v1468 = vmul.f32 %v1027, %v1027
          %v1469 = vmul.f32 %v1029, %v1029
          %v1470 = vmul.f32 %v1033, %v1033
          %v1471 = vmul.f32 %v1035, %v1035
          %v1472 = vmul.f32 %v1037, %v1037
          %v1473 = vmul.f32 %v1039, %v1039
          %v1474 = vmul.f32 %v1043, %v1043
          %v1475 = vmul.f32 %v1045, %v1045
          %v1476 = vmul.f32 %v1047, %v1047
          %v1477 = vmul.f32 %v1049, %v1049
          %v1478 = vmul.f32 %v1053, %v1053
          %v1479 = vmul.f32 %v1055, %v1055
          %v1480 = vmul.f32 %v1057, %v1057
          %v1481 = vmul.f32 %v1059, %v1059
          %v1482 = vmul.f32 %v1063, %v1063
          %v1483 = vmul.f32 %v1065, %v1065
          %v1484 = vmul.f32 %v1067, %v1067
          %v1485 = vmul.f32 %v1069, %v1069
          %v1486 = vmul.f32 %v1073, %v1073
          %v1487 = vmul.f32 %v1075, %v1075
          %v1488 = vmul.f32 %v1077, %v1077
          %v1489 = vmul.f32 %v1079, %v1079
          %v1490 = vmul.f32 %v1083, %v1083
          %v1491 = vmul.f32 %v1085, %v1085
          %v1492 = vmul.f32 %v1087, %v1087
          %v1493 = vmul.f32 %v1089, %v1089
          %v1494 = vmul.f32 %v1093, %v1093
          %v1495 = vmul.f32 %v1095, %v1095
          %v1496 = vmul.f32 %v1097, %v1097
          %v1497 = vmul.f32 %v1099, %v1099
          %v1498 = vmul.f32 %v1103, %v1103
          %v1499 = vmul.f32 %v1105, %v1105
          %v1500 = vmul.f32 %v1107, %v1107
          %v1501 = vmul.f32 %v1109, %v1109
          %v1502 = vmul.f32 %v1113, %v1113
          %v1503 = vmul.f32 %v1115, %v1115
          %v1504 = vmul.f32 %v1117, %v1117
          %v1505 = vmul.f32 %v1119, %v1119
          %v1506 = vmul.f32 %v1123, %v1123
          %v1507 = vmul.f32 %v1125, %v1125
          %v1508 = vmul.f32 %v1127, %v1127
          %v1509 = vmul.f32 %v1129, %v1129
          %v1510 = vmul.f32 %v1133, %v1133
          %v1511 = vmul.f32 %v1135, %v1135
          %v1512 = vmul.f32 %v1137, %v1137
          %v1513 = vmul.f32 %v1139, %v1139
          %v1514 = vmul.f32 %v1143, %v1143
          %v1515 = vmul.f32 %v1145, %v1145
          %v1516 = vmul.f32 %v1147, %v1147
          %v1517 = vmul.f32 %v1149, %v1149
          %v1518 = vmul.f32 %v1153, %v1153
          %v1519 = vmul.f32 %v1155, %v1155
          %v1520 = vmul.f32 %v1157, %v1157
          %v1521 = vmul.f32 %v1159, %v1159
          %v1522 = vmul.f32 %v1163, %v1163
          %v1523 = vmul.f32 %v1165, %v1165
          %v1524 = vmul.f32 %v1167, %v1167
          %v1525 = vmul.f32 %v1169, %v1169
          %v1526 = vmul.f32 %v1173, %v1173
          %v1527 = vmul.f32 %v1175, %v1175
          %v1528 = vmul.f32 %v1177, %v1177
          %v1529 = vmul.f32 %v1179, %v1179
          %v1530 = vmul.f32 %v1183, %v1183
          %v1531 = vmul.f32 %v1185, %v1185
          %v1532 = vmul.f32 %v1187, %v1187
          %v1533 = vmul.f32 %v1189, %v1189
          %v1534 = vmul.f32 %v1193, %v1193
          %v1535 = vmul.f32 %v1195, %v1195
          %v1536 = vmul.f32 %v1197, %v1197
          %v1537 = vmul.f32 %v1199, %v1199
          %v1538 = vmul.f32 %v1203, %v1203
          %v1539 = vmul.f32 %v1205, %v1205
          %v1540 = vmul.f32 %v1207, %v1207
          %v1541 = vmul.f32 %v1209, %v1209
          %v1542 = vmul.f32 %v1213, %v1213
          %v1543 = vmul.f32 %v1215, %v1215
          %v1544 = vmul.f32 %v1217, %v1217
          %v1545 = vmul.f32 %v1219, %v1219
          %v1546 = vmul.f32 %v1223, %v1223
          %v1547 = vmul.f32 %v1225, %v1225
          %v1548 = vmul.f32 %v1227, %v1227
          %v1549 = vmul.f32 %v1229, %v1229
          %v1550 = vmul.f32 %v1233, %v1233
          %v1551 = vmul.f32 %v1235, %v1235
          %v1552 = vmul.f32 %v1237, %v1237
          %v1553 = vmul.f32 %v1239, %v1239
          %v1554 = vmul.f32 %v1243, %v1243
          %v1555 = vmul.f32 %v1245, %v1245
          %v1556 = vmul.f32 %v1247, %v1247
          %v1557 = vmul.f32 %v1249, %v1249
          %v1558 = vmul.f32 %v1253, %v1253
          %v1559 = vmul.f32 %v1255, %v1255
          %v1560 = vmul.f32 %v1257, %v1257
          %v1561 = vmul.f32 %v1259, %v1259
          %v1562 = vmul.f32 %v1263, %v1263
          %v1563 = vmul.f32 %v1265, %v1265
          %v1564 = vmul.f32 %v1267, %v1267
          %v1565 = vmul.f32 %v1269, %v1269
          %v1566 = vmul.f32 %v1273, %v1273
          %v1567 = vmul.f32 %v1275, %v1275
          %v1568 = vmul.f32 %v1277, %v1277
          %v1569 = vmul.f32 %v1279, %v1279
          %v1570 = vmul.f32 %v1283, %v1283
          %v1571 = vmul.f32 %v1285, %v1285
          %v1572 = vmul.f32 %v1287, %v1287
          %v1573 = vmul.f32 %v1289, %v1289
          %v1574 = vmul.f32 %v1293, %v1293
          %v1575 = vmul.f32 %v1295, %v1295
          %v1576 = vmul.f32 %v1297, %v1297
          %v1577 = vmul.f32 %v1299, %v1299
          %v1578 = vmul.f32 %v1303, %v1303
          %v1579 = vmul.f32 %v1305, %v1305
          %v1580 = vmul.f32 %v1307, %v1307
          %v1581 = vmul.f32 %v1309, %v1309
          %v1582 = vadd.f32 %v1454, %v1456
          %v1583 = vadd.f32 %v1582, %v1458
          %v1584 = vadd.f32 %v1583, %v1460
          %v1585 = vadd.f32 %v1584, %v1462
          %v1586 = vadd.f32 %v1585, %v1464
          %v1587 = vadd.f32 %v1586, %v1466
          %v1588 = vadd.f32 %v1587, %v1468
          %v1589 = vadd.f32 %v1588, %v1470
          %v1590 = vadd.f32 %v1589, %v1472
          %v1591 = vadd.f32 %v1590, %v1474
          %v1592 = vadd.f32 %v1591, %v1476
          %v1593 = vadd.f32 %v1592, %v1478
          %v1594 = vadd.f32 %v1593, %v1480
          %v1595 = vadd.f32 %v1594, %v1482
          %v1596 = vadd.f32 %v1595, %v1484
          %v1597 = vadd.f32 %v1596, %v1486
          %v1598 = vadd.f32 %v1597, %v1488
          %v1599 = vadd.f32 %v1598, %v1490
          %v1600 = vadd.f32 %v1599, %v1492
          %v1601 = vadd.f32 %v1600, %v1494
          %v1602 = vadd.f32 %v1601, %v1496
          %v1603 = vadd.f32 %v1602, %v1498
          %v1604 = vadd.f32 %v1603, %v1500
          %v1605 = vadd.f32 %v1604, %v1502
          %v1606 = vadd.f32 %v1605, %v1504
          %v1607 = vadd.f32 %v1606, %v1506
          %v1608 = vadd.f32 %v1607, %v1508
          %v1609 = vadd.f32 %v1608, %v1510
          %v1610 = vadd.f32 %v1609, %v1512
          %v1611 = vadd.f32 %v1610, %v1514
          %v1612 = vadd.f32 %v1611, %v1516
          %v1613 = vadd.f32 %v1612, %v1518
          %v1614 = vadd.f32 %v1613, %v1520
          %v1615 = vadd.f32 %v1614, %v1522
          %v1616 = vadd.f32 %v1615, %v1524
          %v1617 = vadd.f32 %v1616, %v1526
          %v1618 = vadd.f32 %v1617, %v1528
          %v1619 = vadd.f32 %v1618, %v1530
          %v1620 = vadd.f32 %v1619, %v1532
          %v1621 = vadd.f32 %v1620, %v1534
          %v1622 = vadd.f32 %v1621, %v1536
          %v1623 = vadd.f32 %v1622, %v1538
          %v1624 = vadd.f32 %v1623, %v1540
          %v1625 = vadd.f32 %v1624, %v1542
          %v1626 = vadd.f32 %v1625, %v1544
          %v1627 = vadd.f32 %v1626, %v1546
          %v1628 = vadd.f32 %v1627, %v1548
          %v1629 = vadd.f32 %v1628, %v1550
          %v1630 = vadd.f32 %v1629, %v1552
          %v1631 = vadd.f32 %v1630, %v1554
          %v1632 = vadd.f32 %v1631, %v1556
          %v1633 = vadd.f32 %v1632, %v1558
          %v1634 = vadd.f32 %v1633, %v1560
          %v1635 = vadd.f32 %v1634, %v1562
          %v1636 = vadd.f32 %v1635, %v1564
          %v1637 = vadd.f32 %v1636, %v1566
          %v1638 = vadd.f32 %v1637, %v1568
          %v1639 = vadd.f32 %v1638, %v1570
          %v1640 = vadd.f32 %v1639, %v1572
          %v1641 = vadd.f32 %v1640, %v1574
          %v1642 = vadd.f32 %v1641, %v1576
          %v1643 = vadd.f32 %v1642, %v1578
          %v1644 = vadd.f32 %v1643, %v1580
          %v1645 = vrot.slane %v1644, 4
          %v1646 = vadd.f32 %v1644, %v1645
          %v1647 = vrot.slane %v1646, 2
          %v1648 = vadd.f32 %v1646, %v1647
          %v1649 = vrot.slane %v1648, 1
          %v1650 = vadd.f32 %v1648, %v1649
          %v1651 = vadd.f32 %v1455, %v1457
          %v1652 = vadd.f32 %v1651, %v1459
          %v1653 = vadd.f32 %v1652, %v1461
          %v1654 = vadd.f32 %v1653, %v1463
          %v1655 = vadd.f32 %v1654, %v1465
          %v1656 = vadd.f32 %v1655, %v1467
          %v1657 = vadd.f32 %v1656, %v1469
          %v1658 = vadd.f32 %v1657, %v1471
          %v1659 = vadd.f32 %v1658, %v1473
          %v1660 = vadd.f32 %v1659, %v1475
          %v1661 = vadd.f32 %v1660, %v1477
          %v1662 = vadd.f32 %v1661, %v1479
          %v1663 = vadd.f32 %v1662, %v1481
          %v1664 = vadd.f32 %v1663, %v1483
          %v1665 = vadd.f32 %v1664, %v1485
          %v1666 = vadd.f32 %v1665, %v1487
          %v1667 = vadd.f32 %v1666, %v1489
          %v1668 = vadd.f32 %v1667, %v1491
          %v1669 = vadd.f32 %v1668, %v1493
          %v1670 = vadd.f32 %v1669, %v1495
          %v1671 = vadd.f32 %v1670, %v1497
          %v1672 = vadd.f32 %v1671, %v1499
          %v1673 = vadd.f32 %v1672, %v1501
          %v1674 = vadd.f32 %v1673, %v1503
          %v1675 = vadd.f32 %v1674, %v1505
          %v1676 = vadd.f32 %v1675, %v1507
          %v1677 = vadd.f32 %v1676, %v1509
          %v1678 = vadd.f32 %v1677, %v1511
          %v1679 = vadd.f32 %v1678, %v1513
          %v1680 = vadd.f32 %v1679, %v1515
          %v1681 = vadd.f32 %v1680, %v1517
          %v1682 = vadd.f32 %v1681, %v1519
          %v1683 = vadd.f32 %v1682, %v1521
          %v1684 = vadd.f32 %v1683, %v1523
          %v1685 = vadd.f32 %v1684, %v1525
          %v1686 = vadd.f32 %v1685, %v1527
          %v1687 = vadd.f32 %v1686, %v1529
          %v1688 = vadd.f32 %v1687, %v1531
          %v1689 = vadd.f32 %v1688, %v1533
          %v1690 = vadd.f32 %v1689, %v1535
          %v1691 = vadd.f32 %v1690, %v1537
          %v1692 = vadd.f32 %v1691, %v1539
          %v1693 = vadd.f32 %v1692, %v1541
          %v1694 = vadd.f32 %v1693, %v1543
          %v1695 = vadd.f32 %v1694, %v1545
          %v1696 = vadd.f32 %v1695, %v1547
          %v1697 = vadd.f32 %v1696, %v1549
          %v1698 = vadd.f32 %v1697, %v1551
          %v1699 = vadd.f32 %v1698, %v1553
          %v1700 = vadd.f32 %v1699, %v1555
          %v1701 = vadd.f32 %v1700, %v1557
          %v1702 = vadd.f32 %v1701, %v1559
          %v1703 = vadd.f32 %v1702, %v1561
          %v1704 = vadd.f32 %v1703, %v1563
          %v1705 = vadd.f32 %v1704, %v1565
          %v1706 = vadd.f32 %v1705, %v1567
          %v1707 = vadd.f32 %v1706, %v1569
          %v1708 = vadd.f32 %v1707, %v1571
          %v1709 = vadd.f32 %v1708, %v1573
          %v1710 = vadd.f32 %v1709, %v1575
          %v1711 = vadd.f32 %v1710, %v1577
          %v1712 = vadd.f32 %v1711, %v1579
          %v1713 = vadd.f32 %v1712, %v1581
          %v1714 = vrot.slane %v1713, 4
          %v1715 = vadd.f32 %v1713, %v1714
          %v1716 = vrot.slane %v1715, 2
          %v1717 = vadd.f32 %v1715, %v1716
          %v1718 = vrot.slane %v1717, 1
          %v1719 = vadd.f32 %v1717, %v1718
          %v1720 = vmul.f32 %v1650, %v1451
          %v1721 = vmul.f32 %v1719, %v1451
          %v1722 = vmul.f32 %v1452, %v1452
          %v1723 = vmul.f32 %v1453, %v1453
          %v1724 = vsub.f32 %v1720, %v1722
          %v1725 = vsub.f32 %v1721, %v1723
          %v1726 = vmax.f32 %v1724, 0.0
          %v1727 = vmax.f32 %v1725, 0.0
          %v1728 = vadd.f32 %v1726, 1e-05
          %v1729 = vadd.f32 %v1727, 1e-05
          %v1730 = vrsqrt.pop %v1728
          %v1731 = vrsqrt.pop %v1729
          %v1734 = vcombine.low %v1730, %v1731
          %v1736 = vunpack.c.l.s4 1966171168
          %v1737 = vunpack.c.0.s8 %v1736
          %v1738 = vlaneseq
          %v1739 = vshrl.u32 %v1738, 7
          %v1740 = vsub.s32 %v1737, %v1739
          %v1741 = vrot.slane %v1734, %v1740
          %v1743 = vunpack.c.l.s4 1966171168
          %v1744 = vunpack.c.0.s8 %v1743
          %v1745 = vlaneseq
          %v1746 = vshrl.u32 %v1745, 7
          %v1747 = vsub.s32 %v1744, %v1746
          %v1748 = vrot.slane %v1741, %v1747
          %v1750 = vmul.f32 %v1311, %v1748
          %v1752 = vlaneseq
          %v1753 = vshrl.u32 %v1752, 7
          %v1754 = vsub.s32 0, %v1753
          %v1755 = vrot.slane %v1750, %v1754
          %v1756 = vlaneseq
          %v1757 = vshrl.u32 %v1756, 7
          %v1758 = vsub.s32 1, %v1757
          %v1759 = vrot.slane %v1750, %v1758
          %v1762 = vmul.f32 %v1452, %v1755
          %v1763 = vmul.f32 %v1453, %v1759
          %v1766 = vcombine.low %v1762, %v1763
          %v1768 = vunpack.c.l.s4 1966171168
          %v1769 = vunpack.c.0.s8 %v1768
          %v1770 = vlaneseq
          %v1771 = vshrl.u32 %v1770, 7
          %v1772 = vsub.s32 %v1769, %v1771
          %v1773 = vrot.slane %v1766, %v1772
          %v1775 = vunpack.c.l.s4 1966171168
          %v1776 = vunpack.c.0.s8 %v1775
          %v1777 = vlaneseq
          %v1778 = vshrl.u32 %v1777, 7
          %v1779 = vsub.s32 %v1776, %v1778
          %v1780 = vrot.slane %v1773, %v1779
          %v1782 = vsub.f32 %v1312, %v1780
          %v1783 = vmul.f32 %v993, %v1755
          %v1784 = vmul.f32 %v995, %v1759
          %v1785 = vmul.f32 %v997, %v1755
          %v1786 = vmul.f32 %v999, %v1759
          %v1787 = vmul.f32 %v1003, %v1755
          %v1788 = vmul.f32 %v1005, %v1759
          %v1789 = vmul.f32 %v1007, %v1755
          %v1790 = vmul.f32 %v1009, %v1759
          %v1791 = vmul.f32 %v1013, %v1755
          %v1792 = vmul.f32 %v1015, %v1759
          %v1793 = vmul.f32 %v1017, %v1755
          %v1794 = vmul.f32 %v1019, %v1759
          %v1795 = vmul.f32 %v1023, %v1755
          %v1796 = vmul.f32 %v1025, %v1759
          %v1797 = vmul.f32 %v1027, %v1755
          %v1798 = vmul.f32 %v1029, %v1759
          %v1799 = vmul.f32 %v1033, %v1755
          %v1800 = vmul.f32 %v1035, %v1759
          %v1801 = vmul.f32 %v1037, %v1755
          %v1802 = vmul.f32 %v1039, %v1759
          %v1803 = vmul.f32 %v1043, %v1755
          %v1804 = vmul.f32 %v1045, %v1759
          %v1805 = vmul.f32 %v1047, %v1755
          %v1806 = vmul.f32 %v1049, %v1759
          %v1807 = vmul.f32 %v1053, %v1755
          %v1808 = vmul.f32 %v1055, %v1759
          %v1809 = vmul.f32 %v1057, %v1755
          %v1810 = vmul.f32 %v1059, %v1759
          %v1811 = vmul.f32 %v1063, %v1755
          %v1812 = vmul.f32 %v1065, %v1759
          %v1813 = vmul.f32 %v1067, %v1755
          %v1814 = vmul.f32 %v1069, %v1759
          %v1815 = vmul.f32 %v1073, %v1755
          %v1816 = vmul.f32 %v1075, %v1759
          %v1817 = vmul.f32 %v1077, %v1755
          %v1818 = vmul.f32 %v1079, %v1759
          %v1819 = vmul.f32 %v1083, %v1755
          %v1820 = vmul.f32 %v1085, %v1759
          %v1821 = vmul.f32 %v1087, %v1755
          %v1822 = vmul.f32 %v1089, %v1759
          %v1823 = vmul.f32 %v1093, %v1755
          %v1824 = vmul.f32 %v1095, %v1759
          %v1825 = vmul.f32 %v1097, %v1755
          %v1826 = vmul.f32 %v1099, %v1759
          %v1827 = vmul.f32 %v1103, %v1755
          %v1828 = vmul.f32 %v1105, %v1759
          %v1829 = vmul.f32 %v1107, %v1755
          %v1830 = vmul.f32 %v1109, %v1759
          %v1831 = vmul.f32 %v1113, %v1755
          %v1832 = vmul.f32 %v1115, %v1759
          %v1833 = vmul.f32 %v1117, %v1755
          %v1834 = vmul.f32 %v1119, %v1759
          %v1835 = vmul.f32 %v1123, %v1755
          %v1836 = vmul.f32 %v1125, %v1759
          %v1837 = vmul.f32 %v1127, %v1755
          %v1838 = vmul.f32 %v1129, %v1759
          %v1839 = vmul.f32 %v1133, %v1755
          %v1840 = vmul.f32 %v1135, %v1759
          %v1841 = vmul.f32 %v1137, %v1755
          %v1842 = vmul.f32 %v1139, %v1759
          %v1843 = vmul.f32 %v1143, %v1755
          %v1844 = vmul.f32 %v1145, %v1759
          %v1845 = vmul.f32 %v1147, %v1755
          %v1846 = vmul.f32 %v1149, %v1759
          %v1847 = vmul.f32 %v1153, %v1755
          %v1848 = vmul.f32 %v1155, %v1759
          %v1849 = vmul.f32 %v1157, %v1755
          %v1850 = vmul.f32 %v1159, %v1759
          %v1851 = vmul.f32 %v1163, %v1755
          %v1852 = vmul.f32 %v1165, %v1759
          %v1853 = vmul.f32 %v1167, %v1755
          %v1854 = vmul.f32 %v1169, %v1759
          %v1855 = vmul.f32 %v1173, %v1755
          %v1856 = vmul.f32 %v1175, %v1759
          %v1857 = vmul.f32 %v1177, %v1755
          %v1858 = vmul.f32 %v1179, %v1759
          %v1859 = vmul.f32 %v1183, %v1755
          %v1860 = vmul.f32 %v1185, %v1759
          %v1861 = vmul.f32 %v1187, %v1755
          %v1862 = vmul.f32 %v1189, %v1759
          %v1863 = vmul.f32 %v1193, %v1755
          %v1864 = vmul.f32 %v1195, %v1759
          %v1865 = vmul.f32 %v1197, %v1755
          %v1866 = vmul.f32 %v1199, %v1759
          %v1867 = vmul.f32 %v1203, %v1755
          %v1868 = vmul.f32 %v1205, %v1759
          %v1869 = vmul.f32 %v1207, %v1755
          %v1870 = vmul.f32 %v1209, %v1759
          %v1871 = vmul.f32 %v1213, %v1755
          %v1872 = vmul.f32 %v1215, %v1759
          %v1873 = vmul.f32 %v1217, %v1755
          %v1874 = vmul.f32 %v1219, %v1759
          %v1875 = vmul.f32 %v1223, %v1755
          %v1876 = vmul.f32 %v1225, %v1759
          %v1877 = vmul.f32 %v1227, %v1755
          %v1878 = vmul.f32 %v1229, %v1759
          %v1879 = vmul.f32 %v1233, %v1755
          %v1880 = vmul.f32 %v1235, %v1759
          %v1881 = vmul.f32 %v1237, %v1755
          %v1882 = vmul.f32 %v1239, %v1759
          %v1883 = vmul.f32 %v1243, %v1755
          %v1884 = vmul.f32 %v1245, %v1759
          %v1885 = vmul.f32 %v1247, %v1755
          %v1886 = vmul.f32 %v1249, %v1759
          %v1887 = vmul.f32 %v1253, %v1755
          %v1888 = vmul.f32 %v1255, %v1759
          %v1889 = vmul.f32 %v1257, %v1755
          %v1890 = vmul.f32 %v1259, %v1759
          %v1891 = vmul.f32 %v1263, %v1755
          %v1892 = vmul.f32 %v1265, %v1759
          %v1893 = vmul.f32 %v1267, %v1755
          %v1894 = vmul.f32 %v1269, %v1759
          %v1895 = vmul.f32 %v1273, %v1755
          %v1896 = vmul.f32 %v1275, %v1759
          %v1897 = vmul.f32 %v1277, %v1755
          %v1898 = vmul.f32 %v1279, %v1759
          %v1899 = vmul.f32 %v1283, %v1755
          %v1900 = vmul.f32 %v1285, %v1759
          %v1901 = vmul.f32 %v1287, %v1755
          %v1902 = vmul.f32 %v1289, %v1759
          %v1903 = vmul.f32 %v1293, %v1755
          %v1904 = vmul.f32 %v1295, %v1759
          %v1905 = vmul.f32 %v1297, %v1755
          %v1906 = vmul.f32 %v1299, %v1759
          %v1907 = vmul.f32 %v1303, %v1755
          %v1908 = vmul.f32 %v1305, %v1759
          %v1909 = vmul.f32 %v1307, %v1755
          %v1910 = vmul.f32 %v1309, %v1759
          %v1912 = vlaneseq
          %v1913 = vshrl.u32 %v1912, 7
          %v1914 = vsub.s32 0, %v1913
          %v1915 = vrot.slane %v1782, %v1914
          %v1916 = vlaneseq
          %v1917 = vshrl.u32 %v1916, 7
          %v1918 = vsub.s32 1, %v1917
          %v1919 = vrot.slane %v1782, %v1918
          %v1922 = vadd.f32 %v1783, %v1915
          %v1923 = vadd.f32 %v1784, %v1919
          %v1924 = vadd.f32 %v1785, %v1915
          %v1925 = vadd.f32 %v1786, %v1919
          %v1926 = vadd.f32 %v1787, %v1915
          %v1927 = vadd.f32 %v1788, %v1919
          %v1928 = vadd.f32 %v1789, %v1915
          %v1929 = vadd.f32 %v1790, %v1919
          %v1930 = vadd.f32 %v1791, %v1915
          %v1931 = vadd.f32 %v1792, %v1919
          %v1932 = vadd.f32 %v1793, %v1915
          %v1933 = vadd.f32 %v1794, %v1919
          %v1934 = vadd.f32 %v1795, %v1915
          %v1935 = vadd.f32 %v1796, %v1919
          %v1936 = vadd.f32 %v1797, %v1915
          %v1937 = vadd.f32 %v1798, %v1919
          %v1938 = vadd.f32 %v1799, %v1915
          %v1939 = vadd.f32 %v1800, %v1919
          %v1940 = vadd.f32 %v1801, %v1915
          %v1941 = vadd.f32 %v1802, %v1919
          %v1942 = vadd.f32 %v1803, %v1915
          %v1943 = vadd.f32 %v1804, %v1919
          %v1944 = vadd.f32 %v1805, %v1915
          %v1945 = vadd.f32 %v1806, %v1919
          %v1946 = vadd.f32 %v1807, %v1915
          %v1947 = vadd.f32 %v1808, %v1919
          %v1948 = vadd.f32 %v1809, %v1915
          %v1949 = vadd.f32 %v1810, %v1919
          %v1950 = vadd.f32 %v1811, %v1915
          %v1951 = vadd.f32 %v1812, %v1919
          %v1952 = vadd.f32 %v1813, %v1915
          %v1953 = vadd.f32 %v1814, %v1919
          %v1954 = vadd.f32 %v1815, %v1915
          %v1955 = vadd.f32 %v1816, %v1919
          %v1956 = vadd.f32 %v1817, %v1915
          %v1957 = vadd.f32 %v1818, %v1919
          %v1958 = vadd.f32 %v1819, %v1915
          %v1959 = vadd.f32 %v1820, %v1919
          %v1960 = vadd.f32 %v1821, %v1915
          %v1961 = vadd.f32 %v1822, %v1919
          %v1962 = vadd.f32 %v1823, %v1915
          %v1963 = vadd.f32 %v1824, %v1919
          %v1964 = vadd.f32 %v1825, %v1915
          %v1965 = vadd.f32 %v1826, %v1919
          %v1966 = vadd.f32 %v1827, %v1915
          %v1967 = vadd.f32 %v1828, %v1919
          %v1968 = vadd.f32 %v1829, %v1915
          %v1969 = vadd.f32 %v1830, %v1919
          %v1970 = vadd.f32 %v1831, %v1915
          %v1971 = vadd.f32 %v1832, %v1919
          %v1972 = vadd.f32 %v1833, %v1915
          %v1973 = vadd.f32 %v1834, %v1919
          %v1974 = vadd.f32 %v1835, %v1915
          %v1975 = vadd.f32 %v1836, %v1919
          %v1976 = vadd.f32 %v1837, %v1915
          %v1977 = vadd.f32 %v1838, %v1919
          %v1978 = vadd.f32 %v1839, %v1915
          %v1979 = vadd.f32 %v1840, %v1919
          %v1980 = vadd.f32 %v1841, %v1915
          %v1981 = vadd.f32 %v1842, %v1919
          %v1982 = vadd.f32 %v1843, %v1915
          %v1983 = vadd.f32 %v1844, %v1919
          %v1984 = vadd.f32 %v1845, %v1915
          %v1985 = vadd.f32 %v1846, %v1919
          %v1986 = vadd.f32 %v1847, %v1915
          %v1987 = vadd.f32 %v1848, %v1919
          %v1988 = vadd.f32 %v1849, %v1915
          %v1989 = vadd.f32 %v1850, %v1919
          %v1990 = vadd.f32 %v1851, %v1915
          %v1991 = vadd.f32 %v1852, %v1919
          %v1992 = vadd.f32 %v1853, %v1915
          %v1993 = vadd.f32 %v1854, %v1919
          %v1994 = vadd.f32 %v1855, %v1915
          %v1995 = vadd.f32 %v1856, %v1919
          %v1996 = vadd.f32 %v1857, %v1915
          %v1997 = vadd.f32 %v1858, %v1919
          %v1998 = vadd.f32 %v1859, %v1915
          %v1999 = vadd.f32 %v1860, %v1919
          %v2000 = vadd.f32 %v1861, %v1915
          %v2001 = vadd.f32 %v1862, %v1919
          %v2002 = vadd.f32 %v1863, %v1915
          %v2003 = vadd.f32 %v1864, %v1919
          %v2004 = vadd.f32 %v1865, %v1915
          %v2005 = vadd.f32 %v1866, %v1919
          %v2006 = vadd.f32 %v1867, %v1915
          %v2007 = vadd.f32 %v1868, %v1919
          %v2008 = vadd.f32 %v1869, %v1915
          %v2009 = vadd.f32 %v1870, %v1919
          %v2010 = vadd.f32 %v1871, %v1915
          %v2011 = vadd.f32 %v1872, %v1919
          %v2012 = vadd.f32 %v1873, %v1915
          %v2013 = vadd.f32 %v1874, %v1919
          %v2014 = vadd.f32 %v1875, %v1915
          %v2015 = vadd.f32 %v1876, %v1919
          %v2016 = vadd.f32 %v1877, %v1915
          %v2017 = vadd.f32 %v1878, %v1919
          %v2018 = vadd.f32 %v1879, %v1915
          %v2019 = vadd.f32 %v1880, %v1919
          %v2020 = vadd.f32 %v1881, %v1915
          %v2021 = vadd.f32 %v1882, %v1919
          %v2022 = vadd.f32 %v1883, %v1915
          %v2023 = vadd.f32 %v1884, %v1919
          %v2024 = vadd.f32 %v1885, %v1915
          %v2025 = vadd.f32 %v1886, %v1919
          %v2026 = vadd.f32 %v1887, %v1915
          %v2027 = vadd.f32 %v1888, %v1919
          %v2028 = vadd.f32 %v1889, %v1915
          %v2029 = vadd.f32 %v1890, %v1919
          %v2030 = vadd.f32 %v1891, %v1915
          %v2031 = vadd.f32 %v1892, %v1919
          %v2032 = vadd.f32 %v1893, %v1915
          %v2033 = vadd.f32 %v1894, %v1919
          %v2034 = vadd.f32 %v1895, %v1915
          %v2035 = vadd.f32 %v1896, %v1919
          %v2036 = vadd.f32 %v1897, %v1915
          %v2037 = vadd.f32 %v1898, %v1919
          %v2038 = vadd.f32 %v1899, %v1915
          %v2039 = vadd.f32 %v1900, %v1919
          %v2040 = vadd.f32 %v1901, %v1915
          %v2041 = vadd.f32 %v1902, %v1919
          %v2042 = vadd.f32 %v1903, %v1915
          %v2043 = vadd.f32 %v1904, %v1919
          %v2044 = vadd.f32 %v1905, %v1915
          %v2045 = vadd.f32 %v1906, %v1919
          %v2046 = vadd.f32 %v1907, %v1915
          %v2047 = vadd.f32 %v1908, %v1919
          %v2048 = vadd.f32 %v1909, %v1915
          %v2049 = vadd.f32 %v1910, %v1919
          %v2050 = vmax.f32 %v1922, 0.0
          %v2051 = vmax.f32 %v1923, 0.0
          %v2052 = vmax.f32 %v1924, 0.0
          %v2053 = vmax.f32 %v1925, 0.0
          %v2054 = vmax.f32 %v1926, 0.0
          %v2055 = vmax.f32 %v1927, 0.0
          %v2056 = vmax.f32 %v1928, 0.0
          %v2057 = vmax.f32 %v1929, 0.0
          %v2058 = vmax.f32 %v1930, 0.0
          %v2059 = vmax.f32 %v1931, 0.0
          %v2060 = vmax.f32 %v1932, 0.0
          %v2061 = vmax.f32 %v1933, 0.0
          %v2062 = vmax.f32 %v1934, 0.0
          %v2063 = vmax.f32 %v1935, 0.0
          %v2064 = vmax.f32 %v1936, 0.0
          %v2065 = vmax.f32 %v1937, 0.0
          %v2066 = vmax.f32 %v1938, 0.0
          %v2067 = vmax.f32 %v1939, 0.0
          %v2068 = vmax.f32 %v1940, 0.0
          %v2069 = vmax.f32 %v1941, 0.0
          %v2070 = vmax.f32 %v1942, 0.0
          %v2071 = vmax.f32 %v1943, 0.0
          %v2072 = vmax.f32 %v1944, 0.0
          %v2073 = vmax.f32 %v1945, 0.0
          %v2074 = vmax.f32 %v1946, 0.0
          %v2075 = vmax.f32 %v1947, 0.0
          %v2076 = vmax.f32 %v1948, 0.0
          %v2077 = vmax.f32 %v1949, 0.0
          %v2078 = vmax.f32 %v1950, 0.0
          %v2079 = vmax.f32 %v1951, 0.0
          %v2080 = vmax.f32 %v1952, 0.0
          %v2081 = vmax.f32 %v1953, 0.0
          %v2082 = vmax.f32 %v1954, 0.0
          %v2083 = vmax.f32 %v1955, 0.0
          %v2084 = vmax.f32 %v1956, 0.0
          %v2085 = vmax.f32 %v1957, 0.0
          %v2086 = vmax.f32 %v1958, 0.0
          %v2087 = vmax.f32 %v1959, 0.0
          %v2088 = vmax.f32 %v1960, 0.0
          %v2089 = vmax.f32 %v1961, 0.0
          %v2090 = vmax.f32 %v1962, 0.0
          %v2091 = vmax.f32 %v1963, 0.0
          %v2092 = vmax.f32 %v1964, 0.0
          %v2093 = vmax.f32 %v1965, 0.0
          %v2094 = vmax.f32 %v1966, 0.0
          %v2095 = vmax.f32 %v1967, 0.0
          %v2096 = vmax.f32 %v1968, 0.0
          %v2097 = vmax.f32 %v1969, 0.0
          %v2098 = vmax.f32 %v1970, 0.0
          %v2099 = vmax.f32 %v1971, 0.0
          %v2100 = vmax.f32 %v1972, 0.0
          %v2101 = vmax.f32 %v1973, 0.0
          %v2102 = vmax.f32 %v1974, 0.0
          %v2103 = vmax.f32 %v1975, 0.0
          %v2104 = vmax.f32 %v1976, 0.0
          %v2105 = vmax.f32 %v1977, 0.0
          %v2106 = vmax.f32 %v1978, 0.0
          %v2107 = vmax.f32 %v1979, 0.0
          %v2108 = vmax.f32 %v1980, 0.0
          %v2109 = vmax.f32 %v1981, 0.0
          %v2110 = vmax.f32 %v1982, 0.0
          %v2111 = vmax.f32 %v1983, 0.0
          %v2112 = vmax.f32 %v1984, 0.0
          %v2113 = vmax.f32 %v1985, 0.0
          %v2114 = vmax.f32 %v1986, 0.0
          %v2115 = vmax.f32 %v1987, 0.0
          %v2116 = vmax.f32 %v1988, 0.0
          %v2117 = vmax.f32 %v1989, 0.0
          %v2118 = vmax.f32 %v1990, 0.0
          %v2119 = vmax.f32 %v1991, 0.0
          %v2120 = vmax.f32 %v1992, 0.0
          %v2121 = vmax.f32 %v1993, 0.0
          %v2122 = vmax.f32 %v1994, 0.0
          %v2123 = vmax.f32 %v1995, 0.0
          %v2124 = vmax.f32 %v1996, 0.0
          %v2125 = vmax.f32 %v1997, 0.0
          %v2126 = vmax.f32 %v1998, 0.0
          %v2127 = vmax.f32 %v1999, 0.0
          %v2128 = vmax.f32 %v2000, 0.0
          %v2129 = vmax.f32 %v2001, 0.0
          %v2130 = vmax.f32 %v2002, 0.0
          %v2131 = vmax.f32 %v2003, 0.0
          %v2132 = vmax.f32 %v2004, 0.0
          %v2133 = vmax.f32 %v2005, 0.0
          %v2134 = vmax.f32 %v2006, 0.0
          %v2135 = vmax.f32 %v2007, 0.0
          %v2136 = vmax.f32 %v2008, 0.0
          %v2137 = vmax.f32 %v2009, 0.0
          %v2138 = vmax.f32 %v2010, 0.0
          %v2139 = vmax.f32 %v2011, 0.0
          %v2140 = vmax.f32 %v2012, 0.0
          %v2141 = vmax.f32 %v2013, 0.0
          %v2142 = vmax.f32 %v2014, 0.0
          %v2143 = vmax.f32 %v2015, 0.0
          %v2144 = vmax.f32 %v2016, 0.0
          %v2145 = vmax.f32 %v2017, 0.0
          %v2146 = vmax.f32 %v2018, 0.0
          %v2147 = vmax.f32 %v2019, 0.0
          %v2148 = vmax.f32 %v2020, 0.0
          %v2149 = vmax.f32 %v2021, 0.0
          %v2150 = vmax.f32 %v2022, 0.0
          %v2151 = vmax.f32 %v2023, 0.0
          %v2152 = vmax.f32 %v2024, 0.0
          %v2153 = vmax.f32 %v2025, 0.0
          %v2154 = vmax.f32 %v2026, 0.0
          %v2155 = vmax.f32 %v2027, 0.0
          %v2156 = vmax.f32 %v2028, 0.0
          %v2157 = vmax.f32 %v2029, 0.0
          %v2158 = vmax.f32 %v2030, 0.0
          %v2159 = vmax.f32 %v2031, 0.0
          %v2160 = vmax.f32 %v2032, 0.0
          %v2161 = vmax.f32 %v2033, 0.0
          %v2162 = vmax.f32 %v2034, 0.0
          %v2163 = vmax.f32 %v2035, 0.0
          %v2164 = vmax.f32 %v2036, 0.0
          %v2165 = vmax.f32 %v2037, 0.0
          %v2166 = vmax.f32 %v2038, 0.0
          %v2167 = vmax.f32 %v2039, 0.0
          %v2168 = vmax.f32 %v2040, 0.0
          %v2169 = vmax.f32 %v2041, 0.0
          %v2170 = vmax.f32 %v2042, 0.0
          %v2171 = vmax.f32 %v2043, 0.0
          %v2172 = vmax.f32 %v2044, 0.0
          %v2173 = vmax.f32 %v2045, 0.0
          %v2174 = vmax.f32 %v2046, 0.0
          %v2175 = vmax.f32 %v2047, 0.0
          %v2176 = vmax.f32 %v2048, 0.0
          %v2177 = vmax.f32 %v2049, 0.0
          %v2178 = vpack.c.bf16 %v2052, %v2050
          %v2179 = vpack.c.bf16 %v2053, %v2051
          %v2180 = vpack.c.bf16 %v2056, %v2054
          %v2181 = vpack.c.bf16 %v2057, %v2055
          %v2182 = vpack.c.bf16 %v2060, %v2058
          %v2183 = vpack.c.bf16 %v2061, %v2059
          %v2184 = vpack.c.bf16 %v2064, %v2062
          %v2185 = vpack.c.bf16 %v2065, %v2063
          %v2186 = vpack.c.bf16 %v2068, %v2066
          %v2187 = vpack.c.bf16 %v2069, %v2067
          %v2188 = vpack.c.bf16 %v2072, %v2070
          %v2189 = vpack.c.bf16 %v2073, %v2071
          %v2190 = vpack.c.bf16 %v2076, %v2074
          %v2191 = vpack.c.bf16 %v2077, %v2075
          %v2192 = vpack.c.bf16 %v2080, %v2078
          %v2193 = vpack.c.bf16 %v2081, %v2079
          %v2194 = vpack.c.bf16 %v2084, %v2082
          %v2195 = vpack.c.bf16 %v2085, %v2083
          %v2196 = vpack.c.bf16 %v2088, %v2086
          %v2197 = vpack.c.bf16 %v2089, %v2087
          %v2198 = vpack.c.bf16 %v2092, %v2090
          %v2199 = vpack.c.bf16 %v2093, %v2091
          %v2200 = vpack.c.bf16 %v2096, %v2094
          %v2201 = vpack.c.bf16 %v2097, %v2095
          %v2202 = vpack.c.bf16 %v2100, %v2098
          %v2203 = vpack.c.bf16 %v2101, %v2099
          %v2204 = vpack.c.bf16 %v2104, %v2102
          %v2205 = vpack.c.bf16 %v2105, %v2103
          %v2206 = vpack.c.bf16 %v2108, %v2106
          %v2207 = vpack.c.bf16 %v2109, %v2107
          %v2208 = vpack.c.bf16 %v2112, %v2110
          %v2209 = vpack.c.bf16 %v2113, %v2111
          %v2210 = vpack.c.bf16 %v2116, %v2114
          %v2211 = vpack.c.bf16 %v2117, %v2115
          %v2212 = vpack.c.bf16 %v2120, %v2118
          %v2213 = vpack.c.bf16 %v2121, %v2119
          %v2214 = vpack.c.bf16 %v2124, %v2122
          %v2215 = vpack.c.bf16 %v2125, %v2123
          %v2216 = vpack.c.bf16 %v2128, %v2126
          %v2217 = vpack.c.bf16 %v2129, %v2127
          %v2218 = vpack.c.bf16 %v2132, %v2130
          %v2219 = vpack.c.bf16 %v2133, %v2131
          %v2220 = vpack.c.bf16 %v2136, %v2134
          %v2221 = vpack.c.bf16 %v2137, %v2135
          %v2222 = vpack.c.bf16 %v2140, %v2138
          %v2223 = vpack.c.bf16 %v2141, %v2139
          %v2224 = vpack.c.bf16 %v2144, %v2142
          %v2225 = vpack.c.bf16 %v2145, %v2143
          %v2226 = vpack.c.bf16 %v2148, %v2146
          %v2227 = vpack.c.bf16 %v2149, %v2147
          %v2228 = vpack.c.bf16 %v2152, %v2150
          %v2229 = vpack.c.bf16 %v2153, %v2151
          %v2230 = vpack.c.bf16 %v2156, %v2154
          %v2231 = vpack.c.bf16 %v2157, %v2155
          %v2232 = vpack.c.bf16 %v2160, %v2158
          %v2233 = vpack.c.bf16 %v2161, %v2159
          %v2234 = vpack.c.bf16 %v2164, %v2162
          %v2235 = vpack.c.bf16 %v2165, %v2163
          %v2236 = vpack.c.bf16 %v2168, %v2166
          %v2237 = vpack.c.bf16 %v2169, %v2167
          %v2238 = vpack.c.bf16 %v2172, %v2170
          %v2239 = vpack.c.bf16 %v2173, %v2171
          %v2240 = vpack.c.bf16 %v2176, %v2174
          %v2241 = vpack.c.bf16 %v2177, %v2175
          %v2306 = vunpack.c.l.b16 %v2178
          %v2307 = vunpack.c.l.b16 %v2179
          %v2308 = vunpack.c.h.b16 %v2178
          %v2309 = vunpack.c.h.b16 %v2179
          %v2310 = vunpack.c.l.b16 %v2180
          %v2311 = vunpack.c.l.b16 %v2181
          %v2312 = vunpack.c.h.b16 %v2180
          %v2313 = vunpack.c.h.b16 %v2181
          %v2314 = vunpack.c.l.b16 %v2182
          %v2315 = vunpack.c.l.b16 %v2183
          %v2316 = vunpack.c.h.b16 %v2182
          %v2317 = vunpack.c.h.b16 %v2183
          %v2318 = vunpack.c.l.b16 %v2184
          %v2319 = vunpack.c.l.b16 %v2185
          %v2320 = vunpack.c.h.b16 %v2184
          %v2321 = vunpack.c.h.b16 %v2185
          %v2322 = vunpack.c.l.b16 %v2186
          %v2323 = vunpack.c.l.b16 %v2187
          %v2324 = vunpack.c.h.b16 %v2186
          %v2325 = vunpack.c.h.b16 %v2187
          %v2326 = vunpack.c.l.b16 %v2188
          %v2327 = vunpack.c.l.b16 %v2189
          %v2328 = vunpack.c.h.b16 %v2188
          %v2329 = vunpack.c.h.b16 %v2189
          %v2330 = vunpack.c.l.b16 %v2190
          %v2331 = vunpack.c.l.b16 %v2191
          %v2332 = vunpack.c.h.b16 %v2190
          %v2333 = vunpack.c.h.b16 %v2191
          %v2334 = vunpack.c.l.b16 %v2192
          %v2335 = vunpack.c.l.b16 %v2193
          %v2336 = vunpack.c.h.b16 %v2192
          %v2337 = vunpack.c.h.b16 %v2193
          %v2338 = vunpack.c.l.b16 %v2194
          %v2339 = vunpack.c.l.b16 %v2195
          %v2340 = vunpack.c.h.b16 %v2194
          %v2341 = vunpack.c.h.b16 %v2195
          %v2342 = vunpack.c.l.b16 %v2196
          %v2343 = vunpack.c.l.b16 %v2197
          %v2344 = vunpack.c.h.b16 %v2196
          %v2345 = vunpack.c.h.b16 %v2197
          %v2346 = vunpack.c.l.b16 %v2198
          %v2347 = vunpack.c.l.b16 %v2199
          %v2348 = vunpack.c.h.b16 %v2198
          %v2349 = vunpack.c.h.b16 %v2199
          %v2350 = vunpack.c.l.b16 %v2200
          %v2351 = vunpack.c.l.b16 %v2201
          %v2352 = vunpack.c.h.b16 %v2200
          %v2353 = vunpack.c.h.b16 %v2201
          %v2354 = vunpack.c.l.b16 %v2202
          %v2355 = vunpack.c.l.b16 %v2203
          %v2356 = vunpack.c.h.b16 %v2202
          %v2357 = vunpack.c.h.b16 %v2203
          %v2358 = vunpack.c.l.b16 %v2204
          %v2359 = vunpack.c.l.b16 %v2205
          %v2360 = vunpack.c.h.b16 %v2204
          %v2361 = vunpack.c.h.b16 %v2205
          %v2362 = vunpack.c.l.b16 %v2206
          %v2363 = vunpack.c.l.b16 %v2207
          %v2364 = vunpack.c.h.b16 %v2206
          %v2365 = vunpack.c.h.b16 %v2207
          %v2366 = vunpack.c.l.b16 %v2208
          %v2367 = vunpack.c.l.b16 %v2209
          %v2368 = vunpack.c.h.b16 %v2208
          %v2369 = vunpack.c.h.b16 %v2209
          %v2370 = vunpack.c.l.b16 %v2210
          %v2371 = vunpack.c.l.b16 %v2211
          %v2372 = vunpack.c.h.b16 %v2210
          %v2373 = vunpack.c.h.b16 %v2211
          %v2374 = vunpack.c.l.b16 %v2212
          %v2375 = vunpack.c.l.b16 %v2213
          %v2376 = vunpack.c.h.b16 %v2212
          %v2377 = vunpack.c.h.b16 %v2213
          %v2378 = vunpack.c.l.b16 %v2214
          %v2379 = vunpack.c.l.b16 %v2215
          %v2380 = vunpack.c.h.b16 %v2214
          %v2381 = vunpack.c.h.b16 %v2215
          %v2382 = vunpack.c.l.b16 %v2216
          %v2383 = vunpack.c.l.b16 %v2217
          %v2384 = vunpack.c.h.b16 %v2216
          %v2385 = vunpack.c.h.b16 %v2217
          %v2386 = vunpack.c.l.b16 %v2218
          %v2387 = vunpack.c.l.b16 %v2219
          %v2388 = vunpack.c.h.b16 %v2218
          %v2389 = vunpack.c.h.b16 %v2219
          %v2390 = vunpack.c.l.b16 %v2220
          %v2391 = vunpack.c.l.b16 %v2221
          %v2392 = vunpack.c.h.b16 %v2220
          %v2393 = vunpack.c.h.b16 %v2221
          %v2394 = vunpack.c.l.b16 %v2222
          %v2395 = vunpack.c.l.b16 %v2223
          %v2396 = vunpack.c.h.b16 %v2222
          %v2397 = vunpack.c.h.b16 %v2223
          %v2398 = vunpack.c.l.b16 %v2224
          %v2399 = vunpack.c.l.b16 %v2225
          %v2400 = vunpack.c.h.b16 %v2224
          %v2401 = vunpack.c.h.b16 %v2225
          %v2402 = vunpack.c.l.b16 %v2226
          %v2403 = vunpack.c.l.b16 %v2227
          %v2404 = vunpack.c.h.b16 %v2226
          %v2405 = vunpack.c.h.b16 %v2227
          %v2406 = vunpack.c.l.b16 %v2228
          %v2407 = vunpack.c.l.b16 %v2229
          %v2408 = vunpack.c.h.b16 %v2228
          %v2409 = vunpack.c.h.b16 %v2229
          %v2410 = vunpack.c.l.b16 %v2230
          %v2411 = vunpack.c.l.b16 %v2231
          %v2412 = vunpack.c.h.b16 %v2230
          %v2413 = vunpack.c.h.b16 %v2231
          %v2414 = vunpack.c.l.b16 %v2232
          %v2415 = vunpack.c.l.b16 %v2233
          %v2416 = vunpack.c.h.b16 %v2232
          %v2417 = vunpack.c.h.b16 %v2233
          %v2418 = vunpack.c.l.b16 %v2234
          %v2419 = vunpack.c.l.b16 %v2235
          %v2420 = vunpack.c.h.b16 %v2234
          %v2421 = vunpack.c.h.b16 %v2235
          %v2422 = vunpack.c.l.b16 %v2236
          %v2423 = vunpack.c.l.b16 %v2237
          %v2424 = vunpack.c.h.b16 %v2236
          %v2425 = vunpack.c.h.b16 %v2237
          %v2426 = vunpack.c.l.b16 %v2238
          %v2427 = vunpack.c.l.b16 %v2239
          %v2428 = vunpack.c.h.b16 %v2238
          %v2429 = vunpack.c.h.b16 %v2239
          %v2430 = vunpack.c.l.b16 %v2240
          %v2431 = vunpack.c.l.b16 %v2241
          %v2432 = vunpack.c.h.b16 %v2240
          %v2433 = vunpack.c.h.b16 %v2241
          %v2434 = vpack.c.b16 %v2307, %v2306
          %v2435 = vpack.c.b16 %v2309, %v2308
          %v2436 = vpack.c.b16 %v2311, %v2310
          %v2437 = vpack.c.b16 %v2313, %v2312
          %v2438 = vpack.c.b16 %v2315, %v2314
          %v2439 = vpack.c.b16 %v2317, %v2316
          %v2440 = vpack.c.b16 %v2319, %v2318
          %v2441 = vpack.c.b16 %v2321, %v2320
          %v2442 = vpack.c.b16 %v2323, %v2322
          %v2443 = vpack.c.b16 %v2325, %v2324
          %v2444 = vpack.c.b16 %v2327, %v2326
          %v2445 = vpack.c.b16 %v2329, %v2328
          %v2446 = vpack.c.b16 %v2331, %v2330
          %v2447 = vpack.c.b16 %v2333, %v2332
          %v2448 = vpack.c.b16 %v2335, %v2334
          %v2449 = vpack.c.b16 %v2337, %v2336
          %v2450 = vpack.c.b16 %v2339, %v2338
          %v2451 = vpack.c.b16 %v2341, %v2340
          %v2452 = vpack.c.b16 %v2343, %v2342
          %v2453 = vpack.c.b16 %v2345, %v2344
          %v2454 = vpack.c.b16 %v2347, %v2346
          %v2455 = vpack.c.b16 %v2349, %v2348
          %v2456 = vpack.c.b16 %v2351, %v2350
          %v2457 = vpack.c.b16 %v2353, %v2352
          %v2458 = vpack.c.b16 %v2355, %v2354
          %v2459 = vpack.c.b16 %v2357, %v2356
          %v2460 = vpack.c.b16 %v2359, %v2358
          %v2461 = vpack.c.b16 %v2361, %v2360
          %v2462 = vpack.c.b16 %v2363, %v2362
          %v2463 = vpack.c.b16 %v2365, %v2364
          %v2464 = vpack.c.b16 %v2367, %v2366
          %v2465 = vpack.c.b16 %v2369, %v2368
          %v2466 = vpack.c.b16 %v2371, %v2370
          %v2467 = vpack.c.b16 %v2373, %v2372
          %v2468 = vpack.c.b16 %v2375, %v2374
          %v2469 = vpack.c.b16 %v2377, %v2376
          %v2470 = vpack.c.b16 %v2379, %v2378
          %v2471 = vpack.c.b16 %v2381, %v2380
          %v2472 = vpack.c.b16 %v2383, %v2382
          %v2473 = vpack.c.b16 %v2385, %v2384
          %v2474 = vpack.c.b16 %v2387, %v2386
          %v2475 = vpack.c.b16 %v2389, %v2388
          %v2476 = vpack.c.b16 %v2391, %v2390
          %v2477 = vpack.c.b16 %v2393, %v2392
          %v2478 = vpack.c.b16 %v2395, %v2394
          %v2479 = vpack.c.b16 %v2397, %v2396
          %v2480 = vpack.c.b16 %v2399, %v2398
          %v2481 = vpack.c.b16 %v2401, %v2400
          %v2482 = vpack.c.b16 %v2403, %v2402
          %v2483 = vpack.c.b16 %v2405, %v2404
          %v2484 = vpack.c.b16 %v2407, %v2406
          %v2485 = vpack.c.b16 %v2409, %v2408
          %v2486 = vpack.c.b16 %v2411, %v2410
          %v2487 = vpack.c.b16 %v2413, %v2412
          %v2488 = vpack.c.b16 %v2415, %v2414
          %v2489 = vpack.c.b16 %v2417, %v2416
          %v2490 = vpack.c.b16 %v2419, %v2418
          %v2491 = vpack.c.b16 %v2421, %v2420
          %v2492 = vpack.c.b16 %v2423, %v2422
          %v2493 = vpack.c.b16 %v2425, %v2424
          %v2494 = vpack.c.b16 %v2427, %v2426
          %v2495 = vpack.c.b16 %v2429, %v2428
          %v2496 = vpack.c.b16 %v2431, %v2430
          %v2497 = vpack.c.b16 %v2433, %v2432
          %2562 = vst [vmem:[#allocation2] sm:$0xff] %v2434
          %2563 = vst [vmem:[#allocation2 + $0x8] sm:$0xff] %v2435
          %2564 = vst [vmem:[#allocation2 + $0x10] sm:$0xff] %v2436
          %2565 = vst [vmem:[#allocation2 + $0x18] sm:$0xff] %v2437
          %2566 = vst [vmem:[#allocation2 + $0x20] sm:$0xff] %v2438
          %2567 = vst [vmem:[#allocation2 + $0x28] sm:$0xff] %v2439
          %2568 = vst [vmem:[#allocation2 + $0x30] sm:$0xff] %v2440
          %2569 = vst [vmem:[#allocation2 + $0x38] sm:$0xff] %v2441
          %2570 = vst [vmem:[#allocation2 + $0x40] sm:$0xff] %v2442
          %2571 = vst [vmem:[#allocation2 + $0x48] sm:$0xff] %v2443
          %2572 = vst [vmem:[#allocation2 + $0x50] sm:$0xff] %v2444
          %2573 = vst [vmem:[#allocation2 + $0x58] sm:$0xff] %v2445
          %2574 = vst [vmem:[#allocation2 + $0x60] sm:$0xff] %v2446
          %2575 = vst [vmem:[#allocation2 + $0x68] sm:$0xff] %v2447
          %2576 = vst [vmem:[#allocation2 + $0x70] sm:$0xff] %v2448
          %2577 = vst [vmem:[#allocation2 + $0x78] sm:$0xff] %v2449
          %2578 = vst [vmem:[#allocation2 + $0x80] sm:$0xff] %v2450
          %2579 = vst [vmem:[#allocation2 + $0x88] sm:$0xff] %v2451
          %2580 = vst [vmem:[#allocation2 + $0x90] sm:$0xff] %v2452
          %2581 = vst [vmem:[#allocation2 + $0x98] sm:$0xff] %v2453
          %2582 = vst [vmem:[#allocation2 + $0xa0] sm:$0xff] %v2454
          %2583 = vst [vmem:[#allocation2 + $0xa8] sm:$0xff] %v2455
          %2584 = vst [vmem:[#allocation2 + $0xb0] sm:$0xff] %v2456
          %2585 = vst [vmem:[#allocation2 + $0xb8] sm:$0xff] %v2457
          %2586 = vst [vmem:[#allocation2 + $0xc0] sm:$0xff] %v2458
          %2587 = vst [vmem:[#allocation2 + $0xc8] sm:$0xff] %v2459
          %2588 = vst [vmem:[#allocation2 + $0xd0] sm:$0xff] %v2460
          %2589 = vst [vmem:[#allocation2 + $0xd8] sm:$0xff] %v2461
          %2590 = vst [vmem:[#allocation2 + $0xe0] sm:$0xff] %v2462
          %2591 = vst [vmem:[#allocation2 + $0xe8] sm:$0xff] %v2463
          %2592 = vst [vmem:[#allocation2 + $0xf0] sm:$0xff] %v2464
          %2593 = vst [vmem:[#allocation2 + $0xf8] sm:$0xff] %v2465
          %2594 = vst [vmem:[#allocation2 + $0x100] sm:$0xff] %v2466
          %2595 = vst [vmem:[#allocation2 + $0x108] sm:$0xff] %v2467
          %2596 = vst [vmem:[#allocation2 + $0x110] sm:$0xff] %v2468
          %2597 = vst [vmem:[#allocation2 + $0x118] sm:$0xff] %v2469
          %2598 = vst [vmem:[#allocation2 + $0x120] sm:$0xff] %v2470
          %2599 = vst [vmem:[#allocation2 + $0x128] sm:$0xff] %v2471
          %2600 = vst [vmem:[#allocation2 + $0x130] sm:$0xff] %v2472
          %2601 = vst [vmem:[#allocation2 + $0x138] sm:$0xff] %v2473
          %2602 = vst [vmem:[#allocation2 + $0x140] sm:$0xff] %v2474
          %2603 = vst [vmem:[#allocation2 + $0x148] sm:$0xff] %v2475
          %2604 = vst [vmem:[#allocation2 + $0x150] sm:$0xff] %v2476
          %2605 = vst [vmem:[#allocation2 + $0x158] sm:$0xff] %v2477
          %2606 = vst [vmem:[#allocation2 + $0x160] sm:$0xff] %v2478
          %2607 = vst [vmem:[#allocation2 + $0x168] sm:$0xff] %v2479
          %2608 = vst [vmem:[#allocation2 + $0x170] sm:$0xff] %v2480
          %2609 = vst [vmem:[#allocation2 + $0x178] sm:$0xff] %v2481
          %2610 = vst [vmem:[#allocation2 + $0x180] sm:$0xff] %v2482
          %2611 = vst [vmem:[#allocation2 + $0x188] sm:$0xff] %v2483
          %2612 = vst [vmem:[#allocation2 + $0x190] sm:$0xff] %v2484
          %2613 = vst [vmem:[#allocation2 + $0x198] sm:$0xff] %v2485
          %2614 = vst [vmem:[#allocation2 + $0x1a0] sm:$0xff] %v2486
          %2615 = vst [vmem:[#allocation2 + $0x1a8] sm:$0xff] %v2487
          %2616 = vst [vmem:[#allocation2 + $0x1b0] sm:$0xff] %v2488
          %2617 = vst [vmem:[#allocation2 + $0x1b8] sm:$0xff] %v2489
          %2618 = vst [vmem:[#allocation2 + $0x1c0] sm:$0xff] %v2490
          %2619 = vst [vmem:[#allocation2 + $0x1c8] sm:$0xff] %v2491
          %2620 = vst [vmem:[#allocation2 + $0x1d0] sm:$0xff] %v2492
          %2621 = vst [vmem:[#allocation2 + $0x1d8] sm:$0xff] %v2493
          %2622 = vst [vmem:[#allocation2 + $0x1e0] sm:$0xff] %v2494
          %2623 = vst [vmem:[#allocation2 + $0x1e8] sm:$0xff] %v2495
          %2624 = vst [vmem:[#allocation2 + $0x1f0] sm:$0xff] %v2496
          %2625 = vst [vmem:[#allocation2 + $0x1f8] sm:$0xff] %v2497
          %2626 = vst [vmem:[#allocation3] sm:$0xff] 0.0
          %vm2627 = vcmask 1024
          %2628 = vst.msk [vmem:[%s13] sm:$0x3] %vm2627, 0.0
        $region108: #{barlow_twins_forward.1} parent=67 // pred_fallthru
          _
        %v2629 = vld [vmem:[#allocation2] sm:$0xff]
        %v2630 = vld [vmem:[#allocation2 + $0x8] sm:$0xff]
        %v2631 = vld [vmem:[#allocation2 + $0x10] sm:$0xff]
        %v2632 = vld [vmem:[#allocation2 + $0x18] sm:$0xff]
        %v2633 = vld [vmem:[#allocation2 + $0x20] sm:$0xff]
        %v2634 = vld [vmem:[#allocation2 + $0x28] sm:$0xff]
        %v2635 = vld [vmem:[#allocation2 + $0x30] sm:$0xff]
        %v2636 = vld [vmem:[#allocation2 + $0x38] sm:$0xff]
        %v2637 = vld [vmem:[#allocation2 + $0x40] sm:$0xff]
        %v2638 = vld [vmem:[#allocation2 + $0x48] sm:$0xff]
        %v2639 = vld [vmem:[#allocation2 + $0x50] sm:$0xff]
        %v2640 = vld [vmem:[#allocation2 + $0x58] sm:$0xff]
        %v2641 = vld [vmem:[#allocation2 + $0x60] sm:$0xff]
        %v2642 = vld [vmem:[#allocation2 + $0x68] sm:$0xff]
        %v2643 = vld [vmem:[#allocation2 + $0x70] sm:$0xff]
        %v2644 = vld [vmem:[#allocation2 + $0x78] sm:$0xff]
        %v2645 = vld [vmem:[#allocation2 + $0x80] sm:$0xff]
        %v2646 = vld [vmem:[#allocation2 + $0x88] sm:$0xff]
        %v2647 = vld [vmem:[#allocation2 + $0x90] sm:$0xff]
        %v2648 = vld [vmem:[#allocation2 + $0x98] sm:$0xff]
        %v2649 = vld [vmem:[#allocation2 + $0xa0] sm:$0xff]
        %v2650 = vld [vmem:[#allocation2 + $0xa8] sm:$0xff]
        %v2651 = vld [vmem:[#allocation2 + $0xb0] sm:$0xff]
        %v2652 = vld [vmem:[#allocation2 + $0xb8] sm:$0xff]
        %v2653 = vld [vmem:[#allocation2 + $0xc0] sm:$0xff]
        %v2654 = vld [vmem:[#allocation2 + $0xc8] sm:$0xff]
        %v2655 = vld [vmem:[#allocation2 + $0xd0] sm:$0xff]
        %v2656 = vld [vmem:[#allocation2 + $0xd8] sm:$0xff]
        %v2657 = vld [vmem:[#allocation2 + $0xe0] sm:$0xff]
        %v2658 = vld [vmem:[#allocation2 + $0xe8] sm:$0xff]
        %v2659 = vld [vmem:[#allocation2 + $0xf0] sm:$0xff]
        %v2660 = vld [vmem:[#allocation2 + $0xf8] sm:$0xff]
        %v2661 = vld [vmem:[#allocation2 + $0x100] sm:$0xff]
        %v2662 = vld [vmem:[#allocation2 + $0x108] sm:$0xff]
        %v2663 = vld [vmem:[#allocation2 + $0x110] sm:$0xff]
        %v2664 = vld [vmem:[#allocation2 + $0x118] sm:$0xff]
        %v2665 = vld [vmem:[#allocation2 + $0x120] sm:$0xff]
        %v2666 = vld [vmem:[#allocation2 + $0x128] sm:$0xff]
        %v2667 = vld [vmem:[#allocation2 + $0x130] sm:$0xff]
        %v2668 = vld [vmem:[#allocation2 + $0x138] sm:$0xff]
        %v2669 = vld [vmem:[#allocation2 + $0x140] sm:$0xff]
        %v2670 = vld [vmem:[#allocation2 + $0x148] sm:$0xff]
        %v2671 = vld [vmem:[#allocation2 + $0x150] sm:$0xff]
        %v2672 = vld [vmem:[#allocation2 + $0x158] sm:$0xff]
        %v2673 = vld [vmem:[#allocation2 + $0x160] sm:$0xff]
        %v2674 = vld [vmem:[#allocation2 + $0x168] sm:$0xff]
        %v2675 = vld [vmem:[#allocation2 + $0x170] sm:$0xff]
        %v2676 = vld [vmem:[#allocation2 + $0x178] sm:$0xff]
        %v2677 = vld [vmem:[#allocation2 + $0x180] sm:$0xff]
        %v2678 = vld [vmem:[#allocation2 + $0x188] sm:$0xff]
        %v2679 = vld [vmem:[#allocation2 + $0x190] sm:$0xff]
        %v2680 = vld [vmem:[#allocation2 + $0x198] sm:$0xff]
        %v2681 = vld [vmem:[#allocation2 + $0x1a0] sm:$0xff]
        %v2682 = vld [vmem:[#allocation2 + $0x1a8] sm:$0xff]
        %v2683 = vld [vmem:[#allocation2 + $0x1b0] sm:$0xff]
        %v2684 = vld [vmem:[#allocation2 + $0x1b8] sm:$0xff]
        %v2685 = vld [vmem:[#allocation2 + $0x1c0] sm:$0xff]
        %v2686 = vld [vmem:[#allocation2 + $0x1c8] sm:$0xff]
        %v2687 = vld [vmem:[#allocation2 + $0x1d0] sm:$0xff]
        %v2688 = vld [vmem:[#allocation2 + $0x1d8] sm:$0xff]
        %v2689 = vld [vmem:[#allocation2 + $0x1e0] sm:$0xff]
        %v2690 = vld [vmem:[#allocation2 + $0x1e8] sm:$0xff]
        %v2691 = vld [vmem:[#allocation2 + $0x1f0] sm:$0xff]
        %v2692 = vld [vmem:[#allocation2 + $0x1f8] sm:$0xff]
        %v2693 = vld [vmem:[%s532] sm:$0xff]
        %v2694 = vld [vmem:[%s532 + $0x8] sm:$0xff]
        %v2695 = vld [vmem:[%s532 + $0x10] sm:$0xff]
        %v2696 = vld [vmem:[%s532 + $0x18] sm:$0xff]
        %v2697 = vld [vmem:[%s532 + $0x20] sm:$0xff]
        %v2698 = vld [vmem:[%s532 + $0x28] sm:$0xff]
        %v2699 = vld [vmem:[%s532 + $0x30] sm:$0xff]
        %v2700 = vld [vmem:[%s532 + $0x38] sm:$0xff]
        %v2701 = vld [vmem:[%s532 + $0x40] sm:$0xff]
        %v2702 = vld [vmem:[%s532 + $0x48] sm:$0xff]
        %v2703 = vld [vmem:[%s532 + $0x50] sm:$0xff]
        %v2704 = vld [vmem:[%s532 + $0x58] sm:$0xff]
        %v2705 = vld [vmem:[%s532 + $0x60] sm:$0xff]
        %v2706 = vld [vmem:[%s532 + $0x68] sm:$0xff]
        %v2707 = vld [vmem:[%s532 + $0x70] sm:$0xff]
        %v2708 = vld [vmem:[%s532 + $0x78] sm:$0xff]
        %v2709 = vld [vmem:[%s532 + $0x80] sm:$0xff]
        %v2710 = vld [vmem:[%s532 + $0x88] sm:$0xff]
        %v2711 = vld [vmem:[%s532 + $0x90] sm:$0xff]
        %v2712 = vld [vmem:[%s532 + $0x98] sm:$0xff]
        %v2713 = vld [vmem:[%s532 + $0xa0] sm:$0xff]
        %v2714 = vld [vmem:[%s532 + $0xa8] sm:$0xff]
        %v2715 = vld [vmem:[%s532 + $0xb0] sm:$0xff]
        %v2716 = vld [vmem:[%s532 + $0xb8] sm:$0xff]
        %v2717 = vld [vmem:[%s532 + $0xc0] sm:$0xff]
        %v2718 = vld [vmem:[%s532 + $0xc8] sm:$0xff]
        %v2719 = vld [vmem:[%s532 + $0xd0] sm:$0xff]
        %v2720 = vld [vmem:[%s532 + $0xd8] sm:$0xff]
        %v2721 = vld [vmem:[%s532 + $0xe0] sm:$0xff]
        %v2722 = vld [vmem:[%s532 + $0xe8] sm:$0xff]
        %v2723 = vld [vmem:[%s532 + $0xf0] sm:$0xff]
        %v2724 = vld [vmem:[%s532 + $0xf8] sm:$0xff]
        %v2725 = vld [vmem:[%s532 + $0x100] sm:$0xff]
        %v2726 = vld [vmem:[%s532 + $0x108] sm:$0xff]
        %v2727 = vld [vmem:[%s532 + $0x110] sm:$0xff]
        %v2728 = vld [vmem:[%s532 + $0x118] sm:$0xff]
        %v2729 = vld [vmem:[%s532 + $0x120] sm:$0xff]
        %v2730 = vld [vmem:[%s532 + $0x128] sm:$0xff]
        %v2731 = vld [vmem:[%s532 + $0x130] sm:$0xff]
        %v2732 = vld [vmem:[%s532 + $0x138] sm:$0xff]
        %v2733 = vld [vmem:[%s532 + $0x140] sm:$0xff]
        %v2734 = vld [vmem:[%s532 + $0x148] sm:$0xff]
        %v2735 = vld [vmem:[%s532 + $0x150] sm:$0xff]
        %v2736 = vld [vmem:[%s532 + $0x158] sm:$0xff]
        %v2737 = vld [vmem:[%s532 + $0x160] sm:$0xff]
        %v2738 = vld [vmem:[%s532 + $0x168] sm:$0xff]
        %v2739 = vld [vmem:[%s532 + $0x170] sm:$0xff]
        %v2740 = vld [vmem:[%s532 + $0x178] sm:$0xff]
        %v2741 = vld [vmem:[%s532 + $0x180] sm:$0xff]
        %v2742 = vld [vmem:[%s532 + $0x188] sm:$0xff]
        %v2743 = vld [vmem:[%s532 + $0x190] sm:$0xff]
        %v2744 = vld [vmem:[%s532 + $0x198] sm:$0xff]
        %v2745 = vld [vmem:[%s532 + $0x1a0] sm:$0xff]
        %v2746 = vld [vmem:[%s532 + $0x1a8] sm:$0xff]
        %v2747 = vld [vmem:[%s532 + $0x1b0] sm:$0xff]
        %v2748 = vld [vmem:[%s532 + $0x1b8] sm:$0xff]
        %v2749 = vld [vmem:[%s532 + $0x1c0] sm:$0xff]
        %v2750 = vld [vmem:[%s532 + $0x1c8] sm:$0xff]
        %v2751 = vld [vmem:[%s532 + $0x1d0] sm:$0xff]
        %v2752 = vld [vmem:[%s532 + $0x1d8] sm:$0xff]
        %v2753 = vld [vmem:[%s532 + $0x1e0] sm:$0xff]
        %v2754 = vld [vmem:[%s532 + $0x1e8] sm:$0xff]
        %v2755 = vld [vmem:[%s532 + $0x1f0] sm:$0xff]
        %v2756 = vld [vmem:[%s532 + $0x1f8] sm:$0xff]
        %v2757 = vld [vmem:[%s532 + $0x200] sm:$0xff]
        %v2758 = vld [vmem:[%s532 + $0x208] sm:$0xff]
        %v2759 = vld [vmem:[%s532 + $0x210] sm:$0xff]
        %v2760 = vld [vmem:[%s532 + $0x218] sm:$0xff]
        %v2761 = vld [vmem:[%s532 + $0x220] sm:$0xff]
        %v2762 = vld [vmem:[%s532 + $0x228] sm:$0xff]
        %v2763 = vld [vmem:[%s532 + $0x230] sm:$0xff]
        %v2764 = vld [vmem:[%s532 + $0x238] sm:$0xff]
        %v2765 = vld [vmem:[%s532 + $0x240] sm:$0xff]
        %v2766 = vld [vmem:[%s532 + $0x248] sm:$0xff]
        %v2767 = vld [vmem:[%s532 + $0x250] sm:$0xff]
        %v2768 = vld [vmem:[%s532 + $0x258] sm:$0xff]
        %v2769 = vld [vmem:[%s532 + $0x260] sm:$0xff]
        %v2770 = vld [vmem:[%s532 + $0x268] sm:$0xff]
        %v2771 = vld [vmem:[%s532 + $0x270] sm:$0xff]
        %v2772 = vld [vmem:[%s532 + $0x278] sm:$0xff]
        %v2773 = vld [vmem:[%s532 + $0x280] sm:$0xff]
        %v2774 = vld [vmem:[%s532 + $0x288] sm:$0xff]
        %v2775 = vld [vmem:[%s532 + $0x290] sm:$0xff]
        %v2776 = vld [vmem:[%s532 + $0x298] sm:$0xff]
        %v2777 = vld [vmem:[%s532 + $0x2a0] sm:$0xff]
        %v2778 = vld [vmem:[%s532 + $0x2a8] sm:$0xff]
        %v2779 = vld [vmem:[%s532 + $0x2b0] sm:$0xff]
        %v2780 = vld [vmem:[%s532 + $0x2b8] sm:$0xff]
        %v2781 = vld [vmem:[%s532 + $0x2c0] sm:$0xff]
        %v2782 = vld [vmem:[%s532 + $0x2c8] sm:$0xff]
        %v2783 = vld [vmem:[%s532 + $0x2d0] sm:$0xff]
        %v2784 = vld [vmem:[%s532 + $0x2d8] sm:$0xff]
        %v2785 = vld [vmem:[%s532 + $0x2e0] sm:$0xff]
        %v2786 = vld [vmem:[%s532 + $0x2e8] sm:$0xff]
        %v2787 = vld [vmem:[%s532 + $0x2f0] sm:$0xff]
        %v2788 = vld [vmem:[%s532 + $0x2f8] sm:$0xff]
        %v2789 = vld [vmem:[%s532 + $0x300] sm:$0xff]
        %v2790 = vld [vmem:[%s532 + $0x308] sm:$0xff]
        %v2791 = vld [vmem:[%s532 + $0x310] sm:$0xff]
        %v2792 = vld [vmem:[%s532 + $0x318] sm:$0xff]
        %v2793 = vld [vmem:[%s532 + $0x320] sm:$0xff]
        %v2794 = vld [vmem:[%s532 + $0x328] sm:$0xff]
        %v2795 = vld [vmem:[%s532 + $0x330] sm:$0xff]
        %v2796 = vld [vmem:[%s532 + $0x338] sm:$0xff]
        %v2797 = vld [vmem:[%s532 + $0x340] sm:$0xff]
        %v2798 = vld [vmem:[%s532 + $0x348] sm:$0xff]
        %v2799 = vld [vmem:[%s532 + $0x350] sm:$0xff]
        %v2800 = vld [vmem:[%s532 + $0x358] sm:$0xff]
        %v2801 = vld [vmem:[%s532 + $0x360] sm:$0xff]
        %v2802 = vld [vmem:[%s532 + $0x368] sm:$0xff]
        %v2803 = vld [vmem:[%s532 + $0x370] sm:$0xff]
        %v2804 = vld [vmem:[%s532 + $0x378] sm:$0xff]
        %v2805 = vld [vmem:[%s532 + $0x380] sm:$0xff]
        %v2806 = vld [vmem:[%s532 + $0x388] sm:$0xff]
        %v2807 = vld [vmem:[%s532 + $0x390] sm:$0xff]
        %v2808 = vld [vmem:[%s532 + $0x398] sm:$0xff]
        %v2809 = vld [vmem:[%s532 + $0x3a0] sm:$0xff]
        %v2810 = vld [vmem:[%s532 + $0x3a8] sm:$0xff]
        %v2811 = vld [vmem:[%s532 + $0x3b0] sm:$0xff]
        %v2812 = vld [vmem:[%s532 + $0x3b8] sm:$0xff]
        %v2813 = vld [vmem:[%s532 + $0x3c0] sm:$0xff]
        %v2814 = vld [vmem:[%s532 + $0x3c8] sm:$0xff]
        %v2815 = vld [vmem:[%s532 + $0x3d0] sm:$0xff]
        %v2816 = vld [vmem:[%s532 + $0x3d8] sm:$0xff]
        %v2817 = vld [vmem:[%s532 + $0x3e0] sm:$0xff]
        %v2818 = vld [vmem:[%s532 + $0x3e8] sm:$0xff]
        %v2819 = vld [vmem:[%s532 + $0x3f0] sm:$0xff]
        %v2820 = vld [vmem:[%s532 + $0x3f8] sm:$0xff]
        %v2885 = vunpack.c.l.b16 %v2629
        %v2886 = vunpack.c.h.b16 %v2629
        %v2887 = vunpack.c.l.b16 %v2630
        %v2888 = vunpack.c.h.b16 %v2630
        %v2889 = vunpack.c.l.b16 %v2631
        %v2890 = vunpack.c.h.b16 %v2631
        %v2891 = vunpack.c.l.b16 %v2632
        %v2892 = vunpack.c.h.b16 %v2632
        %v2893 = vunpack.c.l.b16 %v2633
        %v2894 = vunpack.c.h.b16 %v2633
        %v2895 = vunpack.c.l.b16 %v2634
        %v2896 = vunpack.c.h.b16 %v2634
        %v2897 = vunpack.c.l.b16 %v2635
        %v2898 = vunpack.c.h.b16 %v2635
        %v2899 = vunpack.c.l.b16 %v2636
        %v2900 = vunpack.c.h.b16 %v2636
        %v2901 = vunpack.c.l.b16 %v2637
        %v2902 = vunpack.c.h.b16 %v2637
        %v2903 = vunpack.c.l.b16 %v2638
        %v2904 = vunpack.c.h.b16 %v2638
        %v2905 = vunpack.c.l.b16 %v2639
        %v2906 = vunpack.c.h.b16 %v2639
        %v2907 = vunpack.c.l.b16 %v2640
        %v2908 = vunpack.c.h.b16 %v2640
        %v2909 = vunpack.c.l.b16 %v2641
        %v2910 = vunpack.c.h.b16 %v2641
        %v2911 = vunpack.c.l.b16 %v2642
        %v2912 = vunpack.c.h.b16 %v2642
        %v2913 = vunpack.c.l.b16 %v2643
        %v2914 = vunpack.c.h.b16 %v2643
        %v2915 = vunpack.c.l.b16 %v2644
        %v2916 = vunpack.c.h.b16 %v2644
        %v2917 = vunpack.c.l.b16 %v2645
        %v2918 = vunpack.c.h.b16 %v2645
        %v2919 = vunpack.c.l.b16 %v2646
        %v2920 = vunpack.c.h.b16 %v2646
        %v2921 = vunpack.c.l.b16 %v2647
        %v2922 = vunpack.c.h.b16 %v2647
        %v2923 = vunpack.c.l.b16 %v2648
        %v2924 = vunpack.c.h.b16 %v2648
        %v2925 = vunpack.c.l.b16 %v2649
        %v2926 = vunpack.c.h.b16 %v2649
        %v2927 = vunpack.c.l.b16 %v2650
        %v2928 = vunpack.c.h.b16 %v2650
        %v2929 = vunpack.c.l.b16 %v2651
        %v2930 = vunpack.c.h.b16 %v2651
        %v2931 = vunpack.c.l.b16 %v2652
        %v2932 = vunpack.c.h.b16 %v2652
        %v2933 = vunpack.c.l.b16 %v2653
        %v2934 = vunpack.c.h.b16 %v2653
        %v2935 = vunpack.c.l.b16 %v2654
        %v2936 = vunpack.c.h.b16 %v2654
        %v2937 = vunpack.c.l.b16 %v2655
        %v2938 = vunpack.c.h.b16 %v2655
        %v2939 = vunpack.c.l.b16 %v2656
        %v2940 = vunpack.c.h.b16 %v2656
        %v2941 = vunpack.c.l.b16 %v2657
        %v2942 = vunpack.c.h.b16 %v2657
        %v2943 = vunpack.c.l.b16 %v2658
        %v2944 = vunpack.c.h.b16 %v2658
        %v2945 = vunpack.c.l.b16 %v2659
        %v2946 = vunpack.c.h.b16 %v2659
        %v2947 = vunpack.c.l.b16 %v2660
        %v2948 = vunpack.c.h.b16 %v2660
        %v2949 = vunpack.c.l.b16 %v2661
        %v2950 = vunpack.c.h.b16 %v2661
        %v2951 = vunpack.c.l.b16 %v2662
        %v2952 = vunpack.c.h.b16 %v2662
        %v2953 = vunpack.c.l.b16 %v2663
        %v2954 = vunpack.c.h.b16 %v2663
        %v2955 = vunpack.c.l.b16 %v2664
        %v2956 = vunpack.c.h.b16 %v2664
        %v2957 = vunpack.c.l.b16 %v2665
        %v2958 = vunpack.c.h.b16 %v2665
        %v2959 = vunpack.c.l.b16 %v2666
        %v2960 = vunpack.c.h.b16 %v2666
        %v2961 = vunpack.c.l.b16 %v2667
        %v2962 = vunpack.c.h.b16 %v2667
        %v2963 = vunpack.c.l.b16 %v2668
        %v2964 = vunpack.c.h.b16 %v2668
        %v2965 = vunpack.c.l.b16 %v2669
        %v2966 = vunpack.c.h.b16 %v2669
        %v2967 = vunpack.c.l.b16 %v2670
        %v2968 = vunpack.c.h.b16 %v2670
        %v2969 = vunpack.c.l.b16 %v2671
        %v2970 = vunpack.c.h.b16 %v2671
        %v2971 = vunpack.c.l.b16 %v2672
        %v2972 = vunpack.c.h.b16 %v2672
        %v2973 = vunpack.c.l.b16 %v2673
        %v2974 = vunpack.c.h.b16 %v2673
        %v2975 = vunpack.c.l.b16 %v2674
        %v2976 = vunpack.c.h.b16 %v2674
        %v2977 = vunpack.c.l.b16 %v2675
        %v2978 = vunpack.c.h.b16 %v2675
        %v2979 = vunpack.c.l.b16 %v2676
        %v2980 = vunpack.c.h.b16 %v2676
        %v2981 = vunpack.c.l.b16 %v2677
        %v2982 = vunpack.c.h.b16 %v2677
        %v2983 = vunpack.c.l.b16 %v2678
        %v2984 = vunpack.c.h.b16 %v2678
        %v2985 = vunpack.c.l.b16 %v2679
        %v2986 = vunpack.c.h.b16 %v2679
        %v2987 = vunpack.c.l.b16 %v2680
        %v2988 = vunpack.c.h.b16 %v2680
        %v2989 = vunpack.c.l.b16 %v2681
        %v2990 = vunpack.c.h.b16 %v2681
        %v2991 = vunpack.c.l.b16 %v2682
        %v2992 = vunpack.c.h.b16 %v2682
        %v2993 = vunpack.c.l.b16 %v2683
        %v2994 = vunpack.c.h.b16 %v2683
        %v2995 = vunpack.c.l.b16 %v2684
        %v2996 = vunpack.c.h.b16 %v2684
        %v2997 = vunpack.c.l.b16 %v2685
        %v2998 = vunpack.c.h.b16 %v2685
        %v2999 = vunpack.c.l.b16 %v2686
        %v3000 = vunpack.c.h.b16 %v2686
        %v3001 = vunpack.c.l.b16 %v2687
        %v3002 = vunpack.c.h.b16 %v2687
        %v3003 = vunpack.c.l.b16 %v2688
        %v3004 = vunpack.c.h.b16 %v2688
        %v3005 = vunpack.c.l.b16 %v2689
        %v3006 = vunpack.c.h.b16 %v2689
        %v3007 = vunpack.c.l.b16 %v2690
        %v3008 = vunpack.c.h.b16 %v2690
        %v3009 = vunpack.c.l.b16 %v2691
        %v3010 = vunpack.c.h.b16 %v2691
        %v3011 = vunpack.c.l.b16 %v2692
        %v3012 = vunpack.c.h.b16 %v2692
        %v3013 = vpack.c.b16 %v2887, %v2885
        %v3014 = vpack.c.b16 %v2888, %v2886
        %v3015 = vpack.c.b16 %v2891, %v2889
        %v3016 = vpack.c.b16 %v2892, %v2890
        %v3017 = vpack.c.b16 %v2895, %v2893
        %v3018 = vpack.c.b16 %v2896, %v2894
        %v3019 = vpack.c.b16 %v2899, %v2897
        %v3020 = vpack.c.b16 %v2900, %v2898
        %v3021 = vpack.c.b16 %v2903, %v2901
        %v3022 = vpack.c.b16 %v2904, %v2902
        %v3023 = vpack.c.b16 %v2907, %v2905
        %v3024 = vpack.c.b16 %v2908, %v2906
        %v3025 = vpack.c.b16 %v2911, %v2909
        %v3026 = vpack.c.b16 %v2912, %v2910
        %v3027 = vpack.c.b16 %v2915, %v2913
        %v3028 = vpack.c.b16 %v2916, %v2914
        %v3029 = vpack.c.b16 %v2919, %v2917
        %v3030 = vpack.c.b16 %v2920, %v2918
        %v3031 = vpack.c.b16 %v2923, %v2921
        %v3032 = vpack.c.b16 %v2924, %v2922
        %v3033 = vpack.c.b16 %v2927, %v2925
        %v3034 = vpack.c.b16 %v2928, %v2926
        %v3035 = vpack.c.b16 %v2931, %v2929
        %v3036 = vpack.c.b16 %v2932, %v2930
        %v3037 = vpack.c.b16 %v2935, %v2933
        %v3038 = vpack.c.b16 %v2936, %v2934
        %v3039 = vpack.c.b16 %v2939, %v2937
        %v3040 = vpack.c.b16 %v2940, %v2938
        %v3041 = vpack.c.b16 %v2943, %v2941
        %v3042 = vpack.c.b16 %v2944, %v2942
        %v3043 = vpack.c.b16 %v2947, %v2945
        %v3044 = vpack.c.b16 %v2948, %v2946
        %v3045 = vpack.c.b16 %v2951, %v2949
        %v3046 = vpack.c.b16 %v2952, %v2950
        %v3047 = vpack.c.b16 %v2955, %v2953
        %v3048 = vpack.c.b16 %v2956, %v2954
        %v3049 = vpack.c.b16 %v2959, %v2957
        %v3050 = vpack.c.b16 %v2960, %v2958
        %v3051 = vpack.c.b16 %v2963, %v2961
        %v3052 = vpack.c.b16 %v2964, %v2962
        %v3053 = vpack.c.b16 %v2967, %v2965
        %v3054 = vpack.c.b16 %v2968, %v2966
        %v3055 = vpack.c.b16 %v2971, %v2969
        %v3056 = vpack.c.b16 %v2972, %v2970
        %v3057 = vpack.c.b16 %v2975, %v2973
        %v3058 = vpack.c.b16 %v2976, %v2974
        %v3059 = vpack.c.b16 %v2979, %v2977
        %v3060 = vpack.c.b16 %v2980, %v2978
        %v3061 = vpack.c.b16 %v2983, %v2981
        %v3062 = vpack.c.b16 %v2984, %v2982
        %v3063 = vpack.c.b16 %v2987, %v2985
        %v3064 = vpack.c.b16 %v2988, %v2986
        %v3065 = vpack.c.b16 %v2991, %v2989
        %v3066 = vpack.c.b16 %v2992, %v2990
        %v3067 = vpack.c.b16 %v2995, %v2993
        %v3068 = vpack.c.b16 %v2996, %v2994
        %v3069 = vpack.c.b16 %v2999, %v2997
        %v3070 = vpack.c.b16 %v3000, %v2998
        %v3071 = vpack.c.b16 %v3003, %v3001
        %v3072 = vpack.c.b16 %v3004, %v3002
        %v3073 = vpack.c.b16 %v3007, %v3005
        %v3074 = vpack.c.b16 %v3008, %v3006
        %v3075 = vpack.c.b16 %v3011, %v3009
        %v3076 = vpack.c.b16 %v3012, %v3010
        %v3269 = vunpack.c.l.b16 %v2693
        %v3270 = vunpack.c.h.b16 %v2693
        %v3271 = vunpack.c.l.b16 %v2694
        %v3272 = vunpack.c.h.b16 %v2694
        %v3273 = vunpack.c.l.b16 %v2695
        %v3274 = vunpack.c.h.b16 %v2695
        %v3275 = vunpack.c.l.b16 %v2696
        %v3276 = vunpack.c.h.b16 %v2696
        %v3277 = vunpack.c.l.b16 %v2697
        %v3278 = vunpack.c.h.b16 %v2697
        %v3279 = vunpack.c.l.b16 %v2698
        %v3280 = vunpack.c.h.b16 %v2698
        %v3281 = vunpack.c.l.b16 %v2699
        %v3282 = vunpack.c.h.b16 %v2699
        %v3283 = vunpack.c.l.b16 %v2700
        %v3284 = vunpack.c.h.b16 %v2700
        %v3285 = vunpack.c.l.b16 %v2701
        %v3286 = vunpack.c.h.b16 %v2701
        %v3287 = vunpack.c.l.b16 %v2702
        %v3288 = vunpack.c.h.b16 %v2702
        %v3289 = vunpack.c.l.b16 %v2703
        %v3290 = vunpack.c.h.b16 %v2703
        %v3291 = vunpack.c.l.b16 %v2704
        %v3292 = vunpack.c.h.b16 %v2704
        %v3293 = vunpack.c.l.b16 %v2705
        %v3294 = vunpack.c.h.b16 %v2705
        %v3295 = vunpack.c.l.b16 %v2706
        %v3296 = vunpack.c.h.b16 %v2706
        %v3297 = vunpack.c.l.b16 %v2707
        %v3298 = vunpack.c.h.b16 %v2707
        %v3299 = vunpack.c.l.b16 %v2708
        %v3300 = vunpack.c.h.b16 %v2708
        %v3301 = vunpack.c.l.b16 %v2709
        %v3302 = vunpack.c.h.b16 %v2709
        %v3303 = vunpack.c.l.b16 %v2710
        %v3304 = vunpack.c.h.b16 %v2710
        %v3305 = vunpack.c.l.b16 %v2711
        %v3306 = vunpack.c.h.b16 %v2711
        %v3307 = vunpack.c.l.b16 %v2712
        %v3308 = vunpack.c.h.b16 %v2712
        %v3309 = vunpack.c.l.b16 %v2713
        %v3310 = vunpack.c.h.b16 %v2713
        %v3311 = vunpack.c.l.b16 %v2714
        %v3312 = vunpack.c.h.b16 %v2714
        %v3313 = vunpack.c.l.b16 %v2715
        %v3314 = vunpack.c.h.b16 %v2715
        %v3315 = vunpack.c.l.b16 %v2716
        %v3316 = vunpack.c.h.b16 %v2716
        %v3317 = vunpack.c.l.b16 %v2717
        %v3318 = vunpack.c.h.b16 %v2717
        %v3319 = vunpack.c.l.b16 %v2718
        %v3320 = vunpack.c.h.b16 %v2718
        %v3321 = vunpack.c.l.b16 %v2719
        %v3322 = vunpack.c.h.b16 %v2719
        %v3323 = vunpack.c.l.b16 %v2720
        %v3324 = vunpack.c.h.b16 %v2720
        %v3325 = vunpack.c.l.b16 %v2721
        %v3326 = vunpack.c.h.b16 %v2721
        %v3327 = vunpack.c.l.b16 %v2722
        %v3328 = vunpack.c.h.b16 %v2722
        %v3329 = vunpack.c.l.b16 %v2723
        %v3330 = vunpack.c.h.b16 %v2723
        %v3331 = vunpack.c.l.b16 %v2724
        %v3332 = vunpack.c.h.b16 %v2724
        %v3333 = vunpack.c.l.b16 %v2725
        %v3334 = vunpack.c.h.b16 %v2725
        %v3335 = vunpack.c.l.b16 %v2726
        %v3336 = vunpack.c.h.b16 %v2726
        %v3337 = vunpack.c.l.b16 %v2727
        %v3338 = vunpack.c.h.b16 %v2727
        %v3339 = vunpack.c.l.b16 %v2728
        %v3340 = vunpack.c.h.b16 %v2728
        %v3341 = vunpack.c.l.b16 %v2729
        %v3342 = vunpack.c.h.b16 %v2729
        %v3343 = vunpack.c.l.b16 %v2730
        %v3344 = vunpack.c.h.b16 %v2730
        %v3345 = vunpack.c.l.b16 %v2731
        %v3346 = vunpack.c.h.b16 %v2731
        %v3347 = vunpack.c.l.b16 %v2732
        %v3348 = vunpack.c.h.b16 %v2732
        %v3349 = vunpack.c.l.b16 %v2733
        %v3350 = vunpack.c.h.b16 %v2733
        %v3351 = vunpack.c.l.b16 %v2734
        %v3352 = vunpack.c.h.b16 %v2734
        %v3353 = vunpack.c.l.b16 %v2735
        %v3354 = vunpack.c.h.b16 %v2735
        %v3355 = vunpack.c.l.b16 %v2736
        %v3356 = vunpack.c.h.b16 %v2736
        %v3357 = vunpack.c.l.b16 %v2737
        %v3358 = vunpack.c.h.b16 %v2737
        %v3359 = vunpack.c.l.b16 %v2738
        %v3360 = vunpack.c.h.b16 %v2738
        %v3361 = vunpack.c.l.b16 %v2739
        %v3362 = vunpack.c.h.b16 %v2739
        %v3363 = vunpack.c.l.b16 %v2740
        %v3364 = vunpack.c.h.b16 %v2740
        %v3365 = vunpack.c.l.b16 %v2741
        %v3366 = vunpack.c.h.b16 %v2741
        %v3367 = vunpack.c.l.b16 %v2742
        %v3368 = vunpack.c.h.b16 %v2742
        %v3369 = vunpack.c.l.b16 %v2743
        %v3370 = vunpack.c.h.b16 %v2743
        %v3371 = vunpack.c.l.b16 %v2744
        %v3372 = vunpack.c.h.b16 %v2744
        %v3373 = vunpack.c.l.b16 %v2745
        %v3374 = vunpack.c.h.b16 %v2745
        %v3375 = vunpack.c.l.b16 %v2746
        %v3376 = vunpack.c.h.b16 %v2746
        %v3377 = vunpack.c.l.b16 %v2747
        %v3378 = vunpack.c.h.b16 %v2747
        %v3379 = vunpack.c.l.b16 %v2748
        %v3380 = vunpack.c.h.b16 %v2748
        %v3381 = vunpack.c.l.b16 %v2749
        %v3382 = vunpack.c.h.b16 %v2749
        %v3383 = vunpack.c.l.b16 %v2750
        %v3384 = vunpack.c.h.b16 %v2750
        %v3385 = vunpack.c.l.b16 %v2751
        %v3386 = vunpack.c.h.b16 %v2751
        %v3387 = vunpack.c.l.b16 %v2752
        %v3388 = vunpack.c.h.b16 %v2752
        %v3389 = vunpack.c.l.b16 %v2753
        %v3390 = vunpack.c.h.b16 %v2753
        %v3391 = vunpack.c.l.b16 %v2754
        %v3392 = vunpack.c.h.b16 %v2754
        %v3393 = vunpack.c.l.b16 %v2755
        %v3394 = vunpack.c.h.b16 %v2755
        %v3395 = vunpack.c.l.b16 %v2756
        %v3396 = vunpack.c.h.b16 %v2756
        %v3397 = vunpack.c.l.b16 %v2757
        %v3398 = vunpack.c.h.b16 %v2757
        %v3399 = vunpack.c.l.b16 %v2758
        %v3400 = vunpack.c.h.b16 %v2758
        %v3401 = vunpack.c.l.b16 %v2759
        %v3402 = vunpack.c.h.b16 %v2759
        %v3403 = vunpack.c.l.b16 %v2760
        %v3404 = vunpack.c.h.b16 %v2760
        %v3405 = vunpack.c.l.b16 %v2761
        %v3406 = vunpack.c.h.b16 %v2761
        %v3407 = vunpack.c.l.b16 %v2762
        %v3408 = vunpack.c.h.b16 %v2762
        %v3409 = vunpack.c.l.b16 %v2763
        %v3410 = vunpack.c.h.b16 %v2763
        %v3411 = vunpack.c.l.b16 %v2764
        %v3412 = vunpack.c.h.b16 %v2764
        %v3413 = vunpack.c.l.b16 %v2765
        %v3414 = vunpack.c.h.b16 %v2765
        %v3415 = vunpack.c.l.b16 %v2766
        %v3416 = vunpack.c.h.b16 %v2766
        %v3417 = vunpack.c.l.b16 %v2767
        %v3418 = vunpack.c.h.b16 %v2767
        %v3419 = vunpack.c.l.b16 %v2768
        %v3420 = vunpack.c.h.b16 %v2768
        %v3421 = vunpack.c.l.b16 %v2769
        %v3422 = vunpack.c.h.b16 %v2769
        %v3423 = vunpack.c.l.b16 %v2770
        %v3424 = vunpack.c.h.b16 %v2770
        %v3425 = vunpack.c.l.b16 %v2771
        %v3426 = vunpack.c.h.b16 %v2771
        %v3427 = vunpack.c.l.b16 %v2772
        %v3428 = vunpack.c.h.b16 %v2772
        %v3429 = vunpack.c.l.b16 %v2773
        %v3430 = vunpack.c.h.b16 %v2773
        %v3431 = vunpack.c.l.b16 %v2774
        %v3432 = vunpack.c.h.b16 %v2774
        %v3433 = vunpack.c.l.b16 %v2775
        %v3434 = vunpack.c.h.b16 %v2775
        %v3435 = vunpack.c.l.b16 %v2776
        %v3436 = vunpack.c.h.b16 %v2776
        %v3437 = vunpack.c.l.b16 %v2777
        %v3438 = vunpack.c.h.b16 %v2777
        %v3439 = vunpack.c.l.b16 %v2778
        %v3440 = vunpack.c.h.b16 %v2778
        %v3441 = vunpack.c.l.b16 %v2779
        %v3442 = vunpack.c.h.b16 %v2779
        %v3443 = vunpack.c.l.b16 %v2780
        %v3444 = vunpack.c.h.b16 %v2780
        %v3445 = vunpack.c.l.b16 %v2781
        %v3446 = vunpack.c.h.b16 %v2781
        %v3447 = vunpack.c.l.b16 %v2782
        %v3448 = vunpack.c.h.b16 %v2782
        %v3449 = vunpack.c.l.b16 %v2783
        %v3450 = vunpack.c.h.b16 %v2783
        %v3451 = vunpack.c.l.b16 %v2784
        %v3452 = vunpack.c.h.b16 %v2784
        %v3453 = vunpack.c.l.b16 %v2785
        %v3454 = vunpack.c.h.b16 %v2785
        %v3455 = vunpack.c.l.b16 %v2786
        %v3456 = vunpack.c.h.b16 %v2786
        %v3457 = vunpack.c.l.b16 %v2787
        %v3458 = vunpack.c.h.b16 %v2787
        %v3459 = vunpack.c.l.b16 %v2788
        %v3460 = vunpack.c.h.b16 %v2788
        %v3461 = vunpack.c.l.b16 %v2789
        %v3462 = vunpack.c.h.b16 %v2789
        %v3463 = vunpack.c.l.b16 %v2790
        %v3464 = vunpack.c.h.b16 %v2790
        %v3465 = vunpack.c.l.b16 %v2791
        %v3466 = vunpack.c.h.b16 %v2791
        %v3467 = vunpack.c.l.b16 %v2792
        %v3468 = vunpack.c.h.b16 %v2792
        %v3469 = vunpack.c.l.b16 %v2793
        %v3470 = vunpack.c.h.b16 %v2793
        %v3471 = vunpack.c.l.b16 %v2794
        %v3472 = vunpack.c.h.b16 %v2794
        %v3473 = vunpack.c.l.b16 %v2795
        %v3474 = vunpack.c.h.b16 %v2795
        %v3475 = vunpack.c.l.b16 %v2796
        %v3476 = vunpack.c.h.b16 %v2796
        %v3477 = vunpack.c.l.b16 %v2797
        %v3478 = vunpack.c.h.b16 %v2797
        %v3479 = vunpack.c.l.b16 %v2798
        %v3480 = vunpack.c.h.b16 %v2798
        %v3481 = vunpack.c.l.b16 %v2799
        %v3482 = vunpack.c.h.b16 %v2799
        %v3483 = vunpack.c.l.b16 %v2800
        %v3484 = vunpack.c.h.b16 %v2800
        %v3485 = vunpack.c.l.b16 %v2801
        %v3486 = vunpack.c.h.b16 %v2801
        %v3487 = vunpack.c.l.b16 %v2802
        %v3488 = vunpack.c.h.b16 %v2802
        %v3489 = vunpack.c.l.b16 %v2803
        %v3490 = vunpack.c.h.b16 %v2803
        %v3491 = vunpack.c.l.b16 %v2804
        %v3492 = vunpack.c.h.b16 %v2804
        %v3493 = vunpack.c.l.b16 %v2805
        %v3494 = vunpack.c.h.b16 %v2805
        %v3495 = vunpack.c.l.b16 %v2806
        %v3496 = vunpack.c.h.b16 %v2806
        %v3497 = vunpack.c.l.b16 %v2807
        %v3498 = vunpack.c.h.b16 %v2807
        %v3499 = vunpack.c.l.b16 %v2808
        %v3500 = vunpack.c.h.b16 %v2808
        %v3501 = vunpack.c.l.b16 %v2809
        %v3502 = vunpack.c.h.b16 %v2809
        %v3503 = vunpack.c.l.b16 %v2810
        %v3504 = vunpack.c.h.b16 %v2810
        %v3505 = vunpack.c.l.b16 %v2811
        %v3506 = vunpack.c.h.b16 %v2811
        %v3507 = vunpack.c.l.b16 %v2812
        %v3508 = vunpack.c.h.b16 %v2812
        %v3509 = vunpack.c.l.b16 %v2813
        %v3510 = vunpack.c.h.b16 %v2813
        %v3511 = vunpack.c.l.b16 %v2814
        %v3512 = vunpack.c.h.b16 %v2814
        %v3513 = vunpack.c.l.b16 %v2815
        %v3514 = vunpack.c.h.b16 %v2815
        %v3515 = vunpack.c.l.b16 %v2816
        %v3516 = vunpack.c.h.b16 %v2816
        %v3517 = vunpack.c.l.b16 %v2817
        %v3518 = vunpack.c.h.b16 %v2817
        %v3519 = vunpack.c.l.b16 %v2818
        %v3520 = vunpack.c.h.b16 %v2818
        %v3521 = vunpack.c.l.b16 %v2819
        %v3522 = vunpack.c.h.b16 %v2819
        %v3523 = vunpack.c.l.b16 %v2820
        %v3524 = vunpack.c.h.b16 %v2820
        %v3525 = vpack.c.b16 %v3277, %v3269
        %v3526 = vpack.c.b16 %v3278, %v3270
        %v3527 = vpack.c.b16 %v3279, %v3271
        %v3528 = vpack.c.b16 %v3280, %v3272
        %v3529 = vpack.c.b16 %v3281, %v3273
        %v3530 = vpack.c.b16 %v3282, %v3274
        %v3531 = vpack.c.b16 %v3283, %v3275
        %v3532 = vpack.c.b16 %v3284, %v3276
        %v3533 = vpack.c.b16 %v3293, %v3285
        %v3534 = vpack.c.b16 %v3294, %v3286
        %v3535 = vpack.c.b16 %v3295, %v3287
        %v3536 = vpack.c.b16 %v3296, %v3288
        %v3537 = vpack.c.b16 %v3297, %v3289
        %v3538 = vpack.c.b16 %v3298, %v3290
        %v3539 = vpack.c.b16 %v3299, %v3291
        %v3540 = vpack.c.b16 %v3300, %v3292
        %v3541 = vpack.c.b16 %v3309, %v3301
        %v3542 = vpack.c.b16 %v3310, %v3302
        %v3543 = vpack.c.b16 %v3311, %v3303
        %v3544 = vpack.c.b16 %v3312, %v3304
        %v3545 = vpack.c.b16 %v3313, %v3305
        %v3546 = vpack.c.b16 %v3314, %v3306
        %v3547 = vpack.c.b16 %v3315, %v3307
        %v3548 = vpack.c.b16 %v3316, %v3308
        %v3549 = vpack.c.b16 %v3325, %v3317
        %v3550 = vpack.c.b16 %v3326, %v3318
        %v3551 = vpack.c.b16 %v3327, %v3319
        %v3552 = vpack.c.b16 %v3328, %v3320
        %v3553 = vpack.c.b16 %v3329, %v3321
        %v3554 = vpack.c.b16 %v3330, %v3322
        %v3555 = vpack.c.b16 %v3331, %v3323
        %v3556 = vpack.c.b16 %v3332, %v3324
        %v3557 = vpack.c.b16 %v3341, %v3333
        %v3558 = vpack.c.b16 %v3342, %v3334
        %v3559 = vpack.c.b16 %v3343, %v3335
        %v3560 = vpack.c.b16 %v3344, %v3336
        %v3561 = vpack.c.b16 %v3345, %v3337
        %v3562 = vpack.c.b16 %v3346, %v3338
        %v3563 = vpack.c.b16 %v3347, %v3339
        %v3564 = vpack.c.b16 %v3348, %v3340
        %v3565 = vpack.c.b16 %v3357, %v3349
        %v3566 = vpack.c.b16 %v3358, %v3350
        %v3567 = vpack.c.b16 %v3359, %v3351
        %v3568 = vpack.c.b16 %v3360, %v3352
        %v3569 = vpack.c.b16 %v3361, %v3353
        %v3570 = vpack.c.b16 %v3362, %v3354
        %v3571 = vpack.c.b16 %v3363, %v3355
        %v3572 = vpack.c.b16 %v3364, %v3356
        %v3573 = vpack.c.b16 %v3373, %v3365
        %v3574 = vpack.c.b16 %v3374, %v3366
        %v3575 = vpack.c.b16 %v3375, %v3367
        %v3576 = vpack.c.b16 %v3376, %v3368
        %v3577 = vpack.c.b16 %v3377, %v3369
        %v3578 = vpack.c.b16 %v3378, %v3370
        %v3579 = vpack.c.b16 %v3379, %v3371
        %v3580 = vpack.c.b16 %v3380, %v3372
        %v3581 = vpack.c.b16 %v3389, %v3381
        %v3582 = vpack.c.b16 %v3390, %v3382
        %v3583 = vpack.c.b16 %v3391, %v3383
        %v3584 = vpack.c.b16 %v3392, %v3384
        %v3585 = vpack.c.b16 %v3393, %v3385
        %v3586 = vpack.c.b16 %v3394, %v3386
        %v3587 = vpack.c.b16 %v3395, %v3387
        %v3588 = vpack.c.b16 %v3396, %v3388
        %v3589 = vpack.c.b16 %v3405, %v3397
        %v3590 = vpack.c.b16 %v3406, %v3398
        %v3591 = vpack.c.b16 %v3407, %v3399
        %v3592 = vpack.c.b16 %v3408, %v3400
        %v3593 = vpack.c.b16 %v3409, %v3401
        %v3594 = vpack.c.b16 %v3410, %v3402
        %v3595 = vpack.c.b16 %v3411, %v3403
        %v3596 = vpack.c.b16 %v3412, %v3404
        %v3597 = vpack.c.b16 %v3421, %v3413
        %v3598 = vpack.c.b16 %v3422, %v3414
        %v3599 = vpack.c.b16 %v3423, %v3415
        %v3600 = vpack.c.b16 %v3424, %v3416
        %v3601 = vpack.c.b16 %v3425, %v3417
        %v3602 = vpack.c.b16 %v3426, %v3418
        %v3603 = vpack.c.b16 %v3427, %v3419
        %v3604 = vpack.c.b16 %v3428, %v3420
        %v3605 = vpack.c.b16 %v3437, %v3429
        %v3606 = vpack.c.b16 %v3438, %v3430
        %v3607 = vpack.c.b16 %v3439, %v3431
        %v3608 = vpack.c.b16 %v3440, %v3432
        %v3609 = vpack.c.b16 %v3441, %v3433
        %v3610 = vpack.c.b16 %v3442, %v3434
        %v3611 = vpack.c.b16 %v3443, %v3435
        %v3612 = vpack.c.b16 %v3444, %v3436
        %v3613 = vpack.c.b16 %v3453, %v3445
        %v3614 = vpack.c.b16 %v3454, %v3446
        %v3615 = vpack.c.b16 %v3455, %v3447
        %v3616 = vpack.c.b16 %v3456, %v3448
        %v3617 = vpack.c.b16 %v3457, %v3449
        %v3618 = vpack.c.b16 %v3458, %v3450
        %v3619 = vpack.c.b16 %v3459, %v3451
        %v3620 = vpack.c.b16 %v3460, %v3452
        %v3621 = vpack.c.b16 %v3469, %v3461
        %v3622 = vpack.c.b16 %v3470, %v3462
        %v3623 = vpack.c.b16 %v3471, %v3463
        %v3624 = vpack.c.b16 %v3472, %v3464
        %v3625 = vpack.c.b16 %v3473, %v3465
        %v3626 = vpack.c.b16 %v3474, %v3466
        %v3627 = vpack.c.b16 %v3475, %v3467
        %v3628 = vpack.c.b16 %v3476, %v3468
        %v3629 = vpack.c.b16 %v3485, %v3477
        %v3630 = vpack.c.b16 %v3486, %v3478
        %v3631 = vpack.c.b16 %v3487, %v3479
        %v3632 = vpack.c.b16 %v3488, %v3480
        %v3633 = vpack.c.b16 %v3489, %v3481
        %v3634 = vpack.c.b16 %v3490, %v3482
        %v3635 = vpack.c.b16 %v3491, %v3483
        %v3636 = vpack.c.b16 %v3492, %v3484
        %v3637 = vpack.c.b16 %v3501, %v3493
        %v3638 = vpack.c.b16 %v3502, %v3494
        %v3639 = vpack.c.b16 %v3503, %v3495
        %v3640 = vpack.c.b16 %v3504, %v3496
        %v3641 = vpack.c.b16 %v3505, %v3497
        %v3642 = vpack.c.b16 %v3506, %v3498
        %v3643 = vpack.c.b16 %v3507, %v3499
        %v3644 = vpack.c.b16 %v3508, %v3500
        %v3645 = vpack.c.b16 %v3517, %v3509
        %v3646 = vpack.c.b16 %v3518, %v3510
        %v3647 = vpack.c.b16 %v3519, %v3511
        %v3648 = vpack.c.b16 %v3520, %v3512
        %v3649 = vpack.c.b16 %v3521, %v3513
        %v3650 = vpack.c.b16 %v3522, %v3514
        %v3651 = vpack.c.b16 %v3523, %v3515
        %v3652 = vpack.c.b16 %v3524, %v3516
        %3781 = vmatprep.subr.bf16.mxu0 %v3582
        %3782 = vmatpush1.bf16.msra.mxu0 %v3581
        %3783 = vmatprep.subr.bf16.mxu0 %v3574
        %3784 = vmatpush1.bf16.msra.mxu0 %v3573
        %3785 = vmatprep.subr.bf16.mxu0 %v3566
        %3786 = vmatpush1.bf16.msra.mxu0 %v3565
        %3787 = vmatprep.subr.bf16.mxu0 %v3558
        %3788 = vmatpush1.bf16.msra.mxu0 %v3557
        %3789 = vmatprep.subr.bf16.mxu0 %v3550
        %3790 = vmatpush1.bf16.msra.mxu0 %v3549
        %3791 = vmatprep.subr.bf16.mxu0 %v3542
        %3792 = vmatpush1.bf16.msra.mxu0 %v3541
        %3793 = vmatprep.subr.bf16.mxu0 %v3534
        %3794 = vmatpush1.bf16.msra.mxu0 %v3533
        %3795 = vmatprep.subr.bf16.mxu0 %v3526
        %3796 = vmatpush1.bf16.msra.mxu0 %v3525
        %3797 = vmatprep.subr.bf16.mxu0 %v3646
        %3798 = vmatpush2.bf16.msra.mxu0 %v3645
        %3799 = vmatprep.subr.bf16.mxu0 %v3638
        %3800 = vmatpush2.bf16.msra.mxu0 %v3637
        %3801 = vmatprep.subr.bf16.mxu0 %v3630
        %3802 = vmatpush2.bf16.msra.mxu0 %v3629
        %3803 = vmatprep.subr.bf16.mxu0 %v3622
        %3804 = vmatpush2.bf16.msra.mxu0 %v3621
        %3805 = vmatprep.subr.bf16.mxu0 %v3614
        %3806 = vmatpush2.bf16.msra.mxu0 %v3613
        %3807 = vmatprep.subr.bf16.mxu0 %v3606
        %3808 = vmatpush2.bf16.msra.mxu0 %v3605
        %3809 = vmatprep.subr.bf16.mxu0 %v3598
        %3810 = vmatpush2.bf16.msra.mxu0 %v3597
        %3811 = vmatprep.subr.bf16.mxu0 %v3590
        %3812 = vmatpush2.bf16.msra.mxu0 %v3589
        %3813 = vmatprep.mubr.bf16.mxu0 %v3014
        %3814 = vmatmul.mubr.bf16.gmra.mxu0 %v3013
        %v3815 = vpop.f32.mrf.mxu0
        %v3816 = vadd.f32 0.0, %v3815
        %v3817 = vpop.f32.mrf.mxu0
        %v3818 = vadd.f32 0.0, %v3817
        %v3819 = vpop.f32.mrf.mxu0
        %v3820 = vadd.f32 0.0, %v3819
        %v3821 = vpop.f32.mrf.mxu0
        %v3822 = vadd.f32 0.0, %v3821
        %3823 = vmatprep.mubr.bf16.mxu0 %v3016
        %3824 = vmatmul.mubr.bf16.gmra.mxu0 %v3015
        %v3825 = vpop.f32.mrf.mxu0
        %v3826 = vadd.f32 0.0, %v3825
        %v3827 = vpop.f32.mrf.mxu0
        %v3828 = vadd.f32 0.0, %v3827
        %v3829 = vpop.f32.mrf.mxu0
        %v3830 = vadd.f32 0.0, %v3829
        %v3831 = vpop.f32.mrf.mxu0
        %v3832 = vadd.f32 0.0, %v3831
        %3833 = vmatprep.mubr.bf16.mxu0 %v3018
        %3834 = vmatmul.mubr.bf16.gmra.mxu0 %v3017
        %v3835 = vpop.f32.mrf.mxu0
        %v3836 = vadd.f32 0.0, %v3835
        %v3837 = vpop.f32.mrf.mxu0
        %v3838 = vadd.f32 0.0, %v3837
        %v3839 = vpop.f32.mrf.mxu0
        %v3840 = vadd.f32 0.0, %v3839
        %v3841 = vpop.f32.mrf.mxu0
        %v3842 = vadd.f32 0.0, %v3841
        %3843 = vmatprep.mubr.bf16.mxu0 %v3020
        %3844 = vmatmul.mubr.bf16.gmra.mxu0 %v3019
        %v3845 = vpop.f32.mrf.mxu0
        %v3846 = vadd.f32 0.0, %v3845
        %v3847 = vpop.f32.mrf.mxu0
        %v3848 = vadd.f32 0.0, %v3847
        %v3849 = vpop.f32.mrf.mxu0
        %v3850 = vadd.f32 0.0, %v3849
        %v3851 = vpop.f32.mrf.mxu0
        %v3852 = vadd.f32 0.0, %v3851
        %3853 = vmatprep.mubr.bf16.mxu0 %v3022
        %3854 = vmatmul.mubr.bf16.gmra.mxu0 %v3021
        %v3855 = vpop.f32.mrf.mxu0
        %v3856 = vadd.f32 0.0, %v3855
        %v3857 = vpop.f32.mrf.mxu0
        %v3858 = vadd.f32 0.0, %v3857
        %v3859 = vpop.f32.mrf.mxu0
        %v3860 = vadd.f32 0.0, %v3859
        %v3861 = vpop.f32.mrf.mxu0
        %v3862 = vadd.f32 0.0, %v3861
        %3863 = vmatprep.mubr.bf16.mxu0 %v3024
        %3864 = vmatmul.mubr.bf16.gmra.mxu0 %v3023
        %v3865 = vpop.f32.mrf.mxu0
        %v3866 = vadd.f32 0.0, %v3865
        %v3867 = vpop.f32.mrf.mxu0
        %v3868 = vadd.f32 0.0, %v3867
        %v3869 = vpop.f32.mrf.mxu0
        %v3870 = vadd.f32 0.0, %v3869
        %v3871 = vpop.f32.mrf.mxu0
        %v3872 = vadd.f32 0.0, %v3871
        %3873 = vmatprep.mubr.bf16.mxu0 %v3026
        %3874 = vmatmul.mubr.bf16.gmra.mxu0 %v3025
        %v3875 = vpop.f32.mrf.mxu0
        %v3876 = vadd.f32 0.0, %v3875
        %v3877 = vpop.f32.mrf.mxu0
        %v3878 = vadd.f32 0.0, %v3877
        %v3879 = vpop.f32.mrf.mxu0
        %v3880 = vadd.f32 0.0, %v3879
        %v3881 = vpop.f32.mrf.mxu0
        %v3882 = vadd.f32 0.0, %v3881
        %3883 = vmatprep.mubr.bf16.mxu0 %v3028
        %3884 = vmatmul.mubr.bf16.gmra.mxu0 %v3027
        %v3885 = vpop.f32.mrf.mxu0
        %v3886 = vadd.f32 0.0, %v3885
        %v3887 = vpop.f32.mrf.mxu0
        %v3888 = vadd.f32 0.0, %v3887
        %v3889 = vpop.f32.mrf.mxu0
        %v3890 = vadd.f32 0.0, %v3889
        %v3891 = vpop.f32.mrf.mxu0
        %v3892 = vadd.f32 0.0, %v3891
        %3893 = vmatprep.mubr.bf16.mxu0 %v3030
        %3894 = vmatmul.mubr.bf16.gmra.mxu0 %v3029
        %v3895 = vpop.f32.mrf.mxu0
        %v3896 = vadd.f32 0.0, %v3895
        %v3897 = vpop.f32.mrf.mxu0
        %v3898 = vadd.f32 0.0, %v3897
        %v3899 = vpop.f32.mrf.mxu0
        %v3900 = vadd.f32 0.0, %v3899
        %v3901 = vpop.f32.mrf.mxu0
        %v3902 = vadd.f32 0.0, %v3901
        %3903 = vmatprep.mubr.bf16.mxu0 %v3032
        %3904 = vmatmul.mubr.bf16.gmra.mxu0 %v3031
        %v3905 = vpop.f32.mrf.mxu0
        %v3906 = vadd.f32 0.0, %v3905
        %v3907 = vpop.f32.mrf.mxu0
        %v3908 = vadd.f32 0.0, %v3907
        %v3909 = vpop.f32.mrf.mxu0
        %v3910 = vadd.f32 0.0, %v3909
        %v3911 = vpop.f32.mrf.mxu0
        %v3912 = vadd.f32 0.0, %v3911
        %3913 = vmatprep.mubr.bf16.mxu0 %v3034
        %3914 = vmatmul.mubr.bf16.gmra.mxu0 %v3033
        %v3915 = vpop.f32.mrf.mxu0
        %v3916 = vadd.f32 0.0, %v3915
        %v3917 = vpop.f32.mrf.mxu0
        %v3918 = vadd.f32 0.0, %v3917
        %v3919 = vpop.f32.mrf.mxu0
        %v3920 = vadd.f32 0.0, %v3919
        %v3921 = vpop.f32.mrf.mxu0
        %v3922 = vadd.f32 0.0, %v3921
        %3923 = vmatprep.mubr.bf16.mxu0 %v3036
        %3924 = vmatmul.mubr.bf16.gmra.mxu0 %v3035
        %v3925 = vpop.f32.mrf.mxu0
        %v3926 = vadd.f32 0.0, %v3925
        %v3927 = vpop.f32.mrf.mxu0
        %v3928 = vadd.f32 0.0, %v3927
        %v3929 = vpop.f32.mrf.mxu0
        %v3930 = vadd.f32 0.0, %v3929
        %v3931 = vpop.f32.mrf.mxu0
        %v3932 = vadd.f32 0.0, %v3931
        %3933 = vmatprep.mubr.bf16.mxu0 %v3038
        %3934 = vmatmul.mubr.bf16.gmra.mxu0 %v3037
        %v3935 = vpop.f32.mrf.mxu0
        %v3936 = vadd.f32 0.0, %v3935
        %v3937 = vpop.f32.mrf.mxu0
        %v3938 = vadd.f32 0.0, %v3937
        %v3939 = vpop.f32.mrf.mxu0
        %v3940 = vadd.f32 0.0, %v3939
        %v3941 = vpop.f32.mrf.mxu0
        %v3942 = vadd.f32 0.0, %v3941
        %3943 = vmatprep.mubr.bf16.mxu0 %v3040
        %3944 = vmatmul.mubr.bf16.gmra.mxu0 %v3039
        %v3945 = vpop.f32.mrf.mxu0
        %v3946 = vadd.f32 0.0, %v3945
        %v3947 = vpop.f32.mrf.mxu0
        %v3948 = vadd.f32 0.0, %v3947
        %v3949 = vpop.f32.mrf.mxu0
        %v3950 = vadd.f32 0.0, %v3949
        %v3951 = vpop.f32.mrf.mxu0
        %v3952 = vadd.f32 0.0, %v3951
        %3953 = vmatprep.mubr.bf16.mxu0 %v3042
        %3954 = vmatmul.mubr.bf16.gmra.mxu0 %v3041
        %v3955 = vpop.f32.mrf.mxu0
        %v3956 = vadd.f32 0.0, %v3955
        %v3957 = vpop.f32.mrf.mxu0
        %v3958 = vadd.f32 0.0, %v3957
        %v3959 = vpop.f32.mrf.mxu0
        %v3960 = vadd.f32 0.0, %v3959
        %v3961 = vpop.f32.mrf.mxu0
        %v3962 = vadd.f32 0.0, %v3961
        %3963 = vmatprep.mubr.bf16.mxu0 %v3044
        %3964 = vmatmul.mubr.bf16.gmra.mxu0 %v3043
        %v3965 = vpop.f32.mrf.mxu0
        %v3966 = vadd.f32 0.0, %v3965
        %v3967 = vpop.f32.mrf.mxu0
        %v3968 = vadd.f32 0.0, %v3967
        %v3969 = vpop.f32.mrf.mxu0
        %v3970 = vadd.f32 0.0, %v3969
        %v3971 = vpop.f32.mrf.mxu0
        %v3972 = vadd.f32 0.0, %v3971
        %3973 = vmatprep.mubr.bf16.mxu0 %v3046
        %3974 = vmatmul.mubr.bf16.gmra.mxu0 %v3045
        %v3975 = vpop.f32.mrf.mxu0
        %v3976 = vadd.f32 0.0, %v3975
        %v3977 = vpop.f32.mrf.mxu0
        %v3978 = vadd.f32 0.0, %v3977
        %v3979 = vpop.f32.mrf.mxu0
        %v3980 = vadd.f32 0.0, %v3979
        %v3981 = vpop.f32.mrf.mxu0
        %v3982 = vadd.f32 0.0, %v3981
        %3983 = vmatprep.mubr.bf16.mxu0 %v3048
        %3984 = vmatmul.mubr.bf16.gmra.mxu0 %v3047
        %v3985 = vpop.f32.mrf.mxu0
        %v3986 = vadd.f32 0.0, %v3985
        %v3987 = vpop.f32.mrf.mxu0
        %v3988 = vadd.f32 0.0, %v3987
        %v3989 = vpop.f32.mrf.mxu0
        %v3990 = vadd.f32 0.0, %v3989
        %v3991 = vpop.f32.mrf.mxu0
        %v3992 = vadd.f32 0.0, %v3991
        %3993 = vmatprep.mubr.bf16.mxu0 %v3050
        %3994 = vmatmul.mubr.bf16.gmra.mxu0 %v3049
        %v3995 = vpop.f32.mrf.mxu0
        %v3996 = vadd.f32 0.0, %v3995
        %v3997 = vpop.f32.mrf.mxu0
        %v3998 = vadd.f32 0.0, %v3997
        %v3999 = vpop.f32.mrf.mxu0
        %v4000 = vadd.f32 0.0, %v3999
        %v4001 = vpop.f32.mrf.mxu0
        %v4002 = vadd.f32 0.0, %v4001
        %4003 = vmatprep.mubr.bf16.mxu0 %v3052
        %4004 = vmatmul.mubr.bf16.gmra.mxu0 %v3051
        %v4005 = vpop.f32.mrf.mxu0
        %v4006 = vadd.f32 0.0, %v4005
        %v4007 = vpop.f32.mrf.mxu0
        %v4008 = vadd.f32 0.0, %v4007
        %v4009 = vpop.f32.mrf.mxu0
        %v4010 = vadd.f32 0.0, %v4009
        %v4011 = vpop.f32.mrf.mxu0
        %v4012 = vadd.f32 0.0, %v4011
        %4013 = vmatprep.mubr.bf16.mxu0 %v3054
        %4014 = vmatmul.mubr.bf16.gmra.mxu0 %v3053
        %v4015 = vpop.f32.mrf.mxu0
        %v4016 = vadd.f32 0.0, %v4015
        %v4017 = vpop.f32.mrf.mxu0
        %v4018 = vadd.f32 0.0, %v4017
        %v4019 = vpop.f32.mrf.mxu0
        %v4020 = vadd.f32 0.0, %v4019
        %v4021 = vpop.f32.mrf.mxu0
        %v4022 = vadd.f32 0.0, %v4021
        %4023 = vmatprep.mubr.bf16.mxu0 %v3056
        %4024 = vmatmul.mubr.bf16.gmra.mxu0 %v3055
        %v4025 = vpop.f32.mrf.mxu0
        %v4026 = vadd.f32 0.0, %v4025
        %v4027 = vpop.f32.mrf.mxu0
        %v4028 = vadd.f32 0.0, %v4027
        %v4029 = vpop.f32.mrf.mxu0
        %v4030 = vadd.f32 0.0, %v4029
        %v4031 = vpop.f32.mrf.mxu0
        %v4032 = vadd.f32 0.0, %v4031
        %4033 = vmatprep.mubr.bf16.mxu0 %v3058
        %4034 = vmatmul.mubr.bf16.gmra.mxu0 %v3057
        %v4035 = vpop.f32.mrf.mxu0
        %v4036 = vadd.f32 0.0, %v4035
        %v4037 = vpop.f32.mrf.mxu0
        %v4038 = vadd.f32 0.0, %v4037
        %v4039 = vpop.f32.mrf.mxu0
        %v4040 = vadd.f32 0.0, %v4039
        %v4041 = vpop.f32.mrf.mxu0
        %v4042 = vadd.f32 0.0, %v4041
        %4043 = vmatprep.mubr.bf16.mxu0 %v3060
        %4044 = vmatmul.mubr.bf16.gmra.mxu0 %v3059
        %v4045 = vpop.f32.mrf.mxu0
        %v4046 = vadd.f32 0.0, %v4045
        %v4047 = vpop.f32.mrf.mxu0
        %v4048 = vadd.f32 0.0, %v4047
        %v4049 = vpop.f32.mrf.mxu0
        %v4050 = vadd.f32 0.0, %v4049
        %v4051 = vpop.f32.mrf.mxu0
        %v4052 = vadd.f32 0.0, %v4051
        %4053 = vmatprep.mubr.bf16.mxu0 %v3062
        %4054 = vmatmul.mubr.bf16.gmra.mxu0 %v3061
        %v4055 = vpop.f32.mrf.mxu0
        %v4056 = vadd.f32 0.0, %v4055
        %v4057 = vpop.f32.mrf.mxu0
        %v4058 = vadd.f32 0.0, %v4057
        %v4059 = vpop.f32.mrf.mxu0
        %v4060 = vadd.f32 0.0, %v4059
        %v4061 = vpop.f32.mrf.mxu0
        %v4062 = vadd.f32 0.0, %v4061
        %4063 = vmatprep.mubr.bf16.mxu0 %v3064
        %4064 = vmatmul.mubr.bf16.gmra.mxu0 %v3063
        %v4065 = vpop.f32.mrf.mxu0
        %v4066 = vadd.f32 0.0, %v4065
        %v4067 = vpop.f32.mrf.mxu0
        %v4068 = vadd.f32 0.0, %v4067
        %v4069 = vpop.f32.mrf.mxu0
        %v4070 = vadd.f32 0.0, %v4069
        %v4071 = vpop.f32.mrf.mxu0
        %v4072 = vadd.f32 0.0, %v4071
        %4073 = vmatprep.mubr.bf16.mxu0 %v3066
        %4074 = vmatmul.mubr.bf16.gmra.mxu0 %v3065
        %v4075 = vpop.f32.mrf.mxu0
        %v4076 = vadd.f32 0.0, %v4075
        %v4077 = vpop.f32.mrf.mxu0
        %v4078 = vadd.f32 0.0, %v4077
        %v4079 = vpop.f32.mrf.mxu0
        %v4080 = vadd.f32 0.0, %v4079
        %v4081 = vpop.f32.mrf.mxu0
        %v4082 = vadd.f32 0.0, %v4081
        %4083 = vmatprep.mubr.bf16.mxu0 %v3068
        %4084 = vmatmul.mubr.bf16.gmra.mxu0 %v3067
        %v4085 = vpop.f32.mrf.mxu0
        %v4086 = vadd.f32 0.0, %v4085
        %v4087 = vpop.f32.mrf.mxu0
        %v4088 = vadd.f32 0.0, %v4087
        %v4089 = vpop.f32.mrf.mxu0
        %v4090 = vadd.f32 0.0, %v4089
        %v4091 = vpop.f32.mrf.mxu0
        %v4092 = vadd.f32 0.0, %v4091
        %4093 = vmatprep.mubr.bf16.mxu0 %v3070
        %4094 = vmatmul.mubr.bf16.gmra.mxu0 %v3069
        %v4095 = vpop.f32.mrf.mxu0
        %v4096 = vadd.f32 0.0, %v4095
        %v4097 = vpop.f32.mrf.mxu0
        %v4098 = vadd.f32 0.0, %v4097
        %v4099 = vpop.f32.mrf.mxu0
        %v4100 = vadd.f32 0.0, %v4099
        %v4101 = vpop.f32.mrf.mxu0
        %v4102 = vadd.f32 0.0, %v4101
        %4103 = vmatprep.mubr.bf16.mxu0 %v3072
        %4104 = vmatmul.mubr.bf16.gmra.mxu0 %v3071
        %v4105 = vpop.f32.mrf.mxu0
        %v4106 = vadd.f32 0.0, %v4105
        %v4107 = vpop.f32.mrf.mxu0
        %v4108 = vadd.f32 0.0, %v4107
        %v4109 = vpop.f32.mrf.mxu0
        %v4110 = vadd.f32 0.0, %v4109
        %v4111 = vpop.f32.mrf.mxu0
        %v4112 = vadd.f32 0.0, %v4111
        %4113 = vmatprep.mubr.bf16.mxu0 %v3074
        %4114 = vmatmul.mubr.bf16.gmra.mxu0 %v3073
        %v4115 = vpop.f32.mrf.mxu0
        %v4116 = vadd.f32 0.0, %v4115
        %v4117 = vpop.f32.mrf.mxu0
        %v4118 = vadd.f32 0.0, %v4117
        %v4119 = vpop.f32.mrf.mxu0
        %v4120 = vadd.f32 0.0, %v4119
        %v4121 = vpop.f32.mrf.mxu0
        %v4122 = vadd.f32 0.0, %v4121
        %4123 = vmatprep.mubr.bf16.mxu0 %v3076
        %4124 = vmatmul.mubr.bf16.gmra.mxu0 %v3075
        %v4125 = vpop.f32.mrf.mxu0
        %v4126 = vadd.f32 0.0, %v4125
        %v4127 = vpop.f32.mrf.mxu0
        %v4128 = vadd.f32 0.0, %v4127
        %v4129 = vpop.f32.mrf.mxu0
        %v4130 = vadd.f32 0.0, %v4129
        %v4131 = vpop.f32.mrf.mxu0
        %v4132 = vadd.f32 0.0, %v4131
        %4133 = vdwg.mxu0
        %4134 = vmatprep.subr.bf16.mxu0 %v3584
        %4135 = vmatpush1.bf16.msra.mxu0 %v3583
        %4136 = vmatprep.subr.bf16.mxu0 %v3576
        %4137 = vmatpush1.bf16.msra.mxu0 %v3575
        %4138 = vmatprep.subr.bf16.mxu0 %v3568
        %4139 = vmatpush1.bf16.msra.mxu0 %v3567
        %4140 = vmatprep.subr.bf16.mxu0 %v3560
        %4141 = vmatpush1.bf16.msra.mxu0 %v3559
        %4142 = vmatprep.subr.bf16.mxu0 %v3552
        %4143 = vmatpush1.bf16.msra.mxu0 %v3551
        %4144 = vmatprep.subr.bf16.mxu0 %v3544
        %4145 = vmatpush1.bf16.msra.mxu0 %v3543
        %4146 = vmatprep.subr.bf16.mxu0 %v3536
        %4147 = vmatpush1.bf16.msra.mxu0 %v3535
        %4148 = vmatprep.subr.bf16.mxu0 %v3528
        %4149 = vmatpush1.bf16.msra.mxu0 %v3527
        %4150 = vmatprep.subr.bf16.mxu0 %v3648
        %4151 = vmatpush2.bf16.msra.mxu0 %v3647
        %4152 = vmatprep.subr.bf16.mxu0 %v3640
        %4153 = vmatpush2.bf16.msra.mxu0 %v3639
        %4154 = vmatprep.subr.bf16.mxu0 %v3632
        %4155 = vmatpush2.bf16.msra.mxu0 %v3631
        %4156 = vmatprep.subr.bf16.mxu0 %v3624
        %4157 = vmatpush2.bf16.msra.mxu0 %v3623
        %4158 = vmatprep.subr.bf16.mxu0 %v3616
        %4159 = vmatpush2.bf16.msra.mxu0 %v3615
        %4160 = vmatprep.subr.bf16.mxu0 %v3608
        %4161 = vmatpush2.bf16.msra.mxu0 %v3607
        %4162 = vmatprep.subr.bf16.mxu0 %v3600
        %4163 = vmatpush2.bf16.msra.mxu0 %v3599
        %4164 = vmatprep.subr.bf16.mxu0 %v3592
        %4165 = vmatpush2.bf16.msra.mxu0 %v3591
        %4166 = vmatprep.mubr.bf16.mxu0 %v3014
        %4167 = vmatmul.mubr.bf16.gmra.mxu0 %v3013
        %v4168 = vpop.f32.mrf.mxu0
        %v4169 = vadd.f32 0.0, %v4168
        %v4170 = vpop.f32.mrf.mxu0
        %v4171 = vadd.f32 0.0, %v4170
        %v4172 = vpop.f32.mrf.mxu0
        %v4173 = vadd.f32 0.0, %v4172
        %v4174 = vpop.f32.mrf.mxu0
        %v4175 = vadd.f32 0.0, %v4174
        %4176 = vmatprep.mubr.bf16.mxu0 %v3016
        %4177 = vmatmul.mubr.bf16.gmra.mxu0 %v3015
        %v4178 = vpop.f32.mrf.mxu0
        %v4179 = vadd.f32 0.0, %v4178
        %v4180 = vpop.f32.mrf.mxu0
        %v4181 = vadd.f32 0.0, %v4180
        %v4182 = vpop.f32.mrf.mxu0
        %v4183 = vadd.f32 0.0, %v4182
        %v4184 = vpop.f32.mrf.mxu0
        %v4185 = vadd.f32 0.0, %v4184
        %4186 = vmatprep.mubr.bf16.mxu0 %v3018
        %4187 = vmatmul.mubr.bf16.gmra.mxu0 %v3017
        %v4188 = vpop.f32.mrf.mxu0
        %v4189 = vadd.f32 0.0, %v4188
        %v4190 = vpop.f32.mrf.mxu0
        %v4191 = vadd.f32 0.0, %v4190
        %v4192 = vpop.f32.mrf.mxu0
        %v4193 = vadd.f32 0.0, %v4192
        %v4194 = vpop.f32.mrf.mxu0
        %v4195 = vadd.f32 0.0, %v4194
        %4196 = vmatprep.mubr.bf16.mxu0 %v3020
        %4197 = vmatmul.mubr.bf16.gmra.mxu0 %v3019
        %v4198 = vpop.f32.mrf.mxu0
        %v4199 = vadd.f32 0.0, %v4198
        %v4200 = vpop.f32.mrf.mxu0
        %v4201 = vadd.f32 0.0, %v4200
        %v4202 = vpop.f32.mrf.mxu0
        %v4203 = vadd.f32 0.0, %v4202
        %v4204 = vpop.f32.mrf.mxu0
        %v4205 = vadd.f32 0.0, %v4204
        %4206 = vmatprep.mubr.bf16.mxu0 %v3022
        %4207 = vmatmul.mubr.bf16.gmra.mxu0 %v3021
        %v4208 = vpop.f32.mrf.mxu0
        %v4209 = vadd.f32 0.0, %v4208
        %v4210 = vpop.f32.mrf.mxu0
        %v4211 = vadd.f32 0.0, %v4210
        %v4212 = vpop.f32.mrf.mxu0
        %v4213 = vadd.f32 0.0, %v4212
        %v4214 = vpop.f32.mrf.mxu0
        %v4215 = vadd.f32 0.0, %v4214
        %4216 = vmatprep.mubr.bf16.mxu0 %v3024
        %4217 = vmatmul.mubr.bf16.gmra.mxu0 %v3023
        %v4218 = vpop.f32.mrf.mxu0
        %v4219 = vadd.f32 0.0, %v4218
        %v4220 = vpop.f32.mrf.mxu0
        %v4221 = vadd.f32 0.0, %v4220
        %v4222 = vpop.f32.mrf.mxu0
        %v4223 = vadd.f32 0.0, %v4222
        %v4224 = vpop.f32.mrf.mxu0
        %v4225 = vadd.f32 0.0, %v4224
        %4226 = vmatprep.mubr.bf16.mxu0 %v3026
        %4227 = vmatmul.mubr.bf16.gmra.mxu0 %v3025
        %v4228 = vpop.f32.mrf.mxu0
        %v4229 = vadd.f32 0.0, %v4228
        %v4230 = vpop.f32.mrf.mxu0
        %v4231 = vadd.f32 0.0, %v4230
        %v4232 = vpop.f32.mrf.mxu0
        %v4233 = vadd.f32 0.0, %v4232
        %v4234 = vpop.f32.mrf.mxu0
        %v4235 = vadd.f32 0.0, %v4234
        %4236 = vmatprep.mubr.bf16.mxu0 %v3028
        %4237 = vmatmul.mubr.bf16.gmra.mxu0 %v3027
        %v4238 = vpop.f32.mrf.mxu0
        %v4239 = vadd.f32 0.0, %v4238
        %v4240 = vpop.f32.mrf.mxu0
        %v4241 = vadd.f32 0.0, %v4240
        %v4242 = vpop.f32.mrf.mxu0
        %v4243 = vadd.f32 0.0, %v4242
        %v4244 = vpop.f32.mrf.mxu0
        %v4245 = vadd.f32 0.0, %v4244
        %4246 = vmatprep.mubr.bf16.mxu0 %v3030
        %4247 = vmatmul.mubr.bf16.gmra.mxu0 %v3029
        %v4248 = vpop.f32.mrf.mxu0
        %v4249 = vadd.f32 0.0, %v4248
        %v4250 = vpop.f32.mrf.mxu0
        %v4251 = vadd.f32 0.0, %v4250
        %v4252 = vpop.f32.mrf.mxu0
        %v4253 = vadd.f32 0.0, %v4252
        %v4254 = vpop.f32.mrf.mxu0
        %v4255 = vadd.f32 0.0, %v4254
        %4256 = vmatprep.mubr.bf16.mxu0 %v3032
        %4257 = vmatmul.mubr.bf16.gmra.mxu0 %v3031
        %v4258 = vpop.f32.mrf.mxu0
        %v4259 = vadd.f32 0.0, %v4258
        %v4260 = vpop.f32.mrf.mxu0
        %v4261 = vadd.f32 0.0, %v4260
        %v4262 = vpop.f32.mrf.mxu0
        %v4263 = vadd.f32 0.0, %v4262
        %v4264 = vpop.f32.mrf.mxu0
        %v4265 = vadd.f32 0.0, %v4264
        %4266 = vmatprep.mubr.bf16.mxu0 %v3034
        %4267 = vmatmul.mubr.bf16.gmra.mxu0 %v3033
        %v4268 = vpop.f32.mrf.mxu0
        %v4269 = vadd.f32 0.0, %v4268
        %v4270 = vpop.f32.mrf.mxu0
        %v4271 = vadd.f32 0.0, %v4270
        %v4272 = vpop.f32.mrf.mxu0
        %v4273 = vadd.f32 0.0, %v4272
        %v4274 = vpop.f32.mrf.mxu0
        %v4275 = vadd.f32 0.0, %v4274
        %4276 = vmatprep.mubr.bf16.mxu0 %v3036
        %4277 = vmatmul.mubr.bf16.gmra.mxu0 %v3035
        %v4278 = vpop.f32.mrf.mxu0
        %v4279 = vadd.f32 0.0, %v4278
        %v4280 = vpop.f32.mrf.mxu0
        %v4281 = vadd.f32 0.0, %v4280
        %v4282 = vpop.f32.mrf.mxu0
        %v4283 = vadd.f32 0.0, %v4282
        %v4284 = vpop.f32.mrf.mxu0
        %v4285 = vadd.f32 0.0, %v4284
        %4286 = vmatprep.mubr.bf16.mxu0 %v3038
        %4287 = vmatmul.mubr.bf16.gmra.mxu0 %v3037
        %v4288 = vpop.f32.mrf.mxu0
        %v4289 = vadd.f32 0.0, %v4288
        %v4290 = vpop.f32.mrf.mxu0
        %v4291 = vadd.f32 0.0, %v4290
        %v4292 = vpop.f32.mrf.mxu0
        %v4293 = vadd.f32 0.0, %v4292
        %v4294 = vpop.f32.mrf.mxu0
        %v4295 = vadd.f32 0.0, %v4294
        %4296 = vmatprep.mubr.bf16.mxu0 %v3040
        %4297 = vmatmul.mubr.bf16.gmra.mxu0 %v3039
        %v4298 = vpop.f32.mrf.mxu0
        %v4299 = vadd.f32 0.0, %v4298
        %v4300 = vpop.f32.mrf.mxu0
        %v4301 = vadd.f32 0.0, %v4300
        %v4302 = vpop.f32.mrf.mxu0
        %v4303 = vadd.f32 0.0, %v4302
        %v4304 = vpop.f32.mrf.mxu0
        %v4305 = vadd.f32 0.0, %v4304
        %4306 = vmatprep.mubr.bf16.mxu0 %v3042
        %4307 = vmatmul.mubr.bf16.gmra.mxu0 %v3041
        %v4308 = vpop.f32.mrf.mxu0
        %v4309 = vadd.f32 0.0, %v4308
        %v4310 = vpop.f32.mrf.mxu0
        %v4311 = vadd.f32 0.0, %v4310
        %v4312 = vpop.f32.mrf.mxu0
        %v4313 = vadd.f32 0.0, %v4312
        %v4314 = vpop.f32.mrf.mxu0
        %v4315 = vadd.f32 0.0, %v4314
        %4316 = vmatprep.mubr.bf16.mxu0 %v3044
        %4317 = vmatmul.mubr.bf16.gmra.mxu0 %v3043
        %v4318 = vpop.f32.mrf.mxu0
        %v4319 = vadd.f32 0.0, %v4318
        %v4320 = vpop.f32.mrf.mxu0
        %v4321 = vadd.f32 0.0, %v4320
        %v4322 = vpop.f32.mrf.mxu0
        %v4323 = vadd.f32 0.0, %v4322
        %v4324 = vpop.f32.mrf.mxu0
        %v4325 = vadd.f32 0.0, %v4324
        %4326 = vmatprep.mubr.bf16.mxu0 %v3046
        %4327 = vmatmul.mubr.bf16.gmra.mxu0 %v3045
        %v4328 = vpop.f32.mrf.mxu0
        %v4329 = vadd.f32 0.0, %v4328
        %v4330 = vpop.f32.mrf.mxu0
        %v4331 = vadd.f32 0.0, %v4330
        %v4332 = vpop.f32.mrf.mxu0
        %v4333 = vadd.f32 0.0, %v4332
        %v4334 = vpop.f32.mrf.mxu0
        %v4335 = vadd.f32 0.0, %v4334
        %4336 = vmatprep.mubr.bf16.mxu0 %v3048
        %4337 = vmatmul.mubr.bf16.gmra.mxu0 %v3047
        %v4338 = vpop.f32.mrf.mxu0
        %v4339 = vadd.f32 0.0, %v4338
        %v4340 = vpop.f32.mrf.mxu0
        %v4341 = vadd.f32 0.0, %v4340
        %v4342 = vpop.f32.mrf.mxu0
        %v4343 = vadd.f32 0.0, %v4342
        %v4344 = vpop.f32.mrf.mxu0
        %v4345 = vadd.f32 0.0, %v4344
        %4346 = vmatprep.mubr.bf16.mxu0 %v3050
        %4347 = vmatmul.mubr.bf16.gmra.mxu0 %v3049
        %v4348 = vpop.f32.mrf.mxu0
        %v4349 = vadd.f32 0.0, %v4348
        %v4350 = vpop.f32.mrf.mxu0
        %v4351 = vadd.f32 0.0, %v4350
        %v4352 = vpop.f32.mrf.mxu0
        %v4353 = vadd.f32 0.0, %v4352
        %v4354 = vpop.f32.mrf.mxu0
        %v4355 = vadd.f32 0.0, %v4354
        %4356 = vmatprep.mubr.bf16.mxu0 %v3052
        %4357 = vmatmul.mubr.bf16.gmra.mxu0 %v3051
        %v4358 = vpop.f32.mrf.mxu0
        %v4359 = vadd.f32 0.0, %v4358
        %v4360 = vpop.f32.mrf.mxu0
        %v4361 = vadd.f32 0.0, %v4360
        %v4362 = vpop.f32.mrf.mxu0
        %v4363 = vadd.f32 0.0, %v4362
        %v4364 = vpop.f32.mrf.mxu0
        %v4365 = vadd.f32 0.0, %v4364
        %4366 = vmatprep.mubr.bf16.mxu0 %v3054
        %4367 = vmatmul.mubr.bf16.gmra.mxu0 %v3053
        %v4368 = vpop.f32.mrf.mxu0
        %v4369 = vadd.f32 0.0, %v4368
        %v4370 = vpop.f32.mrf.mxu0
        %v4371 = vadd.f32 0.0, %v4370
        %v4372 = vpop.f32.mrf.mxu0
        %v4373 = vadd.f32 0.0, %v4372
        %v4374 = vpop.f32.mrf.mxu0
        %v4375 = vadd.f32 0.0, %v4374
        %4376 = vmatprep.mubr.bf16.mxu0 %v3056
        %4377 = vmatmul.mubr.bf16.gmra.mxu0 %v3055
        %v4378 = vpop.f32.mrf.mxu0
        %v4379 = vadd.f32 0.0, %v4378
        %v4380 = vpop.f32.mrf.mxu0
        %v4381 = vadd.f32 0.0, %v4380
        %v4382 = vpop.f32.mrf.mxu0
        %v4383 = vadd.f32 0.0, %v4382
        %v4384 = vpop.f32.mrf.mxu0
        %v4385 = vadd.f32 0.0, %v4384
        %4386 = vmatprep.mubr.bf16.mxu0 %v3058
        %4387 = vmatmul.mubr.bf16.gmra.mxu0 %v3057
        %v4388 = vpop.f32.mrf.mxu0
        %v4389 = vadd.f32 0.0, %v4388
        %v4390 = vpop.f32.mrf.mxu0
        %v4391 = vadd.f32 0.0, %v4390
        %v4392 = vpop.f32.mrf.mxu0
        %v4393 = vadd.f32 0.0, %v4392
        %v4394 = vpop.f32.mrf.mxu0
        %v4395 = vadd.f32 0.0, %v4394
        %4396 = vmatprep.mubr.bf16.mxu0 %v3060
        %4397 = vmatmul.mubr.bf16.gmra.mxu0 %v3059
        %v4398 = vpop.f32.mrf.mxu0
        %v4399 = vadd.f32 0.0, %v4398
        %v4400 = vpop.f32.mrf.mxu0
        %v4401 = vadd.f32 0.0, %v4400
        %v4402 = vpop.f32.mrf.mxu0
        %v4403 = vadd.f32 0.0, %v4402
        %v4404 = vpop.f32.mrf.mxu0
        %v4405 = vadd.f32 0.0, %v4404
        %4406 = vmatprep.mubr.bf16.mxu0 %v3062
        %4407 = vmatmul.mubr.bf16.gmra.mxu0 %v3061
        %v4408 = vpop.f32.mrf.mxu0
        %v4409 = vadd.f32 0.0, %v4408
        %v4410 = vpop.f32.mrf.mxu0
        %v4411 = vadd.f32 0.0, %v4410
        %v4412 = vpop.f32.mrf.mxu0
        %v4413 = vadd.f32 0.0, %v4412
        %v4414 = vpop.f32.mrf.mxu0
        %v4415 = vadd.f32 0.0, %v4414
        %4416 = vmatprep.mubr.bf16.mxu0 %v3064
        %4417 = vmatmul.mubr.bf16.gmra.mxu0 %v3063
        %v4418 = vpop.f32.mrf.mxu0
        %v4419 = vadd.f32 0.0, %v4418
        %v4420 = vpop.f32.mrf.mxu0
        %v4421 = vadd.f32 0.0, %v4420
        %v4422 = vpop.f32.mrf.mxu0
        %v4423 = vadd.f32 0.0, %v4422
        %v4424 = vpop.f32.mrf.mxu0
        %v4425 = vadd.f32 0.0, %v4424
        %4426 = vmatprep.mubr.bf16.mxu0 %v3066
        %4427 = vmatmul.mubr.bf16.gmra.mxu0 %v3065
        %v4428 = vpop.f32.mrf.mxu0
        %v4429 = vadd.f32 0.0, %v4428
        %v4430 = vpop.f32.mrf.mxu0
        %v4431 = vadd.f32 0.0, %v4430
        %v4432 = vpop.f32.mrf.mxu0
        %v4433 = vadd.f32 0.0, %v4432
        %v4434 = vpop.f32.mrf.mxu0
        %v4435 = vadd.f32 0.0, %v4434
        %4436 = vmatprep.mubr.bf16.mxu0 %v3068
        %4437 = vmatmul.mubr.bf16.gmra.mxu0 %v3067
        %v4438 = vpop.f32.mrf.mxu0
        %v4439 = vadd.f32 0.0, %v4438
        %v4440 = vpop.f32.mrf.mxu0
        %v4441 = vadd.f32 0.0, %v4440
        %v4442 = vpop.f32.mrf.mxu0
        %v4443 = vadd.f32 0.0, %v4442
        %v4444 = vpop.f32.mrf.mxu0
        %v4445 = vadd.f32 0.0, %v4444
        %4446 = vmatprep.mubr.bf16.mxu0 %v3070
        %4447 = vmatmul.mubr.bf16.gmra.mxu0 %v3069
        %v4448 = vpop.f32.mrf.mxu0
        %v4449 = vadd.f32 0.0, %v4448
        %v4450 = vpop.f32.mrf.mxu0
        %v4451 = vadd.f32 0.0, %v4450
        %v4452 = vpop.f32.mrf.mxu0
        %v4453 = vadd.f32 0.0, %v4452
        %v4454 = vpop.f32.mrf.mxu0
        %v4455 = vadd.f32 0.0, %v4454
        %4456 = vmatprep.mubr.bf16.mxu0 %v3072
        %4457 = vmatmul.mubr.bf16.gmra.mxu0 %v3071
        %v4458 = vpop.f32.mrf.mxu0
        %v4459 = vadd.f32 0.0, %v4458
        %v4460 = vpop.f32.mrf.mxu0
        %v4461 = vadd.f32 0.0, %v4460
        %v4462 = vpop.f32.mrf.mxu0
        %v4463 = vadd.f32 0.0, %v4462
        %v4464 = vpop.f32.mrf.mxu0
        %v4465 = vadd.f32 0.0, %v4464
        %4466 = vmatprep.mubr.bf16.mxu0 %v3074
        %4467 = vmatmul.mubr.bf16.gmra.mxu0 %v3073
        %v4468 = vpop.f32.mrf.mxu0
        %v4469 = vadd.f32 0.0, %v4468
        %v4470 = vpop.f32.mrf.mxu0
        %v4471 = vadd.f32 0.0, %v4470
        %v4472 = vpop.f32.mrf.mxu0
        %v4473 = vadd.f32 0.0, %v4472
        %v4474 = vpop.f32.mrf.mxu0
        %v4475 = vadd.f32 0.0, %v4474
        %4476 = vmatprep.mubr.bf16.mxu0 %v3076
        %4477 = vmatmul.mubr.bf16.gmra.mxu0 %v3075
        %v4478 = vpop.f32.mrf.mxu0
        %v4479 = vadd.f32 0.0, %v4478
        %v4480 = vpop.f32.mrf.mxu0
        %v4481 = vadd.f32 0.0, %v4480
        %v4482 = vpop.f32.mrf.mxu0
        %v4483 = vadd.f32 0.0, %v4482
        %v4484 = vpop.f32.mrf.mxu0
        %v4485 = vadd.f32 0.0, %v4484
        %4486 = vdwg.mxu0
        %4487 = vmatprep.subr.bf16.mxu0 %v3586
        %4488 = vmatpush1.bf16.msra.mxu0 %v3585
        %4489 = vmatprep.subr.bf16.mxu0 %v3578
        %4490 = vmatpush1.bf16.msra.mxu0 %v3577
        %4491 = vmatprep.subr.bf16.mxu0 %v3570
        %4492 = vmatpush1.bf16.msra.mxu0 %v3569
        %4493 = vmatprep.subr.bf16.mxu0 %v3562
        %4494 = vmatpush1.bf16.msra.mxu0 %v3561
        %4495 = vmatprep.subr.bf16.mxu0 %v3554
        %4496 = vmatpush1.bf16.msra.mxu0 %v3553
        %4497 = vmatprep.subr.bf16.mxu0 %v3546
        %4498 = vmatpush1.bf16.msra.mxu0 %v3545
        %4499 = vmatprep.subr.bf16.mxu0 %v3538
        %4500 = vmatpush1.bf16.msra.mxu0 %v3537
        %4501 = vmatprep.subr.bf16.mxu0 %v3530
        %4502 = vmatpush1.bf16.msra.mxu0 %v3529
        %4503 = vmatprep.subr.bf16.mxu0 %v3650
        %4504 = vmatpush2.bf16.msra.mxu0 %v3649
        %4505 = vmatprep.subr.bf16.mxu0 %v3642
        %4506 = vmatpush2.bf16.msra.mxu0 %v3641
        %4507 = vmatprep.subr.bf16.mxu0 %v3634
        %4508 = vmatpush2.bf16.msra.mxu0 %v3633
        %4509 = vmatprep.subr.bf16.mxu0 %v3626
        %4510 = vmatpush2.bf16.msra.mxu0 %v3625
        %4511 = vmatprep.subr.bf16.mxu0 %v3618
        %4512 = vmatpush2.bf16.msra.mxu0 %v3617
        %4513 = vmatprep.subr.bf16.mxu0 %v3610
        %4514 = vmatpush2.bf16.msra.mxu0 %v3609
        %4515 = vmatprep.subr.bf16.mxu0 %v3602
        %4516 = vmatpush2.bf16.msra.mxu0 %v3601
        %4517 = vmatprep.subr.bf16.mxu0 %v3594
        %4518 = vmatpush2.bf16.msra.mxu0 %v3593
        %4519 = vmatprep.mubr.bf16.mxu0 %v3014
        %4520 = vmatmul.mubr.bf16.gmra.mxu0 %v3013
        %v4521 = vpop.f32.mrf.mxu0
        %v4522 = vadd.f32 0.0, %v4521
        %v4523 = vpop.f32.mrf.mxu0
        %v4524 = vadd.f32 0.0, %v4523
        %v4525 = vpop.f32.mrf.mxu0
        %v4526 = vadd.f32 0.0, %v4525
        %v4527 = vpop.f32.mrf.mxu0
        %v4528 = vadd.f32 0.0, %v4527
        %4529 = vmatprep.mubr.bf16.mxu0 %v3016
        %4530 = vmatmul.mubr.bf16.gmra.mxu0 %v3015
        %v4531 = vpop.f32.mrf.mxu0
        %v4532 = vadd.f32 0.0, %v4531
        %v4533 = vpop.f32.mrf.mxu0
        %v4534 = vadd.f32 0.0, %v4533
        %v4535 = vpop.f32.mrf.mxu0
        %v4536 = vadd.f32 0.0, %v4535
        %v4537 = vpop.f32.mrf.mxu0
        %v4538 = vadd.f32 0.0, %v4537
        %4539 = vmatprep.mubr.bf16.mxu0 %v3018
        %4540 = vmatmul.mubr.bf16.gmra.mxu0 %v3017
        %v4541 = vpop.f32.mrf.mxu0
        %v4542 = vadd.f32 0.0, %v4541
        %v4543 = vpop.f32.mrf.mxu0
        %v4544 = vadd.f32 0.0, %v4543
        %v4545 = vpop.f32.mrf.mxu0
        %v4546 = vadd.f32 0.0, %v4545
        %v4547 = vpop.f32.mrf.mxu0
        %v4548 = vadd.f32 0.0, %v4547
        %4549 = vmatprep.mubr.bf16.mxu0 %v3020
        %4550 = vmatmul.mubr.bf16.gmra.mxu0 %v3019
        %v4551 = vpop.f32.mrf.mxu0
        %v4552 = vadd.f32 0.0, %v4551
        %v4553 = vpop.f32.mrf.mxu0
        %v4554 = vadd.f32 0.0, %v4553
        %v4555 = vpop.f32.mrf.mxu0
        %v4556 = vadd.f32 0.0, %v4555
        %v4557 = vpop.f32.mrf.mxu0
        %v4558 = vadd.f32 0.0, %v4557
        %4559 = vmatprep.mubr.bf16.mxu0 %v3022
        %4560 = vmatmul.mubr.bf16.gmra.mxu0 %v3021
        %v4561 = vpop.f32.mrf.mxu0
        %v4562 = vadd.f32 0.0, %v4561
        %v4563 = vpop.f32.mrf.mxu0
        %v4564 = vadd.f32 0.0, %v4563
        %v4565 = vpop.f32.mrf.mxu0
        %v4566 = vadd.f32 0.0, %v4565
        %v4567 = vpop.f32.mrf.mxu0
        %v4568 = vadd.f32 0.0, %v4567
        %4569 = vmatprep.mubr.bf16.mxu0 %v3024
        %4570 = vmatmul.mubr.bf16.gmra.mxu0 %v3023
        %v4571 = vpop.f32.mrf.mxu0
        %v4572 = vadd.f32 0.0, %v4571
        %v4573 = vpop.f32.mrf.mxu0
        %v4574 = vadd.f32 0.0, %v4573
        %v4575 = vpop.f32.mrf.mxu0
        %v4576 = vadd.f32 0.0, %v4575
        %v4577 = vpop.f32.mrf.mxu0
        %v4578 = vadd.f32 0.0, %v4577
        %4579 = vmatprep.mubr.bf16.mxu0 %v3026
        %4580 = vmatmul.mubr.bf16.gmra.mxu0 %v3025
        %v4581 = vpop.f32.mrf.mxu0
        %v4582 = vadd.f32 0.0, %v4581
        %v4583 = vpop.f32.mrf.mxu0
        %v4584 = vadd.f32 0.0, %v4583
        %v4585 = vpop.f32.mrf.mxu0
        %v4586 = vadd.f32 0.0, %v4585
        %v4587 = vpop.f32.mrf.mxu0
        %v4588 = vadd.f32 0.0, %v4587
        %4589 = vmatprep.mubr.bf16.mxu0 %v3028
        %4590 = vmatmul.mubr.bf16.gmra.mxu0 %v3027
        %v4591 = vpop.f32.mrf.mxu0
        %v4592 = vadd.f32 0.0, %v4591
        %v4593 = vpop.f32.mrf.mxu0
        %v4594 = vadd.f32 0.0, %v4593
        %v4595 = vpop.f32.mrf.mxu0
        %v4596 = vadd.f32 0.0, %v4595
        %v4597 = vpop.f32.mrf.mxu0
        %v4598 = vadd.f32 0.0, %v4597
        %4599 = vmatprep.mubr.bf16.mxu0 %v3030
        %4600 = vmatmul.mubr.bf16.gmra.mxu0 %v3029
        %v4601 = vpop.f32.mrf.mxu0
        %v4602 = vadd.f32 0.0, %v4601
        %v4603 = vpop.f32.mrf.mxu0
        %v4604 = vadd.f32 0.0, %v4603
        %v4605 = vpop.f32.mrf.mxu0
        %v4606 = vadd.f32 0.0, %v4605
        %v4607 = vpop.f32.mrf.mxu0
        %v4608 = vadd.f32 0.0, %v4607
        %4609 = vmatprep.mubr.bf16.mxu0 %v3032
        %4610 = vmatmul.mubr.bf16.gmra.mxu0 %v3031
        %v4611 = vpop.f32.mrf.mxu0
        %v4612 = vadd.f32 0.0, %v4611
        %v4613 = vpop.f32.mrf.mxu0
        %v4614 = vadd.f32 0.0, %v4613
        %v4615 = vpop.f32.mrf.mxu0
        %v4616 = vadd.f32 0.0, %v4615
        %v4617 = vpop.f32.mrf.mxu0
        %v4618 = vadd.f32 0.0, %v4617
        %4619 = vmatprep.mubr.bf16.mxu0 %v3034
        %4620 = vmatmul.mubr.bf16.gmra.mxu0 %v3033
        %v4621 = vpop.f32.mrf.mxu0
        %v4622 = vadd.f32 0.0, %v4621
        %v4623 = vpop.f32.mrf.mxu0
        %v4624 = vadd.f32 0.0, %v4623
        %v4625 = vpop.f32.mrf.mxu0
        %v4626 = vadd.f32 0.0, %v4625
        %v4627 = vpop.f32.mrf.mxu0
        %v4628 = vadd.f32 0.0, %v4627
        %4629 = vmatprep.mubr.bf16.mxu0 %v3036
        %4630 = vmatmul.mubr.bf16.gmra.mxu0 %v3035
        %v4631 = vpop.f32.mrf.mxu0
        %v4632 = vadd.f32 0.0, %v4631
        %v4633 = vpop.f32.mrf.mxu0
        %v4634 = vadd.f32 0.0, %v4633
        %v4635 = vpop.f32.mrf.mxu0
        %v4636 = vadd.f32 0.0, %v4635
        %v4637 = vpop.f32.mrf.mxu0
        %v4638 = vadd.f32 0.0, %v4637
        %4639 = vmatprep.mubr.bf16.mxu0 %v3038
        %4640 = vmatmul.mubr.bf16.gmra.mxu0 %v3037
        %v4641 = vpop.f32.mrf.mxu0
        %v4642 = vadd.f32 0.0, %v4641
        %v4643 = vpop.f32.mrf.mxu0
        %v4644 = vadd.f32 0.0, %v4643
        %v4645 = vpop.f32.mrf.mxu0
        %v4646 = vadd.f32 0.0, %v4645
        %v4647 = vpop.f32.mrf.mxu0
        %v4648 = vadd.f32 0.0, %v4647
        %4649 = vmatprep.mubr.bf16.mxu0 %v3040
        %4650 = vmatmul.mubr.bf16.gmra.mxu0 %v3039
        %v4651 = vpop.f32.mrf.mxu0
        %v4652 = vadd.f32 0.0, %v4651
        %v4653 = vpop.f32.mrf.mxu0
        %v4654 = vadd.f32 0.0, %v4653
        %v4655 = vpop.f32.mrf.mxu0
        %v4656 = vadd.f32 0.0, %v4655
        %v4657 = vpop.f32.mrf.mxu0
        %v4658 = vadd.f32 0.0, %v4657
        %4659 = vmatprep.mubr.bf16.mxu0 %v3042
        %4660 = vmatmul.mubr.bf16.gmra.mxu0 %v3041
        %v4661 = vpop.f32.mrf.mxu0
        %v4662 = vadd.f32 0.0, %v4661
        %v4663 = vpop.f32.mrf.mxu0
        %v4664 = vadd.f32 0.0, %v4663
        %v4665 = vpop.f32.mrf.mxu0
        %v4666 = vadd.f32 0.0, %v4665
        %v4667 = vpop.f32.mrf.mxu0
        %v4668 = vadd.f32 0.0, %v4667
        %4669 = vmatprep.mubr.bf16.mxu0 %v3044
        %4670 = vmatmul.mubr.bf16.gmra.mxu0 %v3043
        %v4671 = vpop.f32.mrf.mxu0
        %v4672 = vadd.f32 0.0, %v4671
        %v4673 = vpop.f32.mrf.mxu0
        %v4674 = vadd.f32 0.0, %v4673
        %v4675 = vpop.f32.mrf.mxu0
        %v4676 = vadd.f32 0.0, %v4675
        %v4677 = vpop.f32.mrf.mxu0
        %v4678 = vadd.f32 0.0, %v4677
        %4679 = vmatprep.mubr.bf16.mxu0 %v3046
        %4680 = vmatmul.mubr.bf16.gmra.mxu0 %v3045
        %v4681 = vpop.f32.mrf.mxu0
        %v4682 = vadd.f32 0.0, %v4681
        %v4683 = vpop.f32.mrf.mxu0
        %v4684 = vadd.f32 0.0, %v4683
        %v4685 = vpop.f32.mrf.mxu0
        %v4686 = vadd.f32 0.0, %v4685
        %v4687 = vpop.f32.mrf.mxu0
        %v4688 = vadd.f32 0.0, %v4687
        %4689 = vmatprep.mubr.bf16.mxu0 %v3048
        %4690 = vmatmul.mubr.bf16.gmra.mxu0 %v3047
        %v4691 = vpop.f32.mrf.mxu0
        %v4692 = vadd.f32 0.0, %v4691
        %v4693 = vpop.f32.mrf.mxu0
        %v4694 = vadd.f32 0.0, %v4693
        %v4695 = vpop.f32.mrf.mxu0
        %v4696 = vadd.f32 0.0, %v4695
        %v4697 = vpop.f32.mrf.mxu0
        %v4698 = vadd.f32 0.0, %v4697
        %4699 = vmatprep.mubr.bf16.mxu0 %v3050
        %4700 = vmatmul.mubr.bf16.gmra.mxu0 %v3049
        %v4701 = vpop.f32.mrf.mxu0
        %v4702 = vadd.f32 0.0, %v4701
        %v4703 = vpop.f32.mrf.mxu0
        %v4704 = vadd.f32 0.0, %v4703
        %v4705 = vpop.f32.mrf.mxu0
        %v4706 = vadd.f32 0.0, %v4705
        %v4707 = vpop.f32.mrf.mxu0
        %v4708 = vadd.f32 0.0, %v4707
        %4709 = vmatprep.mubr.bf16.mxu0 %v3052
        %4710 = vmatmul.mubr.bf16.gmra.mxu0 %v3051
        %v4711 = vpop.f32.mrf.mxu0
        %v4712 = vadd.f32 0.0, %v4711
        %v4713 = vpop.f32.mrf.mxu0
        %v4714 = vadd.f32 0.0, %v4713
        %v4715 = vpop.f32.mrf.mxu0
        %v4716 = vadd.f32 0.0, %v4715
        %v4717 = vpop.f32.mrf.mxu0
        %v4718 = vadd.f32 0.0, %v4717
        %4719 = vmatprep.mubr.bf16.mxu0 %v3054
        %4720 = vmatmul.mubr.bf16.gmra.mxu0 %v3053
        %v4721 = vpop.f32.mrf.mxu0
        %v4722 = vadd.f32 0.0, %v4721
        %v4723 = vpop.f32.mrf.mxu0
        %v4724 = vadd.f32 0.0, %v4723
        %v4725 = vpop.f32.mrf.mxu0
        %v4726 = vadd.f32 0.0, %v4725
        %v4727 = vpop.f32.mrf.mxu0
        %v4728 = vadd.f32 0.0, %v4727
        %4729 = vmatprep.mubr.bf16.mxu0 %v3056
        %4730 = vmatmul.mubr.bf16.gmra.mxu0 %v3055
        %v4731 = vpop.f32.mrf.mxu0
        %v4732 = vadd.f32 0.0, %v4731
        %v4733 = vpop.f32.mrf.mxu0
        %v4734 = vadd.f32 0.0, %v4733
        %v4735 = vpop.f32.mrf.mxu0
        %v4736 = vadd.f32 0.0, %v4735
        %v4737 = vpop.f32.mrf.mxu0
        %v4738 = vadd.f32 0.0, %v4737
        %4739 = vmatprep.mubr.bf16.mxu0 %v3058
        %4740 = vmatmul.mubr.bf16.gmra.mxu0 %v3057
        %v4741 = vpop.f32.mrf.mxu0
        %v4742 = vadd.f32 0.0, %v4741
        %v4743 = vpop.f32.mrf.mxu0
        %v4744 = vadd.f32 0.0, %v4743
        %v4745 = vpop.f32.mrf.mxu0
        %v4746 = vadd.f32 0.0, %v4745
        %v4747 = vpop.f32.mrf.mxu0
        %v4748 = vadd.f32 0.0, %v4747
        %4749 = vmatprep.mubr.bf16.mxu0 %v3060
        %4750 = vmatmul.mubr.bf16.gmra.mxu0 %v3059
        %v4751 = vpop.f32.mrf.mxu0
        %v4752 = vadd.f32 0.0, %v4751
        %v4753 = vpop.f32.mrf.mxu0
        %v4754 = vadd.f32 0.0, %v4753
        %v4755 = vpop.f32.mrf.mxu0
        %v4756 = vadd.f32 0.0, %v4755
        %v4757 = vpop.f32.mrf.mxu0
        %v4758 = vadd.f32 0.0, %v4757
        %4759 = vmatprep.mubr.bf16.mxu0 %v3062
        %4760 = vmatmul.mubr.bf16.gmra.mxu0 %v3061
        %v4761 = vpop.f32.mrf.mxu0
        %v4762 = vadd.f32 0.0, %v4761
        %v4763 = vpop.f32.mrf.mxu0
        %v4764 = vadd.f32 0.0, %v4763
        %v4765 = vpop.f32.mrf.mxu0
        %v4766 = vadd.f32 0.0, %v4765
        %v4767 = vpop.f32.mrf.mxu0
        %v4768 = vadd.f32 0.0, %v4767
        %4769 = vmatprep.mubr.bf16.mxu0 %v3064
        %4770 = vmatmul.mubr.bf16.gmra.mxu0 %v3063
        %v4771 = vpop.f32.mrf.mxu0
        %v4772 = vadd.f32 0.0, %v4771
        %v4773 = vpop.f32.mrf.mxu0
        %v4774 = vadd.f32 0.0, %v4773
        %v4775 = vpop.f32.mrf.mxu0
        %v4776 = vadd.f32 0.0, %v4775
        %v4777 = vpop.f32.mrf.mxu0
        %v4778 = vadd.f32 0.0, %v4777
        %4779 = vmatprep.mubr.bf16.mxu0 %v3066
        %4780 = vmatmul.mubr.bf16.gmra.mxu0 %v3065
        %v4781 = vpop.f32.mrf.mxu0
        %v4782 = vadd.f32 0.0, %v4781
        %v4783 = vpop.f32.mrf.mxu0
        %v4784 = vadd.f32 0.0, %v4783
        %v4785 = vpop.f32.mrf.mxu0
        %v4786 = vadd.f32 0.0, %v4785
        %v4787 = vpop.f32.mrf.mxu0
        %v4788 = vadd.f32 0.0, %v4787
        %4789 = vmatprep.mubr.bf16.mxu0 %v3068
        %4790 = vmatmul.mubr.bf16.gmra.mxu0 %v3067
        %v4791 = vpop.f32.mrf.mxu0
        %v4792 = vadd.f32 0.0, %v4791
        %v4793 = vpop.f32.mrf.mxu0
        %v4794 = vadd.f32 0.0, %v4793
        %v4795 = vpop.f32.mrf.mxu0
        %v4796 = vadd.f32 0.0, %v4795
        %v4797 = vpop.f32.mrf.mxu0
        %v4798 = vadd.f32 0.0, %v4797
        %4799 = vmatprep.mubr.bf16.mxu0 %v3070
        %4800 = vmatmul.mubr.bf16.gmra.mxu0 %v3069
        %v4801 = vpop.f32.mrf.mxu0
        %v4802 = vadd.f32 0.0, %v4801
        %v4803 = vpop.f32.mrf.mxu0
        %v4804 = vadd.f32 0.0, %v4803
        %v4805 = vpop.f32.mrf.mxu0
        %v4806 = vadd.f32 0.0, %v4805
        %v4807 = vpop.f32.mrf.mxu0
        %v4808 = vadd.f32 0.0, %v4807
        %4809 = vmatprep.mubr.bf16.mxu0 %v3072
        %4810 = vmatmul.mubr.bf16.gmra.mxu0 %v3071
        %v4811 = vpop.f32.mrf.mxu0
        %v4812 = vadd.f32 0.0, %v4811
        %v4813 = vpop.f32.mrf.mxu0
        %v4814 = vadd.f32 0.0, %v4813
        %v4815 = vpop.f32.mrf.mxu0
        %v4816 = vadd.f32 0.0, %v4815
        %v4817 = vpop.f32.mrf.mxu0
        %v4818 = vadd.f32 0.0, %v4817
        %4819 = vmatprep.mubr.bf16.mxu0 %v3074
        %4820 = vmatmul.mubr.bf16.gmra.mxu0 %v3073
        %v4821 = vpop.f32.mrf.mxu0
        %v4822 = vadd.f32 0.0, %v4821
        %v4823 = vpop.f32.mrf.mxu0
        %v4824 = vadd.f32 0.0, %v4823
        %v4825 = vpop.f32.mrf.mxu0
        %v4826 = vadd.f32 0.0, %v4825
        %v4827 = vpop.f32.mrf.mxu0
        %v4828 = vadd.f32 0.0, %v4827
        %4829 = vmatprep.mubr.bf16.mxu0 %v3076
        %4830 = vmatmul.mubr.bf16.gmra.mxu0 %v3075
        %v4831 = vpop.f32.mrf.mxu0
        %v4832 = vadd.f32 0.0, %v4831
        %v4833 = vpop.f32.mrf.mxu0
        %v4834 = vadd.f32 0.0, %v4833
        %v4835 = vpop.f32.mrf.mxu0
        %v4836 = vadd.f32 0.0, %v4835
        %v4837 = vpop.f32.mrf.mxu0
        %v4838 = vadd.f32 0.0, %v4837
        %4839 = vdwg.mxu0
        %4840 = vmatprep.subr.bf16.mxu0 %v3588
        %4841 = vmatpush1.bf16.msra.mxu0 %v3587
        %4842 = vmatprep.subr.bf16.mxu0 %v3580
        %4843 = vmatpush1.bf16.msra.mxu0 %v3579
        %4844 = vmatprep.subr.bf16.mxu0 %v3572
        %4845 = vmatpush1.bf16.msra.mxu0 %v3571
        %4846 = vmatprep.subr.bf16.mxu0 %v3564
        %4847 = vmatpush1.bf16.msra.mxu0 %v3563
        %4848 = vmatprep.subr.bf16.mxu0 %v3556
        %4849 = vmatpush1.bf16.msra.mxu0 %v3555
        %4850 = vmatprep.subr.bf16.mxu0 %v3548
        %4851 = vmatpush1.bf16.msra.mxu0 %v3547
        %4852 = vmatprep.subr.bf16.mxu0 %v3540
        %4853 = vmatpush1.bf16.msra.mxu0 %v3539
        %4854 = vmatprep.subr.bf16.mxu0 %v3532
        %4855 = vmatpush1.bf16.msra.mxu0 %v3531
        %4856 = vmatprep.subr.bf16.mxu0 %v3652
        %4857 = vmatpush2.bf16.msra.mxu0 %v3651
        %4858 = vmatprep.subr.bf16.mxu0 %v3644
        %4859 = vmatpush2.bf16.msra.mxu0 %v3643
        %4860 = vmatprep.subr.bf16.mxu0 %v3636
        %4861 = vmatpush2.bf16.msra.mxu0 %v3635
        %4862 = vmatprep.subr.bf16.mxu0 %v3628
        %4863 = vmatpush2.bf16.msra.mxu0 %v3627
        %4864 = vmatprep.subr.bf16.mxu0 %v3620
        %4865 = vmatpush2.bf16.msra.mxu0 %v3619
        %4866 = vmatprep.subr.bf16.mxu0 %v3612
        %4867 = vmatpush2.bf16.msra.mxu0 %v3611
        %4868 = vmatprep.subr.bf16.mxu0 %v3604
        %4869 = vmatpush2.bf16.msra.mxu0 %v3603
        %4870 = vmatprep.subr.bf16.mxu0 %v3596
        %4871 = vmatpush2.bf16.msra.mxu0 %v3595
        %4872 = vmatprep.mubr.bf16.mxu0 %v3014
        %4873 = vmatmul.mubr.bf16.gmra.mxu0 %v3013
        %v4874 = vpop.f32.mrf.mxu0
        %v4875 = vadd.f32 0.0, %v4874
        %v4876 = vpop.f32.mrf.mxu0
        %v4877 = vadd.f32 0.0, %v4876
        %v4878 = vpop.f32.mrf.mxu0
        %v4879 = vadd.f32 0.0, %v4878
        %v4880 = vpop.f32.mrf.mxu0
        %v4881 = vadd.f32 0.0, %v4880
        %4882 = vmatprep.mubr.bf16.mxu0 %v3016
        %4883 = vmatmul.mubr.bf16.gmra.mxu0 %v3015
        %v4884 = vpop.f32.mrf.mxu0
        %v4885 = vadd.f32 0.0, %v4884
        %v4886 = vpop.f32.mrf.mxu0
        %v4887 = vadd.f32 0.0, %v4886
        %v4888 = vpop.f32.mrf.mxu0
        %v4889 = vadd.f32 0.0, %v4888
        %v4890 = vpop.f32.mrf.mxu0
        %v4891 = vadd.f32 0.0, %v4890
        %4892 = vmatprep.mubr.bf16.mxu0 %v3018
        %4893 = vmatmul.mubr.bf16.gmra.mxu0 %v3017
        %v4894 = vpop.f32.mrf.mxu0
        %v4895 = vadd.f32 0.0, %v4894
        %v4896 = vpop.f32.mrf.mxu0
        %v4897 = vadd.f32 0.0, %v4896
        %v4898 = vpop.f32.mrf.mxu0
        %v4899 = vadd.f32 0.0, %v4898
        %v4900 = vpop.f32.mrf.mxu0
        %v4901 = vadd.f32 0.0, %v4900
        %4902 = vmatprep.mubr.bf16.mxu0 %v3020
        %4903 = vmatmul.mubr.bf16.gmra.mxu0 %v3019
        %v4904 = vpop.f32.mrf.mxu0
        %v4905 = vadd.f32 0.0, %v4904
        %v4906 = vpop.f32.mrf.mxu0
        %v4907 = vadd.f32 0.0, %v4906
        %v4908 = vpop.f32.mrf.mxu0
        %v4909 = vadd.f32 0.0, %v4908
        %v4910 = vpop.f32.mrf.mxu0
        %v4911 = vadd.f32 0.0, %v4910
        %4912 = vmatprep.mubr.bf16.mxu0 %v3022
        %4913 = vmatmul.mubr.bf16.gmra.mxu0 %v3021
        %v4914 = vpop.f32.mrf.mxu0
        %v4915 = vadd.f32 0.0, %v4914
        %v4916 = vpop.f32.mrf.mxu0
        %v4917 = vadd.f32 0.0, %v4916
        %v4918 = vpop.f32.mrf.mxu0
        %v4919 = vadd.f32 0.0, %v4918
        %v4920 = vpop.f32.mrf.mxu0
        %v4921 = vadd.f32 0.0, %v4920
        %4922 = vmatprep.mubr.bf16.mxu0 %v3024
        %4923 = vmatmul.mubr.bf16.gmra.mxu0 %v3023
        %v4924 = vpop.f32.mrf.mxu0
        %v4925 = vadd.f32 0.0, %v4924
        %v4926 = vpop.f32.mrf.mxu0
        %v4927 = vadd.f32 0.0, %v4926
        %v4928 = vpop.f32.mrf.mxu0
        %v4929 = vadd.f32 0.0, %v4928
        %v4930 = vpop.f32.mrf.mxu0
        %v4931 = vadd.f32 0.0, %v4930
        %4932 = vmatprep.mubr.bf16.mxu0 %v3026
        %4933 = vmatmul.mubr.bf16.gmra.mxu0 %v3025
        %v4934 = vpop.f32.mrf.mxu0
        %v4935 = vadd.f32 0.0, %v4934
        %v4936 = vpop.f32.mrf.mxu0
        %v4937 = vadd.f32 0.0, %v4936
        %v4938 = vpop.f32.mrf.mxu0
        %v4939 = vadd.f32 0.0, %v4938
        %v4940 = vpop.f32.mrf.mxu0
        %v4941 = vadd.f32 0.0, %v4940
        %4942 = vmatprep.mubr.bf16.mxu0 %v3028
        %4943 = vmatmul.mubr.bf16.gmra.mxu0 %v3027
        %v4944 = vpop.f32.mrf.mxu0
        %v4945 = vadd.f32 0.0, %v4944
        %v4946 = vpop.f32.mrf.mxu0
        %v4947 = vadd.f32 0.0, %v4946
        %v4948 = vpop.f32.mrf.mxu0
        %v4949 = vadd.f32 0.0, %v4948
        %v4950 = vpop.f32.mrf.mxu0
        %v4951 = vadd.f32 0.0, %v4950
        %4952 = vmatprep.mubr.bf16.mxu0 %v3030
        %4953 = vmatmul.mubr.bf16.gmra.mxu0 %v3029
        %v4954 = vpop.f32.mrf.mxu0
        %v4955 = vadd.f32 0.0, %v4954
        %v4956 = vpop.f32.mrf.mxu0
        %v4957 = vadd.f32 0.0, %v4956
        %v4958 = vpop.f32.mrf.mxu0
        %v4959 = vadd.f32 0.0, %v4958
        %v4960 = vpop.f32.mrf.mxu0
        %v4961 = vadd.f32 0.0, %v4960
        %4962 = vmatprep.mubr.bf16.mxu0 %v3032
        %4963 = vmatmul.mubr.bf16.gmra.mxu0 %v3031
        %v4964 = vpop.f32.mrf.mxu0
        %v4965 = vadd.f32 0.0, %v4964
        %v4966 = vpop.f32.mrf.mxu0
        %v4967 = vadd.f32 0.0, %v4966
        %v4968 = vpop.f32.mrf.mxu0
        %v4969 = vadd.f32 0.0, %v4968
        %v4970 = vpop.f32.mrf.mxu0
        %v4971 = vadd.f32 0.0, %v4970
        %4972 = vmatprep.mubr.bf16.mxu0 %v3034
        %4973 = vmatmul.mubr.bf16.gmra.mxu0 %v3033
        %v4974 = vpop.f32.mrf.mxu0
        %v4975 = vadd.f32 0.0, %v4974
        %v4976 = vpop.f32.mrf.mxu0
        %v4977 = vadd.f32 0.0, %v4976
        %v4978 = vpop.f32.mrf.mxu0
        %v4979 = vadd.f32 0.0, %v4978
        %v4980 = vpop.f32.mrf.mxu0
        %v4981 = vadd.f32 0.0, %v4980
        %4982 = vmatprep.mubr.bf16.mxu0 %v3036
        %4983 = vmatmul.mubr.bf16.gmra.mxu0 %v3035
        %v4984 = vpop.f32.mrf.mxu0
        %v4985 = vadd.f32 0.0, %v4984
        %v4986 = vpop.f32.mrf.mxu0
        %v4987 = vadd.f32 0.0, %v4986
        %v4988 = vpop.f32.mrf.mxu0
        %v4989 = vadd.f32 0.0, %v4988
        %v4990 = vpop.f32.mrf.mxu0
        %v4991 = vadd.f32 0.0, %v4990
        %4992 = vmatprep.mubr.bf16.mxu0 %v3038
        %4993 = vmatmul.mubr.bf16.gmra.mxu0 %v3037
        %v4994 = vpop.f32.mrf.mxu0
        %v4995 = vadd.f32 0.0, %v4994
        %v4996 = vpop.f32.mrf.mxu0
        %v4997 = vadd.f32 0.0, %v4996
        %v4998 = vpop.f32.mrf.mxu0
        %v4999 = vadd.f32 0.0, %v4998
        %v5000 = vpop.f32.mrf.mxu0
        %v5001 = vadd.f32 0.0, %v5000
        %5002 = vmatprep.mubr.bf16.mxu0 %v3040
        %5003 = vmatmul.mubr.bf16.gmra.mxu0 %v3039
        %v5004 = vpop.f32.mrf.mxu0
        %v5005 = vadd.f32 0.0, %v5004
        %v5006 = vpop.f32.mrf.mxu0
        %v5007 = vadd.f32 0.0, %v5006
        %v5008 = vpop.f32.mrf.mxu0
        %v5009 = vadd.f32 0.0, %v5008
        %v5010 = vpop.f32.mrf.mxu0
        %v5011 = vadd.f32 0.0, %v5010
        %5012 = vmatprep.mubr.bf16.mxu0 %v3042
        %5013 = vmatmul.mubr.bf16.gmra.mxu0 %v3041
        %v5014 = vpop.f32.mrf.mxu0
        %v5015 = vadd.f32 0.0, %v5014
        %v5016 = vpop.f32.mrf.mxu0
        %v5017 = vadd.f32 0.0, %v5016
        %v5018 = vpop.f32.mrf.mxu0
        %v5019 = vadd.f32 0.0, %v5018
        %v5020 = vpop.f32.mrf.mxu0
        %v5021 = vadd.f32 0.0, %v5020
        %5022 = vmatprep.mubr.bf16.mxu0 %v3044
        %5023 = vmatmul.mubr.bf16.gmra.mxu0 %v3043
        %v5024 = vpop.f32.mrf.mxu0
        %v5025 = vadd.f32 0.0, %v5024
        %v5026 = vpop.f32.mrf.mxu0
        %v5027 = vadd.f32 0.0, %v5026
        %v5028 = vpop.f32.mrf.mxu0
        %v5029 = vadd.f32 0.0, %v5028
        %v5030 = vpop.f32.mrf.mxu0
        %v5031 = vadd.f32 0.0, %v5030
        %5032 = vmatprep.mubr.bf16.mxu0 %v3046
        %5033 = vmatmul.mubr.bf16.gmra.mxu0 %v3045
        %v5034 = vpop.f32.mrf.mxu0
        %v5035 = vadd.f32 0.0, %v5034
        %v5036 = vpop.f32.mrf.mxu0
        %v5037 = vadd.f32 0.0, %v5036
        %v5038 = vpop.f32.mrf.mxu0
        %v5039 = vadd.f32 0.0, %v5038
        %v5040 = vpop.f32.mrf.mxu0
        %v5041 = vadd.f32 0.0, %v5040
        %5042 = vmatprep.mubr.bf16.mxu0 %v3048
        %5043 = vmatmul.mubr.bf16.gmra.mxu0 %v3047
        %v5044 = vpop.f32.mrf.mxu0
        %v5045 = vadd.f32 0.0, %v5044
        %v5046 = vpop.f32.mrf.mxu0
        %v5047 = vadd.f32 0.0, %v5046
        %v5048 = vpop.f32.mrf.mxu0
        %v5049 = vadd.f32 0.0, %v5048
        %v5050 = vpop.f32.mrf.mxu0
        %v5051 = vadd.f32 0.0, %v5050
        %5052 = vmatprep.mubr.bf16.mxu0 %v3050
        %5053 = vmatmul.mubr.bf16.gmra.mxu0 %v3049
        %v5054 = vpop.f32.mrf.mxu0
        %v5055 = vadd.f32 0.0, %v5054
        %v5056 = vpop.f32.mrf.mxu0
        %v5057 = vadd.f32 0.0, %v5056
        %v5058 = vpop.f32.mrf.mxu0
        %v5059 = vadd.f32 0.0, %v5058
        %v5060 = vpop.f32.mrf.mxu0
        %v5061 = vadd.f32 0.0, %v5060
        %5062 = vmatprep.mubr.bf16.mxu0 %v3052
        %5063 = vmatmul.mubr.bf16.gmra.mxu0 %v3051
        %v5064 = vpop.f32.mrf.mxu0
        %v5065 = vadd.f32 0.0, %v5064
        %v5066 = vpop.f32.mrf.mxu0
        %v5067 = vadd.f32 0.0, %v5066
        %v5068 = vpop.f32.mrf.mxu0
        %v5069 = vadd.f32 0.0, %v5068
        %v5070 = vpop.f32.mrf.mxu0
        %v5071 = vadd.f32 0.0, %v5070
        %5072 = vmatprep.mubr.bf16.mxu0 %v3054
        %5073 = vmatmul.mubr.bf16.gmra.mxu0 %v3053
        %v5074 = vpop.f32.mrf.mxu0
        %v5075 = vadd.f32 0.0, %v5074
        %v5076 = vpop.f32.mrf.mxu0
        %v5077 = vadd.f32 0.0, %v5076
        %v5078 = vpop.f32.mrf.mxu0
        %v5079 = vadd.f32 0.0, %v5078
        %v5080 = vpop.f32.mrf.mxu0
        %v5081 = vadd.f32 0.0, %v5080
        %5082 = vmatprep.mubr.bf16.mxu0 %v3056
        %5083 = vmatmul.mubr.bf16.gmra.mxu0 %v3055
        %v5084 = vpop.f32.mrf.mxu0
        %v5085 = vadd.f32 0.0, %v5084
        %v5086 = vpop.f32.mrf.mxu0
        %v5087 = vadd.f32 0.0, %v5086
        %v5088 = vpop.f32.mrf.mxu0
        %v5089 = vadd.f32 0.0, %v5088
        %v5090 = vpop.f32.mrf.mxu0
        %v5091 = vadd.f32 0.0, %v5090
        %5092 = vmatprep.mubr.bf16.mxu0 %v3058
        %5093 = vmatmul.mubr.bf16.gmra.mxu0 %v3057
        %v5094 = vpop.f32.mrf.mxu0
        %v5095 = vadd.f32 0.0, %v5094
        %v5096 = vpop.f32.mrf.mxu0
        %v5097 = vadd.f32 0.0, %v5096
        %v5098 = vpop.f32.mrf.mxu0
        %v5099 = vadd.f32 0.0, %v5098
        %v5100 = vpop.f32.mrf.mxu0
        %v5101 = vadd.f32 0.0, %v5100
        %5102 = vmatprep.mubr.bf16.mxu0 %v3060
        %5103 = vmatmul.mubr.bf16.gmra.mxu0 %v3059
        %v5104 = vpop.f32.mrf.mxu0
        %v5105 = vadd.f32 0.0, %v5104
        %v5106 = vpop.f32.mrf.mxu0
        %v5107 = vadd.f32 0.0, %v5106
        %v5108 = vpop.f32.mrf.mxu0
        %v5109 = vadd.f32 0.0, %v5108
        %v5110 = vpop.f32.mrf.mxu0
        %v5111 = vadd.f32 0.0, %v5110
        %5112 = vmatprep.mubr.bf16.mxu0 %v3062
        %5113 = vmatmul.mubr.bf16.gmra.mxu0 %v3061
        %v5114 = vpop.f32.mrf.mxu0
        %v5115 = vadd.f32 0.0, %v5114
        %v5116 = vpop.f32.mrf.mxu0
        %v5117 = vadd.f32 0.0, %v5116
        %v5118 = vpop.f32.mrf.mxu0
        %v5119 = vadd.f32 0.0, %v5118
        %v5120 = vpop.f32.mrf.mxu0
        %v5121 = vadd.f32 0.0, %v5120
        %5122 = vmatprep.mubr.bf16.mxu0 %v3064
        %5123 = vmatmul.mubr.bf16.gmra.mxu0 %v3063
        %v5124 = vpop.f32.mrf.mxu0
        %v5125 = vadd.f32 0.0, %v5124
        %v5126 = vpop.f32.mrf.mxu0
        %v5127 = vadd.f32 0.0, %v5126
        %v5128 = vpop.f32.mrf.mxu0
        %v5129 = vadd.f32 0.0, %v5128
        %v5130 = vpop.f32.mrf.mxu0
        %v5131 = vadd.f32 0.0, %v5130
        %5132 = vmatprep.mubr.bf16.mxu0 %v3066
        %5133 = vmatmul.mubr.bf16.gmra.mxu0 %v3065
        %v5134 = vpop.f32.mrf.mxu0
        %v5135 = vadd.f32 0.0, %v5134
        %v5136 = vpop.f32.mrf.mxu0
        %v5137 = vadd.f32 0.0, %v5136
        %v5138 = vpop.f32.mrf.mxu0
        %v5139 = vadd.f32 0.0, %v5138
        %v5140 = vpop.f32.mrf.mxu0
        %v5141 = vadd.f32 0.0, %v5140
        %5142 = vmatprep.mubr.bf16.mxu0 %v3068
        %5143 = vmatmul.mubr.bf16.gmra.mxu0 %v3067
        %v5144 = vpop.f32.mrf.mxu0
        %v5145 = vadd.f32 0.0, %v5144
        %v5146 = vpop.f32.mrf.mxu0
        %v5147 = vadd.f32 0.0, %v5146
        %v5148 = vpop.f32.mrf.mxu0
        %v5149 = vadd.f32 0.0, %v5148
        %v5150 = vpop.f32.mrf.mxu0
        %v5151 = vadd.f32 0.0, %v5150
        %5152 = vmatprep.mubr.bf16.mxu0 %v3070
        %5153 = vmatmul.mubr.bf16.gmra.mxu0 %v3069
        %v5154 = vpop.f32.mrf.mxu0
        %v5155 = vadd.f32 0.0, %v5154
        %v5156 = vpop.f32.mrf.mxu0
        %v5157 = vadd.f32 0.0, %v5156
        %v5158 = vpop.f32.mrf.mxu0
        %v5159 = vadd.f32 0.0, %v5158
        %v5160 = vpop.f32.mrf.mxu0
        %v5161 = vadd.f32 0.0, %v5160
        %5162 = vmatprep.mubr.bf16.mxu0 %v3072
        %5163 = vmatmul.mubr.bf16.gmra.mxu0 %v3071
        %v5164 = vpop.f32.mrf.mxu0
        %v5165 = vadd.f32 0.0, %v5164
        %v5166 = vpop.f32.mrf.mxu0
        %v5167 = vadd.f32 0.0, %v5166
        %v5168 = vpop.f32.mrf.mxu0
        %v5169 = vadd.f32 0.0, %v5168
        %v5170 = vpop.f32.mrf.mxu0
        %v5171 = vadd.f32 0.0, %v5170
        %5172 = vmatprep.mubr.bf16.mxu0 %v3074
        %5173 = vmatmul.mubr.bf16.gmra.mxu0 %v3073
        %v5174 = vpop.f32.mrf.mxu0
        %v5175 = vadd.f32 0.0, %v5174
        %v5176 = vpop.f32.mrf.mxu0
        %v5177 = vadd.f32 0.0, %v5176
        %v5178 = vpop.f32.mrf.mxu0
        %v5179 = vadd.f32 0.0, %v5178
        %v5180 = vpop.f32.mrf.mxu0
        %v5181 = vadd.f32 0.0, %v5180
        %5182 = vmatprep.mubr.bf16.mxu0 %v3076
        %5183 = vmatmul.mubr.bf16.gmra.mxu0 %v3075
        %v5184 = vpop.f32.mrf.mxu0
        %v5185 = vadd.f32 0.0, %v5184
        %v5186 = vpop.f32.mrf.mxu0
        %v5187 = vadd.f32 0.0, %v5186
        %v5188 = vpop.f32.mrf.mxu0
        %v5189 = vadd.f32 0.0, %v5188
        %v5190 = vpop.f32.mrf.mxu0
        %v5191 = vadd.f32 0.0, %v5190
        %5192 = vdwg.mxu0
        %s5193 = sshra.s32 %s34, 1
        %s5194 = sand.u32 %s34, 1
        %s5195 = sshra.s32 %s34, 1
        %s5196 = sand.u32 %s34, 1
        %s5197 = smul.u32 %s5193, 8
        %s5198 = smul.u32 %s5197, 2
        %s5199 = sadd.s32 %s5198, %s5196
        %s5200 = scalar_lea.vmem %s5, %s5199
        %v5201 = vld [vmem:[%s5200] ss:$2 sm:$0xff]
        %s5202 = scalar_lea.vmem %s6, %s5199
        %v5203 = vld [vmem:[%s5202] ss:$2 sm:$0xff]
        %v5204 = vadd.f32 %v3816, %v3820
        %v5205 = vadd.f32 %v5204, %v3826
        %v5206 = vadd.f32 %v5205, %v3830
        %v5207 = vadd.f32 %v5206, %v3836
        %v5208 = vadd.f32 %v5207, %v3840
        %v5209 = vadd.f32 %v5208, %v3846
        %v5210 = vadd.f32 %v5209, %v3850
        %v5211 = vadd.f32 %v5210, %v3856
        %v5212 = vadd.f32 %v5211, %v3860
        %v5213 = vadd.f32 %v5212, %v3866
        %v5214 = vadd.f32 %v5213, %v3870
        %v5215 = vadd.f32 %v5214, %v3876
        %v5216 = vadd.f32 %v5215, %v3880
        %v5217 = vadd.f32 %v5216, %v3886
        %v5218 = vadd.f32 %v5217, %v3890
        %v5219 = vadd.f32 %v5218, %v3896
        %v5220 = vadd.f32 %v5219, %v3900
        %v5221 = vadd.f32 %v5220, %v3906
        %v5222 = vadd.f32 %v5221, %v3910
        %v5223 = vadd.f32 %v5222, %v3916
        %v5224 = vadd.f32 %v5223, %v3920
        %v5225 = vadd.f32 %v5224, %v3926
        %v5226 = vadd.f32 %v5225, %v3930
        %v5227 = vadd.f32 %v5226, %v3936
        %v5228 = vadd.f32 %v5227, %v3940
        %v5229 = vadd.f32 %v5228, %v3946
        %v5230 = vadd.f32 %v5229, %v3950
        %v5231 = vadd.f32 %v5230, %v3956
        %v5232 = vadd.f32 %v5231, %v3960
        %v5233 = vadd.f32 %v5232, %v3966
        %v5234 = vadd.f32 %v5233, %v3970
        %v5235 = vadd.f32 %v5234, %v3976
        %v5236 = vadd.f32 %v5235, %v3980
        %v5237 = vadd.f32 %v5236, %v3986
        %v5238 = vadd.f32 %v5237, %v3990
        %v5239 = vadd.f32 %v5238, %v3996
        %v5240 = vadd.f32 %v5239, %v4000
        %v5241 = vadd.f32 %v5240, %v4006
        %v5242 = vadd.f32 %v5241, %v4010
        %v5243 = vadd.f32 %v5242, %v4016
        %v5244 = vadd.f32 %v5243, %v4020
        %v5245 = vadd.f32 %v5244, %v4026
        %v5246 = vadd.f32 %v5245, %v4030
        %v5247 = vadd.f32 %v5246, %v4036
        %v5248 = vadd.f32 %v5247, %v4040
        %v5249 = vadd.f32 %v5248, %v4046
        %v5250 = vadd.f32 %v5249, %v4050
        %v5251 = vadd.f32 %v5250, %v4056
        %v5252 = vadd.f32 %v5251, %v4060
        %v5253 = vadd.f32 %v5252, %v4066
        %v5254 = vadd.f32 %v5253, %v4070
        %v5255 = vadd.f32 %v5254, %v4076
        %v5256 = vadd.f32 %v5255, %v4080
        %v5257 = vadd.f32 %v5256, %v4086
        %v5258 = vadd.f32 %v5257, %v4090
        %v5259 = vadd.f32 %v5258, %v4096
        %v5260 = vadd.f32 %v5259, %v4100
        %v5261 = vadd.f32 %v5260, %v4106
        %v5262 = vadd.f32 %v5261, %v4110
        %v5263 = vadd.f32 %v5262, %v4116
        %v5264 = vadd.f32 %v5263, %v4120
        %v5265 = vadd.f32 %v5264, %v4126
        %v5266 = vadd.f32 %v5265, %v4130
        %v5267 = vrot.slane %v5266, 4
        %v5268 = vadd.f32 %v5266, %v5267
        %v5269 = vrot.slane %v5268, 2
        %v5270 = vadd.f32 %v5268, %v5269
        %v5271 = vrot.slane %v5270, 1
        %v5272 = vadd.f32 %v5270, %v5271
        %v5273 = vadd.f32 %v3818, %v3822
        %v5274 = vadd.f32 %v5273, %v3828
        %v5275 = vadd.f32 %v5274, %v3832
        %v5276 = vadd.f32 %v5275, %v3838
        %v5277 = vadd.f32 %v5276, %v3842
        %v5278 = vadd.f32 %v5277, %v3848
        %v5279 = vadd.f32 %v5278, %v3852
        %v5280 = vadd.f32 %v5279, %v3858
        %v5281 = vadd.f32 %v5280, %v3862
        %v5282 = vadd.f32 %v5281, %v3868
        %v5283 = vadd.f32 %v5282, %v3872
        %v5284 = vadd.f32 %v5283, %v3878
        %v5285 = vadd.f32 %v5284, %v3882
        %v5286 = vadd.f32 %v5285, %v3888
        %v5287 = vadd.f32 %v5286, %v3892
        %v5288 = vadd.f32 %v5287, %v3898
        %v5289 = vadd.f32 %v5288, %v3902
        %v5290 = vadd.f32 %v5289, %v3908
        %v5291 = vadd.f32 %v5290, %v3912
        %v5292 = vadd.f32 %v5291, %v3918
        %v5293 = vadd.f32 %v5292, %v3922
        %v5294 = vadd.f32 %v5293, %v3928
        %v5295 = vadd.f32 %v5294, %v3932
        %v5296 = vadd.f32 %v5295, %v3938
        %v5297 = vadd.f32 %v5296, %v3942
        %v5298 = vadd.f32 %v5297, %v3948
        %v5299 = vadd.f32 %v5298, %v3952
        %v5300 = vadd.f32 %v5299, %v3958
        %v5301 = vadd.f32 %v5300, %v3962
        %v5302 = vadd.f32 %v5301, %v3968
        %v5303 = vadd.f32 %v5302, %v3972
        %v5304 = vadd.f32 %v5303, %v3978
        %v5305 = vadd.f32 %v5304, %v3982
        %v5306 = vadd.f32 %v5305, %v3988
        %v5307 = vadd.f32 %v5306, %v3992
        %v5308 = vadd.f32 %v5307, %v3998
        %v5309 = vadd.f32 %v5308, %v4002
        %v5310 = vadd.f32 %v5309, %v4008
        %v5311 = vadd.f32 %v5310, %v4012
        %v5312 = vadd.f32 %v5311, %v4018
        %v5313 = vadd.f32 %v5312, %v4022
        %v5314 = vadd.f32 %v5313, %v4028
        %v5315 = vadd.f32 %v5314, %v4032
        %v5316 = vadd.f32 %v5315, %v4038
        %v5317 = vadd.f32 %v5316, %v4042
        %v5318 = vadd.f32 %v5317, %v4048
        %v5319 = vadd.f32 %v5318, %v4052
        %v5320 = vadd.f32 %v5319, %v4058
        %v5321 = vadd.f32 %v5320, %v4062
        %v5322 = vadd.f32 %v5321, %v4068
        %v5323 = vadd.f32 %v5322, %v4072
        %v5324 = vadd.f32 %v5323, %v4078
        %v5325 = vadd.f32 %v5324, %v4082
        %v5326 = vadd.f32 %v5325, %v4088
        %v5327 = vadd.f32 %v5326, %v4092
        %v5328 = vadd.f32 %v5327, %v4098
        %v5329 = vadd.f32 %v5328, %v4102
        %v5330 = vadd.f32 %v5329, %v4108
        %v5331 = vadd.f32 %v5330, %v4112
        %v5332 = vadd.f32 %v5331, %v4118
        %v5333 = vadd.f32 %v5332, %v4122
        %v5334 = vadd.f32 %v5333, %v4128
        %v5335 = vadd.f32 %v5334, %v4132
        %v5336 = vrot.slane %v5335, 4
        %v5337 = vadd.f32 %v5335, %v5336
        %v5338 = vrot.slane %v5337, 2
        %v5339 = vadd.f32 %v5337, %v5338
        %v5340 = vrot.slane %v5339, 1
        %v5341 = vadd.f32 %v5339, %v5340
        %v5342 = vadd.f32 %v4169, %v4173
        %v5343 = vadd.f32 %v5342, %v4179
        %v5344 = vadd.f32 %v5343, %v4183
        %v5345 = vadd.f32 %v5344, %v4189
        %v5346 = vadd.f32 %v5345, %v4193
        %v5347 = vadd.f32 %v5346, %v4199
        %v5348 = vadd.f32 %v5347, %v4203
        %v5349 = vadd.f32 %v5348, %v4209
        %v5350 = vadd.f32 %v5349, %v4213
        %v5351 = vadd.f32 %v5350, %v4219
        %v5352 = vadd.f32 %v5351, %v4223
        %v5353 = vadd.f32 %v5352, %v4229
        %v5354 = vadd.f32 %v5353, %v4233
        %v5355 = vadd.f32 %v5354, %v4239
        %v5356 = vadd.f32 %v5355, %v4243
        %v5357 = vadd.f32 %v5356, %v4249
        %v5358 = vadd.f32 %v5357, %v4253
        %v5359 = vadd.f32 %v5358, %v4259
        %v5360 = vadd.f32 %v5359, %v4263
        %v5361 = vadd.f32 %v5360, %v4269
        %v5362 = vadd.f32 %v5361, %v4273
        %v5363 = vadd.f32 %v5362, %v4279
        %v5364 = vadd.f32 %v5363, %v4283
        %v5365 = vadd.f32 %v5364, %v4289
        %v5366 = vadd.f32 %v5365, %v4293
        %v5367 = vadd.f32 %v5366, %v4299
        %v5368 = vadd.f32 %v5367, %v4303
        %v5369 = vadd.f32 %v5368, %v4309
        %v5370 = vadd.f32 %v5369, %v4313
        %v5371 = vadd.f32 %v5370, %v4319
        %v5372 = vadd.f32 %v5371, %v4323
        %v5373 = vadd.f32 %v5372, %v4329
        %v5374 = vadd.f32 %v5373, %v4333
        %v5375 = vadd.f32 %v5374, %v4339
        %v5376 = vadd.f32 %v5375, %v4343
        %v5377 = vadd.f32 %v5376, %v4349
        %v5378 = vadd.f32 %v5377, %v4353
        %v5379 = vadd.f32 %v5378, %v4359
        %v5380 = vadd.f32 %v5379, %v4363
        %v5381 = vadd.f32 %v5380, %v4369
        %v5382 = vadd.f32 %v5381, %v4373
        %v5383 = vadd.f32 %v5382, %v4379
        %v5384 = vadd.f32 %v5383, %v4383
        %v5385 = vadd.f32 %v5384, %v4389
        %v5386 = vadd.f32 %v5385, %v4393
        %v5387 = vadd.f32 %v5386, %v4399
        %v5388 = vadd.f32 %v5387, %v4403
        %v5389 = vadd.f32 %v5388, %v4409
        %v5390 = vadd.f32 %v5389, %v4413
        %v5391 = vadd.f32 %v5390, %v4419
        %v5392 = vadd.f32 %v5391, %v4423
        %v5393 = vadd.f32 %v5392, %v4429
        %v5394 = vadd.f32 %v5393, %v4433
        %v5395 = vadd.f32 %v5394, %v4439
        %v5396 = vadd.f32 %v5395, %v4443
        %v5397 = vadd.f32 %v5396, %v4449
        %v5398 = vadd.f32 %v5397, %v4453
        %v5399 = vadd.f32 %v5398, %v4459
        %v5400 = vadd.f32 %v5399, %v4463
        %v5401 = vadd.f32 %v5400, %v4469
        %v5402 = vadd.f32 %v5401, %v4473
        %v5403 = vadd.f32 %v5402, %v4479
        %v5404 = vadd.f32 %v5403, %v4483
        %v5405 = vrot.slane %v5404, 4
        %v5406 = vadd.f32 %v5404, %v5405
        %v5407 = vrot.slane %v5406, 2
        %v5408 = vadd.f32 %v5406, %v5407
        %v5409 = vrot.slane %v5408, 1
        %v5410 = vadd.f32 %v5408, %v5409
        %v5411 = vadd.f32 %v4171, %v4175
        %v5412 = vadd.f32 %v5411, %v4181
        %v5413 = vadd.f32 %v5412, %v4185
        %v5414 = vadd.f32 %v5413, %v4191
        %v5415 = vadd.f32 %v5414, %v4195
        %v5416 = vadd.f32 %v5415, %v4201
        %v5417 = vadd.f32 %v5416, %v4205
        %v5418 = vadd.f32 %v5417, %v4211
        %v5419 = vadd.f32 %v5418, %v4215
        %v5420 = vadd.f32 %v5419, %v4221
        %v5421 = vadd.f32 %v5420, %v4225
        %v5422 = vadd.f32 %v5421, %v4231
        %v5423 = vadd.f32 %v5422, %v4235
        %v5424 = vadd.f32 %v5423, %v4241
        %v5425 = vadd.f32 %v5424, %v4245
        %v5426 = vadd.f32 %v5425, %v4251
        %v5427 = vadd.f32 %v5426, %v4255
        %v5428 = vadd.f32 %v5427, %v4261
        %v5429 = vadd.f32 %v5428, %v4265
        %v5430 = vadd.f32 %v5429, %v4271
        %v5431 = vadd.f32 %v5430, %v4275
        %v5432 = vadd.f32 %v5431, %v4281
        %v5433 = vadd.f32 %v5432, %v4285
        %v5434 = vadd.f32 %v5433, %v4291
        %v5435 = vadd.f32 %v5434, %v4295
        %v5436 = vadd.f32 %v5435, %v4301
        %v5437 = vadd.f32 %v5436, %v4305
        %v5438 = vadd.f32 %v5437, %v4311
        %v5439 = vadd.f32 %v5438, %v4315
        %v5440 = vadd.f32 %v5439, %v4321
        %v5441 = vadd.f32 %v5440, %v4325
        %v5442 = vadd.f32 %v5441, %v4331
        %v5443 = vadd.f32 %v5442, %v4335
        %v5444 = vadd.f32 %v5443, %v4341
        %v5445 = vadd.f32 %v5444, %v4345
        %v5446 = vadd.f32 %v5445, %v4351
        %v5447 = vadd.f32 %v5446, %v4355
        %v5448 = vadd.f32 %v5447, %v4361
        %v5449 = vadd.f32 %v5448, %v4365
        %v5450 = vadd.f32 %v5449, %v4371
        %v5451 = vadd.f32 %v5450, %v4375
        %v5452 = vadd.f32 %v5451, %v4381
        %v5453 = vadd.f32 %v5452, %v4385
        %v5454 = vadd.f32 %v5453, %v4391
        %v5455 = vadd.f32 %v5454, %v4395
        %v5456 = vadd.f32 %v5455, %v4401
        %v5457 = vadd.f32 %v5456, %v4405
        %v5458 = vadd.f32 %v5457, %v4411
        %v5459 = vadd.f32 %v5458, %v4415
        %v5460 = vadd.f32 %v5459, %v4421
        %v5461 = vadd.f32 %v5460, %v4425
        %v5462 = vadd.f32 %v5461, %v4431
        %v5463 = vadd.f32 %v5462, %v4435
        %v5464 = vadd.f32 %v5463, %v4441
        %v5465 = vadd.f32 %v5464, %v4445
        %v5466 = vadd.f32 %v5465, %v4451
        %v5467 = vadd.f32 %v5466, %v4455
        %v5468 = vadd.f32 %v5467, %v4461
        %v5469 = vadd.f32 %v5468, %v4465
        %v5470 = vadd.f32 %v5469, %v4471
        %v5471 = vadd.f32 %v5470, %v4475
        %v5472 = vadd.f32 %v5471, %v4481
        %v5473 = vadd.f32 %v5472, %v4485
        %v5474 = vrot.slane %v5473, 4
        %v5475 = vadd.f32 %v5473, %v5474
        %v5476 = vrot.slane %v5475, 2
        %v5477 = vadd.f32 %v5475, %v5476
        %v5478 = vrot.slane %v5477, 1
        %v5479 = vadd.f32 %v5477, %v5478
        %v5480 = vadd.f32 %v4522, %v4526
        %v5481 = vadd.f32 %v5480, %v4532
        %v5482 = vadd.f32 %v5481, %v4536
        %v5483 = vadd.f32 %v5482, %v4542
        %v5484 = vadd.f32 %v5483, %v4546
        %v5485 = vadd.f32 %v5484, %v4552
        %v5486 = vadd.f32 %v5485, %v4556
        %v5487 = vadd.f32 %v5486, %v4562
        %v5488 = vadd.f32 %v5487, %v4566
        %v5489 = vadd.f32 %v5488, %v4572
        %v5490 = vadd.f32 %v5489, %v4576
        %v5491 = vadd.f32 %v5490, %v4582
        %v5492 = vadd.f32 %v5491, %v4586
        %v5493 = vadd.f32 %v5492, %v4592
        %v5494 = vadd.f32 %v5493, %v4596
        %v5495 = vadd.f32 %v5494, %v4602
        %v5496 = vadd.f32 %v5495, %v4606
        %v5497 = vadd.f32 %v5496, %v4612
        %v5498 = vadd.f32 %v5497, %v4616
        %v5499 = vadd.f32 %v5498, %v4622
        %v5500 = vadd.f32 %v5499, %v4626
        %v5501 = vadd.f32 %v5500, %v4632
        %v5502 = vadd.f32 %v5501, %v4636
        %v5503 = vadd.f32 %v5502, %v4642
        %v5504 = vadd.f32 %v5503, %v4646
        %v5505 = vadd.f32 %v5504, %v4652
        %v5506 = vadd.f32 %v5505, %v4656
        %v5507 = vadd.f32 %v5506, %v4662
        %v5508 = vadd.f32 %v5507, %v4666
        %v5509 = vadd.f32 %v5508, %v4672
        %v5510 = vadd.f32 %v5509, %v4676
        %v5511 = vadd.f32 %v5510, %v4682
        %v5512 = vadd.f32 %v5511, %v4686
        %v5513 = vadd.f32 %v5512, %v4692
        %v5514 = vadd.f32 %v5513, %v4696
        %v5515 = vadd.f32 %v5514, %v4702
        %v5516 = vadd.f32 %v5515, %v4706
        %v5517 = vadd.f32 %v5516, %v4712
        %v5518 = vadd.f32 %v5517, %v4716
        %v5519 = vadd.f32 %v5518, %v4722
        %v5520 = vadd.f32 %v5519, %v4726
        %v5521 = vadd.f32 %v5520, %v4732
        %v5522 = vadd.f32 %v5521, %v4736
        %v5523 = vadd.f32 %v5522, %v4742
        %v5524 = vadd.f32 %v5523, %v4746
        %v5525 = vadd.f32 %v5524, %v4752
        %v5526 = vadd.f32 %v5525, %v4756
        %v5527 = vadd.f32 %v5526, %v4762
        %v5528 = vadd.f32 %v5527, %v4766
        %v5529 = vadd.f32 %v5528, %v4772
        %v5530 = vadd.f32 %v5529, %v4776
        %v5531 = vadd.f32 %v5530, %v4782
        %v5532 = vadd.f32 %v5531, %v4786
        %v5533 = vadd.f32 %v5532, %v4792
        %v5534 = vadd.f32 %v5533, %v4796
        %v5535 = vadd.f32 %v5534, %v4802
        %v5536 = vadd.f32 %v5535, %v4806
        %v5537 = vadd.f32 %v5536, %v4812
        %v5538 = vadd.f32 %v5537, %v4816
        %v5539 = vadd.f32 %v5538, %v4822
        %v5540 = vadd.f32 %v5539, %v4826
        %v5541 = vadd.f32 %v5540, %v4832
        %v5542 = vadd.f32 %v5541, %v4836
        %v5543 = vrot.slane %v5542, 4
        %v5544 = vadd.f32 %v5542, %v5543
        %v5545 = vrot.slane %v5544, 2
        %v5546 = vadd.f32 %v5544, %v5545
        %v5547 = vrot.slane %v5546, 1
        %v5548 = vadd.f32 %v5546, %v5547
        %v5549 = vadd.f32 %v4524, %v4528
        %v5550 = vadd.f32 %v5549, %v4534
        %v5551 = vadd.f32 %v5550, %v4538
        %v5552 = vadd.f32 %v5551, %v4544
        %v5553 = vadd.f32 %v5552, %v4548
        %v5554 = vadd.f32 %v5553, %v4554
        %v5555 = vadd.f32 %v5554, %v4558
        %v5556 = vadd.f32 %v5555, %v4564
        %v5557 = vadd.f32 %v5556, %v4568
        %v5558 = vadd.f32 %v5557, %v4574
        %v5559 = vadd.f32 %v5558, %v4578
        %v5560 = vadd.f32 %v5559, %v4584
        %v5561 = vadd.f32 %v5560, %v4588
        %v5562 = vadd.f32 %v5561, %v4594
        %v5563 = vadd.f32 %v5562, %v4598
        %v5564 = vadd.f32 %v5563, %v4604
        %v5565 = vadd.f32 %v5564, %v4608
        %v5566 = vadd.f32 %v5565, %v4614
        %v5567 = vadd.f32 %v5566, %v4618
        %v5568 = vadd.f32 %v5567, %v4624
        %v5569 = vadd.f32 %v5568, %v4628
        %v5570 = vadd.f32 %v5569, %v4634
        %v5571 = vadd.f32 %v5570, %v4638
        %v5572 = vadd.f32 %v5571, %v4644
        %v5573 = vadd.f32 %v5572, %v4648
        %v5574 = vadd.f32 %v5573, %v4654
        %v5575 = vadd.f32 %v5574, %v4658
        %v5576 = vadd.f32 %v5575, %v4664
        %v5577 = vadd.f32 %v5576, %v4668
        %v5578 = vadd.f32 %v5577, %v4674
        %v5579 = vadd.f32 %v5578, %v4678
        %v5580 = vadd.f32 %v5579, %v4684
        %v5581 = vadd.f32 %v5580, %v4688
        %v5582 = vadd.f32 %v5581, %v4694
        %v5583 = vadd.f32 %v5582, %v4698
        %v5584 = vadd.f32 %v5583, %v4704
        %v5585 = vadd.f32 %v5584, %v4708
        %v5586 = vadd.f32 %v5585, %v4714
        %v5587 = vadd.f32 %v5586, %v4718
        %v5588 = vadd.f32 %v5587, %v4724
        %v5589 = vadd.f32 %v5588, %v4728
        %v5590 = vadd.f32 %v5589, %v4734
        %v5591 = vadd.f32 %v5590, %v4738
        %v5592 = vadd.f32 %v5591, %v4744
        %v5593 = vadd.f32 %v5592, %v4748
        %v5594 = vadd.f32 %v5593, %v4754
        %v5595 = vadd.f32 %v5594, %v4758
        %v5596 = vadd.f32 %v5595, %v4764
        %v5597 = vadd.f32 %v5596, %v4768
        %v5598 = vadd.f32 %v5597, %v4774
        %v5599 = vadd.f32 %v5598, %v4778
        %v5600 = vadd.f32 %v5599, %v4784
        %v5601 = vadd.f32 %v5600, %v4788
        %v5602 = vadd.f32 %v5601, %v4794
        %v5603 = vadd.f32 %v5602, %v4798
        %v5604 = vadd.f32 %v5603, %v4804
        %v5605 = vadd.f32 %v5604, %v4808
        %v5606 = vadd.f32 %v5605, %v4814
        %v5607 = vadd.f32 %v5606, %v4818
        %v5608 = vadd.f32 %v5607, %v4824
        %v5609 = vadd.f32 %v5608, %v4828
        %v5610 = vadd.f32 %v5609, %v4834
        %v5611 = vadd.f32 %v5610, %v4838
        %v5612 = vrot.slane %v5611, 4
        %v5613 = vadd.f32 %v5611, %v5612
        %v5614 = vrot.slane %v5613, 2
        %v5615 = vadd.f32 %v5613, %v5614
        %v5616 = vrot.slane %v5615, 1
        %v5617 = vadd.f32 %v5615, %v5616
        %v5618 = vadd.f32 %v4875, %v4879
        %v5619 = vadd.f32 %v5618, %v4885
        %v5620 = vadd.f32 %v5619, %v4889
        %v5621 = vadd.f32 %v5620, %v4895
        %v5622 = vadd.f32 %v5621, %v4899
        %v5623 = vadd.f32 %v5622, %v4905
        %v5624 = vadd.f32 %v5623, %v4909
        %v5625 = vadd.f32 %v5624, %v4915
        %v5626 = vadd.f32 %v5625, %v4919
        %v5627 = vadd.f32 %v5626, %v4925
        %v5628 = vadd.f32 %v5627, %v4929
        %v5629 = vadd.f32 %v5628, %v4935
        %v5630 = vadd.f32 %v5629, %v4939
        %v5631 = vadd.f32 %v5630, %v4945
        %v5632 = vadd.f32 %v5631, %v4949
        %v5633 = vadd.f32 %v5632, %v4955
        %v5634 = vadd.f32 %v5633, %v4959
        %v5635 = vadd.f32 %v5634, %v4965
        %v5636 = vadd.f32 %v5635, %v4969
        %v5637 = vadd.f32 %v5636, %v4975
        %v5638 = vadd.f32 %v5637, %v4979
        %v5639 = vadd.f32 %v5638, %v4985
        %v5640 = vadd.f32 %v5639, %v4989
        %v5641 = vadd.f32 %v5640, %v4995
        %v5642 = vadd.f32 %v5641, %v4999
        %v5643 = vadd.f32 %v5642, %v5005
        %v5644 = vadd.f32 %v5643, %v5009
        %v5645 = vadd.f32 %v5644, %v5015
        %v5646 = vadd.f32 %v5645, %v5019
        %v5647 = vadd.f32 %v5646, %v5025
        %v5648 = vadd.f32 %v5647, %v5029
        %v5649 = vadd.f32 %v5648, %v5035
        %v5650 = vadd.f32 %v5649, %v5039
        %v5651 = vadd.f32 %v5650, %v5045
        %v5652 = vadd.f32 %v5651, %v5049
        %v5653 = vadd.f32 %v5652, %v5055
        %v5654 = vadd.f32 %v5653, %v5059
        %v5655 = vadd.f32 %v5654, %v5065
        %v5656 = vadd.f32 %v5655, %v5069
        %v5657 = vadd.f32 %v5656, %v5075
        %v5658 = vadd.f32 %v5657, %v5079
        %v5659 = vadd.f32 %v5658, %v5085
        %v5660 = vadd.f32 %v5659, %v5089
        %v5661 = vadd.f32 %v5660, %v5095
        %v5662 = vadd.f32 %v5661, %v5099
        %v5663 = vadd.f32 %v5662, %v5105
        %v5664 = vadd.f32 %v5663, %v5109
        %v5665 = vadd.f32 %v5664, %v5115
        %v5666 = vadd.f32 %v5665, %v5119
        %v5667 = vadd.f32 %v5666, %v5125
        %v5668 = vadd.f32 %v5667, %v5129
        %v5669 = vadd.f32 %v5668, %v5135
        %v5670 = vadd.f32 %v5669, %v5139
        %v5671 = vadd.f32 %v5670, %v5145
        %v5672 = vadd.f32 %v5671, %v5149
        %v5673 = vadd.f32 %v5672, %v5155
        %v5674 = vadd.f32 %v5673, %v5159
        %v5675 = vadd.f32 %v5674, %v5165
        %v5676 = vadd.f32 %v5675, %v5169
        %v5677 = vadd.f32 %v5676, %v5175
        %v5678 = vadd.f32 %v5677, %v5179
        %v5679 = vadd.f32 %v5678, %v5185
        %v5680 = vadd.f32 %v5679, %v5189
        %v5681 = vrot.slane %v5680, 4
        %v5682 = vadd.f32 %v5680, %v5681
        %v5683 = vrot.slane %v5682, 2
        %v5684 = vadd.f32 %v5682, %v5683
        %v5685 = vrot.slane %v5684, 1
        %v5686 = vadd.f32 %v5684, %v5685
        %v5687 = vadd.f32 %v4877, %v4881
        %v5688 = vadd.f32 %v5687, %v4887
        %v5689 = vadd.f32 %v5688, %v4891
        %v5690 = vadd.f32 %v5689, %v4897
        %v5691 = vadd.f32 %v5690, %v4901
        %v5692 = vadd.f32 %v5691, %v4907
        %v5693 = vadd.f32 %v5692, %v4911
        %v5694 = vadd.f32 %v5693, %v4917
        %v5695 = vadd.f32 %v5694, %v4921
        %v5696 = vadd.f32 %v5695, %v4927
        %v5697 = vadd.f32 %v5696, %v4931
        %v5698 = vadd.f32 %v5697, %v4937
        %v5699 = vadd.f32 %v5698, %v4941
        %v5700 = vadd.f32 %v5699, %v4947
        %v5701 = vadd.f32 %v5700, %v4951
        %v5702 = vadd.f32 %v5701, %v4957
        %v5703 = vadd.f32 %v5702, %v4961
        %v5704 = vadd.f32 %v5703, %v4967
        %v5705 = vadd.f32 %v5704, %v4971
        %v5706 = vadd.f32 %v5705, %v4977
        %v5707 = vadd.f32 %v5706, %v4981
        %v5708 = vadd.f32 %v5707, %v4987
        %v5709 = vadd.f32 %v5708, %v4991
        %v5710 = vadd.f32 %v5709, %v4997
        %v5711 = vadd.f32 %v5710, %v5001
        %v5712 = vadd.f32 %v5711, %v5007
        %v5713 = vadd.f32 %v5712, %v5011
        %v5714 = vadd.f32 %v5713, %v5017
        %v5715 = vadd.f32 %v5714, %v5021
        %v5716 = vadd.f32 %v5715, %v5027
        %v5717 = vadd.f32 %v5716, %v5031
        %v5718 = vadd.f32 %v5717, %v5037
        %v5719 = vadd.f32 %v5718, %v5041
        %v5720 = vadd.f32 %v5719, %v5047
        %v5721 = vadd.f32 %v5720, %v5051
        %v5722 = vadd.f32 %v5721, %v5057
        %v5723 = vadd.f32 %v5722, %v5061
        %v5724 = vadd.f32 %v5723, %v5067
        %v5725 = vadd.f32 %v5724, %v5071
        %v5726 = vadd.f32 %v5725, %v5077
        %v5727 = vadd.f32 %v5726, %v5081
        %v5728 = vadd.f32 %v5727, %v5087
        %v5729 = vadd.f32 %v5728, %v5091
        %v5730 = vadd.f32 %v5729, %v5097
        %v5731 = vadd.f32 %v5730, %v5101
        %v5732 = vadd.f32 %v5731, %v5107
        %v5733 = vadd.f32 %v5732, %v5111
        %v5734 = vadd.f32 %v5733, %v5117
        %v5735 = vadd.f32 %v5734, %v5121
        %v5736 = vadd.f32 %v5735, %v5127
        %v5737 = vadd.f32 %v5736, %v5131
        %v5738 = vadd.f32 %v5737, %v5137
        %v5739 = vadd.f32 %v5738, %v5141
        %v5740 = vadd.f32 %v5739, %v5147
        %v5741 = vadd.f32 %v5740, %v5151
        %v5742 = vadd.f32 %v5741, %v5157
        %v5743 = vadd.f32 %v5742, %v5161
        %v5744 = vadd.f32 %v5743, %v5167
        %v5745 = vadd.f32 %v5744, %v5171
        %v5746 = vadd.f32 %v5745, %v5177
        %v5747 = vadd.f32 %v5746, %v5181
        %v5748 = vadd.f32 %v5747, %v5187
        %v5749 = vadd.f32 %v5748, %v5191
        %v5750 = vrot.slane %v5749, 4
        %v5751 = vadd.f32 %v5749, %v5750
        %v5752 = vrot.slane %v5751, 2
        %v5753 = vadd.f32 %v5751, %v5752
        %v5754 = vrot.slane %v5753, 1
        %v5755 = vadd.f32 %v5753, %v5754
        %v5756 = vrcp.pop 512.0
        %v5757 = vmul.f32 %v5272, %v5756
        %v5758 = vmul.f32 %v5341, %v5756
        %v5759 = vmul.f32 %v5410, %v5756
        %v5760 = vmul.f32 %v5479, %v5756
        %v5761 = vmul.f32 %v5548, %v5756
        %v5762 = vmul.f32 %v5617, %v5756
        %v5763 = vmul.f32 %v5686, %v5756
        %v5764 = vmul.f32 %v5755, %v5756
        %v5765 = vmul.f32 %v3816, %v3816
        %v5766 = vmul.f32 %v3818, %v3818
        %v5767 = vmul.f32 %v4169, %v4169
        %v5768 = vmul.f32 %v4171, %v4171
        %v5769 = vmul.f32 %v4522, %v4522
        %v5770 = vmul.f32 %v4524, %v4524
        %v5771 = vmul.f32 %v4875, %v4875
        %v5772 = vmul.f32 %v4877, %v4877
        %v5773 = vmul.f32 %v3820, %v3820
        %v5774 = vmul.f32 %v3822, %v3822
        %v5775 = vmul.f32 %v4173, %v4173
        %v5776 = vmul.f32 %v4175, %v4175
        %v5777 = vmul.f32 %v4526, %v4526
        %v5778 = vmul.f32 %v4528, %v4528
        %v5779 = vmul.f32 %v4879, %v4879
        %v5780 = vmul.f32 %v4881, %v4881
        %v5781 = vmul.f32 %v3826, %v3826
        %v5782 = vmul.f32 %v3828, %v3828
        %v5783 = vmul.f32 %v4179, %v4179
        %v5784 = vmul.f32 %v4181, %v4181
        %v5785 = vmul.f32 %v4532, %v4532
        %v5786 = vmul.f32 %v4534, %v4534
        %v5787 = vmul.f32 %v4885, %v4885
        %v5788 = vmul.f32 %v4887, %v4887
        %v5789 = vmul.f32 %v3830, %v3830
        %v5790 = vmul.f32 %v3832, %v3832
        %v5791 = vmul.f32 %v4183, %v4183
        %v5792 = vmul.f32 %v4185, %v4185
        %v5793 = vmul.f32 %v4536, %v4536
        %v5794 = vmul.f32 %v4538, %v4538
        %v5795 = vmul.f32 %v4889, %v4889
        %v5796 = vmul.f32 %v4891, %v4891
        %v5797 = vmul.f32 %v3836, %v3836
        %v5798 = vmul.f32 %v3838, %v3838
        %v5799 = vmul.f32 %v4189, %v4189
        %v5800 = vmul.f32 %v4191, %v4191
        %v5801 = vmul.f32 %v4542, %v4542
        %v5802 = vmul.f32 %v4544, %v4544
        %v5803 = vmul.f32 %v4895, %v4895
        %v5804 = vmul.f32 %v4897, %v4897
        %v5805 = vmul.f32 %v3840, %v3840
        %v5806 = vmul.f32 %v3842, %v3842
        %v5807 = vmul.f32 %v4193, %v4193
        %v5808 = vmul.f32 %v4195, %v4195
        %v5809 = vmul.f32 %v4546, %v4546
        %v5810 = vmul.f32 %v4548, %v4548
        %v5811 = vmul.f32 %v4899, %v4899
        %v5812 = vmul.f32 %v4901, %v4901
        %v5813 = vmul.f32 %v3846, %v3846
        %v5814 = vmul.f32 %v3848, %v3848
        %v5815 = vmul.f32 %v4199, %v4199
        %v5816 = vmul.f32 %v4201, %v4201
        %v5817 = vmul.f32 %v4552, %v4552
        %v5818 = vmul.f32 %v4554, %v4554
        %v5819 = vmul.f32 %v4905, %v4905
        %v5820 = vmul.f32 %v4907, %v4907
        %v5821 = vmul.f32 %v3850, %v3850
        %v5822 = vmul.f32 %v3852, %v3852
        %v5823 = vmul.f32 %v4203, %v4203
        %v5824 = vmul.f32 %v4205, %v4205
        %v5825 = vmul.f32 %v4556, %v4556
        %v5826 = vmul.f32 %v4558, %v4558
        %v5827 = vmul.f32 %v4909, %v4909
        %v5828 = vmul.f32 %v4911, %v4911
        %v5829 = vmul.f32 %v3856, %v3856
        %v5830 = vmul.f32 %v3858, %v3858
        %v5831 = vmul.f32 %v4209, %v4209
        %v5832 = vmul.f32 %v4211, %v4211
        %v5833 = vmul.f32 %v4562, %v4562
        %v5834 = vmul.f32 %v4564, %v4564
        %v5835 = vmul.f32 %v4915, %v4915
        %v5836 = vmul.f32 %v4917, %v4917
        %v5837 = vmul.f32 %v3860, %v3860
        %v5838 = vmul.f32 %v3862, %v3862
        %v5839 = vmul.f32 %v4213, %v4213
        %v5840 = vmul.f32 %v4215, %v4215
        %v5841 = vmul.f32 %v4566, %v4566
        %v5842 = vmul.f32 %v4568, %v4568
        %v5843 = vmul.f32 %v4919, %v4919
        %v5844 = vmul.f32 %v4921, %v4921
        %v5845 = vmul.f32 %v3866, %v3866
        %v5846 = vmul.f32 %v3868, %v3868
        %v5847 = vmul.f32 %v4219, %v4219
        %v5848 = vmul.f32 %v4221, %v4221
        %v5849 = vmul.f32 %v4572, %v4572
        %v5850 = vmul.f32 %v4574, %v4574
        %v5851 = vmul.f32 %v4925, %v4925
        %v5852 = vmul.f32 %v4927, %v4927
        %v5853 = vmul.f32 %v3870, %v3870
        %v5854 = vmul.f32 %v3872, %v3872
        %v5855 = vmul.f32 %v4223, %v4223
        %v5856 = vmul.f32 %v4225, %v4225
        %v5857 = vmul.f32 %v4576, %v4576
        %v5858 = vmul.f32 %v4578, %v4578
        %v5859 = vmul.f32 %v4929, %v4929
        %v5860 = vmul.f32 %v4931, %v4931
        %v5861 = vmul.f32 %v3876, %v3876
        %v5862 = vmul.f32 %v3878, %v3878
        %v5863 = vmul.f32 %v4229, %v4229
        %v5864 = vmul.f32 %v4231, %v4231
        %v5865 = vmul.f32 %v4582, %v4582
        %v5866 = vmul.f32 %v4584, %v4584
        %v5867 = vmul.f32 %v4935, %v4935
        %v5868 = vmul.f32 %v4937, %v4937
        %v5869 = vmul.f32 %v3880, %v3880
        %v5870 = vmul.f32 %v3882, %v3882
        %v5871 = vmul.f32 %v4233, %v4233
        %v5872 = vmul.f32 %v4235, %v4235
        %v5873 = vmul.f32 %v4586, %v4586
        %v5874 = vmul.f32 %v4588, %v4588
        %v5875 = vmul.f32 %v4939, %v4939
        %v5876 = vmul.f32 %v4941, %v4941
        %v5877 = vmul.f32 %v3886, %v3886
        %v5878 = vmul.f32 %v3888, %v3888
        %v5879 = vmul.f32 %v4239, %v4239
        %v5880 = vmul.f32 %v4241, %v4241
        %v5881 = vmul.f32 %v4592, %v4592
        %v5882 = vmul.f32 %v4594, %v4594
        %v5883 = vmul.f32 %v4945, %v4945
        %v5884 = vmul.f32 %v4947, %v4947
        %v5885 = vmul.f32 %v3890, %v3890
        %v5886 = vmul.f32 %v3892, %v3892
        %v5887 = vmul.f32 %v4243, %v4243
        %v5888 = vmul.f32 %v4245, %v4245
        %v5889 = vmul.f32 %v4596, %v4596
        %v5890 = vmul.f32 %v4598, %v4598
        %v5891 = vmul.f32 %v4949, %v4949
        %v5892 = vmul.f32 %v4951, %v4951
        %v5893 = vmul.f32 %v3896, %v3896
        %v5894 = vmul.f32 %v3898, %v3898
        %v5895 = vmul.f32 %v4249, %v4249
        %v5896 = vmul.f32 %v4251, %v4251
        %v5897 = vmul.f32 %v4602, %v4602
        %v5898 = vmul.f32 %v4604, %v4604
        %v5899 = vmul.f32 %v4955, %v4955
        %v5900 = vmul.f32 %v4957, %v4957
        %v5901 = vmul.f32 %v3900, %v3900
        %v5902 = vmul.f32 %v3902, %v3902
        %v5903 = vmul.f32 %v4253, %v4253
        %v5904 = vmul.f32 %v4255, %v4255
        %v5905 = vmul.f32 %v4606, %v4606
        %v5906 = vmul.f32 %v4608, %v4608
        %v5907 = vmul.f32 %v4959, %v4959
        %v5908 = vmul.f32 %v4961, %v4961
        %v5909 = vmul.f32 %v3906, %v3906
        %v5910 = vmul.f32 %v3908, %v3908
        %v5911 = vmul.f32 %v4259, %v4259
        %v5912 = vmul.f32 %v4261, %v4261
        %v5913 = vmul.f32 %v4612, %v4612
        %v5914 = vmul.f32 %v4614, %v4614
        %v5915 = vmul.f32 %v4965, %v4965
        %v5916 = vmul.f32 %v4967, %v4967
        %v5917 = vmul.f32 %v3910, %v3910
        %v5918 = vmul.f32 %v3912, %v3912
        %v5919 = vmul.f32 %v4263, %v4263
        %v5920 = vmul.f32 %v4265, %v4265
        %v5921 = vmul.f32 %v4616, %v4616
        %v5922 = vmul.f32 %v4618, %v4618
        %v5923 = vmul.f32 %v4969, %v4969
        %v5924 = vmul.f32 %v4971, %v4971
        %v5925 = vmul.f32 %v3916, %v3916
        %v5926 = vmul.f32 %v3918, %v3918
        %v5927 = vmul.f32 %v4269, %v4269
        %v5928 = vmul.f32 %v4271, %v4271
        %v5929 = vmul.f32 %v4622, %v4622
        %v5930 = vmul.f32 %v4624, %v4624
        %v5931 = vmul.f32 %v4975, %v4975
        %v5932 = vmul.f32 %v4977, %v4977
        %v5933 = vmul.f32 %v3920, %v3920
        %v5934 = vmul.f32 %v3922, %v3922
        %v5935 = vmul.f32 %v4273, %v4273
        %v5936 = vmul.f32 %v4275, %v4275
        %v5937 = vmul.f32 %v4626, %v4626
        %v5938 = vmul.f32 %v4628, %v4628
        %v5939 = vmul.f32 %v4979, %v4979
        %v5940 = vmul.f32 %v4981, %v4981
        %v5941 = vmul.f32 %v3926, %v3926
        %v5942 = vmul.f32 %v3928, %v3928
        %v5943 = vmul.f32 %v4279, %v4279
        %v5944 = vmul.f32 %v4281, %v4281
        %v5945 = vmul.f32 %v4632, %v4632
        %v5946 = vmul.f32 %v4634, %v4634
        %v5947 = vmul.f32 %v4985, %v4985
        %v5948 = vmul.f32 %v4987, %v4987
        %v5949 = vmul.f32 %v3930, %v3930
        %v5950 = vmul.f32 %v3932, %v3932
        %v5951 = vmul.f32 %v4283, %v4283
        %v5952 = vmul.f32 %v4285, %v4285
        %v5953 = vmul.f32 %v4636, %v4636
        %v5954 = vmul.f32 %v4638, %v4638
        %v5955 = vmul.f32 %v4989, %v4989
        %v5956 = vmul.f32 %v4991, %v4991
        %v5957 = vmul.f32 %v3936, %v3936
        %v5958 = vmul.f32 %v3938, %v3938
        %v5959 = vmul.f32 %v4289, %v4289
        %v5960 = vmul.f32 %v4291, %v4291
        %v5961 = vmul.f32 %v4642, %v4642
        %v5962 = vmul.f32 %v4644, %v4644
        %v5963 = vmul.f32 %v4995, %v4995
        %v5964 = vmul.f32 %v4997, %v4997
        %v5965 = vmul.f32 %v3940, %v3940
        %v5966 = vmul.f32 %v3942, %v3942
        %v5967 = vmul.f32 %v4293, %v4293
        %v5968 = vmul.f32 %v4295, %v4295
        %v5969 = vmul.f32 %v4646, %v4646
        %v5970 = vmul.f32 %v4648, %v4648
        %v5971 = vmul.f32 %v4999, %v4999
        %v5972 = vmul.f32 %v5001, %v5001
        %v5973 = vmul.f32 %v3946, %v3946
        %v5974 = vmul.f32 %v3948, %v3948
        %v5975 = vmul.f32 %v4299, %v4299
        %v5976 = vmul.f32 %v4301, %v4301
        %v5977 = vmul.f32 %v4652, %v4652
        %v5978 = vmul.f32 %v4654, %v4654
        %v5979 = vmul.f32 %v5005, %v5005
        %v5980 = vmul.f32 %v5007, %v5007
        %v5981 = vmul.f32 %v3950, %v3950
        %v5982 = vmul.f32 %v3952, %v3952
        %v5983 = vmul.f32 %v4303, %v4303
        %v5984 = vmul.f32 %v4305, %v4305
        %v5985 = vmul.f32 %v4656, %v4656
        %v5986 = vmul.f32 %v4658, %v4658
        %v5987 = vmul.f32 %v5009, %v5009
        %v5988 = vmul.f32 %v5011, %v5011
        %v5989 = vmul.f32 %v3956, %v3956
        %v5990 = vmul.f32 %v3958, %v3958
        %v5991 = vmul.f32 %v4309, %v4309
        %v5992 = vmul.f32 %v4311, %v4311
        %v5993 = vmul.f32 %v4662, %v4662
        %v5994 = vmul.f32 %v4664, %v4664
        %v5995 = vmul.f32 %v5015, %v5015
        %v5996 = vmul.f32 %v5017, %v5017
        %v5997 = vmul.f32 %v3960, %v3960
        %v5998 = vmul.f32 %v3962, %v3962
        %v5999 = vmul.f32 %v4313, %v4313
        %v6000 = vmul.f32 %v4315, %v4315
        %v6001 = vmul.f32 %v4666, %v4666
        %v6002 = vmul.f32 %v4668, %v4668
        %v6003 = vmul.f32 %v5019, %v5019
        %v6004 = vmul.f32 %v5021, %v5021
        %v6005 = vmul.f32 %v3966, %v3966
        %v6006 = vmul.f32 %v3968, %v3968
        %v6007 = vmul.f32 %v4319, %v4319
        %v6008 = vmul.f32 %v4321, %v4321
        %v6009 = vmul.f32 %v4672, %v4672
        %v6010 = vmul.f32 %v4674, %v4674
        %v6011 = vmul.f32 %v5025, %v5025
        %v6012 = vmul.f32 %v5027, %v5027
        %v6013 = vmul.f32 %v3970, %v3970
        %v6014 = vmul.f32 %v3972, %v3972
        %v6015 = vmul.f32 %v4323, %v4323
        %v6016 = vmul.f32 %v4325, %v4325
        %v6017 = vmul.f32 %v4676, %v4676
        %v6018 = vmul.f32 %v4678, %v4678
        %v6019 = vmul.f32 %v5029, %v5029
        %v6020 = vmul.f32 %v5031, %v5031
        %v6021 = vmul.f32 %v3976, %v3976
        %v6022 = vmul.f32 %v3978, %v3978
        %v6023 = vmul.f32 %v4329, %v4329
        %v6024 = vmul.f32 %v4331, %v4331
        %v6025 = vmul.f32 %v4682, %v4682
        %v6026 = vmul.f32 %v4684, %v4684
        %v6027 = vmul.f32 %v5035, %v5035
        %v6028 = vmul.f32 %v5037, %v5037
        %v6029 = vmul.f32 %v3980, %v3980
        %v6030 = vmul.f32 %v3982, %v3982
        %v6031 = vmul.f32 %v4333, %v4333
        %v6032 = vmul.f32 %v4335, %v4335
        %v6033 = vmul.f32 %v4686, %v4686
        %v6034 = vmul.f32 %v4688, %v4688
        %v6035 = vmul.f32 %v5039, %v5039
        %v6036 = vmul.f32 %v5041, %v5041
        %v6037 = vmul.f32 %v3986, %v3986
        %v6038 = vmul.f32 %v3988, %v3988
        %v6039 = vmul.f32 %v4339, %v4339
        %v6040 = vmul.f32 %v4341, %v4341
        %v6041 = vmul.f32 %v4692, %v4692
        %v6042 = vmul.f32 %v4694, %v4694
        %v6043 = vmul.f32 %v5045, %v5045
        %v6044 = vmul.f32 %v5047, %v5047
        %v6045 = vmul.f32 %v3990, %v3990
        %v6046 = vmul.f32 %v3992, %v3992
        %v6047 = vmul.f32 %v4343, %v4343
        %v6048 = vmul.f32 %v4345, %v4345
        %v6049 = vmul.f32 %v4696, %v4696
        %v6050 = vmul.f32 %v4698, %v4698
        %v6051 = vmul.f32 %v5049, %v5049
        %v6052 = vmul.f32 %v5051, %v5051
        %v6053 = vmul.f32 %v3996, %v3996
        %v6054 = vmul.f32 %v3998, %v3998
        %v6055 = vmul.f32 %v4349, %v4349
        %v6056 = vmul.f32 %v4351, %v4351
        %v6057 = vmul.f32 %v4702, %v4702
        %v6058 = vmul.f32 %v4704, %v4704
        %v6059 = vmul.f32 %v5055, %v5055
        %v6060 = vmul.f32 %v5057, %v5057
        %v6061 = vmul.f32 %v4000, %v4000
        %v6062 = vmul.f32 %v4002, %v4002
        %v6063 = vmul.f32 %v4353, %v4353
        %v6064 = vmul.f32 %v4355, %v4355
        %v6065 = vmul.f32 %v4706, %v4706
        %v6066 = vmul.f32 %v4708, %v4708
        %v6067 = vmul.f32 %v5059, %v5059
        %v6068 = vmul.f32 %v5061, %v5061
        %v6069 = vmul.f32 %v4006, %v4006
        %v6070 = vmul.f32 %v4008, %v4008
        %v6071 = vmul.f32 %v4359, %v4359
        %v6072 = vmul.f32 %v4361, %v4361
        %v6073 = vmul.f32 %v4712, %v4712
        %v6074 = vmul.f32 %v4714, %v4714
        %v6075 = vmul.f32 %v5065, %v5065
        %v6076 = vmul.f32 %v5067, %v5067
        %v6077 = vmul.f32 %v4010, %v4010
        %v6078 = vmul.f32 %v4012, %v4012
        %v6079 = vmul.f32 %v4363, %v4363
        %v6080 = vmul.f32 %v4365, %v4365
        %v6081 = vmul.f32 %v4716, %v4716
        %v6082 = vmul.f32 %v4718, %v4718
        %v6083 = vmul.f32 %v5069, %v5069
        %v6084 = vmul.f32 %v5071, %v5071
        %v6085 = vmul.f32 %v4016, %v4016
        %v6086 = vmul.f32 %v4018, %v4018
        %v6087 = vmul.f32 %v4369, %v4369
        %v6088 = vmul.f32 %v4371, %v4371
        %v6089 = vmul.f32 %v4722, %v4722
        %v6090 = vmul.f32 %v4724, %v4724
        %v6091 = vmul.f32 %v5075, %v5075
        %v6092 = vmul.f32 %v5077, %v5077
        %v6093 = vmul.f32 %v4020, %v4020
        %v6094 = vmul.f32 %v4022, %v4022
        %v6095 = vmul.f32 %v4373, %v4373
        %v6096 = vmul.f32 %v4375, %v4375
        %v6097 = vmul.f32 %v4726, %v4726
        %v6098 = vmul.f32 %v4728, %v4728
        %v6099 = vmul.f32 %v5079, %v5079
        %v6100 = vmul.f32 %v5081, %v5081
        %v6101 = vmul.f32 %v4026, %v4026
        %v6102 = vmul.f32 %v4028, %v4028
        %v6103 = vmul.f32 %v4379, %v4379
        %v6104 = vmul.f32 %v4381, %v4381
        %v6105 = vmul.f32 %v4732, %v4732
        %v6106 = vmul.f32 %v4734, %v4734
        %v6107 = vmul.f32 %v5085, %v5085
        %v6108 = vmul.f32 %v5087, %v5087
        %v6109 = vmul.f32 %v4030, %v4030
        %v6110 = vmul.f32 %v4032, %v4032
        %v6111 = vmul.f32 %v4383, %v4383
        %v6112 = vmul.f32 %v4385, %v4385
        %v6113 = vmul.f32 %v4736, %v4736
        %v6114 = vmul.f32 %v4738, %v4738
        %v6115 = vmul.f32 %v5089, %v5089
        %v6116 = vmul.f32 %v5091, %v5091
        %v6117 = vmul.f32 %v4036, %v4036
        %v6118 = vmul.f32 %v4038, %v4038
        %v6119 = vmul.f32 %v4389, %v4389
        %v6120 = vmul.f32 %v4391, %v4391
        %v6121 = vmul.f32 %v4742, %v4742
        %v6122 = vmul.f32 %v4744, %v4744
        %v6123 = vmul.f32 %v5095, %v5095
        %v6124 = vmul.f32 %v5097, %v5097
        %v6125 = vmul.f32 %v4040, %v4040
        %v6126 = vmul.f32 %v4042, %v4042
        %v6127 = vmul.f32 %v4393, %v4393
        %v6128 = vmul.f32 %v4395, %v4395
        %v6129 = vmul.f32 %v4746, %v4746
        %v6130 = vmul.f32 %v4748, %v4748
        %v6131 = vmul.f32 %v5099, %v5099
        %v6132 = vmul.f32 %v5101, %v5101
        %v6133 = vmul.f32 %v4046, %v4046
        %v6134 = vmul.f32 %v4048, %v4048
        %v6135 = vmul.f32 %v4399, %v4399
        %v6136 = vmul.f32 %v4401, %v4401
        %v6137 = vmul.f32 %v4752, %v4752
        %v6138 = vmul.f32 %v4754, %v4754
        %v6139 = vmul.f32 %v5105, %v5105
        %v6140 = vmul.f32 %v5107, %v5107
        %v6141 = vmul.f32 %v4050, %v4050
        %v6142 = vmul.f32 %v4052, %v4052
        %v6143 = vmul.f32 %v4403, %v4403
        %v6144 = vmul.f32 %v4405, %v4405
        %v6145 = vmul.f32 %v4756, %v4756
        %v6146 = vmul.f32 %v4758, %v4758
        %v6147 = vmul.f32 %v5109, %v5109
        %v6148 = vmul.f32 %v5111, %v5111
        %v6149 = vmul.f32 %v4056, %v4056
        %v6150 = vmul.f32 %v4058, %v4058
        %v6151 = vmul.f32 %v4409, %v4409
        %v6152 = vmul.f32 %v4411, %v4411
        %v6153 = vmul.f32 %v4762, %v4762
        %v6154 = vmul.f32 %v4764, %v4764
        %v6155 = vmul.f32 %v5115, %v5115
        %v6156 = vmul.f32 %v5117, %v5117
        %v6157 = vmul.f32 %v4060, %v4060
        %v6158 = vmul.f32 %v4062, %v4062
        %v6159 = vmul.f32 %v4413, %v4413
        %v6160 = vmul.f32 %v4415, %v4415
        %v6161 = vmul.f32 %v4766, %v4766
        %v6162 = vmul.f32 %v4768, %v4768
        %v6163 = vmul.f32 %v5119, %v5119
        %v6164 = vmul.f32 %v5121, %v5121
        %v6165 = vmul.f32 %v4066, %v4066
        %v6166 = vmul.f32 %v4068, %v4068
        %v6167 = vmul.f32 %v4419, %v4419
        %v6168 = vmul.f32 %v4421, %v4421
        %v6169 = vmul.f32 %v4772, %v4772
        %v6170 = vmul.f32 %v4774, %v4774
        %v6171 = vmul.f32 %v5125, %v5125
        %v6172 = vmul.f32 %v5127, %v5127
        %v6173 = vmul.f32 %v4070, %v4070
        %v6174 = vmul.f32 %v4072, %v4072
        %v6175 = vmul.f32 %v4423, %v4423
        %v6176 = vmul.f32 %v4425, %v4425
        %v6177 = vmul.f32 %v4776, %v4776
        %v6178 = vmul.f32 %v4778, %v4778
        %v6179 = vmul.f32 %v5129, %v5129
        %v6180 = vmul.f32 %v5131, %v5131
        %v6181 = vmul.f32 %v4076, %v4076
        %v6182 = vmul.f32 %v4078, %v4078
        %v6183 = vmul.f32 %v4429, %v4429
        %v6184 = vmul.f32 %v4431, %v4431
        %v6185 = vmul.f32 %v4782, %v4782
        %v6186 = vmul.f32 %v4784, %v4784
        %v6187 = vmul.f32 %v5135, %v5135
        %v6188 = vmul.f32 %v5137, %v5137
        %v6189 = vmul.f32 %v4080, %v4080
        %v6190 = vmul.f32 %v4082, %v4082
        %v6191 = vmul.f32 %v4433, %v4433
        %v6192 = vmul.f32 %v4435, %v4435
        %v6193 = vmul.f32 %v4786, %v4786
        %v6194 = vmul.f32 %v4788, %v4788
        %v6195 = vmul.f32 %v5139, %v5139
        %v6196 = vmul.f32 %v5141, %v5141
        %v6197 = vmul.f32 %v4086, %v4086
        %v6198 = vmul.f32 %v4088, %v4088
        %v6199 = vmul.f32 %v4439, %v4439
        %v6200 = vmul.f32 %v4441, %v4441
        %v6201 = vmul.f32 %v4792, %v4792
        %v6202 = vmul.f32 %v4794, %v4794
        %v6203 = vmul.f32 %v5145, %v5145
        %v6204 = vmul.f32 %v5147, %v5147
        %v6205 = vmul.f32 %v4090, %v4090
        %v6206 = vmul.f32 %v4092, %v4092
        %v6207 = vmul.f32 %v4443, %v4443
        %v6208 = vmul.f32 %v4445, %v4445
        %v6209 = vmul.f32 %v4796, %v4796
        %v6210 = vmul.f32 %v4798, %v4798
        %v6211 = vmul.f32 %v5149, %v5149
        %v6212 = vmul.f32 %v5151, %v5151
        %v6213 = vmul.f32 %v4096, %v4096
        %v6214 = vmul.f32 %v4098, %v4098
        %v6215 = vmul.f32 %v4449, %v4449
        %v6216 = vmul.f32 %v4451, %v4451
        %v6217 = vmul.f32 %v4802, %v4802
        %v6218 = vmul.f32 %v4804, %v4804
        %v6219 = vmul.f32 %v5155, %v5155
        %v6220 = vmul.f32 %v5157, %v5157
        %v6221 = vmul.f32 %v4100, %v4100
        %v6222 = vmul.f32 %v4102, %v4102
        %v6223 = vmul.f32 %v4453, %v4453
        %v6224 = vmul.f32 %v4455, %v4455
        %v6225 = vmul.f32 %v4806, %v4806
        %v6226 = vmul.f32 %v4808, %v4808
        %v6227 = vmul.f32 %v5159, %v5159
        %v6228 = vmul.f32 %v5161, %v5161
        %v6229 = vmul.f32 %v4106, %v4106
        %v6230 = vmul.f32 %v4108, %v4108
        %v6231 = vmul.f32 %v4459, %v4459
        %v6232 = vmul.f32 %v4461, %v4461
        %v6233 = vmul.f32 %v4812, %v4812
        %v6234 = vmul.f32 %v4814, %v4814
        %v6235 = vmul.f32 %v5165, %v5165
        %v6236 = vmul.f32 %v5167, %v5167
        %v6237 = vmul.f32 %v4110, %v4110
        %v6238 = vmul.f32 %v4112, %v4112
        %v6239 = vmul.f32 %v4463, %v4463
        %v6240 = vmul.f32 %v4465, %v4465
        %v6241 = vmul.f32 %v4816, %v4816
        %v6242 = vmul.f32 %v4818, %v4818
        %v6243 = vmul.f32 %v5169, %v5169
        %v6244 = vmul.f32 %v5171, %v5171
        %v6245 = vmul.f32 %v4116, %v4116
        %v6246 = vmul.f32 %v4118, %v4118
        %v6247 = vmul.f32 %v4469, %v4469
        %v6248 = vmul.f32 %v4471, %v4471
        %v6249 = vmul.f32 %v4822, %v4822
        %v6250 = vmul.f32 %v4824, %v4824
        %v6251 = vmul.f32 %v5175, %v5175
        %v6252 = vmul.f32 %v5177, %v5177
        %v6253 = vmul.f32 %v4120, %v4120
        %v6254 = vmul.f32 %v4122, %v4122
        %v6255 = vmul.f32 %v4473, %v4473
        %v6256 = vmul.f32 %v4475, %v4475
        %v6257 = vmul.f32 %v4826, %v4826
        %v6258 = vmul.f32 %v4828, %v4828
        %v6259 = vmul.f32 %v5179, %v5179
        %v6260 = vmul.f32 %v5181, %v5181
        %v6261 = vmul.f32 %v4126, %v4126
        %v6262 = vmul.f32 %v4128, %v4128
        %v6263 = vmul.f32 %v4479, %v4479
        %v6264 = vmul.f32 %v4481, %v4481
        %v6265 = vmul.f32 %v4832, %v4832
        %v6266 = vmul.f32 %v4834, %v4834
        %v6267 = vmul.f32 %v5185, %v5185
        %v6268 = vmul.f32 %v5187, %v5187
        %v6269 = vmul.f32 %v4130, %v4130
        %v6270 = vmul.f32 %v4132, %v4132
        %v6271 = vmul.f32 %v4483, %v4483
        %v6272 = vmul.f32 %v4485, %v4485
        %v6273 = vmul.f32 %v4836, %v4836
        %v6274 = vmul.f32 %v4838, %v4838
        %v6275 = vmul.f32 %v5189, %v5189
        %v6276 = vmul.f32 %v5191, %v5191
        %v6277 = vadd.f32 %v5765, %v5773
        %v6278 = vadd.f32 %v6277, %v5781
        %v6279 = vadd.f32 %v6278, %v5789
        %v6280 = vadd.f32 %v6279, %v5797
        %v6281 = vadd.f32 %v6280, %v5805
        %v6282 = vadd.f32 %v6281, %v5813
        %v6283 = vadd.f32 %v6282, %v5821
        %v6284 = vadd.f32 %v6283, %v5829
        %v6285 = vadd.f32 %v6284, %v5837
        %v6286 = vadd.f32 %v6285, %v5845
        %v6287 = vadd.f32 %v6286, %v5853
        %v6288 = vadd.f32 %v6287, %v5861
        %v6289 = vadd.f32 %v6288, %v5869
        %v6290 = vadd.f32 %v6289, %v5877
        %v6291 = vadd.f32 %v6290, %v5885
        %v6292 = vadd.f32 %v6291, %v5893
        %v6293 = vadd.f32 %v6292, %v5901
        %v6294 = vadd.f32 %v6293, %v5909
        %v6295 = vadd.f32 %v6294, %v5917
        %v6296 = vadd.f32 %v6295, %v5925
        %v6297 = vadd.f32 %v6296, %v5933
        %v6298 = vadd.f32 %v6297, %v5941
        %v6299 = vadd.f32 %v6298, %v5949
        %v6300 = vadd.f32 %v6299, %v5957
        %v6301 = vadd.f32 %v6300, %v5965
        %v6302 = vadd.f32 %v6301, %v5973
        %v6303 = vadd.f32 %v6302, %v5981
        %v6304 = vadd.f32 %v6303, %v5989
        %v6305 = vadd.f32 %v6304, %v5997
        %v6306 = vadd.f32 %v6305, %v6005
        %v6307 = vadd.f32 %v6306, %v6013
        %v6308 = vadd.f32 %v6307, %v6021
        %v6309 = vadd.f32 %v6308, %v6029
        %v6310 = vadd.f32 %v6309, %v6037
        %v6311 = vadd.f32 %v6310, %v6045
        %v6312 = vadd.f32 %v6311, %v6053
        %v6313 = vadd.f32 %v6312, %v6061
        %v6314 = vadd.f32 %v6313, %v6069
        %v6315 = vadd.f32 %v6314, %v6077
        %v6316 = vadd.f32 %v6315, %v6085
        %v6317 = vadd.f32 %v6316, %v6093
        %v6318 = vadd.f32 %v6317, %v6101
        %v6319 = vadd.f32 %v6318, %v6109
        %v6320 = vadd.f32 %v6319, %v6117
        %v6321 = vadd.f32 %v6320, %v6125
        %v6322 = vadd.f32 %v6321, %v6133
        %v6323 = vadd.f32 %v6322, %v6141
        %v6324 = vadd.f32 %v6323, %v6149
        %v6325 = vadd.f32 %v6324, %v6157
        %v6326 = vadd.f32 %v6325, %v6165
        %v6327 = vadd.f32 %v6326, %v6173
        %v6328 = vadd.f32 %v6327, %v6181
        %v6329 = vadd.f32 %v6328, %v6189
        %v6330 = vadd.f32 %v6329, %v6197
        %v6331 = vadd.f32 %v6330, %v6205
        %v6332 = vadd.f32 %v6331, %v6213
        %v6333 = vadd.f32 %v6332, %v6221
        %v6334 = vadd.f32 %v6333, %v6229
        %v6335 = vadd.f32 %v6334, %v6237
        %v6336 = vadd.f32 %v6335, %v6245
        %v6337 = vadd.f32 %v6336, %v6253
        %v6338 = vadd.f32 %v6337, %v6261
        %v6339 = vadd.f32 %v6338, %v6269
        %v6340 = vrot.slane %v6339, 4
        %v6341 = vadd.f32 %v6339, %v6340
        %v6342 = vrot.slane %v6341, 2
        %v6343 = vadd.f32 %v6341, %v6342
        %v6344 = vrot.slane %v6343, 1
        %v6345 = vadd.f32 %v6343, %v6344
        %v6346 = vadd.f32 %v5766, %v5774
        %v6347 = vadd.f32 %v6346, %v5782
        %v6348 = vadd.f32 %v6347, %v5790
        %v6349 = vadd.f32 %v6348, %v5798
        %v6350 = vadd.f32 %v6349, %v5806
        %v6351 = vadd.f32 %v6350, %v5814
        %v6352 = vadd.f32 %v6351, %v5822
        %v6353 = vadd.f32 %v6352, %v5830
        %v6354 = vadd.f32 %v6353, %v5838
        %v6355 = vadd.f32 %v6354, %v5846
        %v6356 = vadd.f32 %v6355, %v5854
        %v6357 = vadd.f32 %v6356, %v5862
        %v6358 = vadd.f32 %v6357, %v5870
        %v6359 = vadd.f32 %v6358, %v5878
        %v6360 = vadd.f32 %v6359, %v5886
        %v6361 = vadd.f32 %v6360, %v5894
        %v6362 = vadd.f32 %v6361, %v5902
        %v6363 = vadd.f32 %v6362, %v5910
        %v6364 = vadd.f32 %v6363, %v5918
        %v6365 = vadd.f32 %v6364, %v5926
        %v6366 = vadd.f32 %v6365, %v5934
        %v6367 = vadd.f32 %v6366, %v5942
        %v6368 = vadd.f32 %v6367, %v5950
        %v6369 = vadd.f32 %v6368, %v5958
        %v6370 = vadd.f32 %v6369, %v5966
        %v6371 = vadd.f32 %v6370, %v5974
        %v6372 = vadd.f32 %v6371, %v5982
        %v6373 = vadd.f32 %v6372, %v5990
        %v6374 = vadd.f32 %v6373, %v5998
        %v6375 = vadd.f32 %v6374, %v6006
        %v6376 = vadd.f32 %v6375, %v6014
        %v6377 = vadd.f32 %v6376, %v6022
        %v6378 = vadd.f32 %v6377, %v6030
        %v6379 = vadd.f32 %v6378, %v6038
        %v6380 = vadd.f32 %v6379, %v6046
        %v6381 = vadd.f32 %v6380, %v6054
        %v6382 = vadd.f32 %v6381, %v6062
        %v6383 = vadd.f32 %v6382, %v6070
        %v6384 = vadd.f32 %v6383, %v6078
        %v6385 = vadd.f32 %v6384, %v6086
        %v6386 = vadd.f32 %v6385, %v6094
        %v6387 = vadd.f32 %v6386, %v6102
        %v6388 = vadd.f32 %v6387, %v6110
        %v6389 = vadd.f32 %v6388, %v6118
        %v6390 = vadd.f32 %v6389, %v6126
        %v6391 = vadd.f32 %v6390, %v6134
        %v6392 = vadd.f32 %v6391, %v6142
        %v6393 = vadd.f32 %v6392, %v6150
        %v6394 = vadd.f32 %v6393, %v6158
        %v6395 = vadd.f32 %v6394, %v6166
        %v6396 = vadd.f32 %v6395, %v6174
        %v6397 = vadd.f32 %v6396, %v6182
        %v6398 = vadd.f32 %v6397, %v6190
        %v6399 = vadd.f32 %v6398, %v6198
        %v6400 = vadd.f32 %v6399, %v6206
        %v6401 = vadd.f32 %v6400, %v6214
        %v6402 = vadd.f32 %v6401, %v6222
        %v6403 = vadd.f32 %v6402, %v6230
        %v6404 = vadd.f32 %v6403, %v6238
        %v6405 = vadd.f32 %v6404, %v6246
        %v6406 = vadd.f32 %v6405, %v6254
        %v6407 = vadd.f32 %v6406, %v6262
        %v6408 = vadd.f32 %v6407, %v6270
        %v6409 = vrot.slane %v6408, 4
        %v6410 = vadd.f32 %v6408, %v6409
        %v6411 = vrot.slane %v6410, 2
        %v6412 = vadd.f32 %v6410, %v6411
        %v6413 = vrot.slane %v6412, 1
        %v6414 = vadd.f32 %v6412, %v6413
        %v6415 = vadd.f32 %v5767, %v5775
        %v6416 = vadd.f32 %v6415, %v5783
        %v6417 = vadd.f32 %v6416, %v5791
        %v6418 = vadd.f32 %v6417, %v5799
        %v6419 = vadd.f32 %v6418, %v5807
        %v6420 = vadd.f32 %v6419, %v5815
        %v6421 = vadd.f32 %v6420, %v5823
        %v6422 = vadd.f32 %v6421, %v5831
        %v6423 = vadd.f32 %v6422, %v5839
        %v6424 = vadd.f32 %v6423, %v5847
        %v6425 = vadd.f32 %v6424, %v5855
        %v6426 = vadd.f32 %v6425, %v5863
        %v6427 = vadd.f32 %v6426, %v5871
        %v6428 = vadd.f32 %v6427, %v5879
        %v6429 = vadd.f32 %v6428, %v5887
        %v6430 = vadd.f32 %v6429, %v5895
        %v6431 = vadd.f32 %v6430, %v5903
        %v6432 = vadd.f32 %v6431, %v5911
        %v6433 = vadd.f32 %v6432, %v5919
        %v6434 = vadd.f32 %v6433, %v5927
        %v6435 = vadd.f32 %v6434, %v5935
        %v6436 = vadd.f32 %v6435, %v5943
        %v6437 = vadd.f32 %v6436, %v5951
        %v6438 = vadd.f32 %v6437, %v5959
        %v6439 = vadd.f32 %v6438, %v5967
        %v6440 = vadd.f32 %v6439, %v5975
        %v6441 = vadd.f32 %v6440, %v5983
        %v6442 = vadd.f32 %v6441, %v5991
        %v6443 = vadd.f32 %v6442, %v5999
        %v6444 = vadd.f32 %v6443, %v6007
        %v6445 = vadd.f32 %v6444, %v6015
        %v6446 = vadd.f32 %v6445, %v6023
        %v6447 = vadd.f32 %v6446, %v6031
        %v6448 = vadd.f32 %v6447, %v6039
        %v6449 = vadd.f32 %v6448, %v6047
        %v6450 = vadd.f32 %v6449, %v6055
        %v6451 = vadd.f32 %v6450, %v6063
        %v6452 = vadd.f32 %v6451, %v6071
        %v6453 = vadd.f32 %v6452, %v6079
        %v6454 = vadd.f32 %v6453, %v6087
        %v6455 = vadd.f32 %v6454, %v6095
        %v6456 = vadd.f32 %v6455, %v6103
        %v6457 = vadd.f32 %v6456, %v6111
        %v6458 = vadd.f32 %v6457, %v6119
        %v6459 = vadd.f32 %v6458, %v6127
        %v6460 = vadd.f32 %v6459, %v6135
        %v6461 = vadd.f32 %v6460, %v6143
        %v6462 = vadd.f32 %v6461, %v6151
        %v6463 = vadd.f32 %v6462, %v6159
        %v6464 = vadd.f32 %v6463, %v6167
        %v6465 = vadd.f32 %v6464, %v6175
        %v6466 = vadd.f32 %v6465, %v6183
        %v6467 = vadd.f32 %v6466, %v6191
        %v6468 = vadd.f32 %v6467, %v6199
        %v6469 = vadd.f32 %v6468, %v6207
        %v6470 = vadd.f32 %v6469, %v6215
        %v6471 = vadd.f32 %v6470, %v6223
        %v6472 = vadd.f32 %v6471, %v6231
        %v6473 = vadd.f32 %v6472, %v6239
        %v6474 = vadd.f32 %v6473, %v6247
        %v6475 = vadd.f32 %v6474, %v6255
        %v6476 = vadd.f32 %v6475, %v6263
        %v6477 = vadd.f32 %v6476, %v6271
        %v6478 = vrot.slane %v6477, 4
        %v6479 = vadd.f32 %v6477, %v6478
        %v6480 = vrot.slane %v6479, 2
        %v6481 = vadd.f32 %v6479, %v6480
        %v6482 = vrot.slane %v6481, 1
        %v6483 = vadd.f32 %v6481, %v6482
        %v6484 = vadd.f32 %v5768, %v5776
        %v6485 = vadd.f32 %v6484, %v5784
        %v6486 = vadd.f32 %v6485, %v5792
        %v6487 = vadd.f32 %v6486, %v5800
        %v6488 = vadd.f32 %v6487, %v5808
        %v6489 = vadd.f32 %v6488, %v5816
        %v6490 = vadd.f32 %v6489, %v5824
        %v6491 = vadd.f32 %v6490, %v5832
        %v6492 = vadd.f32 %v6491, %v5840
        %v6493 = vadd.f32 %v6492, %v5848
        %v6494 = vadd.f32 %v6493, %v5856
        %v6495 = vadd.f32 %v6494, %v5864
        %v6496 = vadd.f32 %v6495, %v5872
        %v6497 = vadd.f32 %v6496, %v5880
        %v6498 = vadd.f32 %v6497, %v5888
        %v6499 = vadd.f32 %v6498, %v5896
        %v6500 = vadd.f32 %v6499, %v5904
        %v6501 = vadd.f32 %v6500, %v5912
        %v6502 = vadd.f32 %v6501, %v5920
        %v6503 = vadd.f32 %v6502, %v5928
        %v6504 = vadd.f32 %v6503, %v5936
        %v6505 = vadd.f32 %v6504, %v5944
        %v6506 = vadd.f32 %v6505, %v5952
        %v6507 = vadd.f32 %v6506, %v5960
        %v6508 = vadd.f32 %v6507, %v5968
        %v6509 = vadd.f32 %v6508, %v5976
        %v6510 = vadd.f32 %v6509, %v5984
        %v6511 = vadd.f32 %v6510, %v5992
        %v6512 = vadd.f32 %v6511, %v6000
        %v6513 = vadd.f32 %v6512, %v6008
        %v6514 = vadd.f32 %v6513, %v6016
        %v6515 = vadd.f32 %v6514, %v6024
        %v6516 = vadd.f32 %v6515, %v6032
        %v6517 = vadd.f32 %v6516, %v6040
        %v6518 = vadd.f32 %v6517, %v6048
        %v6519 = vadd.f32 %v6518, %v6056
        %v6520 = vadd.f32 %v6519, %v6064
        %v6521 = vadd.f32 %v6520, %v6072
        %v6522 = vadd.f32 %v6521, %v6080
        %v6523 = vadd.f32 %v6522, %v6088
        %v6524 = vadd.f32 %v6523, %v6096
        %v6525 = vadd.f32 %v6524, %v6104
        %v6526 = vadd.f32 %v6525, %v6112
        %v6527 = vadd.f32 %v6526, %v6120
        %v6528 = vadd.f32 %v6527, %v6128
        %v6529 = vadd.f32 %v6528, %v6136
        %v6530 = vadd.f32 %v6529, %v6144
        %v6531 = vadd.f32 %v6530, %v6152
        %v6532 = vadd.f32 %v6531, %v6160
        %v6533 = vadd.f32 %v6532, %v6168
        %v6534 = vadd.f32 %v6533, %v6176
        %v6535 = vadd.f32 %v6534, %v6184
        %v6536 = vadd.f32 %v6535, %v6192
        %v6537 = vadd.f32 %v6536, %v6200
        %v6538 = vadd.f32 %v6537, %v6208
        %v6539 = vadd.f32 %v6538, %v6216
        %v6540 = vadd.f32 %v6539, %v6224
        %v6541 = vadd.f32 %v6540, %v6232
        %v6542 = vadd.f32 %v6541, %v6240
        %v6543 = vadd.f32 %v6542, %v6248
        %v6544 = vadd.f32 %v6543, %v6256
        %v6545 = vadd.f32 %v6544, %v6264
        %v6546 = vadd.f32 %v6545, %v6272
        %v6547 = vrot.slane %v6546, 4
        %v6548 = vadd.f32 %v6546, %v6547
        %v6549 = vrot.slane %v6548, 2
        %v6550 = vadd.f32 %v6548, %v6549
        %v6551 = vrot.slane %v6550, 1
        %v6552 = vadd.f32 %v6550, %v6551
        %v6553 = vadd.f32 %v5769, %v5777
        %v6554 = vadd.f32 %v6553, %v5785
        %v6555 = vadd.f32 %v6554, %v5793
        %v6556 = vadd.f32 %v6555, %v5801
        %v6557 = vadd.f32 %v6556, %v5809
        %v6558 = vadd.f32 %v6557, %v5817
        %v6559 = vadd.f32 %v6558, %v5825
        %v6560 = vadd.f32 %v6559, %v5833
        %v6561 = vadd.f32 %v6560, %v5841
        %v6562 = vadd.f32 %v6561, %v5849
        %v6563 = vadd.f32 %v6562, %v5857
        %v6564 = vadd.f32 %v6563, %v5865
        %v6565 = vadd.f32 %v6564, %v5873
        %v6566 = vadd.f32 %v6565, %v5881
        %v6567 = vadd.f32 %v6566, %v5889
        %v6568 = vadd.f32 %v6567, %v5897
        %v6569 = vadd.f32 %v6568, %v5905
        %v6570 = vadd.f32 %v6569, %v5913
        %v6571 = vadd.f32 %v6570, %v5921
        %v6572 = vadd.f32 %v6571, %v5929
        %v6573 = vadd.f32 %v6572, %v5937
        %v6574 = vadd.f32 %v6573, %v5945
        %v6575 = vadd.f32 %v6574, %v5953
        %v6576 = vadd.f32 %v6575, %v5961
        %v6577 = vadd.f32 %v6576, %v5969
        %v6578 = vadd.f32 %v6577, %v5977
        %v6579 = vadd.f32 %v6578, %v5985
        %v6580 = vadd.f32 %v6579, %v5993
        %v6581 = vadd.f32 %v6580, %v6001
        %v6582 = vadd.f32 %v6581, %v6009
        %v6583 = vadd.f32 %v6582, %v6017
        %v6584 = vadd.f32 %v6583, %v6025
        %v6585 = vadd.f32 %v6584, %v6033
        %v6586 = vadd.f32 %v6585, %v6041
        %v6587 = vadd.f32 %v6586, %v6049
        %v6588 = vadd.f32 %v6587, %v6057
        %v6589 = vadd.f32 %v6588, %v6065
        %v6590 = vadd.f32 %v6589, %v6073
        %v6591 = vadd.f32 %v6590, %v6081
        %v6592 = vadd.f32 %v6591, %v6089
        %v6593 = vadd.f32 %v6592, %v6097
        %v6594 = vadd.f32 %v6593, %v6105
        %v6595 = vadd.f32 %v6594, %v6113
        %v6596 = vadd.f32 %v6595, %v6121
        %v6597 = vadd.f32 %v6596, %v6129
        %v6598 = vadd.f32 %v6597, %v6137
        %v6599 = vadd.f32 %v6598, %v6145
        %v6600 = vadd.f32 %v6599, %v6153
        %v6601 = vadd.f32 %v6600, %v6161
        %v6602 = vadd.f32 %v6601, %v6169
        %v6603 = vadd.f32 %v6602, %v6177
        %v6604 = vadd.f32 %v6603, %v6185
        %v6605 = vadd.f32 %v6604, %v6193
        %v6606 = vadd.f32 %v6605, %v6201
        %v6607 = vadd.f32 %v6606, %v6209
        %v6608 = vadd.f32 %v6607, %v6217
        %v6609 = vadd.f32 %v6608, %v6225
        %v6610 = vadd.f32 %v6609, %v6233
        %v6611 = vadd.f32 %v6610, %v6241
        %v6612 = vadd.f32 %v6611, %v6249
        %v6613 = vadd.f32 %v6612, %v6257
        %v6614 = vadd.f32 %v6613, %v6265
        %v6615 = vadd.f32 %v6614, %v6273
        %v6616 = vrot.slane %v6615, 4
        %v6617 = vadd.f32 %v6615, %v6616
        %v6618 = vrot.slane %v6617, 2
        %v6619 = vadd.f32 %v6617, %v6618
        %v6620 = vrot.slane %v6619, 1
        %v6621 = vadd.f32 %v6619, %v6620
        %v6622 = vadd.f32 %v5770, %v5778
        %v6623 = vadd.f32 %v6622, %v5786
        %v6624 = vadd.f32 %v6623, %v5794
        %v6625 = vadd.f32 %v6624, %v5802
        %v6626 = vadd.f32 %v6625, %v5810
        %v6627 = vadd.f32 %v6626, %v5818
        %v6628 = vadd.f32 %v6627, %v5826
        %v6629 = vadd.f32 %v6628, %v5834
        %v6630 = vadd.f32 %v6629, %v5842
        %v6631 = vadd.f32 %v6630, %v5850
        %v6632 = vadd.f32 %v6631, %v5858
        %v6633 = vadd.f32 %v6632, %v5866
        %v6634 = vadd.f32 %v6633, %v5874
        %v6635 = vadd.f32 %v6634, %v5882
        %v6636 = vadd.f32 %v6635, %v5890
        %v6637 = vadd.f32 %v6636, %v5898
        %v6638 = vadd.f32 %v6637, %v5906
        %v6639 = vadd.f32 %v6638, %v5914
        %v6640 = vadd.f32 %v6639, %v5922
        %v6641 = vadd.f32 %v6640, %v5930
        %v6642 = vadd.f32 %v6641, %v5938
        %v6643 = vadd.f32 %v6642, %v5946
        %v6644 = vadd.f32 %v6643, %v5954
        %v6645 = vadd.f32 %v6644, %v5962
        %v6646 = vadd.f32 %v6645, %v5970
        %v6647 = vadd.f32 %v6646, %v5978
        %v6648 = vadd.f32 %v6647, %v5986
        %v6649 = vadd.f32 %v6648, %v5994
        %v6650 = vadd.f32 %v6649, %v6002
        %v6651 = vadd.f32 %v6650, %v6010
        %v6652 = vadd.f32 %v6651, %v6018
        %v6653 = vadd.f32 %v6652, %v6026
        %v6654 = vadd.f32 %v6653, %v6034
        %v6655 = vadd.f32 %v6654, %v6042
        %v6656 = vadd.f32 %v6655, %v6050
        %v6657 = vadd.f32 %v6656, %v6058
        %v6658 = vadd.f32 %v6657, %v6066
        %v6659 = vadd.f32 %v6658, %v6074
        %v6660 = vadd.f32 %v6659, %v6082
        %v6661 = vadd.f32 %v6660, %v6090
        %v6662 = vadd.f32 %v6661, %v6098
        %v6663 = vadd.f32 %v6662, %v6106
        %v6664 = vadd.f32 %v6663, %v6114
        %v6665 = vadd.f32 %v6664, %v6122
        %v6666 = vadd.f32 %v6665, %v6130
        %v6667 = vadd.f32 %v6666, %v6138
        %v6668 = vadd.f32 %v6667, %v6146
        %v6669 = vadd.f32 %v6668, %v6154
        %v6670 = vadd.f32 %v6669, %v6162
        %v6671 = vadd.f32 %v6670, %v6170
        %v6672 = vadd.f32 %v6671, %v6178
        %v6673 = vadd.f32 %v6672, %v6186
        %v6674 = vadd.f32 %v6673, %v6194
        %v6675 = vadd.f32 %v6674, %v6202
        %v6676 = vadd.f32 %v6675, %v6210
        %v6677 = vadd.f32 %v6676, %v6218
        %v6678 = vadd.f32 %v6677, %v6226
        %v6679 = vadd.f32 %v6678, %v6234
        %v6680 = vadd.f32 %v6679, %v6242
        %v6681 = vadd.f32 %v6680, %v6250
        %v6682 = vadd.f32 %v6681, %v6258
        %v6683 = vadd.f32 %v6682, %v6266
        %v6684 = vadd.f32 %v6683, %v6274
        %v6685 = vrot.slane %v6684, 4
        %v6686 = vadd.f32 %v6684, %v6685
        %v6687 = vrot.slane %v6686, 2
        %v6688 = vadd.f32 %v6686, %v6687
        %v6689 = vrot.slane %v6688, 1
        %v6690 = vadd.f32 %v6688, %v6689
        %v6691 = vadd.f32 %v5771, %v5779
        %v6692 = vadd.f32 %v6691, %v5787
        %v6693 = vadd.f32 %v6692, %v5795
        %v6694 = vadd.f32 %v6693, %v5803
        %v6695 = vadd.f32 %v6694, %v5811
        %v6696 = vadd.f32 %v6695, %v5819
        %v6697 = vadd.f32 %v6696, %v5827
        %v6698 = vadd.f32 %v6697, %v5835
        %v6699 = vadd.f32 %v6698, %v5843
        %v6700 = vadd.f32 %v6699, %v5851
        %v6701 = vadd.f32 %v6700, %v5859
        %v6702 = vadd.f32 %v6701, %v5867
        %v6703 = vadd.f32 %v6702, %v5875
        %v6704 = vadd.f32 %v6703, %v5883
        %v6705 = vadd.f32 %v6704, %v5891
        %v6706 = vadd.f32 %v6705, %v5899
        %v6707 = vadd.f32 %v6706, %v5907
        %v6708 = vadd.f32 %v6707, %v5915
        %v6709 = vadd.f32 %v6708, %v5923
        %v6710 = vadd.f32 %v6709, %v5931
        %v6711 = vadd.f32 %v6710, %v5939
        %v6712 = vadd.f32 %v6711, %v5947
        %v6713 = vadd.f32 %v6712, %v5955
        %v6714 = vadd.f32 %v6713, %v5963
        %v6715 = vadd.f32 %v6714, %v5971
        %v6716 = vadd.f32 %v6715, %v5979
        %v6717 = vadd.f32 %v6716, %v5987
        %v6718 = vadd.f32 %v6717, %v5995
        %v6719 = vadd.f32 %v6718, %v6003
        %v6720 = vadd.f32 %v6719, %v6011
        %v6721 = vadd.f32 %v6720, %v6019
        %v6722 = vadd.f32 %v6721, %v6027
        %v6723 = vadd.f32 %v6722, %v6035
        %v6724 = vadd.f32 %v6723, %v6043
        %v6725 = vadd.f32 %v6724, %v6051
        %v6726 = vadd.f32 %v6725, %v6059
        %v6727 = vadd.f32 %v6726, %v6067
        %v6728 = vadd.f32 %v6727, %v6075
        %v6729 = vadd.f32 %v6728, %v6083
        %v6730 = vadd.f32 %v6729, %v6091
        %v6731 = vadd.f32 %v6730, %v6099
        %v6732 = vadd.f32 %v6731, %v6107
        %v6733 = vadd.f32 %v6732, %v6115
        %v6734 = vadd.f32 %v6733, %v6123
        %v6735 = vadd.f32 %v6734, %v6131
        %v6736 = vadd.f32 %v6735, %v6139
        %v6737 = vadd.f32 %v6736, %v6147
        %v6738 = vadd.f32 %v6737, %v6155
        %v6739 = vadd.f32 %v6738, %v6163
        %v6740 = vadd.f32 %v6739, %v6171
        %v6741 = vadd.f32 %v6740, %v6179
        %v6742 = vadd.f32 %v6741, %v6187
        %v6743 = vadd.f32 %v6742, %v6195
        %v6744 = vadd.f32 %v6743, %v6203
        %v6745 = vadd.f32 %v6744, %v6211
        %v6746 = vadd.f32 %v6745, %v6219
        %v6747 = vadd.f32 %v6746, %v6227
        %v6748 = vadd.f32 %v6747, %v6235
        %v6749 = vadd.f32 %v6748, %v6243
        %v6750 = vadd.f32 %v6749, %v6251
        %v6751 = vadd.f32 %v6750, %v6259
        %v6752 = vadd.f32 %v6751, %v6267
        %v6753 = vadd.f32 %v6752, %v6275
        %v6754 = vrot.slane %v6753, 4
        %v6755 = vadd.f32 %v6753, %v6754
        %v6756 = vrot.slane %v6755, 2
        %v6757 = vadd.f32 %v6755, %v6756
        %v6758 = vrot.slane %v6757, 1
        %v6759 = vadd.f32 %v6757, %v6758
        %v6760 = vadd.f32 %v5772, %v5780
        %v6761 = vadd.f32 %v6760, %v5788
        %v6762 = vadd.f32 %v6761, %v5796
        %v6763 = vadd.f32 %v6762, %v5804
        %v6764 = vadd.f32 %v6763, %v5812
        %v6765 = vadd.f32 %v6764, %v5820
        %v6766 = vadd.f32 %v6765, %v5828
        %v6767 = vadd.f32 %v6766, %v5836
        %v6768 = vadd.f32 %v6767, %v5844
        %v6769 = vadd.f32 %v6768, %v5852
        %v6770 = vadd.f32 %v6769, %v5860
        %v6771 = vadd.f32 %v6770, %v5868
        %v6772 = vadd.f32 %v6771, %v5876
        %v6773 = vadd.f32 %v6772, %v5884
        %v6774 = vadd.f32 %v6773, %v5892
        %v6775 = vadd.f32 %v6774, %v5900
        %v6776 = vadd.f32 %v6775, %v5908
        %v6777 = vadd.f32 %v6776, %v5916
        %v6778 = vadd.f32 %v6777, %v5924
        %v6779 = vadd.f32 %v6778, %v5932
        %v6780 = vadd.f32 %v6779, %v5940
        %v6781 = vadd.f32 %v6780, %v5948
        %v6782 = vadd.f32 %v6781, %v5956
        %v6783 = vadd.f32 %v6782, %v5964
        %v6784 = vadd.f32 %v6783, %v5972
        %v6785 = vadd.f32 %v6784, %v5980
        %v6786 = vadd.f32 %v6785, %v5988
        %v6787 = vadd.f32 %v6786, %v5996
        %v6788 = vadd.f32 %v6787, %v6004
        %v6789 = vadd.f32 %v6788, %v6012
        %v6790 = vadd.f32 %v6789, %v6020
        %v6791 = vadd.f32 %v6790, %v6028
        %v6792 = vadd.f32 %v6791, %v6036
        %v6793 = vadd.f32 %v6792, %v6044
        %v6794 = vadd.f32 %v6793, %v6052
        %v6795 = vadd.f32 %v6794, %v6060
        %v6796 = vadd.f32 %v6795, %v6068
        %v6797 = vadd.f32 %v6796, %v6076
        %v6798 = vadd.f32 %v6797, %v6084
        %v6799 = vadd.f32 %v6798, %v6092
        %v6800 = vadd.f32 %v6799, %v6100
        %v6801 = vadd.f32 %v6800, %v6108
        %v6802 = vadd.f32 %v6801, %v6116
        %v6803 = vadd.f32 %v6802, %v6124
        %v6804 = vadd.f32 %v6803, %v6132
        %v6805 = vadd.f32 %v6804, %v6140
        %v6806 = vadd.f32 %v6805, %v6148
        %v6807 = vadd.f32 %v6806, %v6156
        %v6808 = vadd.f32 %v6807, %v6164
        %v6809 = vadd.f32 %v6808, %v6172
        %v6810 = vadd.f32 %v6809, %v6180
        %v6811 = vadd.f32 %v6810, %v6188
        %v6812 = vadd.f32 %v6811, %v6196
        %v6813 = vadd.f32 %v6812, %v6204
        %v6814 = vadd.f32 %v6813, %v6212
        %v6815 = vadd.f32 %v6814, %v6220
        %v6816 = vadd.f32 %v6815, %v6228
        %v6817 = vadd.f32 %v6816, %v6236
        %v6818 = vadd.f32 %v6817, %v6244
        %v6819 = vadd.f32 %v6818, %v6252
        %v6820 = vadd.f32 %v6819, %v6260
        %v6821 = vadd.f32 %v6820, %v6268
        %v6822 = vadd.f32 %v6821, %v6276
        %v6823 = vrot.slane %v6822, 4
        %v6824 = vadd.f32 %v6822, %v6823
        %v6825 = vrot.slane %v6824, 2
        %v6826 = vadd.f32 %v6824, %v6825
        %v6827 = vrot.slane %v6826, 1
        %v6828 = vadd.f32 %v6826, %v6827
        %v6829 = vmul.f32 %v6345, %v5756
        %v6830 = vmul.f32 %v6414, %v5756
        %v6831 = vmul.f32 %v6483, %v5756
        %v6832 = vmul.f32 %v6552, %v5756
        %v6833 = vmul.f32 %v6621, %v5756
        %v6834 = vmul.f32 %v6690, %v5756
        %v6835 = vmul.f32 %v6759, %v5756
        %v6836 = vmul.f32 %v6828, %v5756
        %v6837 = vmul.f32 %v5757, %v5757
        %v6838 = vmul.f32 %v5758, %v5758
        %v6839 = vmul.f32 %v5759, %v5759
        %v6840 = vmul.f32 %v5760, %v5760
        %v6841 = vmul.f32 %v5761, %v5761
        %v6842 = vmul.f32 %v5762, %v5762
        %v6843 = vmul.f32 %v5763, %v5763
        %v6844 = vmul.f32 %v5764, %v5764
        %v6845 = vsub.f32 %v6829, %v6837
        %v6846 = vsub.f32 %v6830, %v6838
        %v6847 = vsub.f32 %v6831, %v6839
        %v6848 = vsub.f32 %v6832, %v6840
        %v6849 = vsub.f32 %v6833, %v6841
        %v6850 = vsub.f32 %v6834, %v6842
        %v6851 = vsub.f32 %v6835, %v6843
        %v6852 = vsub.f32 %v6836, %v6844
        %v6853 = vmax.f32 %v6845, 0.0
        %v6854 = vmax.f32 %v6846, 0.0
        %v6855 = vmax.f32 %v6847, 0.0
        %v6856 = vmax.f32 %v6848, 0.0
        %v6857 = vmax.f32 %v6849, 0.0
        %v6858 = vmax.f32 %v6850, 0.0
        %v6859 = vmax.f32 %v6851, 0.0
        %v6860 = vmax.f32 %v6852, 0.0
        %v6861 = vadd.f32 %v6853, 1e-05
        %v6862 = vadd.f32 %v6854, 1e-05
        %v6863 = vadd.f32 %v6855, 1e-05
        %v6864 = vadd.f32 %v6856, 1e-05
        %v6865 = vadd.f32 %v6857, 1e-05
        %v6866 = vadd.f32 %v6858, 1e-05
        %v6867 = vadd.f32 %v6859, 1e-05
        %v6868 = vadd.f32 %v6860, 1e-05
        %v6869 = vrsqrt.pop %v6861
        %v6870 = vrsqrt.pop %v6862
        %v6871 = vrsqrt.pop %v6863
        %v6872 = vrsqrt.pop %v6864
        %v6873 = vrsqrt.pop %v6865
        %v6874 = vrsqrt.pop %v6866
        %v6875 = vrsqrt.pop %v6867
        %v6876 = vrsqrt.pop %v6868
        %v6885 = vcombine.low %v6869, %v6870
        %v6886 = vcombine.low %v6871, %v6872
        %v6887 = vcombine.low %v6873, %v6874
        %v6888 = vcombine.low %v6875, %v6876
        %v6890 = vunpack.c.l.s4 1966171168
        %v6891 = vunpack.c.0.s8 %v6890
        %v6892 = vlaneseq
        %v6893 = vshrl.u32 %v6892, 7
        %v6894 = vsub.s32 %v6891, %v6893
        %v6895 = vrot.slane %v6885, %v6894
        %v6897 = vunpack.c.l.s4 1966171168
        %v6898 = vunpack.c.0.s8 %v6897
        %v6899 = vlaneseq
        %v6900 = vshrl.u32 %v6899, 7
        %v6901 = vsub.s32 %v6898, %v6900
        %v6902 = vrot.slane %v6886, %v6901
        %v6904 = vunpack.c.l.s4 1966171168
        %v6905 = vunpack.c.0.s8 %v6904
        %v6906 = vlaneseq
        %v6907 = vshrl.u32 %v6906, 7
        %v6908 = vsub.s32 %v6905, %v6907
        %v6909 = vrot.slane %v6887, %v6908
        %v6911 = vunpack.c.l.s4 1966171168
        %v6912 = vunpack.c.0.s8 %v6911
        %v6913 = vlaneseq
        %v6914 = vshrl.u32 %v6913, 7
        %v6915 = vsub.s32 %v6912, %v6914
        %v6916 = vrot.slane %v6888, %v6915
        %v6917 = vcombine.low %v6895, %v6902
        %v6918 = vcombine.low %v6909, %v6916
        %v6920 = vunpack.c.l.s4 1966171168
        %v6921 = vunpack.c.0.s8 %v6920
        %v6922 = vlaneseq
        %v6923 = vshrl.u32 %v6922, 7
        %v6924 = vsub.s32 %v6921, %v6923
        %v6925 = vrot.slane %v6917, %v6924
        %v6927 = vunpack.c.l.s4 1966171168
        %v6928 = vunpack.c.0.s8 %v6927
        %v6929 = vlaneseq
        %v6930 = vshrl.u32 %v6929, 7
        %v6931 = vsub.s32 %v6928, %v6930
        %v6932 = vrot.slane %v6918, %v6931
        %v6933 = vcombine.low %v6925, %v6932
        %v6935 = vmul.f32 %v5201, %v6933
        %v6937 = vlaneseq
        %v6938 = vshrl.u32 %v6937, 7
        %v6939 = vsub.s32 0, %v6938
        %v6940 = vrot.slane %v6935, %v6939
        %v6941 = vlaneseq
        %v6942 = vshrl.u32 %v6941, 7
        %v6943 = vsub.s32 1, %v6942
        %v6944 = vrot.slane %v6935, %v6943
        %v6945 = vlaneseq
        %v6946 = vshrl.u32 %v6945, 7
        %v6947 = vsub.s32 2, %v6946
        %v6948 = vrot.slane %v6935, %v6947
        %v6949 = vlaneseq
        %v6950 = vshrl.u32 %v6949, 7
        %v6951 = vsub.s32 3, %v6950
        %v6952 = vrot.slane %v6935, %v6951
        %v6953 = vlaneseq
        %v6954 = vshrl.u32 %v6953, 7
        %v6955 = vsub.s32 4, %v6954
        %v6956 = vrot.slane %v6935, %v6955
        %v6957 = vlaneseq
        %v6958 = vshrl.u32 %v6957, 7
        %v6959 = vsub.s32 5, %v6958
        %v6960 = vrot.slane %v6935, %v6959
        %v6961 = vlaneseq
        %v6962 = vshrl.u32 %v6961, 7
        %v6963 = vsub.s32 6, %v6962
        %v6964 = vrot.slane %v6935, %v6963
        %v6965 = vlaneseq
        %v6966 = vshrl.u32 %v6965, 7
        %v6967 = vsub.s32 7, %v6966
        %v6968 = vrot.slane %v6935, %v6967
        %v6977 = vmul.f32 %v5757, %v6940
        %v6978 = vmul.f32 %v5758, %v6944
        %v6979 = vmul.f32 %v5759, %v6948
        %v6980 = vmul.f32 %v5760, %v6952
        %v6981 = vmul.f32 %v5761, %v6956
        %v6982 = vmul.f32 %v5762, %v6960
        %v6983 = vmul.f32 %v5763, %v6964
        %v6984 = vmul.f32 %v5764, %v6968
        %v6993 = vcombine.low %v6977, %v6978
        %v6994 = vcombine.low %v6979, %v6980
        %v6995 = vcombine.low %v6981, %v6982
        %v6996 = vcombine.low %v6983, %v6984
        %v6998 = vunpack.c.l.s4 1966171168
        %v6999 = vunpack.c.0.s8 %v6998
        %v7000 = vlaneseq
        %v7001 = vshrl.u32 %v7000, 7
        %v7002 = vsub.s32 %v6999, %v7001
        %v7003 = vrot.slane %v6993, %v7002
        %v7005 = vunpack.c.l.s4 1966171168
        %v7006 = vunpack.c.0.s8 %v7005
        %v7007 = vlaneseq
        %v7008 = vshrl.u32 %v7007, 7
        %v7009 = vsub.s32 %v7006, %v7008
        %v7010 = vrot.slane %v6994, %v7009
        %v7012 = vunpack.c.l.s4 1966171168
        %v7013 = vunpack.c.0.s8 %v7012
        %v7014 = vlaneseq
        %v7015 = vshrl.u32 %v7014, 7
        %v7016 = vsub.s32 %v7013, %v7015
        %v7017 = vrot.slane %v6995, %v7016
        %v7019 = vunpack.c.l.s4 1966171168
        %v7020 = vunpack.c.0.s8 %v7019
        %v7021 = vlaneseq
        %v7022 = vshrl.u32 %v7021, 7
        %v7023 = vsub.s32 %v7020, %v7022
        %v7024 = vrot.slane %v6996, %v7023
        %v7025 = vcombine.low %v7003, %v7010
        %v7026 = vcombine.low %v7017, %v7024
        %v7028 = vunpack.c.l.s4 1966171168
        %v7029 = vunpack.c.0.s8 %v7028
        %v7030 = vlaneseq
        %v7031 = vshrl.u32 %v7030, 7
        %v7032 = vsub.s32 %v7029, %v7031
        %v7033 = vrot.slane %v7025, %v7032
        %v7035 = vunpack.c.l.s4 1966171168
        %v7036 = vunpack.c.0.s8 %v7035
        %v7037 = vlaneseq
        %v7038 = vshrl.u32 %v7037, 7
        %v7039 = vsub.s32 %v7036, %v7038
        %v7040 = vrot.slane %v7026, %v7039
        %v7041 = vcombine.low %v7033, %v7040
        %v7043 = vsub.f32 %v5203, %v7041
        %v7044 = vmul.f32 %v3816, %v6940
        %v7045 = vmul.f32 %v3818, %v6944
        %v7046 = vmul.f32 %v4169, %v6948
        %v7047 = vmul.f32 %v4171, %v6952
        %v7048 = vmul.f32 %v4522, %v6956
        %v7049 = vmul.f32 %v4524, %v6960
        %v7050 = vmul.f32 %v4875, %v6964
        %v7051 = vmul.f32 %v4877, %v6968
        %v7052 = vmul.f32 %v3820, %v6940
        %v7053 = vmul.f32 %v3822, %v6944
        %v7054 = vmul.f32 %v4173, %v6948
        %v7055 = vmul.f32 %v4175, %v6952
        %v7056 = vmul.f32 %v4526, %v6956
        %v7057 = vmul.f32 %v4528, %v6960
        %v7058 = vmul.f32 %v4879, %v6964
        %v7059 = vmul.f32 %v4881, %v6968
        %v7060 = vmul.f32 %v3826, %v6940
        %v7061 = vmul.f32 %v3828, %v6944
        %v7062 = vmul.f32 %v4179, %v6948
        %v7063 = vmul.f32 %v4181, %v6952
        %v7064 = vmul.f32 %v4532, %v6956
        %v7065 = vmul.f32 %v4534, %v6960
        %v7066 = vmul.f32 %v4885, %v6964
        %v7067 = vmul.f32 %v4887, %v6968
        %v7068 = vmul.f32 %v3830, %v6940
        %v7069 = vmul.f32 %v3832, %v6944
        %v7070 = vmul.f32 %v4183, %v6948
        %v7071 = vmul.f32 %v4185, %v6952
        %v7072 = vmul.f32 %v4536, %v6956
        %v7073 = vmul.f32 %v4538, %v6960
        %v7074 = vmul.f32 %v4889, %v6964
        %v7075 = vmul.f32 %v4891, %v6968
        %v7076 = vmul.f32 %v3836, %v6940
        %v7077 = vmul.f32 %v3838, %v6944
        %v7078 = vmul.f32 %v4189, %v6948
        %v7079 = vmul.f32 %v4191, %v6952
        %v7080 = vmul.f32 %v4542, %v6956
        %v7081 = vmul.f32 %v4544, %v6960
        %v7082 = vmul.f32 %v4895, %v6964
        %v7083 = vmul.f32 %v4897, %v6968
        %v7084 = vmul.f32 %v3840, %v6940
        %v7085 = vmul.f32 %v3842, %v6944
        %v7086 = vmul.f32 %v4193, %v6948
        %v7087 = vmul.f32 %v4195, %v6952
        %v7088 = vmul.f32 %v4546, %v6956
        %v7089 = vmul.f32 %v4548, %v6960
        %v7090 = vmul.f32 %v4899, %v6964
        %v7091 = vmul.f32 %v4901, %v6968
        %v7092 = vmul.f32 %v3846, %v6940
        %v7093 = vmul.f32 %v3848, %v6944
        %v7094 = vmul.f32 %v4199, %v6948
        %v7095 = vmul.f32 %v4201, %v6952
        %v7096 = vmul.f32 %v4552, %v6956
        %v7097 = vmul.f32 %v4554, %v6960
        %v7098 = vmul.f32 %v4905, %v6964
        %v7099 = vmul.f32 %v4907, %v6968
        %v7100 = vmul.f32 %v3850, %v6940
        %v7101 = vmul.f32 %v3852, %v6944
        %v7102 = vmul.f32 %v4203, %v6948
        %v7103 = vmul.f32 %v4205, %v6952
        %v7104 = vmul.f32 %v4556, %v6956
        %v7105 = vmul.f32 %v4558, %v6960
        %v7106 = vmul.f32 %v4909, %v6964
        %v7107 = vmul.f32 %v4911, %v6968
        %v7108 = vmul.f32 %v3856, %v6940
        %v7109 = vmul.f32 %v3858, %v6944
        %v7110 = vmul.f32 %v4209, %v6948
        %v7111 = vmul.f32 %v4211, %v6952
        %v7112 = vmul.f32 %v4562, %v6956
        %v7113 = vmul.f32 %v4564, %v6960
        %v7114 = vmul.f32 %v4915, %v6964
        %v7115 = vmul.f32 %v4917, %v6968
        %v7116 = vmul.f32 %v3860, %v6940
        %v7117 = vmul.f32 %v3862, %v6944
        %v7118 = vmul.f32 %v4213, %v6948
        %v7119 = vmul.f32 %v4215, %v6952
        %v7120 = vmul.f32 %v4566, %v6956
        %v7121 = vmul.f32 %v4568, %v6960
        %v7122 = vmul.f32 %v4919, %v6964
        %v7123 = vmul.f32 %v4921, %v6968
        %v7124 = vmul.f32 %v3866, %v6940
        %v7125 = vmul.f32 %v3868, %v6944
        %v7126 = vmul.f32 %v4219, %v6948
        %v7127 = vmul.f32 %v4221, %v6952
        %v7128 = vmul.f32 %v4572, %v6956
        %v7129 = vmul.f32 %v4574, %v6960
        %v7130 = vmul.f32 %v4925, %v6964
        %v7131 = vmul.f32 %v4927, %v6968
        %v7132 = vmul.f32 %v3870, %v6940
        %v7133 = vmul.f32 %v3872, %v6944
        %v7134 = vmul.f32 %v4223, %v6948
        %v7135 = vmul.f32 %v4225, %v6952
        %v7136 = vmul.f32 %v4576, %v6956
        %v7137 = vmul.f32 %v4578, %v6960
        %v7138 = vmul.f32 %v4929, %v6964
        %v7139 = vmul.f32 %v4931, %v6968
        %v7140 = vmul.f32 %v3876, %v6940
        %v7141 = vmul.f32 %v3878, %v6944
        %v7142 = vmul.f32 %v4229, %v6948
        %v7143 = vmul.f32 %v4231, %v6952
        %v7144 = vmul.f32 %v4582, %v6956
        %v7145 = vmul.f32 %v4584, %v6960
        %v7146 = vmul.f32 %v4935, %v6964
        %v7147 = vmul.f32 %v4937, %v6968
        %v7148 = vmul.f32 %v3880, %v6940
        %v7149 = vmul.f32 %v3882, %v6944
        %v7150 = vmul.f32 %v4233, %v6948
        %v7151 = vmul.f32 %v4235, %v6952
        %v7152 = vmul.f32 %v4586, %v6956
        %v7153 = vmul.f32 %v4588, %v6960
        %v7154 = vmul.f32 %v4939, %v6964
        %v7155 = vmul.f32 %v4941, %v6968
        %v7156 = vmul.f32 %v3886, %v6940
        %v7157 = vmul.f32 %v3888, %v6944
        %v7158 = vmul.f32 %v4239, %v6948
        %v7159 = vmul.f32 %v4241, %v6952
        %v7160 = vmul.f32 %v4592, %v6956
        %v7161 = vmul.f32 %v4594, %v6960
        %v7162 = vmul.f32 %v4945, %v6964
        %v7163 = vmul.f32 %v4947, %v6968
        %v7164 = vmul.f32 %v3890, %v6940
        %v7165 = vmul.f32 %v3892, %v6944
        %v7166 = vmul.f32 %v4243, %v6948
        %v7167 = vmul.f32 %v4245, %v6952
        %v7168 = vmul.f32 %v4596, %v6956
        %v7169 = vmul.f32 %v4598, %v6960
        %v7170 = vmul.f32 %v4949, %v6964
        %v7171 = vmul.f32 %v4951, %v6968
        %v7172 = vmul.f32 %v3896, %v6940
        %v7173 = vmul.f32 %v3898, %v6944
        %v7174 = vmul.f32 %v4249, %v6948
        %v7175 = vmul.f32 %v4251, %v6952
        %v7176 = vmul.f32 %v4602, %v6956
        %v7177 = vmul.f32 %v4604, %v6960
        %v7178 = vmul.f32 %v4955, %v6964
        %v7179 = vmul.f32 %v4957, %v6968
        %v7180 = vmul.f32 %v3900, %v6940
        %v7181 = vmul.f32 %v3902, %v6944
        %v7182 = vmul.f32 %v4253, %v6948
        %v7183 = vmul.f32 %v4255, %v6952
        %v7184 = vmul.f32 %v4606, %v6956
        %v7185 = vmul.f32 %v4608, %v6960
        %v7186 = vmul.f32 %v4959, %v6964
        %v7187 = vmul.f32 %v4961, %v6968
        %v7188 = vmul.f32 %v3906, %v6940
        %v7189 = vmul.f32 %v3908, %v6944
        %v7190 = vmul.f32 %v4259, %v6948
        %v7191 = vmul.f32 %v4261, %v6952
        %v7192 = vmul.f32 %v4612, %v6956
        %v7193 = vmul.f32 %v4614, %v6960
        %v7194 = vmul.f32 %v4965, %v6964
        %v7195 = vmul.f32 %v4967, %v6968
        %v7196 = vmul.f32 %v3910, %v6940
        %v7197 = vmul.f32 %v3912, %v6944
        %v7198 = vmul.f32 %v4263, %v6948
        %v7199 = vmul.f32 %v4265, %v6952
        %v7200 = vmul.f32 %v4616, %v6956
        %v7201 = vmul.f32 %v4618, %v6960
        %v7202 = vmul.f32 %v4969, %v6964
        %v7203 = vmul.f32 %v4971, %v6968
        %v7204 = vmul.f32 %v3916, %v6940
        %v7205 = vmul.f32 %v3918, %v6944
        %v7206 = vmul.f32 %v4269, %v6948
        %v7207 = vmul.f32 %v4271, %v6952
        %v7208 = vmul.f32 %v4622, %v6956
        %v7209 = vmul.f32 %v4624, %v6960
        %v7210 = vmul.f32 %v4975, %v6964
        %v7211 = vmul.f32 %v4977, %v6968
        %v7212 = vmul.f32 %v3920, %v6940
        %v7213 = vmul.f32 %v3922, %v6944
        %v7214 = vmul.f32 %v4273, %v6948
        %v7215 = vmul.f32 %v4275, %v6952
        %v7216 = vmul.f32 %v4626, %v6956
        %v7217 = vmul.f32 %v4628, %v6960
        %v7218 = vmul.f32 %v4979, %v6964
        %v7219 = vmul.f32 %v4981, %v6968
        %v7220 = vmul.f32 %v3926, %v6940
        %v7221 = vmul.f32 %v3928, %v6944
        %v7222 = vmul.f32 %v4279, %v6948
        %v7223 = vmul.f32 %v4281, %v6952
        %v7224 = vmul.f32 %v4632, %v6956
        %v7225 = vmul.f32 %v4634, %v6960
        %v7226 = vmul.f32 %v4985, %v6964
        %v7227 = vmul.f32 %v4987, %v6968
        %v7228 = vmul.f32 %v3930, %v6940
        %v7229 = vmul.f32 %v3932, %v6944
        %v7230 = vmul.f32 %v4283, %v6948
        %v7231 = vmul.f32 %v4285, %v6952
        %v7232 = vmul.f32 %v4636, %v6956
        %v7233 = vmul.f32 %v4638, %v6960
        %v7234 = vmul.f32 %v4989, %v6964
        %v7235 = vmul.f32 %v4991, %v6968
        %v7236 = vmul.f32 %v3936, %v6940
        %v7237 = vmul.f32 %v3938, %v6944
        %v7238 = vmul.f32 %v4289, %v6948
        %v7239 = vmul.f32 %v4291, %v6952
        %v7240 = vmul.f32 %v4642, %v6956
        %v7241 = vmul.f32 %v4644, %v6960
        %v7242 = vmul.f32 %v4995, %v6964
        %v7243 = vmul.f32 %v4997, %v6968
        %v7244 = vmul.f32 %v3940, %v6940
        %v7245 = vmul.f32 %v3942, %v6944
        %v7246 = vmul.f32 %v4293, %v6948
        %v7247 = vmul.f32 %v4295, %v6952
        %v7248 = vmul.f32 %v4646, %v6956
        %v7249 = vmul.f32 %v4648, %v6960
        %v7250 = vmul.f32 %v4999, %v6964
        %v7251 = vmul.f32 %v5001, %v6968
        %v7252 = vmul.f32 %v3946, %v6940
        %v7253 = vmul.f32 %v3948, %v6944
        %v7254 = vmul.f32 %v4299, %v6948
        %v7255 = vmul.f32 %v4301, %v6952
        %v7256 = vmul.f32 %v4652, %v6956
        %v7257 = vmul.f32 %v4654, %v6960
        %v7258 = vmul.f32 %v5005, %v6964
        %v7259 = vmul.f32 %v5007, %v6968
        %v7260 = vmul.f32 %v3950, %v6940
        %v7261 = vmul.f32 %v3952, %v6944
        %v7262 = vmul.f32 %v4303, %v6948
        %v7263 = vmul.f32 %v4305, %v6952
        %v7264 = vmul.f32 %v4656, %v6956
        %v7265 = vmul.f32 %v4658, %v6960
        %v7266 = vmul.f32 %v5009, %v6964
        %v7267 = vmul.f32 %v5011, %v6968
        %v7268 = vmul.f32 %v3956, %v6940
        %v7269 = vmul.f32 %v3958, %v6944
        %v7270 = vmul.f32 %v4309, %v6948
        %v7271 = vmul.f32 %v4311, %v6952
        %v7272 = vmul.f32 %v4662, %v6956
        %v7273 = vmul.f32 %v4664, %v6960
        %v7274 = vmul.f32 %v5015, %v6964
        %v7275 = vmul.f32 %v5017, %v6968
        %v7276 = vmul.f32 %v3960, %v6940
        %v7277 = vmul.f32 %v3962, %v6944
        %v7278 = vmul.f32 %v4313, %v6948
        %v7279 = vmul.f32 %v4315, %v6952
        %v7280 = vmul.f32 %v4666, %v6956
        %v7281 = vmul.f32 %v4668, %v6960
        %v7282 = vmul.f32 %v5019, %v6964
        %v7283 = vmul.f32 %v5021, %v6968
        %v7284 = vmul.f32 %v3966, %v6940
        %v7285 = vmul.f32 %v3968, %v6944
        %v7286 = vmul.f32 %v4319, %v6948
        %v7287 = vmul.f32 %v4321, %v6952
        %v7288 = vmul.f32 %v4672, %v6956
        %v7289 = vmul.f32 %v4674, %v6960
        %v7290 = vmul.f32 %v5025, %v6964
        %v7291 = vmul.f32 %v5027, %v6968
        %v7292 = vmul.f32 %v3970, %v6940
        %v7293 = vmul.f32 %v3972, %v6944
        %v7294 = vmul.f32 %v4323, %v6948
        %v7295 = vmul.f32 %v4325, %v6952
        %v7296 = vmul.f32 %v4676, %v6956
        %v7297 = vmul.f32 %v4678, %v6960
        %v7298 = vmul.f32 %v5029, %v6964
        %v7299 = vmul.f32 %v5031, %v6968
        %v7300 = vmul.f32 %v3976, %v6940
        %v7301 = vmul.f32 %v3978, %v6944
        %v7302 = vmul.f32 %v4329, %v6948
        %v7303 = vmul.f32 %v4331, %v6952
        %v7304 = vmul.f32 %v4682, %v6956
        %v7305 = vmul.f32 %v4684, %v6960
        %v7306 = vmul.f32 %v5035, %v6964
        %v7307 = vmul.f32 %v5037, %v6968
        %v7308 = vmul.f32 %v3980, %v6940
        %v7309 = vmul.f32 %v3982, %v6944
        %v7310 = vmul.f32 %v4333, %v6948
        %v7311 = vmul.f32 %v4335, %v6952
        %v7312 = vmul.f32 %v4686, %v6956
        %v7313 = vmul.f32 %v4688, %v6960
        %v7314 = vmul.f32 %v5039, %v6964
        %v7315 = vmul.f32 %v5041, %v6968
        %v7316 = vmul.f32 %v3986, %v6940
        %v7317 = vmul.f32 %v3988, %v6944
        %v7318 = vmul.f32 %v4339, %v6948
        %v7319 = vmul.f32 %v4341, %v6952
        %v7320 = vmul.f32 %v4692, %v6956
        %v7321 = vmul.f32 %v4694, %v6960
        %v7322 = vmul.f32 %v5045, %v6964
        %v7323 = vmul.f32 %v5047, %v6968
        %v7324 = vmul.f32 %v3990, %v6940
        %v7325 = vmul.f32 %v3992, %v6944
        %v7326 = vmul.f32 %v4343, %v6948
        %v7327 = vmul.f32 %v4345, %v6952
        %v7328 = vmul.f32 %v4696, %v6956
        %v7329 = vmul.f32 %v4698, %v6960
        %v7330 = vmul.f32 %v5049, %v6964
        %v7331 = vmul.f32 %v5051, %v6968
        %v7332 = vmul.f32 %v3996, %v6940
        %v7333 = vmul.f32 %v3998, %v6944
        %v7334 = vmul.f32 %v4349, %v6948
        %v7335 = vmul.f32 %v4351, %v6952
        %v7336 = vmul.f32 %v4702, %v6956
        %v7337 = vmul.f32 %v4704, %v6960
        %v7338 = vmul.f32 %v5055, %v6964
        %v7339 = vmul.f32 %v5057, %v6968
        %v7340 = vmul.f32 %v4000, %v6940
        %v7341 = vmul.f32 %v4002, %v6944
        %v7342 = vmul.f32 %v4353, %v6948
        %v7343 = vmul.f32 %v4355, %v6952
        %v7344 = vmul.f32 %v4706, %v6956
        %v7345 = vmul.f32 %v4708, %v6960
        %v7346 = vmul.f32 %v5059, %v6964
        %v7347 = vmul.f32 %v5061, %v6968
        %v7348 = vmul.f32 %v4006, %v6940
        %v7349 = vmul.f32 %v4008, %v6944
        %v7350 = vmul.f32 %v4359, %v6948
        %v7351 = vmul.f32 %v4361, %v6952
        %v7352 = vmul.f32 %v4712, %v6956
        %v7353 = vmul.f32 %v4714, %v6960
        %v7354 = vmul.f32 %v5065, %v6964
        %v7355 = vmul.f32 %v5067, %v6968
        %v7356 = vmul.f32 %v4010, %v6940
        %v7357 = vmul.f32 %v4012, %v6944
        %v7358 = vmul.f32 %v4363, %v6948
        %v7359 = vmul.f32 %v4365, %v6952
        %v7360 = vmul.f32 %v4716, %v6956
        %v7361 = vmul.f32 %v4718, %v6960
        %v7362 = vmul.f32 %v5069, %v6964
        %v7363 = vmul.f32 %v5071, %v6968
        %v7364 = vmul.f32 %v4016, %v6940
        %v7365 = vmul.f32 %v4018, %v6944
        %v7366 = vmul.f32 %v4369, %v6948
        %v7367 = vmul.f32 %v4371, %v6952
        %v7368 = vmul.f32 %v4722, %v6956
        %v7369 = vmul.f32 %v4724, %v6960
        %v7370 = vmul.f32 %v5075, %v6964
        %v7371 = vmul.f32 %v5077, %v6968
        %v7372 = vmul.f32 %v4020, %v6940
        %v7373 = vmul.f32 %v4022, %v6944
        %v7374 = vmul.f32 %v4373, %v6948
        %v7375 = vmul.f32 %v4375, %v6952
        %v7376 = vmul.f32 %v4726, %v6956
        %v7377 = vmul.f32 %v4728, %v6960
        %v7378 = vmul.f32 %v5079, %v6964
        %v7379 = vmul.f32 %v5081, %v6968
        %v7380 = vmul.f32 %v4026, %v6940
        %v7381 = vmul.f32 %v4028, %v6944
        %v7382 = vmul.f32 %v4379, %v6948
        %v7383 = vmul.f32 %v4381, %v6952
        %v7384 = vmul.f32 %v4732, %v6956
        %v7385 = vmul.f32 %v4734, %v6960
        %v7386 = vmul.f32 %v5085, %v6964
        %v7387 = vmul.f32 %v5087, %v6968
        %v7388 = vmul.f32 %v4030, %v6940
        %v7389 = vmul.f32 %v4032, %v6944
        %v7390 = vmul.f32 %v4383, %v6948
        %v7391 = vmul.f32 %v4385, %v6952
        %v7392 = vmul.f32 %v4736, %v6956
        %v7393 = vmul.f32 %v4738, %v6960
        %v7394 = vmul.f32 %v5089, %v6964
        %v7395 = vmul.f32 %v5091, %v6968
        %v7396 = vmul.f32 %v4036, %v6940
        %v7397 = vmul.f32 %v4038, %v6944
        %v7398 = vmul.f32 %v4389, %v6948
        %v7399 = vmul.f32 %v4391, %v6952
        %v7400 = vmul.f32 %v4742, %v6956
        %v7401 = vmul.f32 %v4744, %v6960
        %v7402 = vmul.f32 %v5095, %v6964
        %v7403 = vmul.f32 %v5097, %v6968
        %v7404 = vmul.f32 %v4040, %v6940
        %v7405 = vmul.f32 %v4042, %v6944
        %v7406 = vmul.f32 %v4393, %v6948
        %v7407 = vmul.f32 %v4395, %v6952
        %v7408 = vmul.f32 %v4746, %v6956
        %v7409 = vmul.f32 %v4748, %v6960
        %v7410 = vmul.f32 %v5099, %v6964
        %v7411 = vmul.f32 %v5101, %v6968
        %v7412 = vmul.f32 %v4046, %v6940
        %v7413 = vmul.f32 %v4048, %v6944
        %v7414 = vmul.f32 %v4399, %v6948
        %v7415 = vmul.f32 %v4401, %v6952
        %v7416 = vmul.f32 %v4752, %v6956
        %v7417 = vmul.f32 %v4754, %v6960
        %v7418 = vmul.f32 %v5105, %v6964
        %v7419 = vmul.f32 %v5107, %v6968
        %v7420 = vmul.f32 %v4050, %v6940
        %v7421 = vmul.f32 %v4052, %v6944
        %v7422 = vmul.f32 %v4403, %v6948
        %v7423 = vmul.f32 %v4405, %v6952
        %v7424 = vmul.f32 %v4756, %v6956
        %v7425 = vmul.f32 %v4758, %v6960
        %v7426 = vmul.f32 %v5109, %v6964
        %v7427 = vmul.f32 %v5111, %v6968
        %v7428 = vmul.f32 %v4056, %v6940
        %v7429 = vmul.f32 %v4058, %v6944
        %v7430 = vmul.f32 %v4409, %v6948
        %v7431 = vmul.f32 %v4411, %v6952
        %v7432 = vmul.f32 %v4762, %v6956
        %v7433 = vmul.f32 %v4764, %v6960
        %v7434 = vmul.f32 %v5115, %v6964
        %v7435 = vmul.f32 %v5117, %v6968
        %v7436 = vmul.f32 %v4060, %v6940
        %v7437 = vmul.f32 %v4062, %v6944
        %v7438 = vmul.f32 %v4413, %v6948
        %v7439 = vmul.f32 %v4415, %v6952
        %v7440 = vmul.f32 %v4766, %v6956
        %v7441 = vmul.f32 %v4768, %v6960
        %v7442 = vmul.f32 %v5119, %v6964
        %v7443 = vmul.f32 %v5121, %v6968
        %v7444 = vmul.f32 %v4066, %v6940
        %v7445 = vmul.f32 %v4068, %v6944
        %v7446 = vmul.f32 %v4419, %v6948
        %v7447 = vmul.f32 %v4421, %v6952
        %v7448 = vmul.f32 %v4772, %v6956
        %v7449 = vmul.f32 %v4774, %v6960
        %v7450 = vmul.f32 %v5125, %v6964
        %v7451 = vmul.f32 %v5127, %v6968
        %v7452 = vmul.f32 %v4070, %v6940
        %v7453 = vmul.f32 %v4072, %v6944
        %v7454 = vmul.f32 %v4423, %v6948
        %v7455 = vmul.f32 %v4425, %v6952
        %v7456 = vmul.f32 %v4776, %v6956
        %v7457 = vmul.f32 %v4778, %v6960
        %v7458 = vmul.f32 %v5129, %v6964
        %v7459 = vmul.f32 %v5131, %v6968
        %v7460 = vmul.f32 %v4076, %v6940
        %v7461 = vmul.f32 %v4078, %v6944
        %v7462 = vmul.f32 %v4429, %v6948
        %v7463 = vmul.f32 %v4431, %v6952
        %v7464 = vmul.f32 %v4782, %v6956
        %v7465 = vmul.f32 %v4784, %v6960
        %v7466 = vmul.f32 %v5135, %v6964
        %v7467 = vmul.f32 %v5137, %v6968
        %v7468 = vmul.f32 %v4080, %v6940
        %v7469 = vmul.f32 %v4082, %v6944
        %v7470 = vmul.f32 %v4433, %v6948
        %v7471 = vmul.f32 %v4435, %v6952
        %v7472 = vmul.f32 %v4786, %v6956
        %v7473 = vmul.f32 %v4788, %v6960
        %v7474 = vmul.f32 %v5139, %v6964
        %v7475 = vmul.f32 %v5141, %v6968
        %v7476 = vmul.f32 %v4086, %v6940
        %v7477 = vmul.f32 %v4088, %v6944
        %v7478 = vmul.f32 %v4439, %v6948
        %v7479 = vmul.f32 %v4441, %v6952
        %v7480 = vmul.f32 %v4792, %v6956
        %v7481 = vmul.f32 %v4794, %v6960
        %v7482 = vmul.f32 %v5145, %v6964
        %v7483 = vmul.f32 %v5147, %v6968
        %v7484 = vmul.f32 %v4090, %v6940
        %v7485 = vmul.f32 %v4092, %v6944
        %v7486 = vmul.f32 %v4443, %v6948
        %v7487 = vmul.f32 %v4445, %v6952
        %v7488 = vmul.f32 %v4796, %v6956
        %v7489 = vmul.f32 %v4798, %v6960
        %v7490 = vmul.f32 %v5149, %v6964
        %v7491 = vmul.f32 %v5151, %v6968
        %v7492 = vmul.f32 %v4096, %v6940
        %v7493 = vmul.f32 %v4098, %v6944
        %v7494 = vmul.f32 %v4449, %v6948
        %v7495 = vmul.f32 %v4451, %v6952
        %v7496 = vmul.f32 %v4802, %v6956
        %v7497 = vmul.f32 %v4804, %v6960
        %v7498 = vmul.f32 %v5155, %v6964
        %v7499 = vmul.f32 %v5157, %v6968
        %v7500 = vmul.f32 %v4100, %v6940
        %v7501 = vmul.f32 %v4102, %v6944
        %v7502 = vmul.f32 %v4453, %v6948
        %v7503 = vmul.f32 %v4455, %v6952
        %v7504 = vmul.f32 %v4806, %v6956
        %v7505 = vmul.f32 %v4808, %v6960
        %v7506 = vmul.f32 %v5159, %v6964
        %v7507 = vmul.f32 %v5161, %v6968
        %v7508 = vmul.f32 %v4106, %v6940
        %v7509 = vmul.f32 %v4108, %v6944
        %v7510 = vmul.f32 %v4459, %v6948
        %v7511 = vmul.f32 %v4461, %v6952
        %v7512 = vmul.f32 %v4812, %v6956
        %v7513 = vmul.f32 %v4814, %v6960
        %v7514 = vmul.f32 %v5165, %v6964
        %v7515 = vmul.f32 %v5167, %v6968
        %v7516 = vmul.f32 %v4110, %v6940
        %v7517 = vmul.f32 %v4112, %v6944
        %v7518 = vmul.f32 %v4463, %v6948
        %v7519 = vmul.f32 %v4465, %v6952
        %v7520 = vmul.f32 %v4816, %v6956
        %v7521 = vmul.f32 %v4818, %v6960
        %v7522 = vmul.f32 %v5169, %v6964
        %v7523 = vmul.f32 %v5171, %v6968
        %v7524 = vmul.f32 %v4116, %v6940
        %v7525 = vmul.f32 %v4118, %v6944
        %v7526 = vmul.f32 %v4469, %v6948
        %v7527 = vmul.f32 %v4471, %v6952
        %v7528 = vmul.f32 %v4822, %v6956
        %v7529 = vmul.f32 %v4824, %v6960
        %v7530 = vmul.f32 %v5175, %v6964
        %v7531 = vmul.f32 %v5177, %v6968
        %v7532 = vmul.f32 %v4120, %v6940
        %v7533 = vmul.f32 %v4122, %v6944
        %v7534 = vmul.f32 %v4473, %v6948
        %v7535 = vmul.f32 %v4475, %v6952
        %v7536 = vmul.f32 %v4826, %v6956
        %v7537 = vmul.f32 %v4828, %v6960
        %v7538 = vmul.f32 %v5179, %v6964
        %v7539 = vmul.f32 %v5181, %v6968
        %v7540 = vmul.f32 %v4126, %v6940
        %v7541 = vmul.f32 %v4128, %v6944
        %v7542 = vmul.f32 %v4479, %v6948
        %v7543 = vmul.f32 %v4481, %v6952
        %v7544 = vmul.f32 %v4832, %v6956
        %v7545 = vmul.f32 %v4834, %v6960
        %v7546 = vmul.f32 %v5185, %v6964
        %v7547 = vmul.f32 %v5187, %v6968
        %v7548 = vmul.f32 %v4130, %v6940
        %v7549 = vmul.f32 %v4132, %v6944
        %v7550 = vmul.f32 %v4483, %v6948
        %v7551 = vmul.f32 %v4485, %v6952
        %v7552 = vmul.f32 %v4836, %v6956
        %v7553 = vmul.f32 %v4838, %v6960
        %v7554 = vmul.f32 %v5189, %v6964
        %v7555 = vmul.f32 %v5191, %v6968
        %v7557 = vlaneseq
        %v7558 = vshrl.u32 %v7557, 7
        %v7559 = vsub.s32 0, %v7558
        %v7560 = vrot.slane %v7043, %v7559
        %v7561 = vlaneseq
        %v7562 = vshrl.u32 %v7561, 7
        %v7563 = vsub.s32 1, %v7562
        %v7564 = vrot.slane %v7043, %v7563
        %v7565 = vlaneseq
        %v7566 = vshrl.u32 %v7565, 7
        %v7567 = vsub.s32 2, %v7566
        %v7568 = vrot.slane %v7043, %v7567
        %v7569 = vlaneseq
        %v7570 = vshrl.u32 %v7569, 7
        %v7571 = vsub.s32 3, %v7570
        %v7572 = vrot.slane %v7043, %v7571
        %v7573 = vlaneseq
        %v7574 = vshrl.u32 %v7573, 7
        %v7575 = vsub.s32 4, %v7574
        %v7576 = vrot.slane %v7043, %v7575
        %v7577 = vlaneseq
        %v7578 = vshrl.u32 %v7577, 7
        %v7579 = vsub.s32 5, %v7578
        %v7580 = vrot.slane %v7043, %v7579
        %v7581 = vlaneseq
        %v7582 = vshrl.u32 %v7581, 7
        %v7583 = vsub.s32 6, %v7582
        %v7584 = vrot.slane %v7043, %v7583
        %v7585 = vlaneseq
        %v7586 = vshrl.u32 %v7585, 7
        %v7587 = vsub.s32 7, %v7586
        %v7588 = vrot.slane %v7043, %v7587
        %v7597 = vadd.f32 %v7044, %v7560
        %v7598 = vadd.f32 %v7045, %v7564
        %v7599 = vadd.f32 %v7046, %v7568
        %v7600 = vadd.f32 %v7047, %v7572
        %v7601 = vadd.f32 %v7048, %v7576
        %v7602 = vadd.f32 %v7049, %v7580
        %v7603 = vadd.f32 %v7050, %v7584
        %v7604 = vadd.f32 %v7051, %v7588
        %v7605 = vadd.f32 %v7052, %v7560
        %v7606 = vadd.f32 %v7053, %v7564
        %v7607 = vadd.f32 %v7054, %v7568
        %v7608 = vadd.f32 %v7055, %v7572
        %v7609 = vadd.f32 %v7056, %v7576
        %v7610 = vadd.f32 %v7057, %v7580
        %v7611 = vadd.f32 %v7058, %v7584
        %v7612 = vadd.f32 %v7059, %v7588
        %v7613 = vadd.f32 %v7060, %v7560
        %v7614 = vadd.f32 %v7061, %v7564
        %v7615 = vadd.f32 %v7062, %v7568
        %v7616 = vadd.f32 %v7063, %v7572
        %v7617 = vadd.f32 %v7064, %v7576
        %v7618 = vadd.f32 %v7065, %v7580
        %v7619 = vadd.f32 %v7066, %v7584
        %v7620 = vadd.f32 %v7067, %v7588
        %v7621 = vadd.f32 %v7068, %v7560
        %v7622 = vadd.f32 %v7069, %v7564
        %v7623 = vadd.f32 %v7070, %v7568
        %v7624 = vadd.f32 %v7071, %v7572
        %v7625 = vadd.f32 %v7072, %v7576
        %v7626 = vadd.f32 %v7073, %v7580
        %v7627 = vadd.f32 %v7074, %v7584
        %v7628 = vadd.f32 %v7075, %v7588
        %v7629 = vadd.f32 %v7076, %v7560
        %v7630 = vadd.f32 %v7077, %v7564
        %v7631 = vadd.f32 %v7078, %v7568
        %v7632 = vadd.f32 %v7079, %v7572
        %v7633 = vadd.f32 %v7080, %v7576
        %v7634 = vadd.f32 %v7081, %v7580
        %v7635 = vadd.f32 %v7082, %v7584
        %v7636 = vadd.f32 %v7083, %v7588
        %v7637 = vadd.f32 %v7084, %v7560
        %v7638 = vadd.f32 %v7085, %v7564
        %v7639 = vadd.f32 %v7086, %v7568
        %v7640 = vadd.f32 %v7087, %v7572
        %v7641 = vadd.f32 %v7088, %v7576
        %v7642 = vadd.f32 %v7089, %v7580
        %v7643 = vadd.f32 %v7090, %v7584
        %v7644 = vadd.f32 %v7091, %v7588
        %v7645 = vadd.f32 %v7092, %v7560
        %v7646 = vadd.f32 %v7093, %v7564
        %v7647 = vadd.f32 %v7094, %v7568
        %v7648 = vadd.f32 %v7095, %v7572
        %v7649 = vadd.f32 %v7096, %v7576
        %v7650 = vadd.f32 %v7097, %v7580
        %v7651 = vadd.f32 %v7098, %v7584
        %v7652 = vadd.f32 %v7099, %v7588
        %v7653 = vadd.f32 %v7100, %v7560
        %v7654 = vadd.f32 %v7101, %v7564
        %v7655 = vadd.f32 %v7102, %v7568
        %v7656 = vadd.f32 %v7103, %v7572
        %v7657 = vadd.f32 %v7104, %v7576
        %v7658 = vadd.f32 %v7105, %v7580
        %v7659 = vadd.f32 %v7106, %v7584
        %v7660 = vadd.f32 %v7107, %v7588
        %v7661 = vadd.f32 %v7108, %v7560
        %v7662 = vadd.f32 %v7109, %v7564
        %v7663 = vadd.f32 %v7110, %v7568
        %v7664 = vadd.f32 %v7111, %v7572
        %v7665 = vadd.f32 %v7112, %v7576
        %v7666 = vadd.f32 %v7113, %v7580
        %v7667 = vadd.f32 %v7114, %v7584
        %v7668 = vadd.f32 %v7115, %v7588
        %v7669 = vadd.f32 %v7116, %v7560
        %v7670 = vadd.f32 %v7117, %v7564
        %v7671 = vadd.f32 %v7118, %v7568
        %v7672 = vadd.f32 %v7119, %v7572
        %v7673 = vadd.f32 %v7120, %v7576
        %v7674 = vadd.f32 %v7121, %v7580
        %v7675 = vadd.f32 %v7122, %v7584
        %v7676 = vadd.f32 %v7123, %v7588
        %v7677 = vadd.f32 %v7124, %v7560
        %v7678 = vadd.f32 %v7125, %v7564
        %v7679 = vadd.f32 %v7126, %v7568
        %v7680 = vadd.f32 %v7127, %v7572
        %v7681 = vadd.f32 %v7128, %v7576
        %v7682 = vadd.f32 %v7129, %v7580
        %v7683 = vadd.f32 %v7130, %v7584
        %v7684 = vadd.f32 %v7131, %v7588
        %v7685 = vadd.f32 %v7132, %v7560
        %v7686 = vadd.f32 %v7133, %v7564
        %v7687 = vadd.f32 %v7134, %v7568
        %v7688 = vadd.f32 %v7135, %v7572
        %v7689 = vadd.f32 %v7136, %v7576
        %v7690 = vadd.f32 %v7137, %v7580
        %v7691 = vadd.f32 %v7138, %v7584
        %v7692 = vadd.f32 %v7139, %v7588
        %v7693 = vadd.f32 %v7140, %v7560
        %v7694 = vadd.f32 %v7141, %v7564
        %v7695 = vadd.f32 %v7142, %v7568
        %v7696 = vadd.f32 %v7143, %v7572
        %v7697 = vadd.f32 %v7144, %v7576
        %v7698 = vadd.f32 %v7145, %v7580
        %v7699 = vadd.f32 %v7146, %v7584
        %v7700 = vadd.f32 %v7147, %v7588
        %v7701 = vadd.f32 %v7148, %v7560
        %v7702 = vadd.f32 %v7149, %v7564
        %v7703 = vadd.f32 %v7150, %v7568
        %v7704 = vadd.f32 %v7151, %v7572
        %v7705 = vadd.f32 %v7152, %v7576
        %v7706 = vadd.f32 %v7153, %v7580
        %v7707 = vadd.f32 %v7154, %v7584
        %v7708 = vadd.f32 %v7155, %v7588
        %v7709 = vadd.f32 %v7156, %v7560
        %v7710 = vadd.f32 %v7157, %v7564
        %v7711 = vadd.f32 %v7158, %v7568
        %v7712 = vadd.f32 %v7159, %v7572
        %v7713 = vadd.f32 %v7160, %v7576
        %v7714 = vadd.f32 %v7161, %v7580
        %v7715 = vadd.f32 %v7162, %v7584
        %v7716 = vadd.f32 %v7163, %v7588
        %v7717 = vadd.f32 %v7164, %v7560
        %v7718 = vadd.f32 %v7165, %v7564
        %v7719 = vadd.f32 %v7166, %v7568
        %v7720 = vadd.f32 %v7167, %v7572
        %v7721 = vadd.f32 %v7168, %v7576
        %v7722 = vadd.f32 %v7169, %v7580
        %v7723 = vadd.f32 %v7170, %v7584
        %v7724 = vadd.f32 %v7171, %v7588
        %v7725 = vadd.f32 %v7172, %v7560
        %v7726 = vadd.f32 %v7173, %v7564
        %v7727 = vadd.f32 %v7174, %v7568
        %v7728 = vadd.f32 %v7175, %v7572
        %v7729 = vadd.f32 %v7176, %v7576
        %v7730 = vadd.f32 %v7177, %v7580
        %v7731 = vadd.f32 %v7178, %v7584
        %v7732 = vadd.f32 %v7179, %v7588
        %v7733 = vadd.f32 %v7180, %v7560
        %v7734 = vadd.f32 %v7181, %v7564
        %v7735 = vadd.f32 %v7182, %v7568
        %v7736 = vadd.f32 %v7183, %v7572
        %v7737 = vadd.f32 %v7184, %v7576
        %v7738 = vadd.f32 %v7185, %v7580
        %v7739 = vadd.f32 %v7186, %v7584
        %v7740 = vadd.f32 %v7187, %v7588
        %v7741 = vadd.f32 %v7188, %v7560
        %v7742 = vadd.f32 %v7189, %v7564
        %v7743 = vadd.f32 %v7190, %v7568
        %v7744 = vadd.f32 %v7191, %v7572
        %v7745 = vadd.f32 %v7192, %v7576
        %v7746 = vadd.f32 %v7193, %v7580
        %v7747 = vadd.f32 %v7194, %v7584
        %v7748 = vadd.f32 %v7195, %v7588
        %v7749 = vadd.f32 %v7196, %v7560
        %v7750 = vadd.f32 %v7197, %v7564
        %v7751 = vadd.f32 %v7198, %v7568
        %v7752 = vadd.f32 %v7199, %v7572
        %v7753 = vadd.f32 %v7200, %v7576
        %v7754 = vadd.f32 %v7201, %v7580
        %v7755 = vadd.f32 %v7202, %v7584
        %v7756 = vadd.f32 %v7203, %v7588
        %v7757 = vadd.f32 %v7204, %v7560
        %v7758 = vadd.f32 %v7205, %v7564
        %v7759 = vadd.f32 %v7206, %v7568
        %v7760 = vadd.f32 %v7207, %v7572
        %v7761 = vadd.f32 %v7208, %v7576
        %v7762 = vadd.f32 %v7209, %v7580
        %v7763 = vadd.f32 %v7210, %v7584
        %v7764 = vadd.f32 %v7211, %v7588
        %v7765 = vadd.f32 %v7212, %v7560
        %v7766 = vadd.f32 %v7213, %v7564
        %v7767 = vadd.f32 %v7214, %v7568
        %v7768 = vadd.f32 %v7215, %v7572
        %v7769 = vadd.f32 %v7216, %v7576
        %v7770 = vadd.f32 %v7217, %v7580
        %v7771 = vadd.f32 %v7218, %v7584
        %v7772 = vadd.f32 %v7219, %v7588
        %v7773 = vadd.f32 %v7220, %v7560
        %v7774 = vadd.f32 %v7221, %v7564
        %v7775 = vadd.f32 %v7222, %v7568
        %v7776 = vadd.f32 %v7223, %v7572
        %v7777 = vadd.f32 %v7224, %v7576
        %v7778 = vadd.f32 %v7225, %v7580
        %v7779 = vadd.f32 %v7226, %v7584
        %v7780 = vadd.f32 %v7227, %v7588
        %v7781 = vadd.f32 %v7228, %v7560
        %v7782 = vadd.f32 %v7229, %v7564
        %v7783 = vadd.f32 %v7230, %v7568
        %v7784 = vadd.f32 %v7231, %v7572
        %v7785 = vadd.f32 %v7232, %v7576
        %v7786 = vadd.f32 %v7233, %v7580
        %v7787 = vadd.f32 %v7234, %v7584
        %v7788 = vadd.f32 %v7235, %v7588
        %v7789 = vadd.f32 %v7236, %v7560
        %v7790 = vadd.f32 %v7237, %v7564
        %v7791 = vadd.f32 %v7238, %v7568
        %v7792 = vadd.f32 %v7239, %v7572
        %v7793 = vadd.f32 %v7240, %v7576
        %v7794 = vadd.f32 %v7241, %v7580
        %v7795 = vadd.f32 %v7242, %v7584
        %v7796 = vadd.f32 %v7243, %v7588
        %v7797 = vadd.f32 %v7244, %v7560
        %v7798 = vadd.f32 %v7245, %v7564
        %v7799 = vadd.f32 %v7246, %v7568
        %v7800 = vadd.f32 %v7247, %v7572
        %v7801 = vadd.f32 %v7248, %v7576
        %v7802 = vadd.f32 %v7249, %v7580
        %v7803 = vadd.f32 %v7250, %v7584
        %v7804 = vadd.f32 %v7251, %v7588
        %v7805 = vadd.f32 %v7252, %v7560
        %v7806 = vadd.f32 %v7253, %v7564
        %v7807 = vadd.f32 %v7254, %v7568
        %v7808 = vadd.f32 %v7255, %v7572
        %v7809 = vadd.f32 %v7256, %v7576
        %v7810 = vadd.f32 %v7257, %v7580
        %v7811 = vadd.f32 %v7258, %v7584
        %v7812 = vadd.f32 %v7259, %v7588
        %v7813 = vadd.f32 %v7260, %v7560
        %v7814 = vadd.f32 %v7261, %v7564
        %v7815 = vadd.f32 %v7262, %v7568
        %v7816 = vadd.f32 %v7263, %v7572
        %v7817 = vadd.f32 %v7264, %v7576
        %v7818 = vadd.f32 %v7265, %v7580
        %v7819 = vadd.f32 %v7266, %v7584
        %v7820 = vadd.f32 %v7267, %v7588
        %v7821 = vadd.f32 %v7268, %v7560
        %v7822 = vadd.f32 %v7269, %v7564
        %v7823 = vadd.f32 %v7270, %v7568
        %v7824 = vadd.f32 %v7271, %v7572
        %v7825 = vadd.f32 %v7272, %v7576
        %v7826 = vadd.f32 %v7273, %v7580
        %v7827 = vadd.f32 %v7274, %v7584
        %v7828 = vadd.f32 %v7275, %v7588
        %v7829 = vadd.f32 %v7276, %v7560
        %v7830 = vadd.f32 %v7277, %v7564
        %v7831 = vadd.f32 %v7278, %v7568
        %v7832 = vadd.f32 %v7279, %v7572
        %v7833 = vadd.f32 %v7280, %v7576
        %v7834 = vadd.f32 %v7281, %v7580
        %v7835 = vadd.f32 %v7282, %v7584
        %v7836 = vadd.f32 %v7283, %v7588
        %v7837 = vadd.f32 %v7284, %v7560
        %v7838 = vadd.f32 %v7285, %v7564
        %v7839 = vadd.f32 %v7286, %v7568
        %v7840 = vadd.f32 %v7287, %v7572
        %v7841 = vadd.f32 %v7288, %v7576
        %v7842 = vadd.f32 %v7289, %v7580
        %v7843 = vadd.f32 %v7290, %v7584
        %v7844 = vadd.f32 %v7291, %v7588
        %v7845 = vadd.f32 %v7292, %v7560
        %v7846 = vadd.f32 %v7293, %v7564
        %v7847 = vadd.f32 %v7294, %v7568
        %v7848 = vadd.f32 %v7295, %v7572
        %v7849 = vadd.f32 %v7296, %v7576
        %v7850 = vadd.f32 %v7297, %v7580
        %v7851 = vadd.f32 %v7298, %v7584
        %v7852 = vadd.f32 %v7299, %v7588
        %v7853 = vadd.f32 %v7300, %v7560
        %v7854 = vadd.f32 %v7301, %v7564
        %v7855 = vadd.f32 %v7302, %v7568
        %v7856 = vadd.f32 %v7303, %v7572
        %v7857 = vadd.f32 %v7304, %v7576
        %v7858 = vadd.f32 %v7305, %v7580
        %v7859 = vadd.f32 %v7306, %v7584
        %v7860 = vadd.f32 %v7307, %v7588
        %v7861 = vadd.f32 %v7308, %v7560
        %v7862 = vadd.f32 %v7309, %v7564
        %v7863 = vadd.f32 %v7310, %v7568
        %v7864 = vadd.f32 %v7311, %v7572
        %v7865 = vadd.f32 %v7312, %v7576
        %v7866 = vadd.f32 %v7313, %v7580
        %v7867 = vadd.f32 %v7314, %v7584
        %v7868 = vadd.f32 %v7315, %v7588
        %v7869 = vadd.f32 %v7316, %v7560
        %v7870 = vadd.f32 %v7317, %v7564
        %v7871 = vadd.f32 %v7318, %v7568
        %v7872 = vadd.f32 %v7319, %v7572
        %v7873 = vadd.f32 %v7320, %v7576
        %v7874 = vadd.f32 %v7321, %v7580
        %v7875 = vadd.f32 %v7322, %v7584
        %v7876 = vadd.f32 %v7323, %v7588
        %v7877 = vadd.f32 %v7324, %v7560
        %v7878 = vadd.f32 %v7325, %v7564
        %v7879 = vadd.f32 %v7326, %v7568
        %v7880 = vadd.f32 %v7327, %v7572
        %v7881 = vadd.f32 %v7328, %v7576
        %v7882 = vadd.f32 %v7329, %v7580
        %v7883 = vadd.f32 %v7330, %v7584
        %v7884 = vadd.f32 %v7331, %v7588
        %v7885 = vadd.f32 %v7332, %v7560
        %v7886 = vadd.f32 %v7333, %v7564
        %v7887 = vadd.f32 %v7334, %v7568
        %v7888 = vadd.f32 %v7335, %v7572
        %v7889 = vadd.f32 %v7336, %v7576
        %v7890 = vadd.f32 %v7337, %v7580
        %v7891 = vadd.f32 %v7338, %v7584
        %v7892 = vadd.f32 %v7339, %v7588
        %v7893 = vadd.f32 %v7340, %v7560
        %v7894 = vadd.f32 %v7341, %v7564
        %v7895 = vadd.f32 %v7342, %v7568
        %v7896 = vadd.f32 %v7343, %v7572
        %v7897 = vadd.f32 %v7344, %v7576
        %v7898 = vadd.f32 %v7345, %v7580
        %v7899 = vadd.f32 %v7346, %v7584
        %v7900 = vadd.f32 %v7347, %v7588
        %v7901 = vadd.f32 %v7348, %v7560
        %v7902 = vadd.f32 %v7349, %v7564
        %v7903 = vadd.f32 %v7350, %v7568
        %v7904 = vadd.f32 %v7351, %v7572
        %v7905 = vadd.f32 %v7352, %v7576
        %v7906 = vadd.f32 %v7353, %v7580
        %v7907 = vadd.f32 %v7354, %v7584
        %v7908 = vadd.f32 %v7355, %v7588
        %v7909 = vadd.f32 %v7356, %v7560
        %v7910 = vadd.f32 %v7357, %v7564
        %v7911 = vadd.f32 %v7358, %v7568
        %v7912 = vadd.f32 %v7359, %v7572
        %v7913 = vadd.f32 %v7360, %v7576
        %v7914 = vadd.f32 %v7361, %v7580
        %v7915 = vadd.f32 %v7362, %v7584
        %v7916 = vadd.f32 %v7363, %v7588
        %v7917 = vadd.f32 %v7364, %v7560
        %v7918 = vadd.f32 %v7365, %v7564
        %v7919 = vadd.f32 %v7366, %v7568
        %v7920 = vadd.f32 %v7367, %v7572
        %v7921 = vadd.f32 %v7368, %v7576
        %v7922 = vadd.f32 %v7369, %v7580
        %v7923 = vadd.f32 %v7370, %v7584
        %v7924 = vadd.f32 %v7371, %v7588
        %v7925 = vadd.f32 %v7372, %v7560
        %v7926 = vadd.f32 %v7373, %v7564
        %v7927 = vadd.f32 %v7374, %v7568
        %v7928 = vadd.f32 %v7375, %v7572
        %v7929 = vadd.f32 %v7376, %v7576
        %v7930 = vadd.f32 %v7377, %v7580
        %v7931 = vadd.f32 %v7378, %v7584
        %v7932 = vadd.f32 %v7379, %v7588
        %v7933 = vadd.f32 %v7380, %v7560
        %v7934 = vadd.f32 %v7381, %v7564
        %v7935 = vadd.f32 %v7382, %v7568
        %v7936 = vadd.f32 %v7383, %v7572
        %v7937 = vadd.f32 %v7384, %v7576
        %v7938 = vadd.f32 %v7385, %v7580
        %v7939 = vadd.f32 %v7386, %v7584
        %v7940 = vadd.f32 %v7387, %v7588
        %v7941 = vadd.f32 %v7388, %v7560
        %v7942 = vadd.f32 %v7389, %v7564
        %v7943 = vadd.f32 %v7390, %v7568
        %v7944 = vadd.f32 %v7391, %v7572
        %v7945 = vadd.f32 %v7392, %v7576
        %v7946 = vadd.f32 %v7393, %v7580
        %v7947 = vadd.f32 %v7394, %v7584
        %v7948 = vadd.f32 %v7395, %v7588
        %v7949 = vadd.f32 %v7396, %v7560
        %v7950 = vadd.f32 %v7397, %v7564
        %v7951 = vadd.f32 %v7398, %v7568
        %v7952 = vadd.f32 %v7399, %v7572
        %v7953 = vadd.f32 %v7400, %v7576
        %v7954 = vadd.f32 %v7401, %v7580
        %v7955 = vadd.f32 %v7402, %v7584
        %v7956 = vadd.f32 %v7403, %v7588
        %v7957 = vadd.f32 %v7404, %v7560
        %v7958 = vadd.f32 %v7405, %v7564
        %v7959 = vadd.f32 %v7406, %v7568
        %v7960 = vadd.f32 %v7407, %v7572
        %v7961 = vadd.f32 %v7408, %v7576
        %v7962 = vadd.f32 %v7409, %v7580
        %v7963 = vadd.f32 %v7410, %v7584
        %v7964 = vadd.f32 %v7411, %v7588
        %v7965 = vadd.f32 %v7412, %v7560
        %v7966 = vadd.f32 %v7413, %v7564
        %v7967 = vadd.f32 %v7414, %v7568
        %v7968 = vadd.f32 %v7415, %v7572
        %v7969 = vadd.f32 %v7416, %v7576
        %v7970 = vadd.f32 %v7417, %v7580
        %v7971 = vadd.f32 %v7418, %v7584
        %v7972 = vadd.f32 %v7419, %v7588
        %v7973 = vadd.f32 %v7420, %v7560
        %v7974 = vadd.f32 %v7421, %v7564
        %v7975 = vadd.f32 %v7422, %v7568
        %v7976 = vadd.f32 %v7423, %v7572
        %v7977 = vadd.f32 %v7424, %v7576
        %v7978 = vadd.f32 %v7425, %v7580
        %v7979 = vadd.f32 %v7426, %v7584
        %v7980 = vadd.f32 %v7427, %v7588
        %v7981 = vadd.f32 %v7428, %v7560
        %v7982 = vadd.f32 %v7429, %v7564
        %v7983 = vadd.f32 %v7430, %v7568
        %v7984 = vadd.f32 %v7431, %v7572
        %v7985 = vadd.f32 %v7432, %v7576
        %v7986 = vadd.f32 %v7433, %v7580
        %v7987 = vadd.f32 %v7434, %v7584
        %v7988 = vadd.f32 %v7435, %v7588
        %v7989 = vadd.f32 %v7436, %v7560
        %v7990 = vadd.f32 %v7437, %v7564
        %v7991 = vadd.f32 %v7438, %v7568
        %v7992 = vadd.f32 %v7439, %v7572
        %v7993 = vadd.f32 %v7440, %v7576
        %v7994 = vadd.f32 %v7441, %v7580
        %v7995 = vadd.f32 %v7442, %v7584
        %v7996 = vadd.f32 %v7443, %v7588
        %v7997 = vadd.f32 %v7444, %v7560
        %v7998 = vadd.f32 %v7445, %v7564
        %v7999 = vadd.f32 %v7446, %v7568
        %v8000 = vadd.f32 %v7447, %v7572
        %v8001 = vadd.f32 %v7448, %v7576
        %v8002 = vadd.f32 %v7449, %v7580
        %v8003 = vadd.f32 %v7450, %v7584
        %v8004 = vadd.f32 %v7451, %v7588
        %v8005 = vadd.f32 %v7452, %v7560
        %v8006 = vadd.f32 %v7453, %v7564
        %v8007 = vadd.f32 %v7454, %v7568
        %v8008 = vadd.f32 %v7455, %v7572
        %v8009 = vadd.f32 %v7456, %v7576
        %v8010 = vadd.f32 %v7457, %v7580
        %v8011 = vadd.f32 %v7458, %v7584
        %v8012 = vadd.f32 %v7459, %v7588
        %v8013 = vadd.f32 %v7460, %v7560
        %v8014 = vadd.f32 %v7461, %v7564
        %v8015 = vadd.f32 %v7462, %v7568
        %v8016 = vadd.f32 %v7463, %v7572
        %v8017 = vadd.f32 %v7464, %v7576
        %v8018 = vadd.f32 %v7465, %v7580
        %v8019 = vadd.f32 %v7466, %v7584
        %v8020 = vadd.f32 %v7467, %v7588
        %v8021 = vadd.f32 %v7468, %v7560
        %v8022 = vadd.f32 %v7469, %v7564
        %v8023 = vadd.f32 %v7470, %v7568
        %v8024 = vadd.f32 %v7471, %v7572
        %v8025 = vadd.f32 %v7472, %v7576
        %v8026 = vadd.f32 %v7473, %v7580
        %v8027 = vadd.f32 %v7474, %v7584
        %v8028 = vadd.f32 %v7475, %v7588
        %v8029 = vadd.f32 %v7476, %v7560
        %v8030 = vadd.f32 %v7477, %v7564
        %v8031 = vadd.f32 %v7478, %v7568
        %v8032 = vadd.f32 %v7479, %v7572
        %v8033 = vadd.f32 %v7480, %v7576
        %v8034 = vadd.f32 %v7481, %v7580
        %v8035 = vadd.f32 %v7482, %v7584
        %v8036 = vadd.f32 %v7483, %v7588
        %v8037 = vadd.f32 %v7484, %v7560
        %v8038 = vadd.f32 %v7485, %v7564
        %v8039 = vadd.f32 %v7486, %v7568
        %v8040 = vadd.f32 %v7487, %v7572
        %v8041 = vadd.f32 %v7488, %v7576
        %v8042 = vadd.f32 %v7489, %v7580
        %v8043 = vadd.f32 %v7490, %v7584
        %v8044 = vadd.f32 %v7491, %v7588
        %v8045 = vadd.f32 %v7492, %v7560
        %v8046 = vadd.f32 %v7493, %v7564
        %v8047 = vadd.f32 %v7494, %v7568
        %v8048 = vadd.f32 %v7495, %v7572
        %v8049 = vadd.f32 %v7496, %v7576
        %v8050 = vadd.f32 %v7497, %v7580
        %v8051 = vadd.f32 %v7498, %v7584
        %v8052 = vadd.f32 %v7499, %v7588
        %v8053 = vadd.f32 %v7500, %v7560
        %v8054 = vadd.f32 %v7501, %v7564
        %v8055 = vadd.f32 %v7502, %v7568
        %v8056 = vadd.f32 %v7503, %v7572
        %v8057 = vadd.f32 %v7504, %v7576
        %v8058 = vadd.f32 %v7505, %v7580
        %v8059 = vadd.f32 %v7506, %v7584
        %v8060 = vadd.f32 %v7507, %v7588
        %v8061 = vadd.f32 %v7508, %v7560
        %v8062 = vadd.f32 %v7509, %v7564
        %v8063 = vadd.f32 %v7510, %v7568
        %v8064 = vadd.f32 %v7511, %v7572
        %v8065 = vadd.f32 %v7512, %v7576
        %v8066 = vadd.f32 %v7513, %v7580
        %v8067 = vadd.f32 %v7514, %v7584
        %v8068 = vadd.f32 %v7515, %v7588
        %v8069 = vadd.f32 %v7516, %v7560
        %v8070 = vadd.f32 %v7517, %v7564
        %v8071 = vadd.f32 %v7518, %v7568
        %v8072 = vadd.f32 %v7519, %v7572
        %v8073 = vadd.f32 %v7520, %v7576
        %v8074 = vadd.f32 %v7521, %v7580
        %v8075 = vadd.f32 %v7522, %v7584
        %v8076 = vadd.f32 %v7523, %v7588
        %v8077 = vadd.f32 %v7524, %v7560
        %v8078 = vadd.f32 %v7525, %v7564
        %v8079 = vadd.f32 %v7526, %v7568
        %v8080 = vadd.f32 %v7527, %v7572
        %v8081 = vadd.f32 %v7528, %v7576
        %v8082 = vadd.f32 %v7529, %v7580
        %v8083 = vadd.f32 %v7530, %v7584
        %v8084 = vadd.f32 %v7531, %v7588
        %v8085 = vadd.f32 %v7532, %v7560
        %v8086 = vadd.f32 %v7533, %v7564
        %v8087 = vadd.f32 %v7534, %v7568
        %v8088 = vadd.f32 %v7535, %v7572
        %v8089 = vadd.f32 %v7536, %v7576
        %v8090 = vadd.f32 %v7537, %v7580
        %v8091 = vadd.f32 %v7538, %v7584
        %v8092 = vadd.f32 %v7539, %v7588
        %v8093 = vadd.f32 %v7540, %v7560
        %v8094 = vadd.f32 %v7541, %v7564
        %v8095 = vadd.f32 %v7542, %v7568
        %v8096 = vadd.f32 %v7543, %v7572
        %v8097 = vadd.f32 %v7544, %v7576
        %v8098 = vadd.f32 %v7545, %v7580
        %v8099 = vadd.f32 %v7546, %v7584
        %v8100 = vadd.f32 %v7547, %v7588
        %v8101 = vadd.f32 %v7548, %v7560
        %v8102 = vadd.f32 %v7549, %v7564
        %v8103 = vadd.f32 %v7550, %v7568
        %v8104 = vadd.f32 %v7551, %v7572
        %v8105 = vadd.f32 %v7552, %v7576
        %v8106 = vadd.f32 %v7553, %v7580
        %v8107 = vadd.f32 %v7554, %v7584
        %v8108 = vadd.f32 %v7555, %v7588
        %v8109 = vmax.f32 %v7597, 0.0
        %v8110 = vmax.f32 %v7598, 0.0
        %v8111 = vmax.f32 %v7599, 0.0
        %v8112 = vmax.f32 %v7600, 0.0
        %v8113 = vmax.f32 %v7601, 0.0
        %v8114 = vmax.f32 %v7602, 0.0
        %v8115 = vmax.f32 %v7603, 0.0
        %v8116 = vmax.f32 %v7604, 0.0
        %v8117 = vmax.f32 %v7605, 0.0
        %v8118 = vmax.f32 %v7606, 0.0
        %v8119 = vmax.f32 %v7607, 0.0
        %v8120 = vmax.f32 %v7608, 0.0
        %v8121 = vmax.f32 %v7609, 0.0
        %v8122 = vmax.f32 %v7610, 0.0
        %v8123 = vmax.f32 %v7611, 0.0
        %v8124 = vmax.f32 %v7612, 0.0
        %v8125 = vmax.f32 %v7613, 0.0
        %v8126 = vmax.f32 %v7614, 0.0
        %v8127 = vmax.f32 %v7615, 0.0
        %v8128 = vmax.f32 %v7616, 0.0
        %v8129 = vmax.f32 %v7617, 0.0
        %v8130 = vmax.f32 %v7618, 0.0
        %v8131 = vmax.f32 %v7619, 0.0
        %v8132 = vmax.f32 %v7620, 0.0
        %v8133 = vmax.f32 %v7621, 0.0
        %v8134 = vmax.f32 %v7622, 0.0
        %v8135 = vmax.f32 %v7623, 0.0
        %v8136 = vmax.f32 %v7624, 0.0
        %v8137 = vmax.f32 %v7625, 0.0
        %v8138 = vmax.f32 %v7626, 0.0
        %v8139 = vmax.f32 %v7627, 0.0
        %v8140 = vmax.f32 %v7628, 0.0
        %v8141 = vmax.f32 %v7629, 0.0
        %v8142 = vmax.f32 %v7630, 0.0
        %v8143 = vmax.f32 %v7631, 0.0
        %v8144 = vmax.f32 %v7632, 0.0
        %v8145 = vmax.f32 %v7633, 0.0
        %v8146 = vmax.f32 %v7634, 0.0
        %v8147 = vmax.f32 %v7635, 0.0
        %v8148 = vmax.f32 %v7636, 0.0
        %v8149 = vmax.f32 %v7637, 0.0
        %v8150 = vmax.f32 %v7638, 0.0
        %v8151 = vmax.f32 %v7639, 0.0
        %v8152 = vmax.f32 %v7640, 0.0
        %v8153 = vmax.f32 %v7641, 0.0
        %v8154 = vmax.f32 %v7642, 0.0
        %v8155 = vmax.f32 %v7643, 0.0
        %v8156 = vmax.f32 %v7644, 0.0
        %v8157 = vmax.f32 %v7645, 0.0
        %v8158 = vmax.f32 %v7646, 0.0
        %v8159 = vmax.f32 %v7647, 0.0
        %v8160 = vmax.f32 %v7648, 0.0
        %v8161 = vmax.f32 %v7649, 0.0
        %v8162 = vmax.f32 %v7650, 0.0
        %v8163 = vmax.f32 %v7651, 0.0
        %v8164 = vmax.f32 %v7652, 0.0
        %v8165 = vmax.f32 %v7653, 0.0
        %v8166 = vmax.f32 %v7654, 0.0
        %v8167 = vmax.f32 %v7655, 0.0
        %v8168 = vmax.f32 %v7656, 0.0
        %v8169 = vmax.f32 %v7657, 0.0
        %v8170 = vmax.f32 %v7658, 0.0
        %v8171 = vmax.f32 %v7659, 0.0
        %v8172 = vmax.f32 %v7660, 0.0
        %v8173 = vmax.f32 %v7661, 0.0
        %v8174 = vmax.f32 %v7662, 0.0
        %v8175 = vmax.f32 %v7663, 0.0
        %v8176 = vmax.f32 %v7664, 0.0
        %v8177 = vmax.f32 %v7665, 0.0
        %v8178 = vmax.f32 %v7666, 0.0
        %v8179 = vmax.f32 %v7667, 0.0
        %v8180 = vmax.f32 %v7668, 0.0
        %v8181 = vmax.f32 %v7669, 0.0
        %v8182 = vmax.f32 %v7670, 0.0
        %v8183 = vmax.f32 %v7671, 0.0
        %v8184 = vmax.f32 %v7672, 0.0
        %v8185 = vmax.f32 %v7673, 0.0
        %v8186 = vmax.f32 %v7674, 0.0
        %v8187 = vmax.f32 %v7675, 0.0
        %v8188 = vmax.f32 %v7676, 0.0
        %v8189 = vmax.f32 %v7677, 0.0
        %v8190 = vmax.f32 %v7678, 0.0
        %v8191 = vmax.f32 %v7679, 0.0
        %v8192 = vmax.f32 %v7680, 0.0
        %v8193 = vmax.f32 %v7681, 0.0
        %v8194 = vmax.f32 %v7682, 0.0
        %v8195 = vmax.f32 %v7683, 0.0
        %v8196 = vmax.f32 %v7684, 0.0
        %v8197 = vmax.f32 %v7685, 0.0
        %v8198 = vmax.f32 %v7686, 0.0
        %v8199 = vmax.f32 %v7687, 0.0
        %v8200 = vmax.f32 %v7688, 0.0
        %v8201 = vmax.f32 %v7689, 0.0
        %v8202 = vmax.f32 %v7690, 0.0
        %v8203 = vmax.f32 %v7691, 0.0
        %v8204 = vmax.f32 %v7692, 0.0
        %v8205 = vmax.f32 %v7693, 0.0
        %v8206 = vmax.f32 %v7694, 0.0
        %v8207 = vmax.f32 %v7695, 0.0
        %v8208 = vmax.f32 %v7696, 0.0
        %v8209 = vmax.f32 %v7697, 0.0
        %v8210 = vmax.f32 %v7698, 0.0
        %v8211 = vmax.f32 %v7699, 0.0
        %v8212 = vmax.f32 %v7700, 0.0
        %v8213 = vmax.f32 %v7701, 0.0
        %v8214 = vmax.f32 %v7702, 0.0
        %v8215 = vmax.f32 %v7703, 0.0
        %v8216 = vmax.f32 %v7704, 0.0
        %v8217 = vmax.f32 %v7705, 0.0
        %v8218 = vmax.f32 %v7706, 0.0
        %v8219 = vmax.f32 %v7707, 0.0
        %v8220 = vmax.f32 %v7708, 0.0
        %v8221 = vmax.f32 %v7709, 0.0
        %v8222 = vmax.f32 %v7710, 0.0
        %v8223 = vmax.f32 %v7711, 0.0
        %v8224 = vmax.f32 %v7712, 0.0
        %v8225 = vmax.f32 %v7713, 0.0
        %v8226 = vmax.f32 %v7714, 0.0
        %v8227 = vmax.f32 %v7715, 0.0
        %v8228 = vmax.f32 %v7716, 0.0
        %v8229 = vmax.f32 %v7717, 0.0
        %v8230 = vmax.f32 %v7718, 0.0
        %v8231 = vmax.f32 %v7719, 0.0
        %v8232 = vmax.f32 %v7720, 0.0
        %v8233 = vmax.f32 %v7721, 0.0
        %v8234 = vmax.f32 %v7722, 0.0
        %v8235 = vmax.f32 %v7723, 0.0
        %v8236 = vmax.f32 %v7724, 0.0
        %v8237 = vmax.f32 %v7725, 0.0
        %v8238 = vmax.f32 %v7726, 0.0
        %v8239 = vmax.f32 %v7727, 0.0
        %v8240 = vmax.f32 %v7728, 0.0
        %v8241 = vmax.f32 %v7729, 0.0
        %v8242 = vmax.f32 %v7730, 0.0
        %v8243 = vmax.f32 %v7731, 0.0
        %v8244 = vmax.f32 %v7732, 0.0
        %v8245 = vmax.f32 %v7733, 0.0
        %v8246 = vmax.f32 %v7734, 0.0
        %v8247 = vmax.f32 %v7735, 0.0
        %v8248 = vmax.f32 %v7736, 0.0
        %v8249 = vmax.f32 %v7737, 0.0
        %v8250 = vmax.f32 %v7738, 0.0
        %v8251 = vmax.f32 %v7739, 0.0
        %v8252 = vmax.f32 %v7740, 0.0
        %v8253 = vmax.f32 %v7741, 0.0
        %v8254 = vmax.f32 %v7742, 0.0
        %v8255 = vmax.f32 %v7743, 0.0
        %v8256 = vmax.f32 %v7744, 0.0
        %v8257 = vmax.f32 %v7745, 0.0
        %v8258 = vmax.f32 %v7746, 0.0
        %v8259 = vmax.f32 %v7747, 0.0
        %v8260 = vmax.f32 %v7748, 0.0
        %v8261 = vmax.f32 %v7749, 0.0
        %v8262 = vmax.f32 %v7750, 0.0
        %v8263 = vmax.f32 %v7751, 0.0
        %v8264 = vmax.f32 %v7752, 0.0
        %v8265 = vmax.f32 %v7753, 0.0
        %v8266 = vmax.f32 %v7754, 0.0
        %v8267 = vmax.f32 %v7755, 0.0
        %v8268 = vmax.f32 %v7756, 0.0
        %v8269 = vmax.f32 %v7757, 0.0
        %v8270 = vmax.f32 %v7758, 0.0
        %v8271 = vmax.f32 %v7759, 0.0
        %v8272 = vmax.f32 %v7760, 0.0
        %v8273 = vmax.f32 %v7761, 0.0
        %v8274 = vmax.f32 %v7762, 0.0
        %v8275 = vmax.f32 %v7763, 0.0
        %v8276 = vmax.f32 %v7764, 0.0
        %v8277 = vmax.f32 %v7765, 0.0
        %v8278 = vmax.f32 %v7766, 0.0
        %v8279 = vmax.f32 %v7767, 0.0
        %v8280 = vmax.f32 %v7768, 0.0
        %v8281 = vmax.f32 %v7769, 0.0
        %v8282 = vmax.f32 %v7770, 0.0
        %v8283 = vmax.f32 %v7771, 0.0
        %v8284 = vmax.f32 %v7772, 0.0
        %v8285 = vmax.f32 %v7773, 0.0
        %v8286 = vmax.f32 %v7774, 0.0
        %v8287 = vmax.f32 %v7775, 0.0
        %v8288 = vmax.f32 %v7776, 0.0
        %v8289 = vmax.f32 %v7777, 0.0
        %v8290 = vmax.f32 %v7778, 0.0
        %v8291 = vmax.f32 %v7779, 0.0
        %v8292 = vmax.f32 %v7780, 0.0
        %v8293 = vmax.f32 %v7781, 0.0
        %v8294 = vmax.f32 %v7782, 0.0
        %v8295 = vmax.f32 %v7783, 0.0
        %v8296 = vmax.f32 %v7784, 0.0
        %v8297 = vmax.f32 %v7785, 0.0
        %v8298 = vmax.f32 %v7786, 0.0
        %v8299 = vmax.f32 %v7787, 0.0
        %v8300 = vmax.f32 %v7788, 0.0
        %v8301 = vmax.f32 %v7789, 0.0
        %v8302 = vmax.f32 %v7790, 0.0
        %v8303 = vmax.f32 %v7791, 0.0
        %v8304 = vmax.f32 %v7792, 0.0
        %v8305 = vmax.f32 %v7793, 0.0
        %v8306 = vmax.f32 %v7794, 0.0
        %v8307 = vmax.f32 %v7795, 0.0
        %v8308 = vmax.f32 %v7796, 0.0
        %v8309 = vmax.f32 %v7797, 0.0
        %v8310 = vmax.f32 %v7798, 0.0
        %v8311 = vmax.f32 %v7799, 0.0
        %v8312 = vmax.f32 %v7800, 0.0
        %v8313 = vmax.f32 %v7801, 0.0
        %v8314 = vmax.f32 %v7802, 0.0
        %v8315 = vmax.f32 %v7803, 0.0
        %v8316 = vmax.f32 %v7804, 0.0
        %v8317 = vmax.f32 %v7805, 0.0
        %v8318 = vmax.f32 %v7806, 0.0
        %v8319 = vmax.f32 %v7807, 0.0
        %v8320 = vmax.f32 %v7808, 0.0
        %v8321 = vmax.f32 %v7809, 0.0
        %v8322 = vmax.f32 %v7810, 0.0
        %v8323 = vmax.f32 %v7811, 0.0
        %v8324 = vmax.f32 %v7812, 0.0
        %v8325 = vmax.f32 %v7813, 0.0
        %v8326 = vmax.f32 %v7814, 0.0
        %v8327 = vmax.f32 %v7815, 0.0
        %v8328 = vmax.f32 %v7816, 0.0
        %v8329 = vmax.f32 %v7817, 0.0
        %v8330 = vmax.f32 %v7818, 0.0
        %v8331 = vmax.f32 %v7819, 0.0
        %v8332 = vmax.f32 %v7820, 0.0
        %v8333 = vmax.f32 %v7821, 0.0
        %v8334 = vmax.f32 %v7822, 0.0
        %v8335 = vmax.f32 %v7823, 0.0
        %v8336 = vmax.f32 %v7824, 0.0
        %v8337 = vmax.f32 %v7825, 0.0
        %v8338 = vmax.f32 %v7826, 0.0
        %v8339 = vmax.f32 %v7827, 0.0
        %v8340 = vmax.f32 %v7828, 0.0
        %v8341 = vmax.f32 %v7829, 0.0
        %v8342 = vmax.f32 %v7830, 0.0
        %v8343 = vmax.f32 %v7831, 0.0
        %v8344 = vmax.f32 %v7832, 0.0
        %v8345 = vmax.f32 %v7833, 0.0
        %v8346 = vmax.f32 %v7834, 0.0
        %v8347 = vmax.f32 %v7835, 0.0
        %v8348 = vmax.f32 %v7836, 0.0
        %v8349 = vmax.f32 %v7837, 0.0
        %v8350 = vmax.f32 %v7838, 0.0
        %v8351 = vmax.f32 %v7839, 0.0
        %v8352 = vmax.f32 %v7840, 0.0
        %v8353 = vmax.f32 %v7841, 0.0
        %v8354 = vmax.f32 %v7842, 0.0
        %v8355 = vmax.f32 %v7843, 0.0
        %v8356 = vmax.f32 %v7844, 0.0
        %v8357 = vmax.f32 %v7845, 0.0
        %v8358 = vmax.f32 %v7846, 0.0
        %v8359 = vmax.f32 %v7847, 0.0
        %v8360 = vmax.f32 %v7848, 0.0
        %v8361 = vmax.f32 %v7849, 0.0
        %v8362 = vmax.f32 %v7850, 0.0
        %v8363 = vmax.f32 %v7851, 0.0
        %v8364 = vmax.f32 %v7852, 0.0
        %v8365 = vmax.f32 %v7853, 0.0
        %v8366 = vmax.f32 %v7854, 0.0
        %v8367 = vmax.f32 %v7855, 0.0
        %v8368 = vmax.f32 %v7856, 0.0
        %v8369 = vmax.f32 %v7857, 0.0
        %v8370 = vmax.f32 %v7858, 0.0
        %v8371 = vmax.f32 %v7859, 0.0
        %v8372 = vmax.f32 %v7860, 0.0
        %v8373 = vmax.f32 %v7861, 0.0
        %v8374 = vmax.f32 %v7862, 0.0
        %v8375 = vmax.f32 %v7863, 0.0
        %v8376 = vmax.f32 %v7864, 0.0
        %v8377 = vmax.f32 %v7865, 0.0
        %v8378 = vmax.f32 %v7866, 0.0
        %v8379 = vmax.f32 %v7867, 0.0
        %v8380 = vmax.f32 %v7868, 0.0
        %v8381 = vmax.f32 %v7869, 0.0
        %v8382 = vmax.f32 %v7870, 0.0
        %v8383 = vmax.f32 %v7871, 0.0
        %v8384 = vmax.f32 %v7872, 0.0
        %v8385 = vmax.f32 %v7873, 0.0
        %v8386 = vmax.f32 %v7874, 0.0
        %v8387 = vmax.f32 %v7875, 0.0
        %v8388 = vmax.f32 %v7876, 0.0
        %v8389 = vmax.f32 %v7877, 0.0
        %v8390 = vmax.f32 %v7878, 0.0
        %v8391 = vmax.f32 %v7879, 0.0
        %v8392 = vmax.f32 %v7880, 0.0
        %v8393 = vmax.f32 %v7881, 0.0
        %v8394 = vmax.f32 %v7882, 0.0
        %v8395 = vmax.f32 %v7883, 0.0
        %v8396 = vmax.f32 %v7884, 0.0
        %v8397 = vmax.f32 %v7885, 0.0
        %v8398 = vmax.f32 %v7886, 0.0
        %v8399 = vmax.f32 %v7887, 0.0
        %v8400 = vmax.f32 %v7888, 0.0
        %v8401 = vmax.f32 %v7889, 0.0
        %v8402 = vmax.f32 %v7890, 0.0
        %v8403 = vmax.f32 %v7891, 0.0
        %v8404 = vmax.f32 %v7892, 0.0
        %v8405 = vmax.f32 %v7893, 0.0
        %v8406 = vmax.f32 %v7894, 0.0
        %v8407 = vmax.f32 %v7895, 0.0
        %v8408 = vmax.f32 %v7896, 0.0
        %v8409 = vmax.f32 %v7897, 0.0
        %v8410 = vmax.f32 %v7898, 0.0
        %v8411 = vmax.f32 %v7899, 0.0
        %v8412 = vmax.f32 %v7900, 0.0
        %v8413 = vmax.f32 %v7901, 0.0
        %v8414 = vmax.f32 %v7902, 0.0
        %v8415 = vmax.f32 %v7903, 0.0
        %v8416 = vmax.f32 %v7904, 0.0
        %v8417 = vmax.f32 %v7905, 0.0
        %v8418 = vmax.f32 %v7906, 0.0
        %v8419 = vmax.f32 %v7907, 0.0
        %v8420 = vmax.f32 %v7908, 0.0
        %v8421 = vmax.f32 %v7909, 0.0
        %v8422 = vmax.f32 %v7910, 0.0
        %v8423 = vmax.f32 %v7911, 0.0
        %v8424 = vmax.f32 %v7912, 0.0
        %v8425 = vmax.f32 %v7913, 0.0
        %v8426 = vmax.f32 %v7914, 0.0
        %v8427 = vmax.f32 %v7915, 0.0
        %v8428 = vmax.f32 %v7916, 0.0
        %v8429 = vmax.f32 %v7917, 0.0
        %v8430 = vmax.f32 %v7918, 0.0
        %v8431 = vmax.f32 %v7919, 0.0
        %v8432 = vmax.f32 %v7920, 0.0
        %v8433 = vmax.f32 %v7921, 0.0
        %v8434 = vmax.f32 %v7922, 0.0
        %v8435 = vmax.f32 %v7923, 0.0
        %v8436 = vmax.f32 %v7924, 0.0
        %v8437 = vmax.f32 %v7925, 0.0
        %v8438 = vmax.f32 %v7926, 0.0
        %v8439 = vmax.f32 %v7927, 0.0
        %v8440 = vmax.f32 %v7928, 0.0
        %v8441 = vmax.f32 %v7929, 0.0
        %v8442 = vmax.f32 %v7930, 0.0
        %v8443 = vmax.f32 %v7931, 0.0
        %v8444 = vmax.f32 %v7932, 0.0
        %v8445 = vmax.f32 %v7933, 0.0
        %v8446 = vmax.f32 %v7934, 0.0
        %v8447 = vmax.f32 %v7935, 0.0
        %v8448 = vmax.f32 %v7936, 0.0
        %v8449 = vmax.f32 %v7937, 0.0
        %v8450 = vmax.f32 %v7938, 0.0
        %v8451 = vmax.f32 %v7939, 0.0
        %v8452 = vmax.f32 %v7940, 0.0
        %v8453 = vmax.f32 %v7941, 0.0
        %v8454 = vmax.f32 %v7942, 0.0
        %v8455 = vmax.f32 %v7943, 0.0
        %v8456 = vmax.f32 %v7944, 0.0
        %v8457 = vmax.f32 %v7945, 0.0
        %v8458 = vmax.f32 %v7946, 0.0
        %v8459 = vmax.f32 %v7947, 0.0
        %v8460 = vmax.f32 %v7948, 0.0
        %v8461 = vmax.f32 %v7949, 0.0
        %v8462 = vmax.f32 %v7950, 0.0
        %v8463 = vmax.f32 %v7951, 0.0
        %v8464 = vmax.f32 %v7952, 0.0
        %v8465 = vmax.f32 %v7953, 0.0
        %v8466 = vmax.f32 %v7954, 0.0
        %v8467 = vmax.f32 %v7955, 0.0
        %v8468 = vmax.f32 %v7956, 0.0
        %v8469 = vmax.f32 %v7957, 0.0
        %v8470 = vmax.f32 %v7958, 0.0
        %v8471 = vmax.f32 %v7959, 0.0
        %v8472 = vmax.f32 %v7960, 0.0
        %v8473 = vmax.f32 %v7961, 0.0
        %v8474 = vmax.f32 %v7962, 0.0
        %v8475 = vmax.f32 %v7963, 0.0
        %v8476 = vmax.f32 %v7964, 0.0
        %v8477 = vmax.f32 %v7965, 0.0
        %v8478 = vmax.f32 %v7966, 0.0
        %v8479 = vmax.f32 %v7967, 0.0
        %v8480 = vmax.f32 %v7968, 0.0
        %v8481 = vmax.f32 %v7969, 0.0
        %v8482 = vmax.f32 %v7970, 0.0
        %v8483 = vmax.f32 %v7971, 0.0
        %v8484 = vmax.f32 %v7972, 0.0
        %v8485 = vmax.f32 %v7973, 0.0
        %v8486 = vmax.f32 %v7974, 0.0
        %v8487 = vmax.f32 %v7975, 0.0
        %v8488 = vmax.f32 %v7976, 0.0
        %v8489 = vmax.f32 %v7977, 0.0
        %v8490 = vmax.f32 %v7978, 0.0
        %v8491 = vmax.f32 %v7979, 0.0
        %v8492 = vmax.f32 %v7980, 0.0
        %v8493 = vmax.f32 %v7981, 0.0
        %v8494 = vmax.f32 %v7982, 0.0
        %v8495 = vmax.f32 %v7983, 0.0
        %v8496 = vmax.f32 %v7984, 0.0
        %v8497 = vmax.f32 %v7985, 0.0
        %v8498 = vmax.f32 %v7986, 0.0
        %v8499 = vmax.f32 %v7987, 0.0
        %v8500 = vmax.f32 %v7988, 0.0
        %v8501 = vmax.f32 %v7989, 0.0
        %v8502 = vmax.f32 %v7990, 0.0
        %v8503 = vmax.f32 %v7991, 0.0
        %v8504 = vmax.f32 %v7992, 0.0
        %v8505 = vmax.f32 %v7993, 0.0
        %v8506 = vmax.f32 %v7994, 0.0
        %v8507 = vmax.f32 %v7995, 0.0
        %v8508 = vmax.f32 %v7996, 0.0
        %v8509 = vmax.f32 %v7997, 0.0
        %v8510 = vmax.f32 %v7998, 0.0
        %v8511 = vmax.f32 %v7999, 0.0
        %v8512 = vmax.f32 %v8000, 0.0
        %v8513 = vmax.f32 %v8001, 0.0
        %v8514 = vmax.f32 %v8002, 0.0
        %v8515 = vmax.f32 %v8003, 0.0
        %v8516 = vmax.f32 %v8004, 0.0
        %v8517 = vmax.f32 %v8005, 0.0
        %v8518 = vmax.f32 %v8006, 0.0
        %v8519 = vmax.f32 %v8007, 0.0
        %v8520 = vmax.f32 %v8008, 0.0
        %v8521 = vmax.f32 %v8009, 0.0
        %v8522 = vmax.f32 %v8010, 0.0
        %v8523 = vmax.f32 %v8011, 0.0
        %v8524 = vmax.f32 %v8012, 0.0
        %v8525 = vmax.f32 %v8013, 0.0
        %v8526 = vmax.f32 %v8014, 0.0
        %v8527 = vmax.f32 %v8015, 0.0
        %v8528 = vmax.f32 %v8016, 0.0
        %v8529 = vmax.f32 %v8017, 0.0
        %v8530 = vmax.f32 %v8018, 0.0
        %v8531 = vmax.f32 %v8019, 0.0
        %v8532 = vmax.f32 %v8020, 0.0
        %v8533 = vmax.f32 %v8021, 0.0
        %v8534 = vmax.f32 %v8022, 0.0
        %v8535 = vmax.f32 %v8023, 0.0
        %v8536 = vmax.f32 %v8024, 0.0
        %v8537 = vmax.f32 %v8025, 0.0
        %v8538 = vmax.f32 %v8026, 0.0
        %v8539 = vmax.f32 %v8027, 0.0
        %v8540 = vmax.f32 %v8028, 0.0
        %v8541 = vmax.f32 %v8029, 0.0
        %v8542 = vmax.f32 %v8030, 0.0
        %v8543 = vmax.f32 %v8031, 0.0
        %v8544 = vmax.f32 %v8032, 0.0
        %v8545 = vmax.f32 %v8033, 0.0
        %v8546 = vmax.f32 %v8034, 0.0
        %v8547 = vmax.f32 %v8035, 0.0
        %v8548 = vmax.f32 %v8036, 0.0
        %v8549 = vmax.f32 %v8037, 0.0
        %v8550 = vmax.f32 %v8038, 0.0
        %v8551 = vmax.f32 %v8039, 0.0
        %v8552 = vmax.f32 %v8040, 0.0
        %v8553 = vmax.f32 %v8041, 0.0
        %v8554 = vmax.f32 %v8042, 0.0
        %v8555 = vmax.f32 %v8043, 0.0
        %v8556 = vmax.f32 %v8044, 0.0
        %v8557 = vmax.f32 %v8045, 0.0
        %v8558 = vmax.f32 %v8046, 0.0
        %v8559 = vmax.f32 %v8047, 0.0
        %v8560 = vmax.f32 %v8048, 0.0
        %v8561 = vmax.f32 %v8049, 0.0
        %v8562 = vmax.f32 %v8050, 0.0
        %v8563 = vmax.f32 %v8051, 0.0
        %v8564 = vmax.f32 %v8052, 0.0
        %v8565 = vmax.f32 %v8053, 0.0
        %v8566 = vmax.f32 %v8054, 0.0
        %v8567 = vmax.f32 %v8055, 0.0
        %v8568 = vmax.f32 %v8056, 0.0
        %v8569 = vmax.f32 %v8057, 0.0
        %v8570 = vmax.f32 %v8058, 0.0
        %v8571 = vmax.f32 %v8059, 0.0
        %v8572 = vmax.f32 %v8060, 0.0
        %v8573 = vmax.f32 %v8061, 0.0
        %v8574 = vmax.f32 %v8062, 0.0
        %v8575 = vmax.f32 %v8063, 0.0
        %v8576 = vmax.f32 %v8064, 0.0
        %v8577 = vmax.f32 %v8065, 0.0
        %v8578 = vmax.f32 %v8066, 0.0
        %v8579 = vmax.f32 %v8067, 0.0
        %v8580 = vmax.f32 %v8068, 0.0
        %v8581 = vmax.f32 %v8069, 0.0
        %v8582 = vmax.f32 %v8070, 0.0
        %v8583 = vmax.f32 %v8071, 0.0
        %v8584 = vmax.f32 %v8072, 0.0
        %v8585 = vmax.f32 %v8073, 0.0
        %v8586 = vmax.f32 %v8074, 0.0
        %v8587 = vmax.f32 %v8075, 0.0
        %v8588 = vmax.f32 %v8076, 0.0
        %v8589 = vmax.f32 %v8077, 0.0
        %v8590 = vmax.f32 %v8078, 0.0
        %v8591 = vmax.f32 %v8079, 0.0
        %v8592 = vmax.f32 %v8080, 0.0
        %v8593 = vmax.f32 %v8081, 0.0
        %v8594 = vmax.f32 %v8082, 0.0
        %v8595 = vmax.f32 %v8083, 0.0
        %v8596 = vmax.f32 %v8084, 0.0
        %v8597 = vmax.f32 %v8085, 0.0
        %v8598 = vmax.f32 %v8086, 0.0
        %v8599 = vmax.f32 %v8087, 0.0
        %v8600 = vmax.f32 %v8088, 0.0
        %v8601 = vmax.f32 %v8089, 0.0
        %v8602 = vmax.f32 %v8090, 0.0
        %v8603 = vmax.f32 %v8091, 0.0
        %v8604 = vmax.f32 %v8092, 0.0
        %v8605 = vmax.f32 %v8093, 0.0
        %v8606 = vmax.f32 %v8094, 0.0
        %v8607 = vmax.f32 %v8095, 0.0
        %v8608 = vmax.f32 %v8096, 0.0
        %v8609 = vmax.f32 %v8097, 0.0
        %v8610 = vmax.f32 %v8098, 0.0
        %v8611 = vmax.f32 %v8099, 0.0
        %v8612 = vmax.f32 %v8100, 0.0
        %v8613 = vmax.f32 %v8101, 0.0
        %v8614 = vmax.f32 %v8102, 0.0
        %v8615 = vmax.f32 %v8103, 0.0
        %v8616 = vmax.f32 %v8104, 0.0
        %v8617 = vmax.f32 %v8105, 0.0
        %v8618 = vmax.f32 %v8106, 0.0
        %v8619 = vmax.f32 %v8107, 0.0
        %v8620 = vmax.f32 %v8108, 0.0
        %v8621 = vadd.f32 %v8109, %v8117
        %v8622 = vadd.f32 %v8621, %v8125
        %v8623 = vadd.f32 %v8622, %v8133
        %v8624 = vadd.f32 %v8623, %v8141
        %v8625 = vadd.f32 %v8624, %v8149
        %v8626 = vadd.f32 %v8625, %v8157
        %v8627 = vadd.f32 %v8626, %v8165
        %v8628 = vadd.f32 %v8627, %v8173
        %v8629 = vadd.f32 %v8628, %v8181
        %v8630 = vadd.f32 %v8629, %v8189
        %v8631 = vadd.f32 %v8630, %v8197
        %v8632 = vadd.f32 %v8631, %v8205
        %v8633 = vadd.f32 %v8632, %v8213
        %v8634 = vadd.f32 %v8633, %v8221
        %v8635 = vadd.f32 %v8634, %v8229
        %v8636 = vadd.f32 %v8635, %v8237
        %v8637 = vadd.f32 %v8636, %v8245
        %v8638 = vadd.f32 %v8637, %v8253
        %v8639 = vadd.f32 %v8638, %v8261
        %v8640 = vadd.f32 %v8639, %v8269
        %v8641 = vadd.f32 %v8640, %v8277
        %v8642 = vadd.f32 %v8641, %v8285
        %v8643 = vadd.f32 %v8642, %v8293
        %v8644 = vadd.f32 %v8643, %v8301
        %v8645 = vadd.f32 %v8644, %v8309
        %v8646 = vadd.f32 %v8645, %v8317
        %v8647 = vadd.f32 %v8646, %v8325
        %v8648 = vadd.f32 %v8647, %v8333
        %v8649 = vadd.f32 %v8648, %v8341
        %v8650 = vadd.f32 %v8649, %v8349
        %v8651 = vadd.f32 %v8650, %v8357
        %v8652 = vrot.slane %v8651, 4
        %v8653 = vadd.f32 %v8651, %v8652
        %v8654 = vrot.slane %v8653, 2
        %v8655 = vadd.f32 %v8653, %v8654
        %v8656 = vrot.slane %v8655, 1
        %v8657 = vadd.f32 %v8655, %v8656
        %v8658 = vadd.f32 %v8110, %v8118
        %v8659 = vadd.f32 %v8658, %v8126
        %v8660 = vadd.f32 %v8659, %v8134
        %v8661 = vadd.f32 %v8660, %v8142
        %v8662 = vadd.f32 %v8661, %v8150
        %v8663 = vadd.f32 %v8662, %v8158
        %v8664 = vadd.f32 %v8663, %v8166
        %v8665 = vadd.f32 %v8664, %v8174
        %v8666 = vadd.f32 %v8665, %v8182
        %v8667 = vadd.f32 %v8666, %v8190
        %v8668 = vadd.f32 %v8667, %v8198
        %v8669 = vadd.f32 %v8668, %v8206
        %v8670 = vadd.f32 %v8669, %v8214
        %v8671 = vadd.f32 %v8670, %v8222
        %v8672 = vadd.f32 %v8671, %v8230
        %v8673 = vadd.f32 %v8672, %v8238
        %v8674 = vadd.f32 %v8673, %v8246
        %v8675 = vadd.f32 %v8674, %v8254
        %v8676 = vadd.f32 %v8675, %v8262
        %v8677 = vadd.f32 %v8676, %v8270
        %v8678 = vadd.f32 %v8677, %v8278
        %v8679 = vadd.f32 %v8678, %v8286
        %v8680 = vadd.f32 %v8679, %v8294
        %v8681 = vadd.f32 %v8680, %v8302
        %v8682 = vadd.f32 %v8681, %v8310
        %v8683 = vadd.f32 %v8682, %v8318
        %v8684 = vadd.f32 %v8683, %v8326
        %v8685 = vadd.f32 %v8684, %v8334
        %v8686 = vadd.f32 %v8685, %v8342
        %v8687 = vadd.f32 %v8686, %v8350
        %v8688 = vadd.f32 %v8687, %v8358
        %v8689 = vrot.slane %v8688, 4
        %v8690 = vadd.f32 %v8688, %v8689
        %v8691 = vrot.slane %v8690, 2
        %v8692 = vadd.f32 %v8690, %v8691
        %v8693 = vrot.slane %v8692, 1
        %v8694 = vadd.f32 %v8692, %v8693
        %v8695 = vadd.f32 %v8111, %v8119
        %v8696 = vadd.f32 %v8695, %v8127
        %v8697 = vadd.f32 %v8696, %v8135
        %v8698 = vadd.f32 %v8697, %v8143
        %v8699 = vadd.f32 %v8698, %v8151
        %v8700 = vadd.f32 %v8699, %v8159
        %v8701 = vadd.f32 %v8700, %v8167
        %v8702 = vadd.f32 %v8701, %v8175
        %v8703 = vadd.f32 %v8702, %v8183
        %v8704 = vadd.f32 %v8703, %v8191
        %v8705 = vadd.f32 %v8704, %v8199
        %v8706 = vadd.f32 %v8705, %v8207
        %v8707 = vadd.f32 %v8706, %v8215
        %v8708 = vadd.f32 %v8707, %v8223
        %v8709 = vadd.f32 %v8708, %v8231
        %v8710 = vadd.f32 %v8709, %v8239
        %v8711 = vadd.f32 %v8710, %v8247
        %v8712 = vadd.f32 %v8711, %v8255
        %v8713 = vadd.f32 %v8712, %v8263
        %v8714 = vadd.f32 %v8713, %v8271
        %v8715 = vadd.f32 %v8714, %v8279
        %v8716 = vadd.f32 %v8715, %v8287
        %v8717 = vadd.f32 %v8716, %v8295
        %v8718 = vadd.f32 %v8717, %v8303
        %v8719 = vadd.f32 %v8718, %v8311
        %v8720 = vadd.f32 %v8719, %v8319
        %v8721 = vadd.f32 %v8720, %v8327
        %v8722 = vadd.f32 %v8721, %v8335
        %v8723 = vadd.f32 %v8722, %v8343
        %v8724 = vadd.f32 %v8723, %v8351
        %v8725 = vadd.f32 %v8724, %v8359
        %v8726 = vrot.slane %v8725, 4
        %v8727 = vadd.f32 %v8725, %v8726
        %v8728 = vrot.slane %v8727, 2
        %v8729 = vadd.f32 %v8727, %v8728
        %v8730 = vrot.slane %v8729, 1
        %v8731 = vadd.f32 %v8729, %v8730
        %v8732 = vadd.f32 %v8112, %v8120
        %v8733 = vadd.f32 %v8732, %v8128
        %v8734 = vadd.f32 %v8733, %v8136
        %v8735 = vadd.f32 %v8734, %v8144
        %v8736 = vadd.f32 %v8735, %v8152
        %v8737 = vadd.f32 %v8736, %v8160
        %v8738 = vadd.f32 %v8737, %v8168
        %v8739 = vadd.f32 %v8738, %v8176
        %v8740 = vadd.f32 %v8739, %v8184
        %v8741 = vadd.f32 %v8740, %v8192
        %v8742 = vadd.f32 %v8741, %v8200
        %v8743 = vadd.f32 %v8742, %v8208
        %v8744 = vadd.f32 %v8743, %v8216
        %v8745 = vadd.f32 %v8744, %v8224
        %v8746 = vadd.f32 %v8745, %v8232
        %v8747 = vadd.f32 %v8746, %v8240
        %v8748 = vadd.f32 %v8747, %v8248
        %v8749 = vadd.f32 %v8748, %v8256
        %v8750 = vadd.f32 %v8749, %v8264
        %v8751 = vadd.f32 %v8750, %v8272
        %v8752 = vadd.f32 %v8751, %v8280
        %v8753 = vadd.f32 %v8752, %v8288
        %v8754 = vadd.f32 %v8753, %v8296
        %v8755 = vadd.f32 %v8754, %v8304
        %v8756 = vadd.f32 %v8755, %v8312
        %v8757 = vadd.f32 %v8756, %v8320
        %v8758 = vadd.f32 %v8757, %v8328
        %v8759 = vadd.f32 %v8758, %v8336
        %v8760 = vadd.f32 %v8759, %v8344
        %v8761 = vadd.f32 %v8760, %v8352
        %v8762 = vadd.f32 %v8761, %v8360
        %v8763 = vrot.slane %v8762, 4
        %v8764 = vadd.f32 %v8762, %v8763
        %v8765 = vrot.slane %v8764, 2
        %v8766 = vadd.f32 %v8764, %v8765
        %v8767 = vrot.slane %v8766, 1
        %v8768 = vadd.f32 %v8766, %v8767
        %v8769 = vadd.f32 %v8113, %v8121
        %v8770 = vadd.f32 %v8769, %v8129
        %v8771 = vadd.f32 %v8770, %v8137
        %v8772 = vadd.f32 %v8771, %v8145
        %v8773 = vadd.f32 %v8772, %v8153
        %v8774 = vadd.f32 %v8773, %v8161
        %v8775 = vadd.f32 %v8774, %v8169
        %v8776 = vadd.f32 %v8775, %v8177
        %v8777 = vadd.f32 %v8776, %v8185
        %v8778 = vadd.f32 %v8777, %v8193
        %v8779 = vadd.f32 %v8778, %v8201
        %v8780 = vadd.f32 %v8779, %v8209
        %v8781 = vadd.f32 %v8780, %v8217
        %v8782 = vadd.f32 %v8781, %v8225
        %v8783 = vadd.f32 %v8782, %v8233
        %v8784 = vadd.f32 %v8783, %v8241
        %v8785 = vadd.f32 %v8784, %v8249
        %v8786 = vadd.f32 %v8785, %v8257
        %v8787 = vadd.f32 %v8786, %v8265
        %v8788 = vadd.f32 %v8787, %v8273
        %v8789 = vadd.f32 %v8788, %v8281
        %v8790 = vadd.f32 %v8789, %v8289
        %v8791 = vadd.f32 %v8790, %v8297
        %v8792 = vadd.f32 %v8791, %v8305
        %v8793 = vadd.f32 %v8792, %v8313
        %v8794 = vadd.f32 %v8793, %v8321
        %v8795 = vadd.f32 %v8794, %v8329
        %v8796 = vadd.f32 %v8795, %v8337
        %v8797 = vadd.f32 %v8796, %v8345
        %v8798 = vadd.f32 %v8797, %v8353
        %v8799 = vadd.f32 %v8798, %v8361
        %v8800 = vrot.slane %v8799, 4
        %v8801 = vadd.f32 %v8799, %v8800
        %v8802 = vrot.slane %v8801, 2
        %v8803 = vadd.f32 %v8801, %v8802
        %v8804 = vrot.slane %v8803, 1
        %v8805 = vadd.f32 %v8803, %v8804
        %v8806 = vadd.f32 %v8114, %v8122
        %v8807 = vadd.f32 %v8806, %v8130
        %v8808 = vadd.f32 %v8807, %v8138
        %v8809 = vadd.f32 %v8808, %v8146
        %v8810 = vadd.f32 %v8809, %v8154
        %v8811 = vadd.f32 %v8810, %v8162
        %v8812 = vadd.f32 %v8811, %v8170
        %v8813 = vadd.f32 %v8812, %v8178
        %v8814 = vadd.f32 %v8813, %v8186
        %v8815 = vadd.f32 %v8814, %v8194
        %v8816 = vadd.f32 %v8815, %v8202
        %v8817 = vadd.f32 %v8816, %v8210
        %v8818 = vadd.f32 %v8817, %v8218
        %v8819 = vadd.f32 %v8818, %v8226
        %v8820 = vadd.f32 %v8819, %v8234
        %v8821 = vadd.f32 %v8820, %v8242
        %v8822 = vadd.f32 %v8821, %v8250
        %v8823 = vadd.f32 %v8822, %v8258
        %v8824 = vadd.f32 %v8823, %v8266
        %v8825 = vadd.f32 %v8824, %v8274
        %v8826 = vadd.f32 %v8825, %v8282
        %v8827 = vadd.f32 %v8826, %v8290
        %v8828 = vadd.f32 %v8827, %v8298
        %v8829 = vadd.f32 %v8828, %v8306
        %v8830 = vadd.f32 %v8829, %v8314
        %v8831 = vadd.f32 %v8830, %v8322
        %v8832 = vadd.f32 %v8831, %v8330
        %v8833 = vadd.f32 %v8832, %v8338
        %v8834 = vadd.f32 %v8833, %v8346
        %v8835 = vadd.f32 %v8834, %v8354
        %v8836 = vadd.f32 %v8835, %v8362
        %v8837 = vrot.slane %v8836, 4
        %v8838 = vadd.f32 %v8836, %v8837
        %v8839 = vrot.slane %v8838, 2
        %v8840 = vadd.f32 %v8838, %v8839
        %v8841 = vrot.slane %v8840, 1
        %v8842 = vadd.f32 %v8840, %v8841
        %v8843 = vadd.f32 %v8115, %v8123
        %v8844 = vadd.f32 %v8843, %v8131
        %v8845 = vadd.f32 %v8844, %v8139
        %v8846 = vadd.f32 %v8845, %v8147
        %v8847 = vadd.f32 %v8846, %v8155
        %v8848 = vadd.f32 %v8847, %v8163
        %v8849 = vadd.f32 %v8848, %v8171
        %v8850 = vadd.f32 %v8849, %v8179
        %v8851 = vadd.f32 %v8850, %v8187
        %v8852 = vadd.f32 %v8851, %v8195
        %v8853 = vadd.f32 %v8852, %v8203
        %v8854 = vadd.f32 %v8853, %v8211
        %v8855 = vadd.f32 %v8854, %v8219
        %v8856 = vadd.f32 %v8855, %v8227
        %v8857 = vadd.f32 %v8856, %v8235
        %v8858 = vadd.f32 %v8857, %v8243
        %v8859 = vadd.f32 %v8858, %v8251
        %v8860 = vadd.f32 %v8859, %v8259
        %v8861 = vadd.f32 %v8860, %v8267
        %v8862 = vadd.f32 %v8861, %v8275
        %v8863 = vadd.f32 %v8862, %v8283
        %v8864 = vadd.f32 %v8863, %v8291
        %v8865 = vadd.f32 %v8864, %v8299
        %v8866 = vadd.f32 %v8865, %v8307
        %v8867 = vadd.f32 %v8866, %v8315
        %v8868 = vadd.f32 %v8867, %v8323
        %v8869 = vadd.f32 %v8868, %v8331
        %v8870 = vadd.f32 %v8869, %v8339
        %v8871 = vadd.f32 %v8870, %v8347
        %v8872 = vadd.f32 %v8871, %v8355
        %v8873 = vadd.f32 %v8872, %v8363
        %v8874 = vrot.slane %v8873, 4
        %v8875 = vadd.f32 %v8873, %v8874
        %v8876 = vrot.slane %v8875, 2
        %v8877 = vadd.f32 %v8875, %v8876
        %v8878 = vrot.slane %v8877, 1
        %v8879 = vadd.f32 %v8877, %v8878
        %v8880 = vadd.f32 %v8116, %v8124
        %v8881 = vadd.f32 %v8880, %v8132
        %v8882 = vadd.f32 %v8881, %v8140
        %v8883 = vadd.f32 %v8882, %v8148
        %v8884 = vadd.f32 %v8883, %v8156
        %v8885 = vadd.f32 %v8884, %v8164
        %v8886 = vadd.f32 %v8885, %v8172
        %v8887 = vadd.f32 %v8886, %v8180
        %v8888 = vadd.f32 %v8887, %v8188
        %v8889 = vadd.f32 %v8888, %v8196
        %v8890 = vadd.f32 %v8889, %v8204
        %v8891 = vadd.f32 %v8890, %v8212
        %v8892 = vadd.f32 %v8891, %v8220
        %v8893 = vadd.f32 %v8892, %v8228
        %v8894 = vadd.f32 %v8893, %v8236
        %v8895 = vadd.f32 %v8894, %v8244
        %v8896 = vadd.f32 %v8895, %v8252
        %v8897 = vadd.f32 %v8896, %v8260
        %v8898 = vadd.f32 %v8897, %v8268
        %v8899 = vadd.f32 %v8898, %v8276
        %v8900 = vadd.f32 %v8899, %v8284
        %v8901 = vadd.f32 %v8900, %v8292
        %v8902 = vadd.f32 %v8901, %v8300
        %v8903 = vadd.f32 %v8902, %v8308
        %v8904 = vadd.f32 %v8903, %v8316
        %v8905 = vadd.f32 %v8904, %v8324
        %v8906 = vadd.f32 %v8905, %v8332
        %v8907 = vadd.f32 %v8906, %v8340
        %v8908 = vadd.f32 %v8907, %v8348
        %v8909 = vadd.f32 %v8908, %v8356
        %v8910 = vadd.f32 %v8909, %v8364
        %v8911 = vrot.slane %v8910, 4
        %v8912 = vadd.f32 %v8910, %v8911
        %v8913 = vrot.slane %v8912, 2
        %v8914 = vadd.f32 %v8912, %v8913
        %v8915 = vrot.slane %v8914, 1
        %v8916 = vadd.f32 %v8914, %v8915
        %v8917 = vadd.f32 %v8365, %v8373
        %v8918 = vadd.f32 %v8917, %v8381
        %v8919 = vadd.f32 %v8918, %v8389
        %v8920 = vadd.f32 %v8919, %v8397
        %v8921 = vadd.f32 %v8920, %v8405
        %v8922 = vadd.f32 %v8921, %v8413
        %v8923 = vadd.f32 %v8922, %v8421
        %v8924 = vadd.f32 %v8923, %v8429
        %v8925 = vadd.f32 %v8924, %v8437
        %v8926 = vadd.f32 %v8925, %v8445
        %v8927 = vadd.f32 %v8926, %v8453
        %v8928 = vadd.f32 %v8927, %v8461
        %v8929 = vadd.f32 %v8928, %v8469
        %v8930 = vadd.f32 %v8929, %v8477
        %v8931 = vadd.f32 %v8930, %v8485
        %v8932 = vadd.f32 %v8931, %v8493
        %v8933 = vadd.f32 %v8932, %v8501
        %v8934 = vadd.f32 %v8933, %v8509
        %v8935 = vadd.f32 %v8934, %v8517
        %v8936 = vadd.f32 %v8935, %v8525
        %v8937 = vadd.f32 %v8936, %v8533
        %v8938 = vadd.f32 %v8937, %v8541
        %v8939 = vadd.f32 %v8938, %v8549
        %v8940 = vadd.f32 %v8939, %v8557
        %v8941 = vadd.f32 %v8940, %v8565
        %v8942 = vadd.f32 %v8941, %v8573
        %v8943 = vadd.f32 %v8942, %v8581
        %v8944 = vadd.f32 %v8943, %v8589
        %v8945 = vadd.f32 %v8944, %v8597
        %v8946 = vadd.f32 %v8945, %v8605
        %v8947 = vadd.f32 %v8946, %v8613
        %v8948 = vrot.slane %v8947, 4
        %v8949 = vadd.f32 %v8947, %v8948
        %v8950 = vrot.slane %v8949, 2
        %v8951 = vadd.f32 %v8949, %v8950
        %v8952 = vrot.slane %v8951, 1
        %v8953 = vadd.f32 %v8951, %v8952
        %v8954 = vadd.f32 %v8366, %v8374
        %v8955 = vadd.f32 %v8954, %v8382
        %v8956 = vadd.f32 %v8955, %v8390
        %v8957 = vadd.f32 %v8956, %v8398
        %v8958 = vadd.f32 %v8957, %v8406
        %v8959 = vadd.f32 %v8958, %v8414
        %v8960 = vadd.f32 %v8959, %v8422
        %v8961 = vadd.f32 %v8960, %v8430
        %v8962 = vadd.f32 %v8961, %v8438
        %v8963 = vadd.f32 %v8962, %v8446
        %v8964 = vadd.f32 %v8963, %v8454
        %v8965 = vadd.f32 %v8964, %v8462
        %v8966 = vadd.f32 %v8965, %v8470
        %v8967 = vadd.f32 %v8966, %v8478
        %v8968 = vadd.f32 %v8967, %v8486
        %v8969 = vadd.f32 %v8968, %v8494
        %v8970 = vadd.f32 %v8969, %v8502
        %v8971 = vadd.f32 %v8970, %v8510
        %v8972 = vadd.f32 %v8971, %v8518
        %v8973 = vadd.f32 %v8972, %v8526
        %v8974 = vadd.f32 %v8973, %v8534
        %v8975 = vadd.f32 %v8974, %v8542
        %v8976 = vadd.f32 %v8975, %v8550
        %v8977 = vadd.f32 %v8976, %v8558
        %v8978 = vadd.f32 %v8977, %v8566
        %v8979 = vadd.f32 %v8978, %v8574
        %v8980 = vadd.f32 %v8979, %v8582
        %v8981 = vadd.f32 %v8980, %v8590
        %v8982 = vadd.f32 %v8981, %v8598
        %v8983 = vadd.f32 %v8982, %v8606
        %v8984 = vadd.f32 %v8983, %v8614
        %v8985 = vrot.slane %v8984, 4
        %v8986 = vadd.f32 %v8984, %v8985
        %v8987 = vrot.slane %v8986, 2
        %v8988 = vadd.f32 %v8986, %v8987
        %v8989 = vrot.slane %v8988, 1
        %v8990 = vadd.f32 %v8988, %v8989
        %v8991 = vadd.f32 %v8367, %v8375
        %v8992 = vadd.f32 %v8991, %v8383
        %v8993 = vadd.f32 %v8992, %v8391
        %v8994 = vadd.f32 %v8993, %v8399
        %v8995 = vadd.f32 %v8994, %v8407
        %v8996 = vadd.f32 %v8995, %v8415
        %v8997 = vadd.f32 %v8996, %v8423
        %v8998 = vadd.f32 %v8997, %v8431
        %v8999 = vadd.f32 %v8998, %v8439
        %v9000 = vadd.f32 %v8999, %v8447
        %v9001 = vadd.f32 %v9000, %v8455
        %v9002 = vadd.f32 %v9001, %v8463
        %v9003 = vadd.f32 %v9002, %v8471
        %v9004 = vadd.f32 %v9003, %v8479
        %v9005 = vadd.f32 %v9004, %v8487
        %v9006 = vadd.f32 %v9005, %v8495
        %v9007 = vadd.f32 %v9006, %v8503
        %v9008 = vadd.f32 %v9007, %v8511
        %v9009 = vadd.f32 %v9008, %v8519
        %v9010 = vadd.f32 %v9009, %v8527
        %v9011 = vadd.f32 %v9010, %v8535
        %v9012 = vadd.f32 %v9011, %v8543
        %v9013 = vadd.f32 %v9012, %v8551
        %v9014 = vadd.f32 %v9013, %v8559
        %v9015 = vadd.f32 %v9014, %v8567
        %v9016 = vadd.f32 %v9015, %v8575
        %v9017 = vadd.f32 %v9016, %v8583
        %v9018 = vadd.f32 %v9017, %v8591
        %v9019 = vadd.f32 %v9018, %v8599
        %v9020 = vadd.f32 %v9019, %v8607
        %v9021 = vadd.f32 %v9020, %v8615
        %v9022 = vrot.slane %v9021, 4
        %v9023 = vadd.f32 %v9021, %v9022
        %v9024 = vrot.slane %v9023, 2
        %v9025 = vadd.f32 %v9023, %v9024
        %v9026 = vrot.slane %v9025, 1
        %v9027 = vadd.f32 %v9025, %v9026
        %v9028 = vadd.f32 %v8368, %v8376
        %v9029 = vadd.f32 %v9028, %v8384
        %v9030 = vadd.f32 %v9029, %v8392
        %v9031 = vadd.f32 %v9030, %v8400
        %v9032 = vadd.f32 %v9031, %v8408
        %v9033 = vadd.f32 %v9032, %v8416
        %v9034 = vadd.f32 %v9033, %v8424
        %v9035 = vadd.f32 %v9034, %v8432
        %v9036 = vadd.f32 %v9035, %v8440
        %v9037 = vadd.f32 %v9036, %v8448
        %v9038 = vadd.f32 %v9037, %v8456
        %v9039 = vadd.f32 %v9038, %v8464
        %v9040 = vadd.f32 %v9039, %v8472
        %v9041 = vadd.f32 %v9040, %v8480
        %v9042 = vadd.f32 %v9041, %v8488
        %v9043 = vadd.f32 %v9042, %v8496
        %v9044 = vadd.f32 %v9043, %v8504
        %v9045 = vadd.f32 %v9044, %v8512
        %v9046 = vadd.f32 %v9045, %v8520
        %v9047 = vadd.f32 %v9046, %v8528
        %v9048 = vadd.f32 %v9047, %v8536
        %v9049 = vadd.f32 %v9048, %v8544
        %v9050 = vadd.f32 %v9049, %v8552
        %v9051 = vadd.f32 %v9050, %v8560
        %v9052 = vadd.f32 %v9051, %v8568
        %v9053 = vadd.f32 %v9052, %v8576
        %v9054 = vadd.f32 %v9053, %v8584
        %v9055 = vadd.f32 %v9054, %v8592
        %v9056 = vadd.f32 %v9055, %v8600
        %v9057 = vadd.f32 %v9056, %v8608
        %v9058 = vadd.f32 %v9057, %v8616
        %v9059 = vrot.slane %v9058, 4
        %v9060 = vadd.f32 %v9058, %v9059
        %v9061 = vrot.slane %v9060, 2
        %v9062 = vadd.f32 %v9060, %v9061
        %v9063 = vrot.slane %v9062, 1
        %v9064 = vadd.f32 %v9062, %v9063
        %v9065 = vadd.f32 %v8369, %v8377
        %v9066 = vadd.f32 %v9065, %v8385
        %v9067 = vadd.f32 %v9066, %v8393
        %v9068 = vadd.f32 %v9067, %v8401
        %v9069 = vadd.f32 %v9068, %v8409
        %v9070 = vadd.f32 %v9069, %v8417
        %v9071 = vadd.f32 %v9070, %v8425
        %v9072 = vadd.f32 %v9071, %v8433
        %v9073 = vadd.f32 %v9072, %v8441
        %v9074 = vadd.f32 %v9073, %v8449
        %v9075 = vadd.f32 %v9074, %v8457
        %v9076 = vadd.f32 %v9075, %v8465
        %v9077 = vadd.f32 %v9076, %v8473
        %v9078 = vadd.f32 %v9077, %v8481
        %v9079 = vadd.f32 %v9078, %v8489
        %v9080 = vadd.f32 %v9079, %v8497
        %v9081 = vadd.f32 %v9080, %v8505
        %v9082 = vadd.f32 %v9081, %v8513
        %v9083 = vadd.f32 %v9082, %v8521
        %v9084 = vadd.f32 %v9083, %v8529
        %v9085 = vadd.f32 %v9084, %v8537
        %v9086 = vadd.f32 %v9085, %v8545
        %v9087 = vadd.f32 %v9086, %v8553
        %v9088 = vadd.f32 %v9087, %v8561
        %v9089 = vadd.f32 %v9088, %v8569
        %v9090 = vadd.f32 %v9089, %v8577
        %v9091 = vadd.f32 %v9090, %v8585
        %v9092 = vadd.f32 %v9091, %v8593
        %v9093 = vadd.f32 %v9092, %v8601
        %v9094 = vadd.f32 %v9093, %v8609
        %v9095 = vadd.f32 %v9094, %v8617
        %v9096 = vrot.slane %v9095, 4
        %v9097 = vadd.f32 %v9095, %v9096
        %v9098 = vrot.slane %v9097, 2
        %v9099 = vadd.f32 %v9097, %v9098
        %v9100 = vrot.slane %v9099, 1
        %v9101 = vadd.f32 %v9099, %v9100
        %v9102 = vadd.f32 %v8370, %v8378
        %v9103 = vadd.f32 %v9102, %v8386
        %v9104 = vadd.f32 %v9103, %v8394
        %v9105 = vadd.f32 %v9104, %v8402
        %v9106 = vadd.f32 %v9105, %v8410
        %v9107 = vadd.f32 %v9106, %v8418
        %v9108 = vadd.f32 %v9107, %v8426
        %v9109 = vadd.f32 %v9108, %v8434
        %v9110 = vadd.f32 %v9109, %v8442
        %v9111 = vadd.f32 %v9110, %v8450
        %v9112 = vadd.f32 %v9111, %v8458
        %v9113 = vadd.f32 %v9112, %v8466
        %v9114 = vadd.f32 %v9113, %v8474
        %v9115 = vadd.f32 %v9114, %v8482
        %v9116 = vadd.f32 %v9115, %v8490
        %v9117 = vadd.f32 %v9116, %v8498
        %v9118 = vadd.f32 %v9117, %v8506
        %v9119 = vadd.f32 %v9118, %v8514
        %v9120 = vadd.f32 %v9119, %v8522
        %v9121 = vadd.f32 %v9120, %v8530
        %v9122 = vadd.f32 %v9121, %v8538
        %v9123 = vadd.f32 %v9122, %v8546
        %v9124 = vadd.f32 %v9123, %v8554
        %v9125 = vadd.f32 %v9124, %v8562
        %v9126 = vadd.f32 %v9125, %v8570
        %v9127 = vadd.f32 %v9126, %v8578
        %v9128 = vadd.f32 %v9127, %v8586
        %v9129 = vadd.f32 %v9128, %v8594
        %v9130 = vadd.f32 %v9129, %v8602
        %v9131 = vadd.f32 %v9130, %v8610
        %v9132 = vadd.f32 %v9131, %v8618
        %v9133 = vrot.slane %v9132, 4
        %v9134 = vadd.f32 %v9132, %v9133
        %v9135 = vrot.slane %v9134, 2
        %v9136 = vadd.f32 %v9134, %v9135
        %v9137 = vrot.slane %v9136, 1
        %v9138 = vadd.f32 %v9136, %v9137
        %v9139 = vadd.f32 %v8371, %v8379
        %v9140 = vadd.f32 %v9139, %v8387
        %v9141 = vadd.f32 %v9140, %v8395
        %v9142 = vadd.f32 %v9141, %v8403
        %v9143 = vadd.f32 %v9142, %v8411
        %v9144 = vadd.f32 %v9143, %v8419
        %v9145 = vadd.f32 %v9144, %v8427
        %v9146 = vadd.f32 %v9145, %v8435
        %v9147 = vadd.f32 %v9146, %v8443
        %v9148 = vadd.f32 %v9147, %v8451
        %v9149 = vadd.f32 %v9148, %v8459
        %v9150 = vadd.f32 %v9149, %v8467
        %v9151 = vadd.f32 %v9150, %v8475
        %v9152 = vadd.f32 %v9151, %v8483
        %v9153 = vadd.f32 %v9152, %v8491
        %v9154 = vadd.f32 %v9153, %v8499
        %v9155 = vadd.f32 %v9154, %v8507
        %v9156 = vadd.f32 %v9155, %v8515
        %v9157 = vadd.f32 %v9156, %v8523
        %v9158 = vadd.f32 %v9157, %v8531
        %v9159 = vadd.f32 %v9158, %v8539
        %v9160 = vadd.f32 %v9159, %v8547
        %v9161 = vadd.f32 %v9160, %v8555
        %v9162 = vadd.f32 %v9161, %v8563
        %v9163 = vadd.f32 %v9162, %v8571
        %v9164 = vadd.f32 %v9163, %v8579
        %v9165 = vadd.f32 %v9164, %v8587
        %v9166 = vadd.f32 %v9165, %v8595
        %v9167 = vadd.f32 %v9166, %v8603
        %v9168 = vadd.f32 %v9167, %v8611
        %v9169 = vadd.f32 %v9168, %v8619
        %v9170 = vrot.slane %v9169, 4
        %v9171 = vadd.f32 %v9169, %v9170
        %v9172 = vrot.slane %v9171, 2
        %v9173 = vadd.f32 %v9171, %v9172
        %v9174 = vrot.slane %v9173, 1
        %v9175 = vadd.f32 %v9173, %v9174
        %v9176 = vadd.f32 %v8372, %v8380
        %v9177 = vadd.f32 %v9176, %v8388
        %v9178 = vadd.f32 %v9177, %v8396
        %v9179 = vadd.f32 %v9178, %v8404
        %v9180 = vadd.f32 %v9179, %v8412
        %v9181 = vadd.f32 %v9180, %v8420
        %v9182 = vadd.f32 %v9181, %v8428
        %v9183 = vadd.f32 %v9182, %v8436
        %v9184 = vadd.f32 %v9183, %v8444
        %v9185 = vadd.f32 %v9184, %v8452
        %v9186 = vadd.f32 %v9185, %v8460
        %v9187 = vadd.f32 %v9186, %v8468
        %v9188 = vadd.f32 %v9187, %v8476
        %v9189 = vadd.f32 %v9188, %v8484
        %v9190 = vadd.f32 %v9189, %v8492
        %v9191 = vadd.f32 %v9190, %v8500
        %v9192 = vadd.f32 %v9191, %v8508
        %v9193 = vadd.f32 %v9192, %v8516
        %v9194 = vadd.f32 %v9193, %v8524
        %v9195 = vadd.f32 %v9194, %v8532
        %v9196 = vadd.f32 %v9195, %v8540
        %v9197 = vadd.f32 %v9196, %v8548
        %v9198 = vadd.f32 %v9197, %v8556
        %v9199 = vadd.f32 %v9198, %v8564
        %v9200 = vadd.f32 %v9199, %v8572
        %v9201 = vadd.f32 %v9200, %v8580
        %v9202 = vadd.f32 %v9201, %v8588
        %v9203 = vadd.f32 %v9202, %v8596
        %v9204 = vadd.f32 %v9203, %v8604
        %v9205 = vadd.f32 %v9204, %v8612
        %v9206 = vadd.f32 %v9205, %v8620
        %v9207 = vrot.slane %v9206, 4
        %v9208 = vadd.f32 %v9206, %v9207
        %v9209 = vrot.slane %v9208, 2
        %v9210 = vadd.f32 %v9208, %v9209
        %v9211 = vrot.slane %v9210, 1
        %v9212 = vadd.f32 %v9210, %v9211
        %v9213 = vrcp.pop 256.0
        %v9214 = vmul.f32 %v8657, %v9213
        %v9215 = vmul.f32 %v8694, %v9213
        %v9216 = vmul.f32 %v8731, %v9213
        %v9217 = vmul.f32 %v8768, %v9213
        %v9218 = vmul.f32 %v8805, %v9213
        %v9219 = vmul.f32 %v8842, %v9213
        %v9220 = vmul.f32 %v8879, %v9213
        %v9221 = vmul.f32 %v8916, %v9213
        %v9222 = vmul.f32 %v8953, %v9213
        %v9223 = vmul.f32 %v8990, %v9213
        %v9224 = vmul.f32 %v9027, %v9213
        %v9225 = vmul.f32 %v9064, %v9213
        %v9226 = vmul.f32 %v9101, %v9213
        %v9227 = vmul.f32 %v9138, %v9213
        %v9228 = vmul.f32 %v9175, %v9213
        %v9229 = vmul.f32 %v9212, %v9213
        %v9246 = vcombine.low %v9214, %v9215
        %v9247 = vcombine.low %v9216, %v9217
        %v9249 = vunpack.c.l.s4 1983009808
        %v9250 = vunpack.c.0.s8 %v9249
        %v9251 = vlaneseq
        %v9252 = vshrl.u32 %v9251, 7
        %v9253 = vsub.s32 %v9250, %v9252
        %v9254 = vrot.slane %v9246, %v9253
        %v9256 = vunpack.c.l.s4 1983009808
        %v9257 = vunpack.c.0.s8 %v9256
        %v9258 = vlaneseq
        %v9259 = vshrl.u32 %v9258, 7
        %v9260 = vsub.s32 %v9257, %v9259
        %v9261 = vrot.slane %v9247, %v9260
        %v9262 = vcombine.low %v9254, %v9261
        %v9263 = vcombine.low %v9218, %v9219
        %v9264 = vcombine.low %v9220, %v9221
        %v9266 = vunpack.c.l.s4 1983009808
        %v9267 = vunpack.c.0.s8 %v9266
        %v9268 = vlaneseq
        %v9269 = vshrl.u32 %v9268, 7
        %v9270 = vsub.s32 %v9267, %v9269
        %v9271 = vrot.slane %v9263, %v9270
        %v9273 = vunpack.c.l.s4 1983009808
        %v9274 = vunpack.c.0.s8 %v9273
        %v9275 = vlaneseq
        %v9276 = vshrl.u32 %v9275, 7
        %v9277 = vsub.s32 %v9274, %v9276
        %v9278 = vrot.slane %v9264, %v9277
        %v9279 = vcombine.low %v9271, %v9278
        %v9280 = vcombine.low %v9222, %v9223
        %v9281 = vcombine.low %v9224, %v9225
        %v9283 = vunpack.c.l.s4 1983009808
        %v9284 = vunpack.c.0.s8 %v9283
        %v9285 = vlaneseq
        %v9286 = vshrl.u32 %v9285, 7
        %v9287 = vsub.s32 %v9284, %v9286
        %v9288 = vrot.slane %v9280, %v9287
        %v9290 = vunpack.c.l.s4 1983009808
        %v9291 = vunpack.c.0.s8 %v9290
        %v9292 = vlaneseq
        %v9293 = vshrl.u32 %v9292, 7
        %v9294 = vsub.s32 %v9291, %v9293
        %v9295 = vrot.slane %v9281, %v9294
        %v9296 = vcombine.low %v9288, %v9295
        %v9297 = vcombine.low %v9226, %v9227
        %v9298 = vcombine.low %v9228, %v9229
        %v9300 = vunpack.c.l.s4 1983009808
        %v9301 = vunpack.c.0.s8 %v9300
        %v9302 = vlaneseq
        %v9303 = vshrl.u32 %v9302, 7
        %v9304 = vsub.s32 %v9301, %v9303
        %v9305 = vrot.slane %v9297, %v9304
        %v9307 = vunpack.c.l.s4 1983009808
        %v9308 = vunpack.c.0.s8 %v9307
        %v9309 = vlaneseq
        %v9310 = vshrl.u32 %v9309, 7
        %v9311 = vsub.s32 %v9308, %v9310
        %v9312 = vrot.slane %v9298, %v9311
        %v9313 = vcombine.low %v9305, %v9312
        %vm9314 = vcmask 1044484
        %v9315 = vsel %vm9314, %v9262, %v9262
        %vm9316 = vcmask 1046534
        %v9317 = vsel %vm9316, %v9262, %v9315
        %v9318 = vrot.slane %v9296, 7
        %vm9319 = vcmask 1041409
        %v9320 = vsel %vm9319, %v9318, %v9317
        %vm9321 = vcmask 1043459
        %v9322 = vsel %vm9321, %v9318, %v9320
        %vm9323 = vcmask 1045509
        %v9324 = vsel %vm9323, %v9318, %v9322
        %vm9325 = vcmask 1047559
        %v9326 = vsel %vm9325, %v9318, %v9324
        %v9327 = vsel %vm9314, %v9279, %v9279
        %v9328 = vsel %vm9316, %v9279, %v9327
        %v9329 = vrot.slane %v9313, 7
        %v9330 = vsel %vm9319, %v9329, %v9328
        %v9331 = vsel %vm9321, %v9329, %v9330
        %v9332 = vsel %vm9323, %v9329, %v9331
        %v9333 = vsel %vm9325, %v9329, %v9332
        %9336 = vst [vmem:[%s613] sm:$0xff] %v9326
        %9337 = vst [vmem:[%s613 + $0x8] sm:$0xff] %v9333
        %v9338 = vld [vmem:[%s13] sm:$0x3]
        %v9339 = vmul.f32 %v9214, %v9214
        %v9340 = vmul.f32 %v9215, %v9215
        %v9341 = vmul.f32 %v9216, %v9216
        %v9342 = vmul.f32 %v9217, %v9217
        %v9343 = vmul.f32 %v9218, %v9218
        %v9344 = vmul.f32 %v9219, %v9219
        %v9345 = vmul.f32 %v9220, %v9220
        %v9346 = vmul.f32 %v9221, %v9221
        %v9347 = vmul.f32 %v9222, %v9222
        %v9348 = vmul.f32 %v9223, %v9223
        %v9349 = vmul.f32 %v9224, %v9224
        %v9350 = vmul.f32 %v9225, %v9225
        %v9351 = vmul.f32 %v9226, %v9226
        %v9352 = vmul.f32 %v9227, %v9227
        %v9353 = vmul.f32 %v9228, %v9228
        %v9354 = vmul.f32 %v9229, %v9229
        %v9371 = vsel %vm9319, %v9347, %v9339
        %v9372 = vsel %vm9319, %v9348, %v9340
        %v9373 = vsel %vm9319, %v9349, %v9341
        %v9374 = vsel %vm9319, %v9350, %v9342
        %v9375 = vsel %vm9319, %v9351, %v9343
        %v9376 = vsel %vm9319, %v9352, %v9344
        %v9377 = vsel %vm9319, %v9353, %v9345
        %v9378 = vsel %vm9319, %v9354, %v9346
        %vm9387 = vcmask 1041408
        %v9388 = vsel %vm9387, %v9371, 0.0
        %v9389 = vsel %vm9387, %v9372, 0.0
        %v9390 = vadd.f32 %v9388, %v9389
        %v9391 = vsel %vm9387, %v9373, 0.0
        %v9392 = vadd.f32 %v9390, %v9391
        %v9393 = vsel %vm9387, %v9374, 0.0
        %v9394 = vadd.f32 %v9392, %v9393
        %v9395 = vsel %vm9387, %v9375, 0.0
        %v9396 = vadd.f32 %v9394, %v9395
        %v9397 = vsel %vm9387, %v9376, 0.0
        %v9398 = vadd.f32 %v9396, %v9397
        %v9399 = vsel %vm9387, %v9377, 0.0
        %v9400 = vadd.f32 %v9398, %v9399
        %v9401 = vsel %vm9387, %v9378, 0.0
        %v9402 = vadd.f32 %v9400, %v9401
        %9403 = vadd.xlane.f32.xlu0 %v9402
        %v9404 = vpop.xlane.xlu0 %9403
        %v9405 = vadd.f32 %v9338, %v9404
        %vm9406 = vcmask 1024
        %9407 = vst.msk [vmem:[%s13] sm:$0x3] %vm9406, %v9405
        %v9408 = vld [vmem:[#allocation3] sm:$0xff]
        %v9409 = vpack.c.bf16 %v9214, %v9214
        %v9410 = vpack.c.bf16 %v9215, %v9215
        %v9411 = vpack.c.bf16 %v9216, %v9216
        %v9412 = vpack.c.bf16 %v9217, %v9217
        %v9413 = vpack.c.bf16 %v9218, %v9218
        %v9414 = vpack.c.bf16 %v9219, %v9219
        %v9415 = vpack.c.bf16 %v9220, %v9220
        %v9416 = vpack.c.bf16 %v9221, %v9221
        %v9417 = vpack.c.bf16 %v9222, %v9222
        %v9418 = vpack.c.bf16 %v9223, %v9223
        %v9419 = vpack.c.bf16 %v9224, %v9224
        %v9420 = vpack.c.bf16 %v9225, %v9225
        %v9421 = vpack.c.bf16 %v9226, %v9226
        %v9422 = vpack.c.bf16 %v9227, %v9227
        %v9423 = vpack.c.bf16 %v9228, %v9228
        %v9424 = vpack.c.bf16 %v9229, %v9229
        %v9425 = vld [vmem:[%s541] sm:$0xff]
        %v9426 = vld [vmem:[%s541 + $0x8] sm:$0xff]
        %v9427 = vld [vmem:[%s541 + $0x10] sm:$0xff]
        %v9428 = vld [vmem:[%s541 + $0x18] sm:$0xff]
        %v9429 = vld [vmem:[%s541 + $0x20] sm:$0xff]
        %v9430 = vld [vmem:[%s541 + $0x28] sm:$0xff]
        %v9431 = vld [vmem:[%s541 + $0x30] sm:$0xff]
        %v9432 = vld [vmem:[%s541 + $0x38] sm:$0xff]
        %v9433 = vld [vmem:[%s541 + $0x40] sm:$0xff]
        %v9434 = vld [vmem:[%s541 + $0x48] sm:$0xff]
        %v9435 = vld [vmem:[%s541 + $0x50] sm:$0xff]
        %v9436 = vld [vmem:[%s541 + $0x58] sm:$0xff]
        %v9437 = vld [vmem:[%s541 + $0x60] sm:$0xff]
        %v9438 = vld [vmem:[%s541 + $0x68] sm:$0xff]
        %v9439 = vld [vmem:[%s541 + $0x70] sm:$0xff]
        %v9440 = vld [vmem:[%s541 + $0x78] sm:$0xff]
        %v9441 = vld [vmem:[%s541 + $0x80] sm:$0xff]
        %v9442 = vld [vmem:[%s541 + $0x88] sm:$0xff]
        %v9443 = vld [vmem:[%s541 + $0x90] sm:$0xff]
        %v9444 = vld [vmem:[%s541 + $0x98] sm:$0xff]
        %v9445 = vld [vmem:[%s541 + $0xa0] sm:$0xff]
        %v9446 = vld [vmem:[%s541 + $0xa8] sm:$0xff]
        %v9447 = vld [vmem:[%s541 + $0xb0] sm:$0xff]
        %v9448 = vld [vmem:[%s541 + $0xb8] sm:$0xff]
        %v9449 = vld [vmem:[%s541 + $0xc0] sm:$0xff]
        %v9450 = vld [vmem:[%s541 + $0xc8] sm:$0xff]
        %v9451 = vld [vmem:[%s541 + $0xd0] sm:$0xff]
        %v9452 = vld [vmem:[%s541 + $0xd8] sm:$0xff]
        %v9453 = vld [vmem:[%s541 + $0xe0] sm:$0xff]
        %v9454 = vld [vmem:[%s541 + $0xe8] sm:$0xff]
        %v9455 = vld [vmem:[%s541 + $0xf0] sm:$0xff]
        %v9456 = vld [vmem:[%s541 + $0xf8] sm:$0xff]
        %v9457 = vld [vmem:[%s541 + $0x100] sm:$0xff]
        %v9458 = vld [vmem:[%s541 + $0x108] sm:$0xff]
        %v9459 = vld [vmem:[%s541 + $0x110] sm:$0xff]
        %v9460 = vld [vmem:[%s541 + $0x118] sm:$0xff]
        %v9461 = vld [vmem:[%s541 + $0x120] sm:$0xff]
        %v9462 = vld [vmem:[%s541 + $0x128] sm:$0xff]
        %v9463 = vld [vmem:[%s541 + $0x130] sm:$0xff]
        %v9464 = vld [vmem:[%s541 + $0x138] sm:$0xff]
        %v9465 = vld [vmem:[%s541 + $0x140] sm:$0xff]
        %v9466 = vld [vmem:[%s541 + $0x148] sm:$0xff]
        %v9467 = vld [vmem:[%s541 + $0x150] sm:$0xff]
        %v9468 = vld [vmem:[%s541 + $0x158] sm:$0xff]
        %v9469 = vld [vmem:[%s541 + $0x160] sm:$0xff]
        %v9470 = vld [vmem:[%s541 + $0x168] sm:$0xff]
        %v9471 = vld [vmem:[%s541 + $0x170] sm:$0xff]
        %v9472 = vld [vmem:[%s541 + $0x178] sm:$0xff]
        %v9473 = vld [vmem:[%s541 + $0x180] sm:$0xff]
        %v9474 = vld [vmem:[%s541 + $0x188] sm:$0xff]
        %v9475 = vld [vmem:[%s541 + $0x190] sm:$0xff]
        %v9476 = vld [vmem:[%s541 + $0x198] sm:$0xff]
        %v9477 = vld [vmem:[%s541 + $0x1a0] sm:$0xff]
        %v9478 = vld [vmem:[%s541 + $0x1a8] sm:$0xff]
        %v9479 = vld [vmem:[%s541 + $0x1b0] sm:$0xff]
        %v9480 = vld [vmem:[%s541 + $0x1b8] sm:$0xff]
        %v9481 = vld [vmem:[%s541 + $0x1c0] sm:$0xff]
        %v9482 = vld [vmem:[%s541 + $0x1c8] sm:$0xff]
        %v9483 = vld [vmem:[%s541 + $0x1d0] sm:$0xff]
        %v9484 = vld [vmem:[%s541 + $0x1d8] sm:$0xff]
        %v9485 = vld [vmem:[%s541 + $0x1e0] sm:$0xff]
        %v9486 = vld [vmem:[%s541 + $0x1e8] sm:$0xff]
        %v9487 = vld [vmem:[%s541 + $0x1f0] sm:$0xff]
        %v9488 = vld [vmem:[%s541 + $0x1f8] sm:$0xff]
        %v9489 = vld [vmem:[%s541 + $0x200] sm:$0xff]
        %v9490 = vld [vmem:[%s541 + $0x208] sm:$0xff]
        %v9491 = vld [vmem:[%s541 + $0x210] sm:$0xff]
        %v9492 = vld [vmem:[%s541 + $0x218] sm:$0xff]
        %v9493 = vld [vmem:[%s541 + $0x220] sm:$0xff]
        %v9494 = vld [vmem:[%s541 + $0x228] sm:$0xff]
        %v9495 = vld [vmem:[%s541 + $0x230] sm:$0xff]
        %v9496 = vld [vmem:[%s541 + $0x238] sm:$0xff]
        %v9497 = vld [vmem:[%s541 + $0x240] sm:$0xff]
        %v9498 = vld [vmem:[%s541 + $0x248] sm:$0xff]
        %v9499 = vld [vmem:[%s541 + $0x250] sm:$0xff]
        %v9500 = vld [vmem:[%s541 + $0x258] sm:$0xff]
        %v9501 = vld [vmem:[%s541 + $0x260] sm:$0xff]
        %v9502 = vld [vmem:[%s541 + $0x268] sm:$0xff]
        %v9503 = vld [vmem:[%s541 + $0x270] sm:$0xff]
        %v9504 = vld [vmem:[%s541 + $0x278] sm:$0xff]
        %v9505 = vld [vmem:[%s541 + $0x280] sm:$0xff]
        %v9506 = vld [vmem:[%s541 + $0x288] sm:$0xff]
        %v9507 = vld [vmem:[%s541 + $0x290] sm:$0xff]
        %v9508 = vld [vmem:[%s541 + $0x298] sm:$0xff]
        %v9509 = vld [vmem:[%s541 + $0x2a0] sm:$0xff]
        %v9510 = vld [vmem:[%s541 + $0x2a8] sm:$0xff]
        %v9511 = vld [vmem:[%s541 + $0x2b0] sm:$0xff]
        %v9512 = vld [vmem:[%s541 + $0x2b8] sm:$0xff]
        %v9513 = vld [vmem:[%s541 + $0x2c0] sm:$0xff]
        %v9514 = vld [vmem:[%s541 + $0x2c8] sm:$0xff]
        %v9515 = vld [vmem:[%s541 + $0x2d0] sm:$0xff]
        %v9516 = vld [vmem:[%s541 + $0x2d8] sm:$0xff]
        %v9517 = vld [vmem:[%s541 + $0x2e0] sm:$0xff]
        %v9518 = vld [vmem:[%s541 + $0x2e8] sm:$0xff]
        %v9519 = vld [vmem:[%s541 + $0x2f0] sm:$0xff]
        %v9520 = vld [vmem:[%s541 + $0x2f8] sm:$0xff]
        %v9521 = vld [vmem:[%s541 + $0x300] sm:$0xff]
        %v9522 = vld [vmem:[%s541 + $0x308] sm:$0xff]
        %v9523 = vld [vmem:[%s541 + $0x310] sm:$0xff]
        %v9524 = vld [vmem:[%s541 + $0x318] sm:$0xff]
        %v9525 = vld [vmem:[%s541 + $0x320] sm:$0xff]
        %v9526 = vld [vmem:[%s541 + $0x328] sm:$0xff]
        %v9527 = vld [vmem:[%s541 + $0x330] sm:$0xff]
        %v9528 = vld [vmem:[%s541 + $0x338] sm:$0xff]
        %v9529 = vld [vmem:[%s541 + $0x340] sm:$0xff]
        %v9530 = vld [vmem:[%s541 + $0x348] sm:$0xff]
        %v9531 = vld [vmem:[%s541 + $0x350] sm:$0xff]
        %v9532 = vld [vmem:[%s541 + $0x358] sm:$0xff]
        %v9533 = vld [vmem:[%s541 + $0x360] sm:$0xff]
        %v9534 = vld [vmem:[%s541 + $0x368] sm:$0xff]
        %v9535 = vld [vmem:[%s541 + $0x370] sm:$0xff]
        %v9536 = vld [vmem:[%s541 + $0x378] sm:$0xff]
        %v9537 = vld [vmem:[%s541 + $0x380] sm:$0xff]
        %v9538 = vld [vmem:[%s541 + $0x388] sm:$0xff]
        %v9539 = vld [vmem:[%s541 + $0x390] sm:$0xff]
        %v9540 = vld [vmem:[%s541 + $0x398] sm:$0xff]
        %v9541 = vld [vmem:[%s541 + $0x3a0] sm:$0xff]
        %v9542 = vld [vmem:[%s541 + $0x3a8] sm:$0xff]
        %v9543 = vld [vmem:[%s541 + $0x3b0] sm:$0xff]
        %v9544 = vld [vmem:[%s541 + $0x3b8] sm:$0xff]
        %v9545 = vld [vmem:[%s541 + $0x3c0] sm:$0xff]
        %v9546 = vld [vmem:[%s541 + $0x3c8] sm:$0xff]
        %v9547 = vld [vmem:[%s541 + $0x3d0] sm:$0xff]
        %v9548 = vld [vmem:[%s541 + $0x3d8] sm:$0xff]
        %v9549 = vld [vmem:[%s541 + $0x3e0] sm:$0xff]
        %v9550 = vld [vmem:[%s541 + $0x3e8] sm:$0xff]
        %v9551 = vld [vmem:[%s541 + $0x3f0] sm:$0xff]
        %v9552 = vld [vmem:[%s541 + $0x3f8] sm:$0xff]
        %v9553 = vld [vmem:[%s541 + $0x400] sm:$0xff]
        %v9554 = vld [vmem:[%s541 + $0x408] sm:$0xff]
        %v9555 = vld [vmem:[%s541 + $0x410] sm:$0xff]
        %v9556 = vld [vmem:[%s541 + $0x418] sm:$0xff]
        %v9557 = vld [vmem:[%s541 + $0x420] sm:$0xff]
        %v9558 = vld [vmem:[%s541 + $0x428] sm:$0xff]
        %v9559 = vld [vmem:[%s541 + $0x430] sm:$0xff]
        %v9560 = vld [vmem:[%s541 + $0x438] sm:$0xff]
        %v9561 = vld [vmem:[%s541 + $0x440] sm:$0xff]
        %v9562 = vld [vmem:[%s541 + $0x448] sm:$0xff]
        %v9563 = vld [vmem:[%s541 + $0x450] sm:$0xff]
        %v9564 = vld [vmem:[%s541 + $0x458] sm:$0xff]
        %v9565 = vld [vmem:[%s541 + $0x460] sm:$0xff]
        %v9566 = vld [vmem:[%s541 + $0x468] sm:$0xff]
        %v9567 = vld [vmem:[%s541 + $0x470] sm:$0xff]
        %v9568 = vld [vmem:[%s541 + $0x478] sm:$0xff]
        %v9569 = vld [vmem:[%s541 + $0x480] sm:$0xff]
        %v9570 = vld [vmem:[%s541 + $0x488] sm:$0xff]
        %v9571 = vld [vmem:[%s541 + $0x490] sm:$0xff]
        %v9572 = vld [vmem:[%s541 + $0x498] sm:$0xff]
        %v9573 = vld [vmem:[%s541 + $0x4a0] sm:$0xff]
        %v9574 = vld [vmem:[%s541 + $0x4a8] sm:$0xff]
        %v9575 = vld [vmem:[%s541 + $0x4b0] sm:$0xff]
        %v9576 = vld [vmem:[%s541 + $0x4b8] sm:$0xff]
        %v9577 = vld [vmem:[%s541 + $0x4c0] sm:$0xff]
        %v9578 = vld [vmem:[%s541 + $0x4c8] sm:$0xff]
        %v9579 = vld [vmem:[%s541 + $0x4d0] sm:$0xff]
        %v9580 = vld [vmem:[%s541 + $0x4d8] sm:$0xff]
        %v9581 = vld [vmem:[%s541 + $0x4e0] sm:$0xff]
        %v9582 = vld [vmem:[%s541 + $0x4e8] sm:$0xff]
        %v9583 = vld [vmem:[%s541 + $0x4f0] sm:$0xff]
        %v9584 = vld [vmem:[%s541 + $0x4f8] sm:$0xff]
        %v9585 = vld [vmem:[%s541 + $0x500] sm:$0xff]
        %v9586 = vld [vmem:[%s541 + $0x508] sm:$0xff]
        %v9587 = vld [vmem:[%s541 + $0x510] sm:$0xff]
        %v9588 = vld [vmem:[%s541 + $0x518] sm:$0xff]
        %v9589 = vld [vmem:[%s541 + $0x520] sm:$0xff]
        %v9590 = vld [vmem:[%s541 + $0x528] sm:$0xff]
        %v9591 = vld [vmem:[%s541 + $0x530] sm:$0xff]
        %v9592 = vld [vmem:[%s541 + $0x538] sm:$0xff]
        %v9593 = vld [vmem:[%s541 + $0x540] sm:$0xff]
        %v9594 = vld [vmem:[%s541 + $0x548] sm:$0xff]
        %v9595 = vld [vmem:[%s541 + $0x550] sm:$0xff]
        %v9596 = vld [vmem:[%s541 + $0x558] sm:$0xff]
        %v9597 = vld [vmem:[%s541 + $0x560] sm:$0xff]
        %v9598 = vld [vmem:[%s541 + $0x568] sm:$0xff]
        %v9599 = vld [vmem:[%s541 + $0x570] sm:$0xff]
        %v9600 = vld [vmem:[%s541 + $0x578] sm:$0xff]
        %v9601 = vld [vmem:[%s541 + $0x580] sm:$0xff]
        %v9602 = vld [vmem:[%s541 + $0x588] sm:$0xff]
        %v9603 = vld [vmem:[%s541 + $0x590] sm:$0xff]
        %v9604 = vld [vmem:[%s541 + $0x598] sm:$0xff]
        %v9605 = vld [vmem:[%s541 + $0x5a0] sm:$0xff]
        %v9606 = vld [vmem:[%s541 + $0x5a8] sm:$0xff]
        %v9607 = vld [vmem:[%s541 + $0x5b0] sm:$0xff]
        %v9608 = vld [vmem:[%s541 + $0x5b8] sm:$0xff]
        %v9609 = vld [vmem:[%s541 + $0x5c0] sm:$0xff]
        %v9610 = vld [vmem:[%s541 + $0x5c8] sm:$0xff]
        %v9611 = vld [vmem:[%s541 + $0x5d0] sm:$0xff]
        %v9612 = vld [vmem:[%s541 + $0x5d8] sm:$0xff]
        %v9613 = vld [vmem:[%s541 + $0x5e0] sm:$0xff]
        %v9614 = vld [vmem:[%s541 + $0x5e8] sm:$0xff]
        %v9615 = vld [vmem:[%s541 + $0x5f0] sm:$0xff]
        %v9616 = vld [vmem:[%s541 + $0x5f8] sm:$0xff]
        %v9617 = vld [vmem:[%s541 + $0x600] sm:$0xff]
        %v9618 = vld [vmem:[%s541 + $0x608] sm:$0xff]
        %v9619 = vld [vmem:[%s541 + $0x610] sm:$0xff]
        %v9620 = vld [vmem:[%s541 + $0x618] sm:$0xff]
        %v9621 = vld [vmem:[%s541 + $0x620] sm:$0xff]
        %v9622 = vld [vmem:[%s541 + $0x628] sm:$0xff]
        %v9623 = vld [vmem:[%s541 + $0x630] sm:$0xff]
        %v9624 = vld [vmem:[%s541 + $0x638] sm:$0xff]
        %v9625 = vld [vmem:[%s541 + $0x640] sm:$0xff]
        %v9626 = vld [vmem:[%s541 + $0x648] sm:$0xff]
        %v9627 = vld [vmem:[%s541 + $0x650] sm:$0xff]
        %v9628 = vld [vmem:[%s541 + $0x658] sm:$0xff]
        %v9629 = vld [vmem:[%s541 + $0x660] sm:$0xff]
        %v9630 = vld [vmem:[%s541 + $0x668] sm:$0xff]
        %v9631 = vld [vmem:[%s541 + $0x670] sm:$0xff]
        %v9632 = vld [vmem:[%s541 + $0x678] sm:$0xff]
        %v9633 = vld [vmem:[%s541 + $0x680] sm:$0xff]
        %v9634 = vld [vmem:[%s541 + $0x688] sm:$0xff]
        %v9635 = vld [vmem:[%s541 + $0x690] sm:$0xff]
        %v9636 = vld [vmem:[%s541 + $0x698] sm:$0xff]
        %v9637 = vld [vmem:[%s541 + $0x6a0] sm:$0xff]
        %v9638 = vld [vmem:[%s541 + $0x6a8] sm:$0xff]
        %v9639 = vld [vmem:[%s541 + $0x6b0] sm:$0xff]
        %v9640 = vld [vmem:[%s541 + $0x6b8] sm:$0xff]
        %v9641 = vld [vmem:[%s541 + $0x6c0] sm:$0xff]
        %v9642 = vld [vmem:[%s541 + $0x6c8] sm:$0xff]
        %v9643 = vld [vmem:[%s541 + $0x6d0] sm:$0xff]
        %v9644 = vld [vmem:[%s541 + $0x6d8] sm:$0xff]
        %v9645 = vld [vmem:[%s541 + $0x6e0] sm:$0xff]
        %v9646 = vld [vmem:[%s541 + $0x6e8] sm:$0xff]
        %v9647 = vld [vmem:[%s541 + $0x6f0] sm:$0xff]
        %v9648 = vld [vmem:[%s541 + $0x6f8] sm:$0xff]
        %v9649 = vld [vmem:[%s541 + $0x700] sm:$0xff]
        %v9650 = vld [vmem:[%s541 + $0x708] sm:$0xff]
        %v9651 = vld [vmem:[%s541 + $0x710] sm:$0xff]
        %v9652 = vld [vmem:[%s541 + $0x718] sm:$0xff]
        %v9653 = vld [vmem:[%s541 + $0x720] sm:$0xff]
        %v9654 = vld [vmem:[%s541 + $0x728] sm:$0xff]
        %v9655 = vld [vmem:[%s541 + $0x730] sm:$0xff]
        %v9656 = vld [vmem:[%s541 + $0x738] sm:$0xff]
        %v9657 = vld [vmem:[%s541 + $0x740] sm:$0xff]
        %v9658 = vld [vmem:[%s541 + $0x748] sm:$0xff]
        %v9659 = vld [vmem:[%s541 + $0x750] sm:$0xff]
        %v9660 = vld [vmem:[%s541 + $0x758] sm:$0xff]
        %v9661 = vld [vmem:[%s541 + $0x760] sm:$0xff]
        %v9662 = vld [vmem:[%s541 + $0x768] sm:$0xff]
        %v9663 = vld [vmem:[%s541 + $0x770] sm:$0xff]
        %v9664 = vld [vmem:[%s541 + $0x778] sm:$0xff]
        %v9665 = vld [vmem:[%s541 + $0x780] sm:$0xff]
        %v9666 = vld [vmem:[%s541 + $0x788] sm:$0xff]
        %v9667 = vld [vmem:[%s541 + $0x790] sm:$0xff]
        %v9668 = vld [vmem:[%s541 + $0x798] sm:$0xff]
        %v9669 = vld [vmem:[%s541 + $0x7a0] sm:$0xff]
        %v9670 = vld [vmem:[%s541 + $0x7a8] sm:$0xff]
        %v9671 = vld [vmem:[%s541 + $0x7b0] sm:$0xff]
        %v9672 = vld [vmem:[%s541 + $0x7b8] sm:$0xff]
        %v9673 = vld [vmem:[%s541 + $0x7c0] sm:$0xff]
        %v9674 = vld [vmem:[%s541 + $0x7c8] sm:$0xff]
        %v9675 = vld [vmem:[%s541 + $0x7d0] sm:$0xff]
        %v9676 = vld [vmem:[%s541 + $0x7d8] sm:$0xff]
        %v9677 = vld [vmem:[%s541 + $0x7e0] sm:$0xff]
        %v9678 = vld [vmem:[%s541 + $0x7e8] sm:$0xff]
        %v9679 = vld [vmem:[%s541 + $0x7f0] sm:$0xff]
        %v9680 = vld [vmem:[%s541 + $0x7f8] sm:$0xff]
        %v9697 = vunpack.c.l.b16 %v9409
        %v9698 = vunpack.c.l.b16 %v9410
        %v9699 = vunpack.c.l.b16 %v9411
        %v9700 = vunpack.c.l.b16 %v9412
        %v9701 = vunpack.c.l.b16 %v9413
        %v9702 = vunpack.c.l.b16 %v9414
        %v9703 = vunpack.c.l.b16 %v9415
        %v9704 = vunpack.c.l.b16 %v9416
        %v9705 = vunpack.c.l.b16 %v9417
        %v9706 = vunpack.c.l.b16 %v9418
        %v9707 = vunpack.c.l.b16 %v9419
        %v9708 = vunpack.c.l.b16 %v9420
        %v9709 = vunpack.c.l.b16 %v9421
        %v9710 = vunpack.c.l.b16 %v9422
        %v9711 = vunpack.c.l.b16 %v9423
        %v9712 = vunpack.c.l.b16 %v9424
        %v9713 = vsel %vm9319, %v9705, %v9697
        %v9714 = vsel %vm9319, %v9706, %v9698
        %v9715 = vsel %vm9319, %v9707, %v9699
        %v9716 = vsel %vm9319, %v9708, %v9700
        %v9717 = vsel %vm9319, %v9709, %v9701
        %v9718 = vsel %vm9319, %v9710, %v9702
        %v9719 = vsel %vm9319, %v9711, %v9703
        %v9720 = vsel %vm9319, %v9712, %v9704
        %v9721 = vpack.c.b16 %v9713, %v9713
        %v9722 = vpack.c.b16 %v9714, %v9714
        %v9723 = vpack.c.b16 %v9715, %v9715
        %v9724 = vpack.c.b16 %v9716, %v9716
        %v9725 = vpack.c.b16 %v9717, %v9717
        %v9726 = vpack.c.b16 %v9718, %v9718
        %v9727 = vpack.c.b16 %v9719, %v9719
        %v9728 = vpack.c.b16 %v9720, %v9720
        %v9993 = vunpack.c.l.b16 %v9425
        %v9994 = vunpack.c.h.b16 %v9425
        %v9995 = vunpack.c.l.b16 %v9426
        %v9996 = vunpack.c.h.b16 %v9426
        %v9997 = vunpack.c.l.b16 %v9427
        %v9998 = vunpack.c.h.b16 %v9427
        %v9999 = vunpack.c.l.b16 %v9428
        %v10000 = vunpack.c.h.b16 %v9428
        %v10001 = vunpack.c.l.b16 %v9429
        %v10002 = vunpack.c.h.b16 %v9429
        %v10003 = vunpack.c.l.b16 %v9430
        %v10004 = vunpack.c.h.b16 %v9430
        %v10005 = vunpack.c.l.b16 %v9431
        %v10006 = vunpack.c.h.b16 %v9431
        %v10007 = vunpack.c.l.b16 %v9432
        %v10008 = vunpack.c.h.b16 %v9432
        %v10009 = vunpack.c.l.b16 %v9433
        %v10010 = vunpack.c.h.b16 %v9433
        %v10011 = vunpack.c.l.b16 %v9434
        %v10012 = vunpack.c.h.b16 %v9434
        %v10013 = vunpack.c.l.b16 %v9435
        %v10014 = vunpack.c.h.b16 %v9435
        %v10015 = vunpack.c.l.b16 %v9436
        %v10016 = vunpack.c.h.b16 %v9436
        %v10017 = vunpack.c.l.b16 %v9437
        %v10018 = vunpack.c.h.b16 %v9437
        %v10019 = vunpack.c.l.b16 %v9438
        %v10020 = vunpack.c.h.b16 %v9438
        %v10021 = vunpack.c.l.b16 %v9439
        %v10022 = vunpack.c.h.b16 %v9439
        %v10023 = vunpack.c.l.b16 %v9440
        %v10024 = vunpack.c.h.b16 %v9440
        %v10025 = vunpack.c.l.b16 %v9441
        %v10026 = vunpack.c.h.b16 %v9441
        %v10027 = vunpack.c.l.b16 %v9442
        %v10028 = vunpack.c.h.b16 %v9442
        %v10029 = vunpack.c.l.b16 %v9443
        %v10030 = vunpack.c.h.b16 %v9443
        %v10031 = vunpack.c.l.b16 %v9444
        %v10032 = vunpack.c.h.b16 %v9444
        %v10033 = vunpack.c.l.b16 %v9445
        %v10034 = vunpack.c.h.b16 %v9445
        %v10035 = vunpack.c.l.b16 %v9446
        %v10036 = vunpack.c.h.b16 %v9446
        %v10037 = vunpack.c.l.b16 %v9447
        %v10038 = vunpack.c.h.b16 %v9447
        %v10039 = vunpack.c.l.b16 %v9448
        %v10040 = vunpack.c.h.b16 %v9448
        %v10041 = vunpack.c.l.b16 %v9449
        %v10042 = vunpack.c.h.b16 %v9449
        %v10043 = vunpack.c.l.b16 %v9450
        %v10044 = vunpack.c.h.b16 %v9450
        %v10045 = vunpack.c.l.b16 %v9451
        %v10046 = vunpack.c.h.b16 %v9451
        %v10047 = vunpack.c.l.b16 %v9452
        %v10048 = vunpack.c.h.b16 %v9452
        %v10049 = vunpack.c.l.b16 %v9453
        %v10050 = vunpack.c.h.b16 %v9453
        %v10051 = vunpack.c.l.b16 %v9454
        %v10052 = vunpack.c.h.b16 %v9454
        %v10053 = vunpack.c.l.b16 %v9455
        %v10054 = vunpack.c.h.b16 %v9455
        %v10055 = vunpack.c.l.b16 %v9456
        %v10056 = vunpack.c.h.b16 %v9456
        %v10057 = vunpack.c.l.b16 %v9457
        %v10058 = vunpack.c.h.b16 %v9457
        %v10059 = vunpack.c.l.b16 %v9458
        %v10060 = vunpack.c.h.b16 %v9458
        %v10061 = vunpack.c.l.b16 %v9459
        %v10062 = vunpack.c.h.b16 %v9459
        %v10063 = vunpack.c.l.b16 %v9460
        %v10064 = vunpack.c.h.b16 %v9460
        %v10065 = vunpack.c.l.b16 %v9461
        %v10066 = vunpack.c.h.b16 %v9461
        %v10067 = vunpack.c.l.b16 %v9462
        %v10068 = vunpack.c.h.b16 %v9462
        %v10069 = vunpack.c.l.b16 %v9463
        %v10070 = vunpack.c.h.b16 %v9463
        %v10071 = vunpack.c.l.b16 %v9464
        %v10072 = vunpack.c.h.b16 %v9464
        %v10073 = vunpack.c.l.b16 %v9465
        %v10074 = vunpack.c.h.b16 %v9465
        %v10075 = vunpack.c.l.b16 %v9466
        %v10076 = vunpack.c.h.b16 %v9466
        %v10077 = vunpack.c.l.b16 %v9467
        %v10078 = vunpack.c.h.b16 %v9467
        %v10079 = vunpack.c.l.b16 %v9468
        %v10080 = vunpack.c.h.b16 %v9468
        %v10081 = vunpack.c.l.b16 %v9469
        %v10082 = vunpack.c.h.b16 %v9469
        %v10083 = vunpack.c.l.b16 %v9470
        %v10084 = vunpack.c.h.b16 %v9470
        %v10085 = vunpack.c.l.b16 %v9471
        %v10086 = vunpack.c.h.b16 %v9471
        %v10087 = vunpack.c.l.b16 %v9472
        %v10088 = vunpack.c.h.b16 %v9472
        %v10089 = vunpack.c.l.b16 %v9473
        %v10090 = vunpack.c.h.b16 %v9473
        %v10091 = vunpack.c.l.b16 %v9474
        %v10092 = vunpack.c.h.b16 %v9474
        %v10093 = vunpack.c.l.b16 %v9475
        %v10094 = vunpack.c.h.b16 %v9475
        %v10095 = vunpack.c.l.b16 %v9476
        %v10096 = vunpack.c.h.b16 %v9476
        %v10097 = vunpack.c.l.b16 %v9477
        %v10098 = vunpack.c.h.b16 %v9477
        %v10099 = vunpack.c.l.b16 %v9478
        %v10100 = vunpack.c.h.b16 %v9478
        %v10101 = vunpack.c.l.b16 %v9479
        %v10102 = vunpack.c.h.b16 %v9479
        %v10103 = vunpack.c.l.b16 %v9480
        %v10104 = vunpack.c.h.b16 %v9480
        %v10105 = vunpack.c.l.b16 %v9481
        %v10106 = vunpack.c.h.b16 %v9481
        %v10107 = vunpack.c.l.b16 %v9482
        %v10108 = vunpack.c.h.b16 %v9482
        %v10109 = vunpack.c.l.b16 %v9483
        %v10110 = vunpack.c.h.b16 %v9483
        %v10111 = vunpack.c.l.b16 %v9484
        %v10112 = vunpack.c.h.b16 %v9484
        %v10113 = vunpack.c.l.b16 %v9485
        %v10114 = vunpack.c.h.b16 %v9485
        %v10115 = vunpack.c.l.b16 %v9486
        %v10116 = vunpack.c.h.b16 %v9486
        %v10117 = vunpack.c.l.b16 %v9487
        %v10118 = vunpack.c.h.b16 %v9487
        %v10119 = vunpack.c.l.b16 %v9488
        %v10120 = vunpack.c.h.b16 %v9488
        %v10121 = vunpack.c.l.b16 %v9489
        %v10122 = vunpack.c.h.b16 %v9489
        %v10123 = vunpack.c.l.b16 %v9490
        %v10124 = vunpack.c.h.b16 %v9490
        %v10125 = vunpack.c.l.b16 %v9491
        %v10126 = vunpack.c.h.b16 %v9491
        %v10127 = vunpack.c.l.b16 %v9492
        %v10128 = vunpack.c.h.b16 %v9492
        %v10129 = vunpack.c.l.b16 %v9493
        %v10130 = vunpack.c.h.b16 %v9493
        %v10131 = vunpack.c.l.b16 %v9494
        %v10132 = vunpack.c.h.b16 %v9494
        %v10133 = vunpack.c.l.b16 %v9495
        %v10134 = vunpack.c.h.b16 %v9495
        %v10135 = vunpack.c.l.b16 %v9496
        %v10136 = vunpack.c.h.b16 %v9496
        %v10137 = vunpack.c.l.b16 %v9497
        %v10138 = vunpack.c.h.b16 %v9497
        %v10139 = vunpack.c.l.b16 %v9498
        %v10140 = vunpack.c.h.b16 %v9498
        %v10141 = vunpack.c.l.b16 %v9499
        %v10142 = vunpack.c.h.b16 %v9499
        %v10143 = vunpack.c.l.b16 %v9500
        %v10144 = vunpack.c.h.b16 %v9500
        %v10145 = vunpack.c.l.b16 %v9501
        %v10146 = vunpack.c.h.b16 %v9501
        %v10147 = vunpack.c.l.b16 %v9502
        %v10148 = vunpack.c.h.b16 %v9502
        %v10149 = vunpack.c.l.b16 %v9503
        %v10150 = vunpack.c.h.b16 %v9503
        %v10151 = vunpack.c.l.b16 %v9504
        %v10152 = vunpack.c.h.b16 %v9504
        %v10153 = vunpack.c.l.b16 %v9505
        %v10154 = vunpack.c.h.b16 %v9505
        %v10155 = vunpack.c.l.b16 %v9506
        %v10156 = vunpack.c.h.b16 %v9506
        %v10157 = vunpack.c.l.b16 %v9507
        %v10158 = vunpack.c.h.b16 %v9507
        %v10159 = vunpack.c.l.b16 %v9508
        %v10160 = vunpack.c.h.b16 %v9508
        %v10161 = vunpack.c.l.b16 %v9509
        %v10162 = vunpack.c.h.b16 %v9509
        %v10163 = vunpack.c.l.b16 %v9510
        %v10164 = vunpack.c.h.b16 %v9510
        %v10165 = vunpack.c.l.b16 %v9511
        %v10166 = vunpack.c.h.b16 %v9511
        %v10167 = vunpack.c.l.b16 %v9512
        %v10168 = vunpack.c.h.b16 %v9512
        %v10169 = vunpack.c.l.b16 %v9513
        %v10170 = vunpack.c.h.b16 %v9513
        %v10171 = vunpack.c.l.b16 %v9514
        %v10172 = vunpack.c.h.b16 %v9514
        %v10173 = vunpack.c.l.b16 %v9515
        %v10174 = vunpack.c.h.b16 %v9515
        %v10175 = vunpack.c.l.b16 %v9516
        %v10176 = vunpack.c.h.b16 %v9516
        %v10177 = vunpack.c.l.b16 %v9517
        %v10178 = vunpack.c.h.b16 %v9517
        %v10179 = vunpack.c.l.b16 %v9518
        %v10180 = vunpack.c.h.b16 %v9518
        %v10181 = vunpack.c.l.b16 %v9519
        %v10182 = vunpack.c.h.b16 %v9519
        %v10183 = vunpack.c.l.b16 %v9520
        %v10184 = vunpack.c.h.b16 %v9520
        %v10185 = vunpack.c.l.b16 %v9521
        %v10186 = vunpack.c.h.b16 %v9521
        %v10187 = vunpack.c.l.b16 %v9522
        %v10188 = vunpack.c.h.b16 %v9522
        %v10189 = vunpack.c.l.b16 %v9523
        %v10190 = vunpack.c.h.b16 %v9523
        %v10191 = vunpack.c.l.b16 %v9524
        %v10192 = vunpack.c.h.b16 %v9524
        %v10193 = vunpack.c.l.b16 %v9525
        %v10194 = vunpack.c.h.b16 %v9525
        %v10195 = vunpack.c.l.b16 %v9526
        %v10196 = vunpack.c.h.b16 %v9526
        %v10197 = vunpack.c.l.b16 %v9527
        %v10198 = vunpack.c.h.b16 %v9527
        %v10199 = vunpack.c.l.b16 %v9528
        %v10200 = vunpack.c.h.b16 %v9528
        %v10201 = vunpack.c.l.b16 %v9529
        %v10202 = vunpack.c.h.b16 %v9529
        %v10203 = vunpack.c.l.b16 %v9530
        %v10204 = vunpack.c.h.b16 %v9530
        %v10205 = vunpack.c.l.b16 %v9531
        %v10206 = vunpack.c.h.b16 %v9531
        %v10207 = vunpack.c.l.b16 %v9532
        %v10208 = vunpack.c.h.b16 %v9532
        %v10209 = vunpack.c.l.b16 %v9533
        %v10210 = vunpack.c.h.b16 %v9533
        %v10211 = vunpack.c.l.b16 %v9534
        %v10212 = vunpack.c.h.b16 %v9534
        %v10213 = vunpack.c.l.b16 %v9535
        %v10214 = vunpack.c.h.b16 %v9535
        %v10215 = vunpack.c.l.b16 %v9536
        %v10216 = vunpack.c.h.b16 %v9536
        %v10217 = vunpack.c.l.b16 %v9537
        %v10218 = vunpack.c.h.b16 %v9537
        %v10219 = vunpack.c.l.b16 %v9538
        %v10220 = vunpack.c.h.b16 %v9538
        %v10221 = vunpack.c.l.b16 %v9539
        %v10222 = vunpack.c.h.b16 %v9539
        %v10223 = vunpack.c.l.b16 %v9540
        %v10224 = vunpack.c.h.b16 %v9540
        %v10225 = vunpack.c.l.b16 %v9541
        %v10226 = vunpack.c.h.b16 %v9541
        %v10227 = vunpack.c.l.b16 %v9542
        %v10228 = vunpack.c.h.b16 %v9542
        %v10229 = vunpack.c.l.b16 %v9543
        %v10230 = vunpack.c.h.b16 %v9543
        %v10231 = vunpack.c.l.b16 %v9544
        %v10232 = vunpack.c.h.b16 %v9544
        %v10233 = vunpack.c.l.b16 %v9545
        %v10234 = vunpack.c.h.b16 %v9545
        %v10235 = vunpack.c.l.b16 %v9546
        %v10236 = vunpack.c.h.b16 %v9546
        %v10237 = vunpack.c.l.b16 %v9547
        %v10238 = vunpack.c.h.b16 %v9547
        %v10239 = vunpack.c.l.b16 %v9548
        %v10240 = vunpack.c.h.b16 %v9548
        %v10241 = vunpack.c.l.b16 %v9549
        %v10242 = vunpack.c.h.b16 %v9549
        %v10243 = vunpack.c.l.b16 %v9550
        %v10244 = vunpack.c.h.b16 %v9550
        %v10245 = vunpack.c.l.b16 %v9551
        %v10246 = vunpack.c.h.b16 %v9551
        %v10247 = vunpack.c.l.b16 %v9552
        %v10248 = vunpack.c.h.b16 %v9552
        %v10249 = vunpack.c.l.b16 %v9553
        %v10250 = vunpack.c.h.b16 %v9553
        %v10251 = vunpack.c.l.b16 %v9554
        %v10252 = vunpack.c.h.b16 %v9554
        %v10253 = vunpack.c.l.b16 %v9555
        %v10254 = vunpack.c.h.b16 %v9555
        %v10255 = vunpack.c.l.b16 %v9556
        %v10256 = vunpack.c.h.b16 %v9556
        %v10257 = vunpack.c.l.b16 %v9557
        %v10258 = vunpack.c.h.b16 %v9557
        %v10259 = vunpack.c.l.b16 %v9558
        %v10260 = vunpack.c.h.b16 %v9558
        %v10261 = vunpack.c.l.b16 %v9559
        %v10262 = vunpack.c.h.b16 %v9559
        %v10263 = vunpack.c.l.b16 %v9560
        %v10264 = vunpack.c.h.b16 %v9560
        %v10265 = vunpack.c.l.b16 %v9561
        %v10266 = vunpack.c.h.b16 %v9561
        %v10267 = vunpack.c.l.b16 %v9562
        %v10268 = vunpack.c.h.b16 %v9562
        %v10269 = vunpack.c.l.b16 %v9563
        %v10270 = vunpack.c.h.b16 %v9563
        %v10271 = vunpack.c.l.b16 %v9564
        %v10272 = vunpack.c.h.b16 %v9564
        %v10273 = vunpack.c.l.b16 %v9565
        %v10274 = vunpack.c.h.b16 %v9565
        %v10275 = vunpack.c.l.b16 %v9566
        %v10276 = vunpack.c.h.b16 %v9566
        %v10277 = vunpack.c.l.b16 %v9567
        %v10278 = vunpack.c.h.b16 %v9567
        %v10279 = vunpack.c.l.b16 %v9568
        %v10280 = vunpack.c.h.b16 %v9568
        %v10281 = vunpack.c.l.b16 %v9569
        %v10282 = vunpack.c.h.b16 %v9569
        %v10283 = vunpack.c.l.b16 %v9570
        %v10284 = vunpack.c.h.b16 %v9570
        %v10285 = vunpack.c.l.b16 %v9571
        %v10286 = vunpack.c.h.b16 %v9571
        %v10287 = vunpack.c.l.b16 %v9572
        %v10288 = vunpack.c.h.b16 %v9572
        %v10289 = vunpack.c.l.b16 %v9573
        %v10290 = vunpack.c.h.b16 %v9573
        %v10291 = vunpack.c.l.b16 %v9574
        %v10292 = vunpack.c.h.b16 %v9574
        %v10293 = vunpack.c.l.b16 %v9575
        %v10294 = vunpack.c.h.b16 %v9575
        %v10295 = vunpack.c.l.b16 %v9576
        %v10296 = vunpack.c.h.b16 %v9576
        %v10297 = vunpack.c.l.b16 %v9577
        %v10298 = vunpack.c.h.b16 %v9577
        %v10299 = vunpack.c.l.b16 %v9578
        %v10300 = vunpack.c.h.b16 %v9578
        %v10301 = vunpack.c.l.b16 %v9579
        %v10302 = vunpack.c.h.b16 %v9579
        %v10303 = vunpack.c.l.b16 %v9580
        %v10304 = vunpack.c.h.b16 %v9580
        %v10305 = vunpack.c.l.b16 %v9581
        %v10306 = vunpack.c.h.b16 %v9581
        %v10307 = vunpack.c.l.b16 %v9582
        %v10308 = vunpack.c.h.b16 %v9582
        %v10309 = vunpack.c.l.b16 %v9583
        %v10310 = vunpack.c.h.b16 %v9583
        %v10311 = vunpack.c.l.b16 %v9584
        %v10312 = vunpack.c.h.b16 %v9584
        %v10313 = vunpack.c.l.b16 %v9585
        %v10314 = vunpack.c.h.b16 %v9585
        %v10315 = vunpack.c.l.b16 %v9586
        %v10316 = vunpack.c.h.b16 %v9586
        %v10317 = vunpack.c.l.b16 %v9587
        %v10318 = vunpack.c.h.b16 %v9587
        %v10319 = vunpack.c.l.b16 %v9588
        %v10320 = vunpack.c.h.b16 %v9588
        %v10321 = vunpack.c.l.b16 %v9589
        %v10322 = vunpack.c.h.b16 %v9589
        %v10323 = vunpack.c.l.b16 %v9590
        %v10324 = vunpack.c.h.b16 %v9590
        %v10325 = vunpack.c.l.b16 %v9591
        %v10326 = vunpack.c.h.b16 %v9591
        %v10327 = vunpack.c.l.b16 %v9592
        %v10328 = vunpack.c.h.b16 %v9592
        %v10329 = vunpack.c.l.b16 %v9593
        %v10330 = vunpack.c.h.b16 %v9593
        %v10331 = vunpack.c.l.b16 %v9594
        %v10332 = vunpack.c.h.b16 %v9594
        %v10333 = vunpack.c.l.b16 %v9595
        %v10334 = vunpack.c.h.b16 %v9595
        %v10335 = vunpack.c.l.b16 %v9596
        %v10336 = vunpack.c.h.b16 %v9596
        %v10337 = vunpack.c.l.b16 %v9597
        %v10338 = vunpack.c.h.b16 %v9597
        %v10339 = vunpack.c.l.b16 %v9598
        %v10340 = vunpack.c.h.b16 %v9598
        %v10341 = vunpack.c.l.b16 %v9599
        %v10342 = vunpack.c.h.b16 %v9599
        %v10343 = vunpack.c.l.b16 %v9600
        %v10344 = vunpack.c.h.b16 %v9600
        %v10345 = vunpack.c.l.b16 %v9601
        %v10346 = vunpack.c.h.b16 %v9601
        %v10347 = vunpack.c.l.b16 %v9602
        %v10348 = vunpack.c.h.b16 %v9602
        %v10349 = vunpack.c.l.b16 %v9603
        %v10350 = vunpack.c.h.b16 %v9603
        %v10351 = vunpack.c.l.b16 %v9604
        %v10352 = vunpack.c.h.b16 %v9604
        %v10353 = vunpack.c.l.b16 %v9605
        %v10354 = vunpack.c.h.b16 %v9605
        %v10355 = vunpack.c.l.b16 %v9606
        %v10356 = vunpack.c.h.b16 %v9606
        %v10357 = vunpack.c.l.b16 %v9607
        %v10358 = vunpack.c.h.b16 %v9607
        %v10359 = vunpack.c.l.b16 %v9608
        %v10360 = vunpack.c.h.b16 %v9608
        %v10361 = vunpack.c.l.b16 %v9609
        %v10362 = vunpack.c.h.b16 %v9609
        %v10363 = vunpack.c.l.b16 %v9610
        %v10364 = vunpack.c.h.b16 %v9610
        %v10365 = vunpack.c.l.b16 %v9611
        %v10366 = vunpack.c.h.b16 %v9611
        %v10367 = vunpack.c.l.b16 %v9612
        %v10368 = vunpack.c.h.b16 %v9612
        %v10369 = vunpack.c.l.b16 %v9613
        %v10370 = vunpack.c.h.b16 %v9613
        %v10371 = vunpack.c.l.b16 %v9614
        %v10372 = vunpack.c.h.b16 %v9614
        %v10373 = vunpack.c.l.b16 %v9615
        %v10374 = vunpack.c.h.b16 %v9615
        %v10375 = vunpack.c.l.b16 %v9616
        %v10376 = vunpack.c.h.b16 %v9616
        %v10377 = vunpack.c.l.b16 %v9617
        %v10378 = vunpack.c.h.b16 %v9617
        %v10379 = vunpack.c.l.b16 %v9618
        %v10380 = vunpack.c.h.b16 %v9618
        %v10381 = vunpack.c.l.b16 %v9619
        %v10382 = vunpack.c.h.b16 %v9619
        %v10383 = vunpack.c.l.b16 %v9620
        %v10384 = vunpack.c.h.b16 %v9620
        %v10385 = vunpack.c.l.b16 %v9621
        %v10386 = vunpack.c.h.b16 %v9621
        %v10387 = vunpack.c.l.b16 %v9622
        %v10388 = vunpack.c.h.b16 %v9622
        %v10389 = vunpack.c.l.b16 %v9623
        %v10390 = vunpack.c.h.b16 %v9623
        %v10391 = vunpack.c.l.b16 %v9624
        %v10392 = vunpack.c.h.b16 %v9624
        %v10393 = vunpack.c.l.b16 %v9625
        %v10394 = vunpack.c.h.b16 %v9625
        %v10395 = vunpack.c.l.b16 %v9626
        %v10396 = vunpack.c.h.b16 %v9626
        %v10397 = vunpack.c.l.b16 %v9627
        %v10398 = vunpack.c.h.b16 %v9627
        %v10399 = vunpack.c.l.b16 %v9628
        %v10400 = vunpack.c.h.b16 %v9628
        %v10401 = vunpack.c.l.b16 %v9629
        %v10402 = vunpack.c.h.b16 %v9629
        %v10403 = vunpack.c.l.b16 %v9630
        %v10404 = vunpack.c.h.b16 %v9630
        %v10405 = vunpack.c.l.b16 %v9631
        %v10406 = vunpack.c.h.b16 %v9631
        %v10407 = vunpack.c.l.b16 %v9632
        %v10408 = vunpack.c.h.b16 %v9632
        %v10409 = vunpack.c.l.b16 %v9633
        %v10410 = vunpack.c.h.b16 %v9633
        %v10411 = vunpack.c.l.b16 %v9634
        %v10412 = vunpack.c.h.b16 %v9634
        %v10413 = vunpack.c.l.b16 %v9635
        %v10414 = vunpack.c.h.b16 %v9635
        %v10415 = vunpack.c.l.b16 %v9636
        %v10416 = vunpack.c.h.b16 %v9636
        %v10417 = vunpack.c.l.b16 %v9637
        %v10418 = vunpack.c.h.b16 %v9637
        %v10419 = vunpack.c.l.b16 %v9638
        %v10420 = vunpack.c.h.b16 %v9638
        %v10421 = vunpack.c.l.b16 %v9639
        %v10422 = vunpack.c.h.b16 %v9639
        %v10423 = vunpack.c.l.b16 %v9640
        %v10424 = vunpack.c.h.b16 %v9640
        %v10425 = vunpack.c.l.b16 %v9641
        %v10426 = vunpack.c.h.b16 %v9641
        %v10427 = vunpack.c.l.b16 %v9642
        %v10428 = vunpack.c.h.b16 %v9642
        %v10429 = vunpack.c.l.b16 %v9643
        %v10430 = vunpack.c.h.b16 %v9643
        %v10431 = vunpack.c.l.b16 %v9644
        %v10432 = vunpack.c.h.b16 %v9644
        %v10433 = vunpack.c.l.b16 %v9645
        %v10434 = vunpack.c.h.b16 %v9645
        %v10435 = vunpack.c.l.b16 %v9646
        %v10436 = vunpack.c.h.b16 %v9646
        %v10437 = vunpack.c.l.b16 %v9647
        %v10438 = vunpack.c.h.b16 %v9647
        %v10439 = vunpack.c.l.b16 %v9648
        %v10440 = vunpack.c.h.b16 %v9648
        %v10441 = vunpack.c.l.b16 %v9649
        %v10442 = vunpack.c.h.b16 %v9649
        %v10443 = vunpack.c.l.b16 %v9650
        %v10444 = vunpack.c.h.b16 %v9650
        %v10445 = vunpack.c.l.b16 %v9651
        %v10446 = vunpack.c.h.b16 %v9651
        %v10447 = vunpack.c.l.b16 %v9652
        %v10448 = vunpack.c.h.b16 %v9652
        %v10449 = vunpack.c.l.b16 %v9653
        %v10450 = vunpack.c.h.b16 %v9653
        %v10451 = vunpack.c.l.b16 %v9654
        %v10452 = vunpack.c.h.b16 %v9654
        %v10453 = vunpack.c.l.b16 %v9655
        %v10454 = vunpack.c.h.b16 %v9655
        %v10455 = vunpack.c.l.b16 %v9656
        %v10456 = vunpack.c.h.b16 %v9656
        %v10457 = vunpack.c.l.b16 %v9657
        %v10458 = vunpack.c.h.b16 %v9657
        %v10459 = vunpack.c.l.b16 %v9658
        %v10460 = vunpack.c.h.b16 %v9658
        %v10461 = vunpack.c.l.b16 %v9659
        %v10462 = vunpack.c.h.b16 %v9659
        %v10463 = vunpack.c.l.b16 %v9660
        %v10464 = vunpack.c.h.b16 %v9660
        %v10465 = vunpack.c.l.b16 %v9661
        %v10466 = vunpack.c.h.b16 %v9661
        %v10467 = vunpack.c.l.b16 %v9662
        %v10468 = vunpack.c.h.b16 %v9662
        %v10469 = vunpack.c.l.b16 %v9663
        %v10470 = vunpack.c.h.b16 %v9663
        %v10471 = vunpack.c.l.b16 %v9664
        %v10472 = vunpack.c.h.b16 %v9664
        %v10473 = vunpack.c.l.b16 %v9665
        %v10474 = vunpack.c.h.b16 %v9665
        %v10475 = vunpack.c.l.b16 %v9666
        %v10476 = vunpack.c.h.b16 %v9666
        %v10477 = vunpack.c.l.b16 %v9667
        %v10478 = vunpack.c.h.b16 %v9667
        %v10479 = vunpack.c.l.b16 %v9668
        %v10480 = vunpack.c.h.b16 %v9668
        %v10481 = vunpack.c.l.b16 %v9669
        %v10482 = vunpack.c.h.b16 %v9669
        %v10483 = vunpack.c.l.b16 %v9670
        %v10484 = vunpack.c.h.b16 %v9670
        %v10485 = vunpack.c.l.b16 %v9671
        %v10486 = vunpack.c.h.b16 %v9671
        %v10487 = vunpack.c.l.b16 %v9672
        %v10488 = vunpack.c.h.b16 %v9672
        %v10489 = vunpack.c.l.b16 %v9673
        %v10490 = vunpack.c.h.b16 %v9673
        %v10491 = vunpack.c.l.b16 %v9674
        %v10492 = vunpack.c.h.b16 %v9674
        %v10493 = vunpack.c.l.b16 %v9675
        %v10494 = vunpack.c.h.b16 %v9675
        %v10495 = vunpack.c.l.b16 %v9676
        %v10496 = vunpack.c.h.b16 %v9676
        %v10497 = vunpack.c.l.b16 %v9677
        %v10498 = vunpack.c.h.b16 %v9677
        %v10499 = vunpack.c.l.b16 %v9678
        %v10500 = vunpack.c.h.b16 %v9678
        %v10501 = vunpack.c.l.b16 %v9679
        %v10502 = vunpack.c.h.b16 %v9679
        %v10503 = vunpack.c.l.b16 %v9680
        %v10504 = vunpack.c.h.b16 %v9680
        %v10505 = vpack.c.b16 %v9997, %v9993
        %v10506 = vpack.c.b16 %v9998, %v9994
        %v10507 = vpack.c.b16 %v9999, %v9995
        %v10508 = vpack.c.b16 %v10000, %v9996
        %v10509 = vpack.c.b16 %v10005, %v10001
        %v10510 = vpack.c.b16 %v10006, %v10002
        %v10511 = vpack.c.b16 %v10007, %v10003
        %v10512 = vpack.c.b16 %v10008, %v10004
        %v10513 = vpack.c.b16 %v10013, %v10009
        %v10514 = vpack.c.b16 %v10014, %v10010
        %v10515 = vpack.c.b16 %v10015, %v10011
        %v10516 = vpack.c.b16 %v10016, %v10012
        %v10517 = vpack.c.b16 %v10021, %v10017
        %v10518 = vpack.c.b16 %v10022, %v10018
        %v10519 = vpack.c.b16 %v10023, %v10019
        %v10520 = vpack.c.b16 %v10024, %v10020
        %v10521 = vpack.c.b16 %v10029, %v10025
        %v10522 = vpack.c.b16 %v10030, %v10026
        %v10523 = vpack.c.b16 %v10031, %v10027
        %v10524 = vpack.c.b16 %v10032, %v10028
        %v10525 = vpack.c.b16 %v10037, %v10033
        %v10526 = vpack.c.b16 %v10038, %v10034
        %v10527 = vpack.c.b16 %v10039, %v10035
        %v10528 = vpack.c.b16 %v10040, %v10036
        %v10529 = vpack.c.b16 %v10045, %v10041
        %v10530 = vpack.c.b16 %v10046, %v10042
        %v10531 = vpack.c.b16 %v10047, %v10043
        %v10532 = vpack.c.b16 %v10048, %v10044
        %v10533 = vpack.c.b16 %v10053, %v10049
        %v10534 = vpack.c.b16 %v10054, %v10050
        %v10535 = vpack.c.b16 %v10055, %v10051
        %v10536 = vpack.c.b16 %v10056, %v10052
        %v10537 = vpack.c.b16 %v10061, %v10057
        %v10538 = vpack.c.b16 %v10062, %v10058
        %v10539 = vpack.c.b16 %v10063, %v10059
        %v10540 = vpack.c.b16 %v10064, %v10060
        %v10541 = vpack.c.b16 %v10069, %v10065
        %v10542 = vpack.c.b16 %v10070, %v10066
        %v10543 = vpack.c.b16 %v10071, %v10067
        %v10544 = vpack.c.b16 %v10072, %v10068
        %v10545 = vpack.c.b16 %v10077, %v10073
        %v10546 = vpack.c.b16 %v10078, %v10074
        %v10547 = vpack.c.b16 %v10079, %v10075
        %v10548 = vpack.c.b16 %v10080, %v10076
        %v10549 = vpack.c.b16 %v10085, %v10081
        %v10550 = vpack.c.b16 %v10086, %v10082
        %v10551 = vpack.c.b16 %v10087, %v10083
        %v10552 = vpack.c.b16 %v10088, %v10084
        %v10553 = vpack.c.b16 %v10093, %v10089
        %v10554 = vpack.c.b16 %v10094, %v10090
        %v10555 = vpack.c.b16 %v10095, %v10091
        %v10556 = vpack.c.b16 %v10096, %v10092
        %v10557 = vpack.c.b16 %v10101, %v10097
        %v10558 = vpack.c.b16 %v10102, %v10098
        %v10559 = vpack.c.b16 %v10103, %v10099
        %v10560 = vpack.c.b16 %v10104, %v10100
        %v10561 = vpack.c.b16 %v10109, %v10105
        %v10562 = vpack.c.b16 %v10110, %v10106
        %v10563 = vpack.c.b16 %v10111, %v10107
        %v10564 = vpack.c.b16 %v10112, %v10108
        %v10565 = vpack.c.b16 %v10117, %v10113
        %v10566 = vpack.c.b16 %v10118, %v10114
        %v10567 = vpack.c.b16 %v10119, %v10115
        %v10568 = vpack.c.b16 %v10120, %v10116
        %v10569 = vpack.c.b16 %v10125, %v10121
        %v10570 = vpack.c.b16 %v10126, %v10122
        %v10571 = vpack.c.b16 %v10127, %v10123
        %v10572 = vpack.c.b16 %v10128, %v10124
        %v10573 = vpack.c.b16 %v10133, %v10129
        %v10574 = vpack.c.b16 %v10134, %v10130
        %v10575 = vpack.c.b16 %v10135, %v10131
        %v10576 = vpack.c.b16 %v10136, %v10132
        %v10577 = vpack.c.b16 %v10141, %v10137
        %v10578 = vpack.c.b16 %v10142, %v10138
        %v10579 = vpack.c.b16 %v10143, %v10139
        %v10580 = vpack.c.b16 %v10144, %v10140
        %v10581 = vpack.c.b16 %v10149, %v10145
        %v10582 = vpack.c.b16 %v10150, %v10146
        %v10583 = vpack.c.b16 %v10151, %v10147
        %v10584 = vpack.c.b16 %v10152, %v10148
        %v10585 = vpack.c.b16 %v10157, %v10153
        %v10586 = vpack.c.b16 %v10158, %v10154
        %v10587 = vpack.c.b16 %v10159, %v10155
        %v10588 = vpack.c.b16 %v10160, %v10156
        %v10589 = vpack.c.b16 %v10165, %v10161
        %v10590 = vpack.c.b16 %v10166, %v10162
        %v10591 = vpack.c.b16 %v10167, %v10163
        %v10592 = vpack.c.b16 %v10168, %v10164
        %v10593 = vpack.c.b16 %v10173, %v10169
        %v10594 = vpack.c.b16 %v10174, %v10170
        %v10595 = vpack.c.b16 %v10175, %v10171
        %v10596 = vpack.c.b16 %v10176, %v10172
        %v10597 = vpack.c.b16 %v10181, %v10177
        %v10598 = vpack.c.b16 %v10182, %v10178
        %v10599 = vpack.c.b16 %v10183, %v10179
        %v10600 = vpack.c.b16 %v10184, %v10180
        %v10601 = vpack.c.b16 %v10189, %v10185
        %v10602 = vpack.c.b16 %v10190, %v10186
        %v10603 = vpack.c.b16 %v10191, %v10187
        %v10604 = vpack.c.b16 %v10192, %v10188
        %v10605 = vpack.c.b16 %v10197, %v10193
        %v10606 = vpack.c.b16 %v10198, %v10194
        %v10607 = vpack.c.b16 %v10199, %v10195
        %v10608 = vpack.c.b16 %v10200, %v10196
        %v10609 = vpack.c.b16 %v10205, %v10201
        %v10610 = vpack.c.b16 %v10206, %v10202
        %v10611 = vpack.c.b16 %v10207, %v10203
        %v10612 = vpack.c.b16 %v10208, %v10204
        %v10613 = vpack.c.b16 %v10213, %v10209
        %v10614 = vpack.c.b16 %v10214, %v10210
        %v10615 = vpack.c.b16 %v10215, %v10211
        %v10616 = vpack.c.b16 %v10216, %v10212
        %v10617 = vpack.c.b16 %v10221, %v10217
        %v10618 = vpack.c.b16 %v10222, %v10218
        %v10619 = vpack.c.b16 %v10223, %v10219
        %v10620 = vpack.c.b16 %v10224, %v10220
        %v10621 = vpack.c.b16 %v10229, %v10225
        %v10622 = vpack.c.b16 %v10230, %v10226
        %v10623 = vpack.c.b16 %v10231, %v10227
        %v10624 = vpack.c.b16 %v10232, %v10228
        %v10625 = vpack.c.b16 %v10237, %v10233
        %v10626 = vpack.c.b16 %v10238, %v10234
        %v10627 = vpack.c.b16 %v10239, %v10235
        %v10628 = vpack.c.b16 %v10240, %v10236
        %v10629 = vpack.c.b16 %v10245, %v10241
        %v10630 = vpack.c.b16 %v10246, %v10242
        %v10631 = vpack.c.b16 %v10247, %v10243
        %v10632 = vpack.c.b16 %v10248, %v10244
        %v10633 = vpack.c.b16 %v10253, %v10249
        %v10634 = vpack.c.b16 %v10254, %v10250
        %v10635 = vpack.c.b16 %v10255, %v10251
        %v10636 = vpack.c.b16 %v10256, %v10252
        %v10637 = vpack.c.b16 %v10261, %v10257
        %v10638 = vpack.c.b16 %v10262, %v10258
        %v10639 = vpack.c.b16 %v10263, %v10259
        %v10640 = vpack.c.b16 %v10264, %v10260
        %v10641 = vpack.c.b16 %v10269, %v10265
        %v10642 = vpack.c.b16 %v10270, %v10266
        %v10643 = vpack.c.b16 %v10271, %v10267
        %v10644 = vpack.c.b16 %v10272, %v10268
        %v10645 = vpack.c.b16 %v10277, %v10273
        %v10646 = vpack.c.b16 %v10278, %v10274
        %v10647 = vpack.c.b16 %v10279, %v10275
        %v10648 = vpack.c.b16 %v10280, %v10276
        %v10649 = vpack.c.b16 %v10285, %v10281
        %v10650 = vpack.c.b16 %v10286, %v10282
        %v10651 = vpack.c.b16 %v10287, %v10283
        %v10652 = vpack.c.b16 %v10288, %v10284
        %v10653 = vpack.c.b16 %v10293, %v10289
        %v10654 = vpack.c.b16 %v10294, %v10290
        %v10655 = vpack.c.b16 %v10295, %v10291
        %v10656 = vpack.c.b16 %v10296, %v10292
        %v10657 = vpack.c.b16 %v10301, %v10297
        %v10658 = vpack.c.b16 %v10302, %v10298
        %v10659 = vpack.c.b16 %v10303, %v10299
        %v10660 = vpack.c.b16 %v10304, %v10300
        %v10661 = vpack.c.b16 %v10309, %v10305
        %v10662 = vpack.c.b16 %v10310, %v10306
        %v10663 = vpack.c.b16 %v10311, %v10307
        %v10664 = vpack.c.b16 %v10312, %v10308
        %v10665 = vpack.c.b16 %v10317, %v10313
        %v10666 = vpack.c.b16 %v10318, %v10314
        %v10667 = vpack.c.b16 %v10319, %v10315
        %v10668 = vpack.c.b16 %v10320, %v10316
        %v10669 = vpack.c.b16 %v10325, %v10321
        %v10670 = vpack.c.b16 %v10326, %v10322
        %v10671 = vpack.c.b16 %v10327, %v10323
        %v10672 = vpack.c.b16 %v10328, %v10324
        %v10673 = vpack.c.b16 %v10333, %v10329
        %v10674 = vpack.c.b16 %v10334, %v10330
        %v10675 = vpack.c.b16 %v10335, %v10331
        %v10676 = vpack.c.b16 %v10336, %v10332
        %v10677 = vpack.c.b16 %v10341, %v10337
        %v10678 = vpack.c.b16 %v10342, %v10338
        %v10679 = vpack.c.b16 %v10343, %v10339
        %v10680 = vpack.c.b16 %v10344, %v10340
        %v10681 = vpack.c.b16 %v10349, %v10345
        %v10682 = vpack.c.b16 %v10350, %v10346
        %v10683 = vpack.c.b16 %v10351, %v10347
        %v10684 = vpack.c.b16 %v10352, %v10348
        %v10685 = vpack.c.b16 %v10357, %v10353
        %v10686 = vpack.c.b16 %v10358, %v10354
        %v10687 = vpack.c.b16 %v10359, %v10355
        %v10688 = vpack.c.b16 %v10360, %v10356
        %v10689 = vpack.c.b16 %v10365, %v10361
        %v10690 = vpack.c.b16 %v10366, %v10362
        %v10691 = vpack.c.b16 %v10367, %v10363
        %v10692 = vpack.c.b16 %v10368, %v10364
        %v10693 = vpack.c.b16 %v10373, %v10369
        %v10694 = vpack.c.b16 %v10374, %v10370
        %v10695 = vpack.c.b16 %v10375, %v10371
        %v10696 = vpack.c.b16 %v10376, %v10372
        %v10697 = vpack.c.b16 %v10381, %v10377
        %v10698 = vpack.c.b16 %v10382, %v10378
        %v10699 = vpack.c.b16 %v10383, %v10379
        %v10700 = vpack.c.b16 %v10384, %v10380
        %v10701 = vpack.c.b16 %v10389, %v10385
        %v10702 = vpack.c.b16 %v10390, %v10386
        %v10703 = vpack.c.b16 %v10391, %v10387
        %v10704 = vpack.c.b16 %v10392, %v10388
        %v10705 = vpack.c.b16 %v10397, %v10393
        %v10706 = vpack.c.b16 %v10398, %v10394
        %v10707 = vpack.c.b16 %v10399, %v10395
        %v10708 = vpack.c.b16 %v10400, %v10396
        %v10709 = vpack.c.b16 %v10405, %v10401
        %v10710 = vpack.c.b16 %v10406, %v10402
        %v10711 = vpack.c.b16 %v10407, %v10403
        %v10712 = vpack.c.b16 %v10408, %v10404
        %v10713 = vpack.c.b16 %v10413, %v10409
        %v10714 = vpack.c.b16 %v10414, %v10410
        %v10715 = vpack.c.b16 %v10415, %v10411
        %v10716 = vpack.c.b16 %v10416, %v10412
        %v10717 = vpack.c.b16 %v10421, %v10417
        %v10718 = vpack.c.b16 %v10422, %v10418
        %v10719 = vpack.c.b16 %v10423, %v10419
        %v10720 = vpack.c.b16 %v10424, %v10420
        %v10721 = vpack.c.b16 %v10429, %v10425
        %v10722 = vpack.c.b16 %v10430, %v10426
        %v10723 = vpack.c.b16 %v10431, %v10427
        %v10724 = vpack.c.b16 %v10432, %v10428
        %v10725 = vpack.c.b16 %v10437, %v10433
        %v10726 = vpack.c.b16 %v10438, %v10434
        %v10727 = vpack.c.b16 %v10439, %v10435
        %v10728 = vpack.c.b16 %v10440, %v10436
        %v10729 = vpack.c.b16 %v10445, %v10441
        %v10730 = vpack.c.b16 %v10446, %v10442
        %v10731 = vpack.c.b16 %v10447, %v10443
        %v10732 = vpack.c.b16 %v10448, %v10444
        %v10733 = vpack.c.b16 %v10453, %v10449
        %v10734 = vpack.c.b16 %v10454, %v10450
        %v10735 = vpack.c.b16 %v10455, %v10451
        %v10736 = vpack.c.b16 %v10456, %v10452
        %v10737 = vpack.c.b16 %v10461, %v10457
        %v10738 = vpack.c.b16 %v10462, %v10458
        %v10739 = vpack.c.b16 %v10463, %v10459
        %v10740 = vpack.c.b16 %v10464, %v10460
        %v10741 = vpack.c.b16 %v10469, %v10465
        %v10742 = vpack.c.b16 %v10470, %v10466
        %v10743 = vpack.c.b16 %v10471, %v10467
        %v10744 = vpack.c.b16 %v10472, %v10468
        %v10745 = vpack.c.b16 %v10477, %v10473
        %v10746 = vpack.c.b16 %v10478, %v10474
        %v10747 = vpack.c.b16 %v10479, %v10475
        %v10748 = vpack.c.b16 %v10480, %v10476
        %v10749 = vpack.c.b16 %v10485, %v10481
        %v10750 = vpack.c.b16 %v10486, %v10482
        %v10751 = vpack.c.b16 %v10487, %v10483
        %v10752 = vpack.c.b16 %v10488, %v10484
        %v10753 = vpack.c.b16 %v10493, %v10489
        %v10754 = vpack.c.b16 %v10494, %v10490
        %v10755 = vpack.c.b16 %v10495, %v10491
        %v10756 = vpack.c.b16 %v10496, %v10492
        %v10757 = vpack.c.b16 %v10501, %v10497
        %v10758 = vpack.c.b16 %v10502, %v10498
        %v10759 = vpack.c.b16 %v10503, %v10499
        %v10760 = vpack.c.b16 %v10504, %v10500
        %11017 = vmatprep.subr.bf16.mxu0 %v10534
        %11018 = vmatpush1.bf16.msra.mxu0 %v10533
        %11019 = vmatprep.subr.bf16.mxu0 %v10530
        %11020 = vmatpush1.bf16.msra.mxu0 %v10529
        %11021 = vmatprep.subr.bf16.mxu0 %v10526
        %11022 = vmatpush1.bf16.msra.mxu0 %v10525
        %11023 = vmatprep.subr.bf16.mxu0 %v10522
        %11024 = vmatpush1.bf16.msra.mxu0 %v10521
        %11025 = vmatprep.subr.bf16.mxu0 %v10518
        %11026 = vmatpush1.bf16.msra.mxu0 %v10517
        %11027 = vmatprep.subr.bf16.mxu0 %v10514
        %11028 = vmatpush1.bf16.msra.mxu0 %v10513
        %11029 = vmatprep.subr.bf16.mxu0 %v10510
        %11030 = vmatpush1.bf16.msra.mxu0 %v10509
        %11031 = vmatprep.subr.bf16.mxu0 %v10506
        %11032 = vmatpush1.bf16.msra.mxu0 %v10505
        %11033 = vmatprep.subr.bf16.mxu0 %v10566
        %11034 = vmatpush2.bf16.msra.mxu0 %v10565
        %11035 = vmatprep.subr.bf16.mxu0 %v10562
        %11036 = vmatpush2.bf16.msra.mxu0 %v10561
        %11037 = vmatprep.subr.bf16.mxu0 %v10558
        %11038 = vmatpush2.bf16.msra.mxu0 %v10557
        %11039 = vmatprep.subr.bf16.mxu0 %v10554
        %11040 = vmatpush2.bf16.msra.mxu0 %v10553
        %11041 = vmatprep.subr.bf16.mxu0 %v10550
        %11042 = vmatpush2.bf16.msra.mxu0 %v10549
        %11043 = vmatprep.subr.bf16.mxu0 %v10546
        %11044 = vmatpush2.bf16.msra.mxu0 %v10545
        %11045 = vmatprep.subr.bf16.mxu0 %v10542
        %11046 = vmatpush2.bf16.msra.mxu0 %v10541
        %11047 = vmatprep.subr.bf16.mxu0 %v10538
        %11048 = vmatpush2.bf16.msra.mxu0 %v10537
        %11049 = vmatprep.mubr.bf16.mxu0 %v9722
        %11050 = vmatmul.mubr.bf16.gmra.mxu0 %v9721
        %v11051 = vpop.f32.mrf.mxu0
        %v11052 = vadd.f32 0.0, %v11051
        %v11053 = vpop.f32.mrf.mxu0
        %v11054 = vadd.f32 0.0, %v11053
        %v11055 = vpop.f32.mrf.mxu0
        %v11056 = vpop.f32.mrf.mxu0
        %11057 = vdwg.mxu0
        %11058 = vmatprep.subr.bf16.mxu0 %v10598
        %11059 = vmatpush1.bf16.msra.mxu0 %v10597
        %11060 = vmatprep.subr.bf16.mxu0 %v10594
        %11061 = vmatpush1.bf16.msra.mxu0 %v10593
        %11062 = vmatprep.subr.bf16.mxu0 %v10590
        %11063 = vmatpush1.bf16.msra.mxu0 %v10589
        %11064 = vmatprep.subr.bf16.mxu0 %v10586
        %11065 = vmatpush1.bf16.msra.mxu0 %v10585
        %11066 = vmatprep.subr.bf16.mxu0 %v10582
        %11067 = vmatpush1.bf16.msra.mxu0 %v10581
        %11068 = vmatprep.subr.bf16.mxu0 %v10578
        %11069 = vmatpush1.bf16.msra.mxu0 %v10577
        %11070 = vmatprep.subr.bf16.mxu0 %v10574
        %11071 = vmatpush1.bf16.msra.mxu0 %v10573
        %11072 = vmatprep.subr.bf16.mxu0 %v10570
        %11073 = vmatpush1.bf16.msra.mxu0 %v10569
        %11074 = vmatprep.subr.bf16.mxu0 %v10630
        %11075 = vmatpush2.bf16.msra.mxu0 %v10629
        %11076 = vmatprep.subr.bf16.mxu0 %v10626
        %11077 = vmatpush2.bf16.msra.mxu0 %v10625
        %11078 = vmatprep.subr.bf16.mxu0 %v10622
        %11079 = vmatpush2.bf16.msra.mxu0 %v10621
        %11080 = vmatprep.subr.bf16.mxu0 %v10618
        %11081 = vmatpush2.bf16.msra.mxu0 %v10617
        %11082 = vmatprep.subr.bf16.mxu0 %v10614
        %11083 = vmatpush2.bf16.msra.mxu0 %v10613
        %11084 = vmatprep.subr.bf16.mxu0 %v10610
        %11085 = vmatpush2.bf16.msra.mxu0 %v10609
        %11086 = vmatprep.subr.bf16.mxu0 %v10606
        %11087 = vmatpush2.bf16.msra.mxu0 %v10605
        %11088 = vmatprep.subr.bf16.mxu0 %v10602
        %11089 = vmatpush2.bf16.msra.mxu0 %v10601
        %11090 = vmatprep.mubr.bf16.mxu0 %v9724
        %11091 = vmatmul.mubr.bf16.gmra.mxu0 %v9723
        %v11092 = vpop.f32.mrf.mxu0
        %v11093 = vadd.f32 %v11052, %v11092
        %v11094 = vpop.f32.mrf.mxu0
        %v11095 = vadd.f32 %v11054, %v11094
        %v11096 = vpop.f32.mrf.mxu0
        %v11097 = vpop.f32.mrf.mxu0
        %11098 = vdwg.mxu0
        %11099 = vmatprep.subr.bf16.mxu0 %v10662
        %11100 = vmatpush1.bf16.msra.mxu0 %v10661
        %11101 = vmatprep.subr.bf16.mxu0 %v10658
        %11102 = vmatpush1.bf16.msra.mxu0 %v10657
        %11103 = vmatprep.subr.bf16.mxu0 %v10654
        %11104 = vmatpush1.bf16.msra.mxu0 %v10653
        %11105 = vmatprep.subr.bf16.mxu0 %v10650
        %11106 = vmatpush1.bf16.msra.mxu0 %v10649
        %11107 = vmatprep.subr.bf16.mxu0 %v10646
        %11108 = vmatpush1.bf16.msra.mxu0 %v10645
        %11109 = vmatprep.subr.bf16.mxu0 %v10642
        %11110 = vmatpush1.bf16.msra.mxu0 %v10641
        %11111 = vmatprep.subr.bf16.mxu0 %v10638
        %11112 = vmatpush1.bf16.msra.mxu0 %v10637
        %11113 = vmatprep.subr.bf16.mxu0 %v10634
        %11114 = vmatpush1.bf16.msra.mxu0 %v10633
        %11115 = vmatprep.subr.bf16.mxu0 %v10694
        %11116 = vmatpush2.bf16.msra.mxu0 %v10693
        %11117 = vmatprep.subr.bf16.mxu0 %v10690
        %11118 = vmatpush2.bf16.msra.mxu0 %v10689
        %11119 = vmatprep.subr.bf16.mxu0 %v10686
        %11120 = vmatpush2.bf16.msra.mxu0 %v10685
        %11121 = vmatprep.subr.bf16.mxu0 %v10682
        %11122 = vmatpush2.bf16.msra.mxu0 %v10681
        %11123 = vmatprep.subr.bf16.mxu0 %v10678
        %11124 = vmatpush2.bf16.msra.mxu0 %v10677
        %11125 = vmatprep.subr.bf16.mxu0 %v10674
        %11126 = vmatpush2.bf16.msra.mxu0 %v10673
        %11127 = vmatprep.subr.bf16.mxu0 %v10670
        %11128 = vmatpush2.bf16.msra.mxu0 %v10669
        %11129 = vmatprep.subr.bf16.mxu0 %v10666
        %11130 = vmatpush2.bf16.msra.mxu0 %v10665
        %11131 = vmatprep.mubr.bf16.mxu0 %v9726
        %11132 = vmatmul.mubr.bf16.gmra.mxu0 %v9725
        %v11133 = vpop.f32.mrf.mxu0
        %v11134 = vadd.f32 %v11093, %v11133
        %v11135 = vpop.f32.mrf.mxu0
        %v11136 = vadd.f32 %v11095, %v11135
        %v11137 = vpop.f32.mrf.mxu0
        %v11138 = vpop.f32.mrf.mxu0
        %11139 = vdwg.mxu0
        %11140 = vmatprep.subr.bf16.mxu0 %v10726
        %11141 = vmatpush1.bf16.msra.mxu0 %v10725
        %11142 = vmatprep.subr.bf16.mxu0 %v10722
        %11143 = vmatpush1.bf16.msra.mxu0 %v10721
        %11144 = vmatprep.subr.bf16.mxu0 %v10718
        %11145 = vmatpush1.bf16.msra.mxu0 %v10717
        %11146 = vmatprep.subr.bf16.mxu0 %v10714
        %11147 = vmatpush1.bf16.msra.mxu0 %v10713
        %11148 = vmatprep.subr.bf16.mxu0 %v10710
        %11149 = vmatpush1.bf16.msra.mxu0 %v10709
        %11150 = vmatprep.subr.bf16.mxu0 %v10706
        %11151 = vmatpush1.bf16.msra.mxu0 %v10705
        %11152 = vmatprep.subr.bf16.mxu0 %v10702
        %11153 = vmatpush1.bf16.msra.mxu0 %v10701
        %11154 = vmatprep.subr.bf16.mxu0 %v10698
        %11155 = vmatpush1.bf16.msra.mxu0 %v10697
        %11156 = vmatprep.subr.bf16.mxu0 %v10758
        %11157 = vmatpush2.bf16.msra.mxu0 %v10757
        %11158 = vmatprep.subr.bf16.mxu0 %v10754
        %11159 = vmatpush2.bf16.msra.mxu0 %v10753
        %11160 = vmatprep.subr.bf16.mxu0 %v10750
        %11161 = vmatpush2.bf16.msra.mxu0 %v10749
        %11162 = vmatprep.subr.bf16.mxu0 %v10746
        %11163 = vmatpush2.bf16.msra.mxu0 %v10745
        %11164 = vmatprep.subr.bf16.mxu0 %v10742
        %11165 = vmatpush2.bf16.msra.mxu0 %v10741
        %11166 = vmatprep.subr.bf16.mxu0 %v10738
        %11167 = vmatpush2.bf16.msra.mxu0 %v10737
        %11168 = vmatprep.subr.bf16.mxu0 %v10734
        %11169 = vmatpush2.bf16.msra.mxu0 %v10733
        %11170 = vmatprep.subr.bf16.mxu0 %v10730
        %11171 = vmatpush2.bf16.msra.mxu0 %v10729
        %11172 = vmatprep.mubr.bf16.mxu0 %v9728
        %11173 = vmatmul.mubr.bf16.gmra.mxu0 %v9727
        %v11174 = vpop.f32.mrf.mxu0
        %v11175 = vadd.f32 %v11134, %v11174
        %v11176 = vpop.f32.mrf.mxu0
        %v11177 = vadd.f32 %v11136, %v11176
        %v11178 = vpop.f32.mrf.mxu0
        %v11179 = vpop.f32.mrf.mxu0
        %11180 = vdwg.mxu0
        %11181 = vmatprep.subr.bf16.mxu0 %v10536
        %11182 = vmatpush1.bf16.msra.mxu0 %v10535
        %11183 = vmatprep.subr.bf16.mxu0 %v10532
        %11184 = vmatpush1.bf16.msra.mxu0 %v10531
        %11185 = vmatprep.subr.bf16.mxu0 %v10528
        %11186 = vmatpush1.bf16.msra.mxu0 %v10527
        %11187 = vmatprep.subr.bf16.mxu0 %v10524
        %11188 = vmatpush1.bf16.msra.mxu0 %v10523
        %11189 = vmatprep.subr.bf16.mxu0 %v10520
        %11190 = vmatpush1.bf16.msra.mxu0 %v10519
        %11191 = vmatprep.subr.bf16.mxu0 %v10516
        %11192 = vmatpush1.bf16.msra.mxu0 %v10515
        %11193 = vmatprep.subr.bf16.mxu0 %v10512
        %11194 = vmatpush1.bf16.msra.mxu0 %v10511
        %11195 = vmatprep.subr.bf16.mxu0 %v10508
        %11196 = vmatpush1.bf16.msra.mxu0 %v10507
        %11197 = vmatprep.subr.bf16.mxu0 %v10568
        %11198 = vmatpush2.bf16.msra.mxu0 %v10567
        %11199 = vmatprep.subr.bf16.mxu0 %v10564
        %11200 = vmatpush2.bf16.msra.mxu0 %v10563
        %11201 = vmatprep.subr.bf16.mxu0 %v10560
        %11202 = vmatpush2.bf16.msra.mxu0 %v10559
        %11203 = vmatprep.subr.bf16.mxu0 %v10556
        %11204 = vmatpush2.bf16.msra.mxu0 %v10555
        %11205 = vmatprep.subr.bf16.mxu0 %v10552
        %11206 = vmatpush2.bf16.msra.mxu0 %v10551
        %11207 = vmatprep.subr.bf16.mxu0 %v10548
        %11208 = vmatpush2.bf16.msra.mxu0 %v10547
        %11209 = vmatprep.subr.bf16.mxu0 %v10544
        %11210 = vmatpush2.bf16.msra.mxu0 %v10543
        %11211 = vmatprep.subr.bf16.mxu0 %v10540
        %11212 = vmatpush2.bf16.msra.mxu0 %v10539
        %11213 = vmatprep.mubr.bf16.mxu0 %v9722
        %11214 = vmatmul.mubr.bf16.gmra.mxu0 %v9721
        %v11215 = vpop.f32.mrf.mxu0
        %v11216 = vadd.f32 0.0, %v11215
        %v11217 = vpop.f32.mrf.mxu0
        %v11218 = vadd.f32 0.0, %v11217
        %v11219 = vpop.f32.mrf.mxu0
        %v11220 = vpop.f32.mrf.mxu0
        %11221 = vdwg.mxu0
        %11222 = vmatprep.subr.bf16.mxu0 %v10600
        %11223 = vmatpush1.bf16.msra.mxu0 %v10599
        %11224 = vmatprep.subr.bf16.mxu0 %v10596
        %11225 = vmatpush1.bf16.msra.mxu0 %v10595
        %11226 = vmatprep.subr.bf16.mxu0 %v10592
        %11227 = vmatpush1.bf16.msra.mxu0 %v10591
        %11228 = vmatprep.subr.bf16.mxu0 %v10588
        %11229 = vmatpush1.bf16.msra.mxu0 %v10587
        %11230 = vmatprep.subr.bf16.mxu0 %v10584
        %11231 = vmatpush1.bf16.msra.mxu0 %v10583
        %11232 = vmatprep.subr.bf16.mxu0 %v10580
        %11233 = vmatpush1.bf16.msra.mxu0 %v10579
        %11234 = vmatprep.subr.bf16.mxu0 %v10576
        %11235 = vmatpush1.bf16.msra.mxu0 %v10575
        %11236 = vmatprep.subr.bf16.mxu0 %v10572
        %11237 = vmatpush1.bf16.msra.mxu0 %v10571
        %11238 = vmatprep.subr.bf16.mxu0 %v10632
        %11239 = vmatpush2.bf16.msra.mxu0 %v10631
        %11240 = vmatprep.subr.bf16.mxu0 %v10628
        %11241 = vmatpush2.bf16.msra.mxu0 %v10627
        %11242 = vmatprep.subr.bf16.mxu0 %v10624
        %11243 = vmatpush2.bf16.msra.mxu0 %v10623
        %11244 = vmatprep.subr.bf16.mxu0 %v10620
        %11245 = vmatpush2.bf16.msra.mxu0 %v10619
        %11246 = vmatprep.subr.bf16.mxu0 %v10616
        %11247 = vmatpush2.bf16.msra.mxu0 %v10615
        %11248 = vmatprep.subr.bf16.mxu0 %v10612
        %11249 = vmatpush2.bf16.msra.mxu0 %v10611
        %11250 = vmatprep.subr.bf16.mxu0 %v10608
        %11251 = vmatpush2.bf16.msra.mxu0 %v10607
        %11252 = vmatprep.subr.bf16.mxu0 %v10604
        %11253 = vmatpush2.bf16.msra.mxu0 %v10603
        %11254 = vmatprep.mubr.bf16.mxu0 %v9724
        %11255 = vmatmul.mubr.bf16.gmra.mxu0 %v9723
        %v11256 = vpop.f32.mrf.mxu0
        %v11257 = vadd.f32 %v11216, %v11256
        %v11258 = vpop.f32.mrf.mxu0
        %v11259 = vadd.f32 %v11218, %v11258
        %v11260 = vpop.f32.mrf.mxu0
        %v11261 = vpop.f32.mrf.mxu0
        %11262 = vdwg.mxu0
        %11263 = vmatprep.subr.bf16.mxu0 %v10664
        %11264 = vmatpush1.bf16.msra.mxu0 %v10663
        %11265 = vmatprep.subr.bf16.mxu0 %v10660
        %11266 = vmatpush1.bf16.msra.mxu0 %v10659
        %11267 = vmatprep.subr.bf16.mxu0 %v10656
        %11268 = vmatpush1.bf16.msra.mxu0 %v10655
        %11269 = vmatprep.subr.bf16.mxu0 %v10652
        %11270 = vmatpush1.bf16.msra.mxu0 %v10651
        %11271 = vmatprep.subr.bf16.mxu0 %v10648
        %11272 = vmatpush1.bf16.msra.mxu0 %v10647
        %11273 = vmatprep.subr.bf16.mxu0 %v10644
        %11274 = vmatpush1.bf16.msra.mxu0 %v10643
        %11275 = vmatprep.subr.bf16.mxu0 %v10640
        %11276 = vmatpush1.bf16.msra.mxu0 %v10639
        %11277 = vmatprep.subr.bf16.mxu0 %v10636
        %11278 = vmatpush1.bf16.msra.mxu0 %v10635
        %11279 = vmatprep.subr.bf16.mxu0 %v10696
        %11280 = vmatpush2.bf16.msra.mxu0 %v10695
        %11281 = vmatprep.subr.bf16.mxu0 %v10692
        %11282 = vmatpush2.bf16.msra.mxu0 %v10691
        %11283 = vmatprep.subr.bf16.mxu0 %v10688
        %11284 = vmatpush2.bf16.msra.mxu0 %v10687
        %11285 = vmatprep.subr.bf16.mxu0 %v10684
        %11286 = vmatpush2.bf16.msra.mxu0 %v10683
        %11287 = vmatprep.subr.bf16.mxu0 %v10680
        %11288 = vmatpush2.bf16.msra.mxu0 %v10679
        %11289 = vmatprep.subr.bf16.mxu0 %v10676
        %11290 = vmatpush2.bf16.msra.mxu0 %v10675
        %11291 = vmatprep.subr.bf16.mxu0 %v10672
        %11292 = vmatpush2.bf16.msra.mxu0 %v10671
        %11293 = vmatprep.subr.bf16.mxu0 %v10668
        %11294 = vmatpush2.bf16.msra.mxu0 %v10667
        %11295 = vmatprep.mubr.bf16.mxu0 %v9726
        %11296 = vmatmul.mubr.bf16.gmra.mxu0 %v9725
        %v11297 = vpop.f32.mrf.mxu0
        %v11298 = vadd.f32 %v11257, %v11297
        %v11299 = vpop.f32.mrf.mxu0
        %v11300 = vadd.f32 %v11259, %v11299
        %v11301 = vpop.f32.mrf.mxu0
        %v11302 = vpop.f32.mrf.mxu0
        %11303 = vdwg.mxu0
        %11304 = vmatprep.subr.bf16.mxu0 %v10728
        %11305 = vmatpush1.bf16.msra.mxu0 %v10727
        %11306 = vmatprep.subr.bf16.mxu0 %v10724
        %11307 = vmatpush1.bf16.msra.mxu0 %v10723
        %11308 = vmatprep.subr.bf16.mxu0 %v10720
        %11309 = vmatpush1.bf16.msra.mxu0 %v10719
        %11310 = vmatprep.subr.bf16.mxu0 %v10716
        %11311 = vmatpush1.bf16.msra.mxu0 %v10715
        %11312 = vmatprep.subr.bf16.mxu0 %v10712
        %11313 = vmatpush1.bf16.msra.mxu0 %v10711
        %11314 = vmatprep.subr.bf16.mxu0 %v10708
        %11315 = vmatpush1.bf16.msra.mxu0 %v10707
        %11316 = vmatprep.subr.bf16.mxu0 %v10704
        %11317 = vmatpush1.bf16.msra.mxu0 %v10703
        %11318 = vmatprep.subr.bf16.mxu0 %v10700
        %11319 = vmatpush1.bf16.msra.mxu0 %v10699
        %11320 = vmatprep.subr.bf16.mxu0 %v10760
        %11321 = vmatpush2.bf16.msra.mxu0 %v10759
        %11322 = vmatprep.subr.bf16.mxu0 %v10756
        %11323 = vmatpush2.bf16.msra.mxu0 %v10755
        %11324 = vmatprep.subr.bf16.mxu0 %v10752
        %11325 = vmatpush2.bf16.msra.mxu0 %v10751
        %11326 = vmatprep.subr.bf16.mxu0 %v10748
        %11327 = vmatpush2.bf16.msra.mxu0 %v10747
        %11328 = vmatprep.subr.bf16.mxu0 %v10744
        %11329 = vmatpush2.bf16.msra.mxu0 %v10743
        %11330 = vmatprep.subr.bf16.mxu0 %v10740
        %11331 = vmatpush2.bf16.msra.mxu0 %v10739
        %11332 = vmatprep.subr.bf16.mxu0 %v10736
        %11333 = vmatpush2.bf16.msra.mxu0 %v10735
        %11334 = vmatprep.subr.bf16.mxu0 %v10732
        %11335 = vmatpush2.bf16.msra.mxu0 %v10731
        %11336 = vmatprep.mubr.bf16.mxu0 %v9728
        %11337 = vmatmul.mubr.bf16.gmra.mxu0 %v9727
        %v11338 = vpop.f32.mrf.mxu0
        %v11339 = vadd.f32 %v11298, %v11338
        %v11340 = vpop.f32.mrf.mxu0
        %v11341 = vadd.f32 %v11300, %v11340
        %v11342 = vpop.f32.mrf.mxu0
        %v11343 = vpop.f32.mrf.mxu0
        %11344 = vdwg.mxu0
        %v11349 = vcombine.low %v11175, %v11177
        %v11350 = vcombine.low %v11339, %v11341
        %v11352 = vunpack.c.l.s4 1983009808
        %v11353 = vunpack.c.0.s8 %v11352
        %v11354 = vlaneseq
        %v11355 = vshrl.u32 %v11354, 7
        %v11356 = vsub.s32 %v11353, %v11355
        %v11357 = vrot.slane %v11349, %v11356
        %v11359 = vunpack.c.l.s4 1983009808
        %v11360 = vunpack.c.0.s8 %v11359
        %v11361 = vlaneseq
        %v11362 = vshrl.u32 %v11361, 7
        %v11363 = vsub.s32 %v11360, %v11362
        %v11364 = vrot.slane %v11350, %v11363
        %v11365 = vcombine.low %v11357, %v11364
        %v11367 = vadd.f32 %v9408, %v11365
        %11368 = vst [vmem:[#allocation3] sm:$0xff] %v11367
        %p11369 = scmp.eq.s32.totalorder %s34, 1
        // Predicated region
        $region109: #{barlow_twins_forward.1} parent=67 // pred_check
          %p11370 = pneg %p11369
        $region110: #{barlow_twins_forward.1} parent=67 // pred_check_branch
          %11372 = sbr.rel (%p11370) target = $region112
        $region111: #{barlow_twins_forward.1} parent=67 // pred_region
          %v11373 = vld [vmem:[#allocation3] sm:$0xff]
          %v11374 = vld [vmem:[#allocation13] sm:$0xf]
          %v11375 = vld [vmem:[#allocation15] sm:$0xf]
          %v11377 = vcombine.high %v11373, %v11373
          %v11379 = vunpack.c.l.s4 1983009808
          %v11380 = vunpack.c.0.s8 %v11379
          %v11381 = vlaneseq
          %v11382 = vshrl.u32 %v11381, 7
          %v11383 = vsub.s32 %v11380, %v11382
          %v11384 = vrot.slane %v11373, %v11383
          %v11386 = vunpack.c.l.s4 1983009808
          %v11387 = vunpack.c.0.s8 %v11386
          %v11388 = vlaneseq
          %v11389 = vshrl.u32 %v11388, 7
          %v11390 = vsub.s32 %v11387, %v11389
          %v11391 = vrot.slane %v11377, %v11390
          %v11392 = vcombine.high %v11384, %v11384
          %v11393 = vcombine.high %v11391, %v11391
          %v11398 = vsel %vm9387, %v11384, 0.0
          %v11399 = vrot.slane %v11398, 4
          %v11400 = vadd.f32 %v11398, %v11399
          %v11401 = vrot.slane %v11400, 2
          %v11402 = vadd.f32 %v11400, %v11401
          %v11403 = vrot.slane %v11402, 1
          %v11404 = vadd.f32 %v11402, %v11403
          %v11405 = vsel %vm9387, %v11392, 0.0
          %v11406 = vrot.slane %v11405, 4
          %v11407 = vadd.f32 %v11405, %v11406
          %v11408 = vrot.slane %v11407, 2
          %v11409 = vadd.f32 %v11407, %v11408
          %v11410 = vrot.slane %v11409, 1
          %v11411 = vadd.f32 %v11409, %v11410
          %v11412 = vsel %vm9387, %v11391, 0.0
          %v11413 = vrot.slane %v11412, 4
          %v11414 = vadd.f32 %v11412, %v11413
          %v11415 = vrot.slane %v11414, 2
          %v11416 = vadd.f32 %v11414, %v11415
          %v11417 = vrot.slane %v11416, 1
          %v11418 = vadd.f32 %v11416, %v11417
          %v11419 = vsel %vm9387, %v11393, 0.0
          %v11420 = vrot.slane %v11419, 4
          %v11421 = vadd.f32 %v11419, %v11420
          %v11422 = vrot.slane %v11421, 2
          %v11423 = vadd.f32 %v11421, %v11422
          %v11424 = vrot.slane %v11423, 1
          %v11425 = vadd.f32 %v11423, %v11424
          %v11426 = vrcp.pop 2.0
          %v11427 = vmul.f32 %v11404, %v11426
          %v11428 = vmul.f32 %v11411, %v11426
          %v11429 = vmul.f32 %v11418, %v11426
          %v11430 = vmul.f32 %v11425, %v11426
          %v11431 = vmul.f32 %v11373, %v11373
          %v11433 = vcombine.high %v11431, %v11431
          %v11435 = vunpack.c.l.s4 1983009808
          %v11436 = vunpack.c.0.s8 %v11435
          %v11437 = vlaneseq
          %v11438 = vshrl.u32 %v11437, 7
          %v11439 = vsub.s32 %v11436, %v11438
          %v11440 = vrot.slane %v11431, %v11439
          %v11442 = vunpack.c.l.s4 1983009808
          %v11443 = vunpack.c.0.s8 %v11442
          %v11444 = vlaneseq
          %v11445 = vshrl.u32 %v11444, 7
          %v11446 = vsub.s32 %v11443, %v11445
          %v11447 = vrot.slane %v11433, %v11446
          %v11448 = vcombine.high %v11440, %v11440
          %v11449 = vcombine.high %v11447, %v11447
          %v11454 = vsel %vm9387, %v11440, 0.0
          %v11455 = vrot.slane %v11454, 4
          %v11456 = vadd.f32 %v11454, %v11455
          %v11457 = vrot.slane %v11456, 2
          %v11458 = vadd.f32 %v11456, %v11457
          %v11459 = vrot.slane %v11458, 1
          %v11460 = vadd.f32 %v11458, %v11459
          %v11461 = vsel %vm9387, %v11448, 0.0
          %v11462 = vrot.slane %v11461, 4
          %v11463 = vadd.f32 %v11461, %v11462
          %v11464 = vrot.slane %v11463, 2
          %v11465 = vadd.f32 %v11463, %v11464
          %v11466 = vrot.slane %v11465, 1
          %v11467 = vadd.f32 %v11465, %v11466
          %v11468 = vsel %vm9387, %v11447, 0.0
          %v11469 = vrot.slane %v11468, 4
          %v11470 = vadd.f32 %v11468, %v11469
          %v11471 = vrot.slane %v11470, 2
          %v11472 = vadd.f32 %v11470, %v11471
          %v11473 = vrot.slane %v11472, 1
          %v11474 = vadd.f32 %v11472, %v11473
          %v11475 = vsel %vm9387, %v11449, 0.0
          %v11476 = vrot.slane %v11475, 4
          %v11477 = vadd.f32 %v11475, %v11476
          %v11478 = vrot.slane %v11477, 2
          %v11479 = vadd.f32 %v11477, %v11478
          %v11480 = vrot.slane %v11479, 1
          %v11481 = vadd.f32 %v11479, %v11480
          %v11482 = vmul.f32 %v11460, %v11426
          %v11483 = vmul.f32 %v11467, %v11426
          %v11484 = vmul.f32 %v11474, %v11426
          %v11485 = vmul.f32 %v11481, %v11426
          %v11486 = vmul.f32 %v11427, %v11427
          %v11487 = vmul.f32 %v11428, %v11428
          %v11488 = vmul.f32 %v11429, %v11429
          %v11489 = vmul.f32 %v11430, %v11430
          %v11490 = vsub.f32 %v11482, %v11486
          %v11491 = vsub.f32 %v11483, %v11487
          %v11492 = vsub.f32 %v11484, %v11488
          %v11493 = vsub.f32 %v11485, %v11489
          %v11494 = vmax.f32 %v11490, 0.0
          %v11495 = vmax.f32 %v11491, 0.0
          %v11496 = vmax.f32 %v11492, 0.0
          %v11497 = vmax.f32 %v11493, 0.0
          %v11498 = vadd.f32 %v11494, 1e-05
          %v11499 = vadd.f32 %v11495, 1e-05
          %v11500 = vadd.f32 %v11496, 1e-05
          %v11501 = vadd.f32 %v11497, 1e-05
          %v11502 = vrsqrt.pop %v11498
          %v11503 = vrsqrt.pop %v11499
          %v11504 = vrsqrt.pop %v11500
          %v11505 = vrsqrt.pop %v11501
          %v11510 = vcombine.low %v11502, %v11503
          %v11511 = vcombine.low %v11504, %v11505
          %v11513 = vunpack.c.l.s4 1966171168
          %v11514 = vunpack.c.0.s8 %v11513
          %v11515 = vlaneseq
          %v11516 = vshrl.u32 %v11515, 7
          %v11517 = vsub.s32 %v11514, %v11516
          %v11518 = vrot.slane %v11510, %v11517
          %v11520 = vunpack.c.l.s4 1966171168
          %v11521 = vunpack.c.0.s8 %v11520
          %v11522 = vlaneseq
          %v11523 = vshrl.u32 %v11522, 7
          %v11524 = vsub.s32 %v11521, %v11523
          %v11525 = vrot.slane %v11511, %v11524
          %v11526 = vcombine.low %v11518, %v11525
          %v11528 = vunpack.c.l.s4 1966171168
          %v11529 = vunpack.c.0.s8 %v11528
          %v11530 = vlaneseq
          %v11531 = vshrl.u32 %v11530, 7
          %v11532 = vsub.s32 %v11529, %v11531
          %v11533 = vrot.slane %v11526, %v11532
          %v11535 = vmul.f32 %v11374, %v11533
          %v11537 = vlaneseq
          %v11538 = vshrl.u32 %v11537, 7
          %v11539 = vsub.s32 0, %v11538
          %v11540 = vrot.slane %v11535, %v11539
          %v11541 = vlaneseq
          %v11542 = vshrl.u32 %v11541, 7
          %v11543 = vsub.s32 1, %v11542
          %v11544 = vrot.slane %v11535, %v11543
          %v11545 = vlaneseq
          %v11546 = vshrl.u32 %v11545, 7
          %v11547 = vsub.s32 2, %v11546
          %v11548 = vrot.slane %v11535, %v11547
          %v11549 = vlaneseq
          %v11550 = vshrl.u32 %v11549, 7
          %v11551 = vsub.s32 3, %v11550
          %v11552 = vrot.slane %v11535, %v11551
          %v11557 = vmul.f32 %v11427, %v11540
          %v11558 = vmul.f32 %v11428, %v11544
          %v11559 = vmul.f32 %v11429, %v11548
          %v11560 = vmul.f32 %v11430, %v11552
          %v11565 = vcombine.low %v11557, %v11558
          %v11566 = vcombine.low %v11559, %v11560
          %v11568 = vunpack.c.l.s4 1966171168
          %v11569 = vunpack.c.0.s8 %v11568
          %v11570 = vlaneseq
          %v11571 = vshrl.u32 %v11570, 7
          %v11572 = vsub.s32 %v11569, %v11571
          %v11573 = vrot.slane %v11565, %v11572
          %v11575 = vunpack.c.l.s4 1966171168
          %v11576 = vunpack.c.0.s8 %v11575
          %v11577 = vlaneseq
          %v11578 = vshrl.u32 %v11577, 7
          %v11579 = vsub.s32 %v11576, %v11578
          %v11580 = vrot.slane %v11566, %v11579
          %v11581 = vcombine.low %v11573, %v11580
          %v11583 = vunpack.c.l.s4 1966171168
          %v11584 = vunpack.c.0.s8 %v11583
          %v11585 = vlaneseq
          %v11586 = vshrl.u32 %v11585, 7
          %v11587 = vsub.s32 %v11584, %v11586
          %v11588 = vrot.slane %v11581, %v11587
          %v11590 = vsub.f32 %v11375, %v11588
          %v11591 = vcombine.low %v11540, %v11544
          %v11592 = vcombine.low %v11548, %v11552
          %v11594 = vunpack.c.l.s4 1983009808
          %v11595 = vunpack.c.0.s8 %v11594
          %v11596 = vlaneseq
          %v11597 = vshrl.u32 %v11596, 7
          %v11598 = vsub.s32 %v11595, %v11597
          %v11599 = vrot.slane %v11591, %v11598
          %v11601 = vunpack.c.l.s4 1983009808
          %v11602 = vunpack.c.0.s8 %v11601
          %v11603 = vlaneseq
          %v11604 = vshrl.u32 %v11603, 7
          %v11605 = vsub.s32 %v11602, %v11604
          %v11606 = vrot.slane %v11592, %v11605
          %v11607 = vcombine.low %v11599, %v11606
          %v11609 = vmul.f32 %v11373, %v11607
          %v11611 = vlaneseq
          %v11612 = vshrl.u32 %v11611, 7
          %v11613 = vsub.s32 0, %v11612
          %v11614 = vrot.slane %v11590, %v11613
          %v11615 = vlaneseq
          %v11616 = vshrl.u32 %v11615, 7
          %v11617 = vsub.s32 1, %v11616
          %v11618 = vrot.slane %v11590, %v11617
          %v11619 = vlaneseq
          %v11620 = vshrl.u32 %v11619, 7
          %v11621 = vsub.s32 2, %v11620
          %v11622 = vrot.slane %v11590, %v11621
          %v11623 = vlaneseq
          %v11624 = vshrl.u32 %v11623, 7
          %v11625 = vsub.s32 3, %v11624
          %v11626 = vrot.slane %v11590, %v11625
          %v11627 = vcombine.low %v11614, %v11618
          %v11628 = vcombine.low %v11622, %v11626
          %v11630 = vunpack.c.l.s4 1983009808
          %v11631 = vunpack.c.0.s8 %v11630
          %v11632 = vlaneseq
          %v11633 = vshrl.u32 %v11632, 7
          %v11634 = vsub.s32 %v11631, %v11633
          %v11635 = vrot.slane %v11627, %v11634
          %v11637 = vunpack.c.l.s4 1983009808
          %v11638 = vunpack.c.0.s8 %v11637
          %v11639 = vlaneseq
          %v11640 = vshrl.u32 %v11639, 7
          %v11641 = vsub.s32 %v11638, %v11640
          %v11642 = vrot.slane %v11628, %v11641
          %v11643 = vcombine.low %v11635, %v11642
          %v11645 = vadd.f32 %v11609, %v11643
          %v11646 = vmax.f32 %v11645, 0.0
          %v11648 = vcombine.high %v11646, %v11646
          %v11650 = vunpack.c.l.s4 1983009808
          %v11651 = vunpack.c.0.s8 %v11650
          %v11652 = vlaneseq
          %v11653 = vshrl.u32 %v11652, 7
          %v11654 = vsub.s32 %v11651, %v11653
          %v11655 = vrot.slane %v11646, %v11654
          %v11657 = vunpack.c.l.s4 1983009808
          %v11658 = vunpack.c.0.s8 %v11657
          %v11659 = vlaneseq
          %v11660 = vshrl.u32 %v11659, 7
          %v11661 = vsub.s32 %v11658, %v11660
          %v11662 = vrot.slane %v11648, %v11661
          %v11663 = vcombine.high %v11655, %v11655
          %v11664 = vcombine.high %v11662, %v11662
          %v11669 = vpack.c.bf16 %v11655, %v11655
          %v11670 = vpack.c.bf16 %v11663, %v11663
          %v11671 = vpack.c.bf16 %v11662, %v11662
          %v11672 = vpack.c.bf16 %v11664, %v11664
          %v11673 = vld [vmem:[#allocation16] sm:$0xf]
          %v11674 = vld [vmem:[#allocation16 + $0x4] sm:$0xf]
          %v11675 = vld [vmem:[#allocation16 + $0x8] sm:$0xf]
          %v11676 = vld [vmem:[#allocation16 + $0xc] sm:$0xf]
          %v11677 = vld [vmem:[#allocation16 + $0x10] sm:$0xf]
          %v11678 = vld [vmem:[#allocation16 + $0x14] sm:$0xf]
          %v11679 = vld [vmem:[#allocation16 + $0x18] sm:$0xf]
          %v11680 = vld [vmem:[#allocation16 + $0x1c] sm:$0xf]
          %v11681 = vld [vmem:[#allocation16 + $0x20] sm:$0xf]
          %v11682 = vld [vmem:[#allocation16 + $0x24] sm:$0xf]
          %v11683 = vld [vmem:[#allocation16 + $0x28] sm:$0xf]
          %v11684 = vld [vmem:[#allocation16 + $0x2c] sm:$0xf]
          %v11685 = vld [vmem:[#allocation16 + $0x30] sm:$0xf]
          %v11686 = vld [vmem:[#allocation16 + $0x34] sm:$0xf]
          %v11687 = vld [vmem:[#allocation16 + $0x38] sm:$0xf]
          %v11688 = vld [vmem:[#allocation16 + $0x3c] sm:$0xf]
          %v11689 = vld [vmem:[#allocation16 + $0x40] sm:$0xf]
          %v11690 = vld [vmem:[#allocation16 + $0x44] sm:$0xf]
          %v11691 = vld [vmem:[#allocation16 + $0x48] sm:$0xf]
          %v11692 = vld [vmem:[#allocation16 + $0x4c] sm:$0xf]
          %v11693 = vld [vmem:[#allocation16 + $0x50] sm:$0xf]
          %v11694 = vld [vmem:[#allocation16 + $0x54] sm:$0xf]
          %v11695 = vld [vmem:[#allocation16 + $0x58] sm:$0xf]
          %v11696 = vld [vmem:[#allocation16 + $0x5c] sm:$0xf]
          %v11697 = vld [vmem:[#allocation16 + $0x60] sm:$0xf]
          %v11698 = vld [vmem:[#allocation16 + $0x64] sm:$0xf]
          %v11699 = vld [vmem:[#allocation16 + $0x68] sm:$0xf]
          %v11700 = vld [vmem:[#allocation16 + $0x6c] sm:$0xf]
          %v11701 = vld [vmem:[#allocation16 + $0x70] sm:$0xf]
          %v11702 = vld [vmem:[#allocation16 + $0x74] sm:$0xf]
          %v11703 = vld [vmem:[#allocation16 + $0x78] sm:$0xf]
          %v11704 = vld [vmem:[#allocation16 + $0x7c] sm:$0xf]
          %v11705 = vld [vmem:[#allocation16 + $0x80] sm:$0xf]
          %v11706 = vld [vmem:[#allocation16 + $0x84] sm:$0xf]
          %v11707 = vld [vmem:[#allocation16 + $0x88] sm:$0xf]
          %v11708 = vld [vmem:[#allocation16 + $0x8c] sm:$0xf]
          %v11709 = vld [vmem:[#allocation16 + $0x90] sm:$0xf]
          %v11710 = vld [vmem:[#allocation16 + $0x94] sm:$0xf]
          %v11711 = vld [vmem:[#allocation16 + $0x98] sm:$0xf]
          %v11712 = vld [vmem:[#allocation16 + $0x9c] sm:$0xf]
          %v11713 = vld [vmem:[#allocation16 + $0xa0] sm:$0xf]
          %v11714 = vld [vmem:[#allocation16 + $0xa4] sm:$0xf]
          %v11715 = vld [vmem:[#allocation16 + $0xa8] sm:$0xf]
          %v11716 = vld [vmem:[#allocation16 + $0xac] sm:$0xf]
          %v11717 = vld [vmem:[#allocation16 + $0xb0] sm:$0xf]
          %v11718 = vld [vmem:[#allocation16 + $0xb4] sm:$0xf]
          %v11719 = vld [vmem:[#allocation16 + $0xb8] sm:$0xf]
          %v11720 = vld [vmem:[#allocation16 + $0xbc] sm:$0xf]
          %v11721 = vld [vmem:[#allocation16 + $0xc0] sm:$0xf]
          %v11722 = vld [vmem:[#allocation16 + $0xc4] sm:$0xf]
          %v11723 = vld [vmem:[#allocation16 + $0xc8] sm:$0xf]
          %v11724 = vld [vmem:[#allocation16 + $0xcc] sm:$0xf]
          %v11725 = vld [vmem:[#allocation16 + $0xd0] sm:$0xf]
          %v11726 = vld [vmem:[#allocation16 + $0xd4] sm:$0xf]
          %v11727 = vld [vmem:[#allocation16 + $0xd8] sm:$0xf]
          %v11728 = vld [vmem:[#allocation16 + $0xdc] sm:$0xf]
          %v11729 = vld [vmem:[#allocation16 + $0xe0] sm:$0xf]
          %v11730 = vld [vmem:[#allocation16 + $0xe4] sm:$0xf]
          %v11731 = vld [vmem:[#allocation16 + $0xe8] sm:$0xf]
          %v11732 = vld [vmem:[#allocation16 + $0xec] sm:$0xf]
          %v11733 = vld [vmem:[#allocation16 + $0xf0] sm:$0xf]
          %v11734 = vld [vmem:[#allocation16 + $0xf4] sm:$0xf]
          %v11735 = vld [vmem:[#allocation16 + $0xf8] sm:$0xf]
          %v11736 = vld [vmem:[#allocation16 + $0xfc] sm:$0xf]
          %v11737 = vld [vmem:[#allocation18] sm:$0x1]
          %v11739 = vlaneseq
          %v11740 = vshrl.u32 %v11739, 7
          %v11741 = vsub.s32 0, %v11740
          %v11742 = vrot.slane %v11737, %v11741
          %v11808 = vunpack.c.l.b16 %v11673
          %v11809 = vunpack.c.l.b16 %v11674
          %v11810 = vunpack.c.l.b16 %v11675
          %v11811 = vunpack.c.l.b16 %v11676
          %v11812 = vunpack.c.l.b16 %v11677
          %v11813 = vunpack.c.l.b16 %v11678
          %v11814 = vunpack.c.l.b16 %v11679
          %v11815 = vunpack.c.l.b16 %v11680
          %v11816 = vunpack.c.l.b16 %v11681
          %v11817 = vunpack.c.l.b16 %v11682
          %v11818 = vunpack.c.l.b16 %v11683
          %v11819 = vunpack.c.l.b16 %v11684
          %v11820 = vunpack.c.l.b16 %v11685
          %v11821 = vunpack.c.l.b16 %v11686
          %v11822 = vunpack.c.l.b16 %v11687
          %v11823 = vunpack.c.l.b16 %v11688
          %v11824 = vunpack.c.l.b16 %v11689
          %v11825 = vunpack.c.l.b16 %v11690
          %v11826 = vunpack.c.l.b16 %v11691
          %v11827 = vunpack.c.l.b16 %v11692
          %v11828 = vunpack.c.l.b16 %v11693
          %v11829 = vunpack.c.l.b16 %v11694
          %v11830 = vunpack.c.l.b16 %v11695
          %v11831 = vunpack.c.l.b16 %v11696
          %v11832 = vunpack.c.l.b16 %v11697
          %v11833 = vunpack.c.l.b16 %v11698
          %v11834 = vunpack.c.l.b16 %v11699
          %v11835 = vunpack.c.l.b16 %v11700
          %v11836 = vunpack.c.l.b16 %v11701
          %v11837 = vunpack.c.l.b16 %v11702
          %v11838 = vunpack.c.l.b16 %v11703
          %v11839 = vunpack.c.l.b16 %v11704
          %v11840 = vunpack.c.l.b16 %v11705
          %v11841 = vunpack.c.l.b16 %v11706
          %v11842 = vunpack.c.l.b16 %v11707
          %v11843 = vunpack.c.l.b16 %v11708
          %v11844 = vunpack.c.l.b16 %v11709
          %v11845 = vunpack.c.l.b16 %v11710
          %v11846 = vunpack.c.l.b16 %v11711
          %v11847 = vunpack.c.l.b16 %v11712
          %v11848 = vunpack.c.l.b16 %v11713
          %v11849 = vunpack.c.l.b16 %v11714
          %v11850 = vunpack.c.l.b16 %v11715
          %v11851 = vunpack.c.l.b16 %v11716
          %v11852 = vunpack.c.l.b16 %v11717
          %v11853 = vunpack.c.l.b16 %v11718
          %v11854 = vunpack.c.l.b16 %v11719
          %v11855 = vunpack.c.l.b16 %v11720
          %v11856 = vunpack.c.l.b16 %v11721
          %v11857 = vunpack.c.l.b16 %v11722
          %v11858 = vunpack.c.l.b16 %v11723
          %v11859 = vunpack.c.l.b16 %v11724
          %v11860 = vunpack.c.l.b16 %v11725
          %v11861 = vunpack.c.l.b16 %v11726
          %v11862 = vunpack.c.l.b16 %v11727
          %v11863 = vunpack.c.l.b16 %v11728
          %v11864 = vunpack.c.l.b16 %v11729
          %v11865 = vunpack.c.l.b16 %v11730
          %v11866 = vunpack.c.l.b16 %v11731
          %v11867 = vunpack.c.l.b16 %v11732
          %v11868 = vunpack.c.l.b16 %v11733
          %v11869 = vunpack.c.l.b16 %v11734
          %v11870 = vunpack.c.l.b16 %v11735
          %v11871 = vunpack.c.l.b16 %v11736
          %v11872 = vpack.c.b16 %v11809, %v11808
          %v11873 = vpack.c.b16 %v11811, %v11810
          %v11874 = vpack.c.b16 %v11813, %v11812
          %v11875 = vpack.c.b16 %v11815, %v11814
          %v11876 = vpack.c.b16 %v11817, %v11816
          %v11877 = vpack.c.b16 %v11819, %v11818
          %v11878 = vpack.c.b16 %v11821, %v11820
          %v11879 = vpack.c.b16 %v11823, %v11822
          %v11880 = vpack.c.b16 %v11825, %v11824
          %v11881 = vpack.c.b16 %v11827, %v11826
          %v11882 = vpack.c.b16 %v11829, %v11828
          %v11883 = vpack.c.b16 %v11831, %v11830
          %v11884 = vpack.c.b16 %v11833, %v11832
          %v11885 = vpack.c.b16 %v11835, %v11834
          %v11886 = vpack.c.b16 %v11837, %v11836
          %v11887 = vpack.c.b16 %v11839, %v11838
          %v11888 = vpack.c.b16 %v11841, %v11840
          %v11889 = vpack.c.b16 %v11843, %v11842
          %v11890 = vpack.c.b16 %v11845, %v11844
          %v11891 = vpack.c.b16 %v11847, %v11846
          %v11892 = vpack.c.b16 %v11849, %v11848
          %v11893 = vpack.c.b16 %v11851, %v11850
          %v11894 = vpack.c.b16 %v11853, %v11852
          %v11895 = vpack.c.b16 %v11855, %v11854
          %v11896 = vpack.c.b16 %v11857, %v11856
          %v11897 = vpack.c.b16 %v11859, %v11858
          %v11898 = vpack.c.b16 %v11861, %v11860
          %v11899 = vpack.c.b16 %v11863, %v11862
          %v11900 = vpack.c.b16 %v11865, %v11864
          %v11901 = vpack.c.b16 %v11867, %v11866
          %v11902 = vpack.c.b16 %v11869, %v11868
          %v11903 = vpack.c.b16 %v11871, %v11870
          %11936 = vmatprep.subr.bf16.mxu0 0
          %11937 = vmatpush1.bf16.msra.mxu0 %v11879
          %11938 = vmatprep.subr.bf16.mxu0 0
          %11939 = vmatpush1.bf16.msra.mxu0 %v11878
          %11940 = vmatprep.subr.bf16.mxu0 0
          %11941 = vmatpush1.bf16.msra.mxu0 %v11877
          %11942 = vmatprep.subr.bf16.mxu0 0
          %11943 = vmatpush1.bf16.msra.mxu0 %v11876
          %11944 = vmatprep.subr.bf16.mxu0 0
          %11945 = vmatpush1.bf16.msra.mxu0 %v11875
          %11946 = vmatprep.subr.bf16.mxu0 0
          %11947 = vmatpush1.bf16.msra.mxu0 %v11874
          %11948 = vmatprep.subr.bf16.mxu0 0
          %11949 = vmatpush1.bf16.msra.mxu0 %v11873
          %11950 = vmatprep.subr.bf16.mxu0 0
          %11951 = vmatpush1.bf16.msra.mxu0 %v11872
          %11952 = vmatprep.subr.bf16.mxu0 0
          %11953 = vmatpush2.bf16.msra.mxu0 %v11887
          %11954 = vmatprep.subr.bf16.mxu0 0
          %11955 = vmatpush2.bf16.msra.mxu0 %v11886
          %11956 = vmatprep.subr.bf16.mxu0 0
          %11957 = vmatpush2.bf16.msra.mxu0 %v11885
          %11958 = vmatprep.subr.bf16.mxu0 0
          %11959 = vmatpush2.bf16.msra.mxu0 %v11884
          %11960 = vmatprep.subr.bf16.mxu0 0
          %11961 = vmatpush2.bf16.msra.mxu0 %v11883
          %11962 = vmatprep.subr.bf16.mxu0 0
          %11963 = vmatpush2.bf16.msra.mxu0 %v11882
          %11964 = vmatprep.subr.bf16.mxu0 0
          %11965 = vmatpush2.bf16.msra.mxu0 %v11881
          %11966 = vmatprep.subr.bf16.mxu0 0
          %11967 = vmatpush2.bf16.msra.mxu0 %v11880
          %11968 = vmatprep.mubr.bf16.mxu0 %v11670
          %11969 = vmatmul.mubr.bf16.gmra.mxu0 %v11669
          %v11970 = vpop.f32.mrf.mxu0
          %v11971 = vadd.f32 %v11742, %v11970
          %v11972 = vpop.f32.mrf.mxu0
          %v11973 = vpop.f32.mrf.mxu0
          %v11974 = vpop.f32.mrf.mxu0
          %11975 = vdwg.mxu0
          %11976 = vmatprep.subr.bf16.mxu0 0
          %11977 = vmatpush1.bf16.msra.mxu0 %v11895
          %11978 = vmatprep.subr.bf16.mxu0 0
          %11979 = vmatpush1.bf16.msra.mxu0 %v11894
          %11980 = vmatprep.subr.bf16.mxu0 0
          %11981 = vmatpush1.bf16.msra.mxu0 %v11893
          %11982 = vmatprep.subr.bf16.mxu0 0
          %11983 = vmatpush1.bf16.msra.mxu0 %v11892
          %11984 = vmatprep.subr.bf16.mxu0 0
          %11985 = vmatpush1.bf16.msra.mxu0 %v11891
          %11986 = vmatprep.subr.bf16.mxu0 0
          %11987 = vmatpush1.bf16.msra.mxu0 %v11890
          %11988 = vmatprep.subr.bf16.mxu0 0
          %11989 = vmatpush1.bf16.msra.mxu0 %v11889
          %11990 = vmatprep.subr.bf16.mxu0 0
          %11991 = vmatpush1.bf16.msra.mxu0 %v11888
          %11992 = vmatprep.subr.bf16.mxu0 0
          %11993 = vmatpush2.bf16.msra.mxu0 %v11903
          %11994 = vmatprep.subr.bf16.mxu0 0
          %11995 = vmatpush2.bf16.msra.mxu0 %v11902
          %11996 = vmatprep.subr.bf16.mxu0 0
          %11997 = vmatpush2.bf16.msra.mxu0 %v11901
          %11998 = vmatprep.subr.bf16.mxu0 0
          %11999 = vmatpush2.bf16.msra.mxu0 %v11900
          %12000 = vmatprep.subr.bf16.mxu0 0
          %12001 = vmatpush2.bf16.msra.mxu0 %v11899
          %12002 = vmatprep.subr.bf16.mxu0 0
          %12003 = vmatpush2.bf16.msra.mxu0 %v11898
          %12004 = vmatprep.subr.bf16.mxu0 0
          %12005 = vmatpush2.bf16.msra.mxu0 %v11897
          %12006 = vmatprep.subr.bf16.mxu0 0
          %12007 = vmatpush2.bf16.msra.mxu0 %v11896
          %12008 = vmatprep.mubr.bf16.mxu0 %v11672
          %12009 = vmatmul.mubr.bf16.gmra.mxu0 %v11671
          %v12010 = vpop.f32.mrf.mxu0
          %v12011 = vadd.f32 %v11971, %v12010
          %v12012 = vpop.f32.mrf.mxu0
          %v12013 = vpop.f32.mrf.mxu0
          %v12014 = vpop.f32.mrf.mxu0
          %12015 = vdwg.mxu0
          %v12016 = vmul.f32 %v12011, %v12011
          %v12017 = vsel %vm9387, %v12016, 0.0
          %12018 = vadd.xlane.f32.xlu0 %v12017
          %v12019 = vpop.xlane.xlu0 %12018
          %v12020 = vmax.f32 %v12019, 1e-24
          %v12021 = vrsqrt.pop %v12020
          %v12022 = vmul.f32 %v12011, %v12021
          %12023 = vst [vmem:[#allocation19] sm:$0x3] %v12022
        $region112: #{barlow_twins_forward.1} parent=67 // pred_fallthru
          _
        %s12024 = smul.u32 8, %s34
        %p12025 = scmp.lt.s32.totalorder %s12024, 15
        %s12026 = scalar_select %p12025, %s12024, 15
        %s12027 = smul.addr %s12026, 2
        %s12028 = scalar_lea.vmem %s12, %s12027
        // Predicated region
        $region113: #{barlow_twins_forward.1} parent=67 // pred_check
          %p12029 = pneg %p314
        $region114: #{barlow_twins_forward.1} parent=67 // pred_check_branch
          %12031 = sbr.rel (%p12029) target = $region116
        $region115: #{barlow_twins_forward.1} parent=67 // pred_region
          %s12032 = smul.u32 8, %s34
        $region116: #{barlow_twins_forward.1} parent=67 // pred_fallthru
          _
        // Predicated region
        $region117: #{barlow_twins_forward.1} parent=67 // pred_check
          %p12033 = pneg %p335
        $region118: #{barlow_twins_forward.1} parent=67 // pred_check_branch
          %12035 = sbr.rel (%p12033) target = $region120
        $region119: #{barlow_twins_forward.1} parent=67 // pred_region
          _
        $region120: #{barlow_twins_forward.1} parent=67 // pred_fallthru
          _
        // Predicated region
        $region121: #{barlow_twins_forward.1} parent=67 // pred_check
          %p12036 = pneg %p356
        $region122: #{barlow_twins_forward.1} parent=67 // pred_check_branch
          %12038 = sbr.rel (%p12036) target = $region124
        $region123: #{barlow_twins_forward.1} parent=67 // pred_region
          %s12040 = ssub.s32 32, 32
          %12041 = vsyncadd [#allocation6], %s12040
          %s12043 = sshll.u32 [#allocation19], 4
          %s12044 = int_to_ptr.vmem [resolvable:$true] %s12043
          %12046 = dma.vmem_to_hbm [thread:$0]  %s12044, 32, %s14, [#allocation6]
        $region124: #{barlow_twins_forward.1} parent=67 // pred_fallthru
          _
        // Predicated region
        $region125: #{barlow_twins_forward.1} parent=67 // pred_check
          %p12047 = pneg %p335
        $region126: #{barlow_twins_forward.1} parent=67 // pred_check_branch
          %12049 = sbr.rel (%p12047) target = $region128
        $region127: #{barlow_twins_forward.1} parent=67 // pred_region
          _
        $region128: #{barlow_twins_forward.1} parent=67 // pred_fallthru
          _
        // Predicated region
        $region129: #{barlow_twins_forward.1} parent=67 // pred_check
          %p12050 = pneg %p356
        $region130: #{barlow_twins_forward.1} parent=67 // pred_check_branch
          %12052 = sbr.rel (%p12050) target = $region132
        $region131: #{barlow_twins_forward.1} parent=67 // pred_region
          %12053 = dma.done [#allocation6], 32
        $region132: #{barlow_twins_forward.1} parent=67 // pred_fallthru
          _
      $region68: #{barlow_twins_forward.1} parent=5 // pred_fallthru
        _
      %p12054 = scmp.le.s32.totalorder 2, %s29
      // Predicated region
      $region133: #{barlow_twins_forward.1} parent=5 // pred_check
        %p12055 = pneg %p12054
      $region134: #{barlow_twins_forward.1} parent=5 // pred_check_branch
        %12057 = sbr.rel (%p12055) target = $region136
      $region135: #{barlow_twins_forward.1} parent=5 // pred_region
        %s12058 = ssub.s32 %s29, 2
        // Predicated region
        $region137: #{barlow_twins_forward.1} parent=135 // pred_check
          %p12059 = pneg %p320
        $region138: #{barlow_twins_forward.1} parent=135 // pred_check_branch
          %12061 = sbr.rel (%p12059) target = $region140
        $region139: #{barlow_twins_forward.1} parent=135 // pred_region
          %s12062 = smul.u32 8, %s35
          %p12063 = scmp.lt.s32.totalorder %s12062, 15
          %s12064 = scalar_select %p12063, %s12062, 15
          %s12065 = smul.addr %s12064, 2
          %s12066 = scalar_lea.vmem %s12, %s12065
        $region140: #{barlow_twins_forward.1} parent=135 // pred_fallthru
          _
      $region136: #{barlow_twins_forward.1} parent=5 // pred_fallthru
        _
    $region6: #{barlow_twins_forward.1} parent=1 // loop_footer
      %s33 = sadd.s32 1, %s29
    $region7: #{barlow_twins_forward.1} parent=1 // loop_footer_branch
      %28 = sbr.rel target = $region3
    $region8: #{barlow_twins_forward.1} parent=1 // loop_exit
      _
    %12067 = vsyncpa [#allocation5], 1
    %s12068 = scalar_lea.sflag [#allocation5], 1
    %12069 = vsyncpa %s12068, 1
    %12070 = vsyncpa [#allocation8], 1
    %12071 = vsyncpa [#allocation11], 1
    %s12072 = scalar_lea.sflag [#allocation11], 1
    %12073 = vsyncpa %s12072, 1
    %12074 = vsyncpa [#allocation14], 1
    %12075 = vsyncpa [#allocation17], 1
    %12076 = vsyncpa [#allocation6], 1
    %s12077 = scalar_lea.sflag [#allocation6], 1
    %12078 = vsyncpa %s12077, 1

</llo_original>
